<compile_context>
chip_gen: v7x
topology: tpu7x:2x2x1
jax: 0.10.0
libtpu: 0.0.40
codegen_flags: <defaults>
</compile_context>

<pallas_src>
import functools
import math

import jax
import jax.numpy as jnp
from jax import lax
from jax.experimental import pallas as pl
from jax.experimental.pallas import tpu as pltpu


# ----------------------------------------------------------------------------
# Glue: makePatch equivalent (reshape/transpose only, no compute)
# ----------------------------------------------------------------------------
def make_patches(images, patch_size):
    """images (B, C, H, W) -> patches (B, seq_len, C*p*p), matching torch order."""
    B, C, H, W = images.shape
    rn, cn = H // patch_size, W // patch_size
    x = images.reshape(B, C, rn, patch_size, cn, patch_size)
    x = x.transpose(0, 2, 4, 1, 3, 5)  # (B, rn, cn, C, p, p) == Flatten(1,3) order
    return x.reshape(B, rn * cn, C * patch_size * patch_size)


# ----------------------------------------------------------------------------
# In-kernel helpers
# ----------------------------------------------------------------------------
def _layernorm(x, gamma, beta, eps=1e-5):
    mu = jnp.mean(x, axis=-1, keepdims=True)
    var = jnp.mean((x - mu) ** 2, axis=-1, keepdims=True)
    return (x - mu) * lax.rsqrt(var + eps) * gamma + beta


def _softmax_rows(s):
    s = s - jnp.max(s, axis=-1, keepdims=True)
    p = jnp.exp(s)
    # Approx reciprocal runs on the EUP slot (otherwise idle) instead of the VALU.
    return p * pl.reciprocal(jnp.sum(p, axis=-1, keepdims=True), approx=True)


# ----------------------------------------------------------------------------
# Fused forward kernel
# ----------------------------------------------------------------------------
def _vit_fused_kernel(
    patches_ref,            # (B*S, token_dim)
    clsp_ref,               # (B, E)        cls_token + pos_embds[:, 0]
    posr_ref,               # (B*S, E)      pos_embds[:, 1:]
    tokw_ref, tokb_ref,     # (token_dim,E), (1,E)
    wqkvo_ref, bqkvo_ref,   # (L,4,E,E), (L,4,1,E)   [q,k,v,o]
    wffn_ref, bffn_ref,     # (L,2,E,E), (L,2,1,E)   [w1,w2]
    lnp_ref,                # (L,4,1,E)              [ln1_g,ln1_b,ln2_g,ln2_b]
    outw_ref, outb_ref,     # (E,C), (1,C)
    o_ref,                  # (B, C)  output
    buf_sc,                 # VMEM scratch (B*(S+1), E)
    *, B, S, E, head_num, trans_num,
):
    S1 = S + 1
    dh = E // head_num
    scale = 1.0 / math.sqrt(dh)

    # ---- tokenize all patches of all batch elements in one matmul ----
    img = (jnp.dot(patches_ref[...], tokw_ref[...],
                   preferred_element_type=jnp.float32)
           + tokb_ref[...] + posr_ref[...])                      # (B*S, E)
    clsp = clsp_ref[...]                                          # (B, E)

    # ---- assemble the residual stream (B*S1, E): [cls_b ; patches_b] per batch ----
    for b in range(B):
        buf_sc[b * S1:b * S1 + 1, :] = clsp[b:b + 1, :]
        buf_sc[b * S1 + 1:(b + 1) * S1, :] = img[b * S:(b + 1) * S, :]
    x = buf_sc[...]                                               # (B*S1, E)

    # ---- transformer encoder stack, statically unrolled, weights resident ----
    for l in range(trans_num):
        q = jnp.dot(x, wqkvo_ref[l, 0], preferred_element_type=jnp.float32) + bqkvo_ref[l, 0]
        k = jnp.dot(x, wqkvo_ref[l, 1], preferred_element_type=jnp.float32) + bqkvo_ref[l, 1]
        v = jnp.dot(x, wqkvo_ref[l, 2], preferred_element_type=jnp.float32) + bqkvo_ref[l, 2]

        # Attention per (batch, head): tiny (S1 x S1) scores; context blocks are
        # written straight into the VMEM scratch slab (no concatenate, no .T).
        for b in range(B):
            r0 = b * S1
            for h in range(head_num):
                c0 = h * dh
                qh = q[r0:r0 + S1, c0:c0 + dh]
                kh = k[r0:r0 + S1, c0:c0 + dh]
                vh = v[r0:r0 + S1, c0:c0 + dh]
                s = lax.dot_general(qh, kh, (((1,), (1,)), ((), ())),
                                    preferred_element_type=jnp.float32) * scale
                p = _softmax_rows(s)
                buf_sc[r0:r0 + S1, c0:c0 + dh] = jnp.dot(
                    p, vh, preferred_element_type=jnp.float32)
        ctx = buf_sc[...]                                         # (B*S1, E)

        attn = jnp.dot(ctx, wqkvo_ref[l, 3],
                       preferred_element_type=jnp.float32) + bqkvo_ref[l, 3]
        # TODO(synk): Dropout(0.1) in TransformerEncoderV2 is identity at inference.
        y = _layernorm(x + attn, lnp_ref[l, 0], lnp_ref[l, 1])

        h1 = jnp.dot(y, wffn_ref[l, 0], preferred_element_type=jnp.float32) + bffn_ref[l, 0]
        # TODO(synk): tanh-approx GELU; PyTorch nn.GELU() default is the exact erf form.
        h1 = jax.nn.gelu(h1, approximate=True)
        f = jnp.dot(h1, wffn_ref[l, 1], preferred_element_type=jnp.float32) + bffn_ref[l, 1]
        x = _layernorm(y + f, lnp_ref[l, 2], lnp_ref[l, 3])

    # ---- classification head on the CLS row of each batch element ----
    ow = outw_ref[...]
    ob = outb_ref[...]
    for b in range(B):
        cls_row = x[b * S1:b * S1 + 1, :]                         # (1, E)
        o_ref[b:b + 1, :] = jnp.dot(cls_row, ow,
                                    preferred_element_type=jnp.float32) + ob


# ----------------------------------------------------------------------------
# Parameter packing (16 per-layer tensors -> 5 stacked slabs)
# ----------------------------------------------------------------------------
def pack_layer_params(layers):
    w_qkvo = jnp.stack([jnp.stack([lp["wq"], lp["wk"], lp["wv"], lp["wo"]])
                        for lp in layers])                               # (L,4,E,E)
    b_qkvo = jnp.stack([jnp.stack([lp["bq"], lp["bk"], lp["bv"], lp["bo"]])
                        for lp in layers])[:, :, None, :]                # (L,4,1,E)
    w_ffn = jnp.stack([jnp.stack([lp["w1"], lp["w2"]]) for lp in layers])   # (L,2,E,E)
    b_ffn = jnp.stack([jnp.stack([lp["b1"], lp["b2"]])
                       for lp in layers])[:, :, None, :]                 # (L,2,1,E)
    ln_p = jnp.stack([jnp.stack([lp["ln1_g"], lp["ln1_b"], lp["ln2_g"], lp["ln2_b"]])
                      for lp in layers])[:, :, None, :]                  # (L,4,1,E)
    return w_qkvo, b_qkvo, w_ffn, b_ffn, ln_p


# ----------------------------------------------------------------------------
# Full forward (mirrors VitLite.forward)
# ----------------------------------------------------------------------------
def vit_lite_forward(images, params, patch_size, head_num):
    patches = make_patches(images, patch_size)            # (B, S, token_dim)
    B, S, token_dim = patches.shape
    E = params["tok_w"].shape[1]
    L = len(params["layers"])
    num_classes = params["out_w"].shape[1]

    patches2d = patches.reshape(B * S, token_dim)
    # (cat(cls, img) + pos)[:, 0] == cls + pos[:, 0]; rows 1: get pos[:, 1:] in-kernel.
    cls_pos0 = params["cls_token"][:, 0, :] + params["pos_embds"][:, 0, :]   # (B, E)
    pos_rest2d = params["pos_embds"][:, 1:, :].reshape(B * S, E)

    w_qkvo, b_qkvo, w_ffn, b_ffn, ln_p = pack_layer_params(params["layers"])

    kernel = functools.partial(_vit_fused_kernel, B=B, S=S, E=E,
                               head_num=head_num, trans_num=L)
    return pl.pallas_call(
        kernel,
        out_shape=jax.ShapeDtypeStruct((B, num_classes), jnp.float32),
        scratch_shapes=[pltpu.VMEM((B * (S + 1), E), jnp.float32)],
    )(patches2d, cls_pos0, pos_rest2d,
      params["tok_w"], params["tok_b"].reshape(1, E),
      w_qkvo, b_qkvo, w_ffn, b_ffn, ln_p,
      params["out_w"], params["out_b"].reshape(1, num_classes))


# ----------------------------------------------------------------------------
# Deterministic parameter init (shapes follow VitLite.__init__)
# ----------------------------------------------------------------------------
def init_params(key, token_dim, emb_dim, seq_len, batch_size, trans_num,
                num_classes=10):
    keys = iter(jax.random.split(key, 4 + 6 * trans_num))

    def linear(k, din, dout):
        kw, kb = jax.random.split(k)
        lim = 1.0 / math.sqrt(din)
        w = jax.random.uniform(kw, (din, dout), jnp.float32, -lim, lim)
        b = jax.random.uniform(kb, (dout,), jnp.float32, -lim, lim)
        return w, b

    params = {
        "cls_token": jax.random.normal(next(keys), (batch_size, 1, emb_dim), jnp.float32),
        "pos_embds": jax.random.normal(next(keys), (batch_size, seq_len + 1, emb_dim), jnp.float32),
    }
    params["tok_w"], params["tok_b"] = linear(next(keys), token_dim, emb_dim)
    params["out_w"], params["out_b"] = linear(next(keys), emb_dim, num_classes)

    layers = []
    for _ in range(trans_num):
        lp = {}
        lp["wq"], lp["bq"] = linear(next(keys), emb_dim, emb_dim)
        lp["wk"], lp["bk"] = linear(next(keys), emb_dim, emb_dim)
        lp["wv"], lp["bv"] = linear(next(keys), emb_dim, emb_dim)
        lp["wo"], lp["bo"] = linear(next(keys), emb_dim, emb_dim)
        lp["w1"], lp["b1"] = linear(next(keys), emb_dim, emb_dim)
        lp["w2"], lp["b2"] = linear(next(keys), emb_dim, emb_dim)
        lp["ln1_g"] = jnp.ones((emb_dim,), jnp.float32)
        lp["ln1_b"] = jnp.zeros((emb_dim,), jnp.float32)
        lp["ln2_g"] = jnp.ones((emb_dim,), jnp.float32)
        lp["ln2_b"] = jnp.zeros((emb_dim,), jnp.float32)
        layers.append(lp)
    params["layers"] = layers
    return params


if __name__ == "__main__":
    # Small shapes consistent with the module.
    B, C, H, W = 2, 4, 16, 16
    patch_size = 4
    seq_len = (H // patch_size) * (W // patch_size)          # 16
    token_dim = C * patch_size * patch_size                  # 64
    emb_dim = 32
    head_num = 4
    trans_num = 2

    key = jax.random.PRNGKey(0)
    k_img, k_par = jax.random.split(key)
    images = jax.random.normal(k_img, (B, C, H, W), jnp.float32)
    params = init_params(k_par, token_dim, emb_dim, seq_len, B, trans_num)

    fwd = jax.jit(vit_lite_forward, static_argnums=(2, 3))
    logits = fwd(images, params, patch_size, head_num)
    logits = jax.block_until_ready(logits)
    assert logits.shape == (B, 10) and logits.dtype == jnp.float32
    print("KERNEL_OK")
</pallas_src>

<mosaic_0001>
module attributes {stable_mosaic.version = 11 : i64} {
  func.func @_vit_fused_kernel(%arg0: memref<32x64xf32, #tpu.memory_space<vmem>>, %arg1: memref<2x32xf32, #tpu.memory_space<vmem>>, %arg2: memref<32x32xf32, #tpu.memory_space<vmem>>, %arg3: memref<64x32xf32, #tpu.memory_space<vmem>>, %arg4: memref<1x32xf32, #tpu.memory_space<vmem>>, %arg5: memref<2x4x32x32xf32, #tpu.memory_space<vmem>>, %arg6: memref<2x4x1x32xf32, #tpu.memory_space<vmem>>, %arg7: memref<2x2x32x32xf32, #tpu.memory_space<vmem>>, %arg8: memref<2x2x1x32xf32, #tpu.memory_space<vmem>>, %arg9: memref<2x4x1x32xf32, #tpu.memory_space<vmem>>, %arg10: memref<32x10xf32, #tpu.memory_space<vmem>>, %arg11: memref<1x10xf32, #tpu.memory_space<vmem>>, %arg12: memref<2x10xf32, #tpu.memory_space<vmem>>, %arg13: memref<34x32xf32, #tpu.memory_space<vmem>>) attributes {dimension_semantics = [], scalar_prefetch = 0 : i64, scratch_operands = 1 : i64, tpu.core_type = #tpu.core_type<tc>} {
    %c0 = arith.constant 0 : index
    %c0_0 = arith.constant 0 : index
    %0 = vector.load %arg0[%c0, %c0_0] : memref<32x64xf32, #tpu.memory_space<vmem>>, vector<32x64xf32>
    %c0_1 = arith.constant 0 : index
    %c0_2 = arith.constant 0 : index
    %1 = vector.load %arg3[%c0_1, %c0_2] : memref<64x32xf32, #tpu.memory_space<vmem>>, vector<64x32xf32>
    %cst = arith.constant dense<0.000000e+00> : vector<32x32xf32>
    %2 = tpu.matmul %0, %1, %cst {dimension_numbers = #tpu.dot_dimension_numbers<[1], [0], [0], [1], [0, 0, 1, 1], [], []>} : vector<32x64xf32>, vector<64x32xf32>, vector<32x32xf32> -> vector<32x32xf32>
    %c0_3 = arith.constant 0 : index
    %c0_4 = arith.constant 0 : index
    %3 = vector.load %arg4[%c0_3, %c0_4] : memref<1x32xf32, #tpu.memory_space<vmem>>, vector<1x32xf32>
    %4 = vector.broadcast %3 : vector<1x32xf32> to vector<32x32xf32>
    %5 = arith.addf %2, %4 : vector<32x32xf32>
    %c0_5 = arith.constant 0 : index
    %c0_6 = arith.constant 0 : index
    %6 = vector.load %arg2[%c0_5, %c0_6] : memref<32x32xf32, #tpu.memory_space<vmem>>, vector<32x32xf32>
    %7 = arith.addf %5, %6 : vector<32x32xf32>
    %c0_7 = arith.constant 0 : index
    %c0_8 = arith.constant 0 : index
    %8 = vector.load %arg1[%c0_7, %c0_8] : memref<2x32xf32, #tpu.memory_space<vmem>>, vector<2x32xf32>
    %9 = vector.extract_strided_slice %8 {offsets = [0, 0], sizes = [1, 32], strides = [1, 1]} : vector<2x32xf32> to vector<1x32xf32>
    %c0_9 = arith.constant 0 : index
    %c0_10 = arith.constant 0 : index
    %10 = vector.load %arg13[%c0_9, %c0_10] : memref<34x32xf32, #tpu.memory_space<vmem>>, vector<1x32xf32>
    tpu.vector_store %arg13[%c0_9, %c0_10], %9 {strides = array<i32>} : memref<34x32xf32, #tpu.memory_space<vmem>>, vector<1x32xf32>,
    %11 = vector.extract_strided_slice %7 {offsets = [0, 0], sizes = [16, 32], strides = [1, 1]} : vector<32x32xf32> to vector<16x32xf32>
    %c1 = arith.constant 1 : index
    %c0_11 = arith.constant 0 : index
    %12 = vector.load %arg13[%c1, %c0_11] : memref<34x32xf32, #tpu.memory_space<vmem>>, vector<16x32xf32>
    tpu.vector_store %arg13[%c1, %c0_11], %11 {strides = array<i32>} : memref<34x32xf32, #tpu.memory_space<vmem>>, vector<16x32xf32>,
    %13 = vector.extract_strided_slice %8 {offsets = [1, 0], sizes = [1, 32], strides = [1, 1]} : vector<2x32xf32> to vector<1x32xf32>
    %c17 = arith.constant 17 : index
    %c0_12 = arith.constant 0 : index
    %14 = vector.load %arg13[%c17, %c0_12] : memref<34x32xf32, #tpu.memory_space<vmem>>, vector<1x32xf32>
    tpu.vector_store %arg13[%c17, %c0_12], %13 {strides = array<i32>} : memref<34x32xf32, #tpu.memory_space<vmem>>, vector<1x32xf32>,
    %15 = vector.extract_strided_slice %7 {offsets = [16, 0], sizes = [16, 32], strides = [1, 1]} : vector<32x32xf32> to vector<16x32xf32>
    %c18 = arith.constant 18 : index
    %c0_13 = arith.constant 0 : index
    %16 = vector.load %arg13[%c18, %c0_13] : memref<34x32xf32, #tpu.memory_space<vmem>>, vector<16x32xf32>
    tpu.vector_store %arg13[%c18, %c0_13], %15 {strides = array<i32>} : memref<34x32xf32, #tpu.memory_space<vmem>>, vector<16x32xf32>,
    %c0_14 = arith.constant 0 : index
    %c0_15 = arith.constant 0 : index
    %17 = vector.load %arg13[%c0_14, %c0_15] : memref<34x32xf32, #tpu.memory_space<vmem>>, vector<34x32xf32>
    %c0_16 = arith.constant 0 : index
    %c0_17 = arith.constant 0 : index
    %c0_18 = arith.constant 0 : index
    %c0_19 = arith.constant 0 : index
    %18 = vector.load %arg5[%c0_16, %c0_17, %c0_18, %c0_19] : memref<2x4x32x32xf32, #tpu.memory_space<vmem>>, vector<1x1x32x32xf32>
    %19 = vector.shape_cast %18 : vector<1x1x32x32xf32> to vector<32x32xf32>
    %cst_20 = arith.constant dense<0.000000e+00> : vector<34x32xf32>
    %20 = tpu.matmul %17, %19, %cst_20 {dimension_numbers = #tpu.dot_dimension_numbers<[1], [0], [0], [1], [0, 0, 1, 1], [], []>} : vector<34x32xf32>, vector<32x32xf32>, vector<34x32xf32> -> vector<34x32xf32>
    %c0_21 = arith.constant 0 : index
    %c0_22 = arith.constant 0 : index
    %c0_23 = arith.constant 0 : index
    %c0_24 = arith.constant 0 : index
    %21 = vector.load %arg6[%c0_21, %c0_22, %c0_23, %c0_24] : memref<2x4x1x32xf32, #tpu.memory_space<vmem>>, vector<1x1x1x32xf32>
    %22 = vector.shape_cast %21 : vector<1x1x1x32xf32> to vector<1x32xf32>
    %23 = vector.broadcast %22 : vector<1x32xf32> to vector<34x32xf32>
    %24 = arith.addf %20, %23 : vector<34x32xf32>
    %c0_25 = arith.constant 0 : index
    %c1_26 = arith.constant 1 : index
    %c0_27 = arith.constant 0 : index
    %c0_28 = arith.constant 0 : index
    %25 = vector.load %arg5[%c0_25, %c1_26, %c0_27, %c0_28] : memref<2x4x32x32xf32, #tpu.memory_space<vmem>>, vector<1x1x32x32xf32>
    %26 = vector.shape_cast %25 : vector<1x1x32x32xf32> to vector<32x32xf32>
    %cst_29 = arith.constant dense<0.000000e+00> : vector<34x32xf32>
    %27 = tpu.matmul %17, %26, %cst_29 {dimension_numbers = #tpu.dot_dimension_numbers<[1], [0], [0], [1], [0, 0, 1, 1], [], []>} : vector<34x32xf32>, vector<32x32xf32>, vector<34x32xf32> -> vector<34x32xf32>
    %c0_30 = arith.constant 0 : index
    %c1_31 = arith.constant 1 : index
    %c0_32 = arith.constant 0 : index
    %c0_33 = arith.constant 0 : index
    %28 = vector.load %arg6[%c0_30, %c1_31, %c0_32, %c0_33] : memref<2x4x1x32xf32, #tpu.memory_space<vmem>>, vector<1x1x1x32xf32>
    %29 = vector.shape_cast %28 : vector<1x1x1x32xf32> to vector<1x32xf32>
    %30 = vector.broadcast %29 : vector<1x32xf32> to vector<34x32xf32>
    %31 = arith.addf %27, %30 : vector<34x32xf32>
    %c0_34 = arith.constant 0 : index
    %c2 = arith.constant 2 : index
    %c0_35 = arith.constant 0 : index
    %c0_36 = arith.constant 0 : index
    %32 = vector.load %arg5[%c0_34, %c2, %c0_35, %c0_36] : memref<2x4x32x32xf32, #tpu.memory_space<vmem>>, vector<1x1x32x32xf32>
    %33 = vector.shape_cast %32 : vector<1x1x32x32xf32> to vector<32x32xf32>
    %cst_37 = arith.constant dense<0.000000e+00> : vector<34x32xf32>
    %34 = tpu.matmul %17, %33, %cst_37 {dimension_numbers = #tpu.dot_dimension_numbers<[1], [0], [0], [1], [0, 0, 1, 1], [], []>} : vector<34x32xf32>, vector<32x32xf32>, vector<34x32xf32> -> vector<34x32xf32>
    %c0_38 = arith.constant 0 : index
    %c2_39 = arith.constant 2 : index
    %c0_40 = arith.constant 0 : index
    %c0_41 = arith.constant 0 : index
    %35 = vector.load %arg6[%c0_38, %c2_39, %c0_40, %c0_41] : memref<2x4x1x32xf32, #tpu.memory_space<vmem>>, vector<1x1x1x32xf32>
    %36 = vector.shape_cast %35 : vector<1x1x1x32xf32> to vector<1x32xf32>
    %37 = vector.broadcast %36 : vector<1x32xf32> to vector<34x32xf32>
    %38 = arith.addf %34, %37 : vector<34x32xf32>
    %39 = vector.extract_strided_slice %24 {offsets = [0, 0], sizes = [17, 8], strides = [1, 1]} : vector<34x32xf32> to vector<17x8xf32>
    %40 = vector.extract_strided_slice %31 {offsets = [0, 0], sizes = [17, 8], strides = [1, 1]} : vector<34x32xf32> to vector<17x8xf32>
    %41 = vector.extract_strided_slice %38 {offsets = [0, 0], sizes = [17, 8], strides = [1, 1]} : vector<34x32xf32> to vector<17x8xf32>
    %cst_42 = arith.constant dense<0.000000e+00> : vector<17x17xf32>
    %42 = tpu.matmul %39, %40, %cst_42 {dimension_numbers = #tpu.dot_dimension_numbers<[1], [1], [0], [0], [0, 0, 1, 0], [], []>} : vector<17x8xf32>, vector<17x8xf32>, vector<17x17xf32> -> vector<17x17xf32>
    %cst_43 = arith.constant 0.353553385 : f32
    %43 = vector.broadcast %cst_43 : f32 to vector<17x17xf32>
    %44 = arith.mulf %42, %43 : vector<17x17xf32>
    %cst_44 = arith.constant dense<0xFF800000> : vector<17xf32>
    %45 = vector.multi_reduction <maximumf>, %44, %cst_44 [1] : vector<17x17xf32> to vector<17xf32>
    %46 = vector.shape_cast %45 : vector<17xf32> to vector<17x1xf32>
    %47 = vector.broadcast %46 : vector<17x1xf32> to vector<17x17xf32>
    %48 = arith.subf %44, %47 : vector<17x17xf32>
    %49 = math.exp %48 : vector<17x17xf32>
    %cst_45 = arith.constant dense<0.000000e+00> : vector<17xf32>
    %50 = vector.multi_reduction <add>, %49, %cst_45 [1] : vector<17x17xf32> to vector<17xf32>
    %51 = vector.shape_cast %50 : vector<17xf32> to vector<17x1xf32>
    %52 = tpu.reciprocal %51 {approx = true} : vector<17x1xf32> -> vector<17x1xf32>
    %53 = vector.broadcast %52 : vector<17x1xf32> to vector<17x17xf32>
    %54 = arith.mulf %49, %53 : vector<17x17xf32>
    %cst_46 = arith.constant dense<0.000000e+00> : vector<17x8xf32>
    %55 = tpu.matmul %54, %41, %cst_46 {dimension_numbers = #tpu.dot_dimension_numbers<[1], [0], [0], [1], [0, 0, 1, 1], [], []>} : vector<17x17xf32>, vector<17x8xf32>, vector<17x8xf32> -> vector<17x8xf32>
    %c0_47 = arith.constant 0 : index
    %c0_48 = arith.constant 0 : index
    %56 = vector.load %arg13[%c0_47, %c0_48] : memref<34x32xf32, #tpu.memory_space<vmem>>, vector<17x8xf32>
    tpu.vector_store %arg13[%c0_47, %c0_48], %55 {strides = array<i32>} : memref<34x32xf32, #tpu.memory_space<vmem>>, vector<17x8xf32>,
    %57 = vector.extract_strided_slice %24 {offsets = [0, 8], sizes = [17, 8], strides = [1, 1]} : vector<34x32xf32> to vector<17x8xf32>
    %58 = vector.extract_strided_slice %31 {offsets = [0, 8], sizes = [17, 8], strides = [1, 1]} : vector<34x32xf32> to vector<17x8xf32>
    %59 = vector.extract_strided_slice %38 {offsets = [0, 8], sizes = [17, 8], strides = [1, 1]} : vector<34x32xf32> to vector<17x8xf32>
    %cst_49 = arith.constant dense<0.000000e+00> : vector<17x17xf32>
    %60 = tpu.matmul %57, %58, %cst_49 {dimension_numbers = #tpu.dot_dimension_numbers<[1], [1], [0], [0], [0, 0, 1, 0], [], []>} : vector<17x8xf32>, vector<17x8xf32>, vector<17x17xf32> -> vector<17x17xf32>
    %cst_50 = arith.constant 0.353553385 : f32
    %61 = vector.broadcast %cst_50 : f32 to vector<17x17xf32>
    %62 = arith.mulf %60, %61 : vector<17x17xf32>
    %cst_51 = arith.constant dense<0xFF800000> : vector<17xf32>
    %63 = vector.multi_reduction <maximumf>, %62, %cst_51 [1] : vector<17x17xf32> to vector<17xf32>
    %64 = vector.shape_cast %63 : vector<17xf32> to vector<17x1xf32>
    %65 = vector.broadcast %64 : vector<17x1xf32> to vector<17x17xf32>
    %66 = arith.subf %62, %65 : vector<17x17xf32>
    %67 = math.exp %66 : vector<17x17xf32>
    %cst_52 = arith.constant dense<0.000000e+00> : vector<17xf32>
    %68 = vector.multi_reduction <add>, %67, %cst_52 [1] : vector<17x17xf32> to vector<17xf32>
    %69 = vector.shape_cast %68 : vector<17xf32> to vector<17x1xf32>
    %70 = tpu.reciprocal %69 {approx = true} : vector<17x1xf32> -> vector<17x1xf32>
    %71 = vector.broadcast %70 : vector<17x1xf32> to vector<17x17xf32>
    %72 = arith.mulf %67, %71 : vector<17x17xf32>
    %cst_53 = arith.constant dense<0.000000e+00> : vector<17x8xf32>
    %73 = tpu.matmul %72, %59, %cst_53 {dimension_numbers = #tpu.dot_dimension_numbers<[1], [0], [0], [1], [0, 0, 1, 1], [], []>} : vector<17x17xf32>, vector<17x8xf32>, vector<17x8xf32> -> vector<17x8xf32>
    %c0_54 = arith.constant 0 : index
    %c8 = arith.constant 8 : index
    %74 = vector.load %arg13[%c0_54, %c8] : memref<34x32xf32, #tpu.memory_space<vmem>>, vector<17x8xf32>
    tpu.vector_store %arg13[%c0_54, %c8], %73 {strides = array<i32>} : memref<34x32xf32, #tpu.memory_space<vmem>>, vector<17x8xf32>,
    %75 = vector.extract_strided_slice %24 {offsets = [0, 16], sizes = [17, 8], strides = [1, 1]} : vector<34x32xf32> to vector<17x8xf32>
    %76 = vector.extract_strided_slice %31 {offsets = [0, 16], sizes = [17, 8], strides = [1, 1]} : vector<34x32xf32> to vector<17x8xf32>
    %77 = vector.extract_strided_slice %38 {offsets = [0, 16], sizes = [17, 8], strides = [1, 1]} : vector<34x32xf32> to vector<17x8xf32>
    %cst_55 = arith.constant dense<0.000000e+00> : vector<17x17xf32>
    %78 = tpu.matmul %75, %76, %cst_55 {dimension_numbers = #tpu.dot_dimension_numbers<[1], [1], [0], [0], [0, 0, 1, 0], [], []>} : vector<17x8xf32>, vector<17x8xf32>, vector<17x17xf32> -> vector<17x17xf32>
    %cst_56 = arith.constant 0.353553385 : f32
    %79 = vector.broadcast %cst_56 : f32 to vector<17x17xf32>
    %80 = arith.mulf %78, %79 : vector<17x17xf32>
    %cst_57 = arith.constant dense<0xFF800000> : vector<17xf32>
    %81 = vector.multi_reduction <maximumf>, %80, %cst_57 [1] : vector<17x17xf32> to vector<17xf32>
    %82 = vector.shape_cast %81 : vector<17xf32> to vector<17x1xf32>
    %83 = vector.broadcast %82 : vector<17x1xf32> to vector<17x17xf32>
    %84 = arith.subf %80, %83 : vector<17x17xf32>
    %85 = math.exp %84 : vector<17x17xf32>
    %cst_58 = arith.constant dense<0.000000e+00> : vector<17xf32>
    %86 = vector.multi_reduction <add>, %85, %cst_58 [1] : vector<17x17xf32> to vector<17xf32>
    %87 = vector.shape_cast %86 : vector<17xf32> to vector<17x1xf32>
    %88 = tpu.reciprocal %87 {approx = true} : vector<17x1xf32> -> vector<17x1xf32>
    %89 = vector.broadcast %88 : vector<17x1xf32> to vector<17x17xf32>
    %90 = arith.mulf %85, %89 : vector<17x17xf32>
    %cst_59 = arith.constant dense<0.000000e+00> : vector<17x8xf32>
    %91 = tpu.matmul %90, %77, %cst_59 {dimension_numbers = #tpu.dot_dimension_numbers<[1], [0], [0], [1], [0, 0, 1, 1], [], []>} : vector<17x17xf32>, vector<17x8xf32>, vector<17x8xf32> -> vector<17x8xf32>
    %c0_60 = arith.constant 0 : index
    %c16 = arith.constant 16 : index
    %92 = vector.load %arg13[%c0_60, %c16] : memref<34x32xf32, #tpu.memory_space<vmem>>, vector<17x8xf32>
    tpu.vector_store %arg13[%c0_60, %c16], %91 {strides = array<i32>} : memref<34x32xf32, #tpu.memory_space<vmem>>, vector<17x8xf32>,
    %93 = vector.extract_strided_slice %24 {offsets = [0, 24], sizes = [17, 8], strides = [1, 1]} : vector<34x32xf32> to vector<17x8xf32>
    %94 = vector.extract_strided_slice %31 {offsets = [0, 24], sizes = [17, 8], strides = [1, 1]} : vector<34x32xf32> to vector<17x8xf32>
    %95 = vector.extract_strided_slice %38 {offsets = [0, 24], sizes = [17, 8], strides = [1, 1]} : vector<34x32xf32> to vector<17x8xf32>
    %cst_61 = arith.constant dense<0.000000e+00> : vector<17x17xf32>
    %96 = tpu.matmul %93, %94, %cst_61 {dimension_numbers = #tpu.dot_dimension_numbers<[1], [1], [0], [0], [0, 0, 1, 0], [], []>} : vector<17x8xf32>, vector<17x8xf32>, vector<17x17xf32> -> vector<17x17xf32>
    %cst_62 = arith.constant 0.353553385 : f32
    %97 = vector.broadcast %cst_62 : f32 to vector<17x17xf32>
    %98 = arith.mulf %96, %97 : vector<17x17xf32>
    %cst_63 = arith.constant dense<0xFF800000> : vector<17xf32>
    %99 = vector.multi_reduction <maximumf>, %98, %cst_63 [1] : vector<17x17xf32> to vector<17xf32>
    %100 = vector.shape_cast %99 : vector<17xf32> to vector<17x1xf32>
    %101 = vector.broadcast %100 : vector<17x1xf32> to vector<17x17xf32>
    %102 = arith.subf %98, %101 : vector<17x17xf32>
    %103 = math.exp %102 : vector<17x17xf32>
    %cst_64 = arith.constant dense<0.000000e+00> : vector<17xf32>
    %104 = vector.multi_reduction <add>, %103, %cst_64 [1] : vector<17x17xf32> to vector<17xf32>
    %105 = vector.shape_cast %104 : vector<17xf32> to vector<17x1xf32>
    %106 = tpu.reciprocal %105 {approx = true} : vector<17x1xf32> -> vector<17x1xf32>
    %107 = vector.broadcast %106 : vector<17x1xf32> to vector<17x17xf32>
    %108 = arith.mulf %103, %107 : vector<17x17xf32>
    %cst_65 = arith.constant dense<0.000000e+00> : vector<17x8xf32>
    %109 = tpu.matmul %108, %95, %cst_65 {dimension_numbers = #tpu.dot_dimension_numbers<[1], [0], [0], [1], [0, 0, 1, 1], [], []>} : vector<17x17xf32>, vector<17x8xf32>, vector<17x8xf32> -> vector<17x8xf32>
    %c0_66 = arith.constant 0 : index
    %c24 = arith.constant 24 : index
    %110 = vector.load %arg13[%c0_66, %c24] : memref<34x32xf32, #tpu.memory_space<vmem>>, vector<17x8xf32>
    tpu.vector_store %arg13[%c0_66, %c24], %109 {strides = array<i32>} : memref<34x32xf32, #tpu.memory_space<vmem>>, vector<17x8xf32>,
    %111 = vector.extract_strided_slice %24 {offsets = [17, 0], sizes = [17, 8], strides = [1, 1]} : vector<34x32xf32> to vector<17x8xf32>
    %112 = vector.extract_strided_slice %31 {offsets = [17, 0], sizes = [17, 8], strides = [1, 1]} : vector<34x32xf32> to vector<17x8xf32>
    %113 = vector.extract_strided_slice %38 {offsets = [17, 0], sizes = [17, 8], strides = [1, 1]} : vector<34x32xf32> to vector<17x8xf32>
    %cst_67 = arith.constant dense<0.000000e+00> : vector<17x17xf32>
    %114 = tpu.matmul %111, %112, %cst_67 {dimension_numbers = #tpu.dot_dimension_numbers<[1], [1], [0], [0], [0, 0, 1, 0], [], []>} : vector<17x8xf32>, vector<17x8xf32>, vector<17x17xf32> -> vector<17x17xf32>
    %cst_68 = arith.constant 0.353553385 : f32
    %115 = vector.broadcast %cst_68 : f32 to vector<17x17xf32>
    %116 = arith.mulf %114, %115 : vector<17x17xf32>
    %cst_69 = arith.constant dense<0xFF800000> : vector<17xf32>
    %117 = vector.multi_reduction <maximumf>, %116, %cst_69 [1] : vector<17x17xf32> to vector<17xf32>
    %118 = vector.shape_cast %117 : vector<17xf32> to vector<17x1xf32>
    %119 = vector.broadcast %118 : vector<17x1xf32> to vector<17x17xf32>
    %120 = arith.subf %116, %119 : vector<17x17xf32>
    %121 = math.exp %120 : vector<17x17xf32>
    %cst_70 = arith.constant dense<0.000000e+00> : vector<17xf32>
    %122 = vector.multi_reduction <add>, %121, %cst_70 [1] : vector<17x17xf32> to vector<17xf32>
    %123 = vector.shape_cast %122 : vector<17xf32> to vector<17x1xf32>
    %124 = tpu.reciprocal %123 {approx = true} : vector<17x1xf32> -> vector<17x1xf32>
    %125 = vector.broadcast %124 : vector<17x1xf32> to vector<17x17xf32>
    %126 = arith.mulf %121, %125 : vector<17x17xf32>
    %cst_71 = arith.constant dense<0.000000e+00> : vector<17x8xf32>
    %127 = tpu.matmul %126, %113, %cst_71 {dimension_numbers = #tpu.dot_dimension_numbers<[1], [0], [0], [1], [0, 0, 1, 1], [], []>} : vector<17x17xf32>, vector<17x8xf32>, vector<17x8xf32> -> vector<17x8xf32>
    %c17_72 = arith.constant 17 : index
    %c0_73 = arith.constant 0 : index
    %128 = vector.load %arg13[%c17_72, %c0_73] : memref<34x32xf32, #tpu.memory_space<vmem>>, vector<17x8xf32>
    tpu.vector_store %arg13[%c17_72, %c0_73], %127 {strides = array<i32>} : memref<34x32xf32, #tpu.memory_space<vmem>>, vector<17x8xf32>,
    %129 = vector.extract_strided_slice %24 {offsets = [17, 8], sizes = [17, 8], strides = [1, 1]} : vector<34x32xf32> to vector<17x8xf32>
    %130 = vector.extract_strided_slice %31 {offsets = [17, 8], sizes = [17, 8], strides = [1, 1]} : vector<34x32xf32> to vector<17x8xf32>
    %131 = vector.extract_strided_slice %38 {offsets = [17, 8], sizes = [17, 8], strides = [1, 1]} : vector<34x32xf32> to vector<17x8xf32>
    %cst_74 = arith.constant dense<0.000000e+00> : vector<17x17xf32>
    %132 = tpu.matmul %129, %130, %cst_74 {dimension_numbers = #tpu.dot_dimension_numbers<[1], [1], [0], [0], [0, 0, 1, 0], [], []>} : vector<17x8xf32>, vector<17x8xf32>, vector<17x17xf32> -> vector<17x17xf32>
    %cst_75 = arith.constant 0.353553385 : f32
    %133 = vector.broadcast %cst_75 : f32 to vector<17x17xf32>
    %134 = arith.mulf %132, %133 : vector<17x17xf32>
    %cst_76 = arith.constant dense<0xFF800000> : vector<17xf32>
    %135 = vector.multi_reduction <maximumf>, %134, %cst_76 [1] : vector<17x17xf32> to vector<17xf32>
    %136 = vector.shape_cast %135 : vector<17xf32> to vector<17x1xf32>
    %137 = vector.broadcast %136 : vector<17x1xf32> to vector<17x17xf32>
    %138 = arith.subf %134, %137 : vector<17x17xf32>
    %139 = math.exp %138 : vector<17x17xf32>
    %cst_77 = arith.constant dense<0.000000e+00> : vector<17xf32>
    %140 = vector.multi_reduction <add>, %139, %cst_77 [1] : vector<17x17xf32> to vector<17xf32>
    %141 = vector.shape_cast %140 : vector<17xf32> to vector<17x1xf32>
    %142 = tpu.reciprocal %141 {approx = true} : vector<17x1xf32> -> vector<17x1xf32>
    %143 = vector.broadcast %142 : vector<17x1xf32> to vector<17x17xf32>
    %144 = arith.mulf %139, %143 : vector<17x17xf32>
    %cst_78 = arith.constant dense<0.000000e+00> : vector<17x8xf32>
    %145 = tpu.matmul %144, %131, %cst_78 {dimension_numbers = #tpu.dot_dimension_numbers<[1], [0], [0], [1], [0, 0, 1, 1], [], []>} : vector<17x17xf32>, vector<17x8xf32>, vector<17x8xf32> -> vector<17x8xf32>
    %c17_79 = arith.constant 17 : index
    %c8_80 = arith.constant 8 : index
    %146 = vector.load %arg13[%c17_79, %c8_80] : memref<34x32xf32, #tpu.memory_space<vmem>>, vector<17x8xf32>
    tpu.vector_store %arg13[%c17_79, %c8_80], %145 {strides = array<i32>} : memref<34x32xf32, #tpu.memory_space<vmem>>, vector<17x8xf32>,
    %147 = vector.extract_strided_slice %24 {offsets = [17, 16], sizes = [17, 8], strides = [1, 1]} : vector<34x32xf32> to vector<17x8xf32>
    %148 = vector.extract_strided_slice %31 {offsets = [17, 16], sizes = [17, 8], strides = [1, 1]} : vector<34x32xf32> to vector<17x8xf32>
    %149 = vector.extract_strided_slice %38 {offsets = [17, 16], sizes = [17, 8], strides = [1, 1]} : vector<34x32xf32> to vector<17x8xf32>
    %cst_81 = arith.constant dense<0.000000e+00> : vector<17x17xf32>
    %150 = tpu.matmul %147, %148, %cst_81 {dimension_numbers = #tpu.dot_dimension_numbers<[1], [1], [0], [0], [0, 0, 1, 0], [], []>} : vector<17x8xf32>, vector<17x8xf32>, vector<17x17xf32> -> vector<17x17xf32>
    %cst_82 = arith.constant 0.353553385 : f32
    %151 = vector.broadcast %cst_82 : f32 to vector<17x17xf32>
    %152 = arith.mulf %150, %151 : vector<17x17xf32>
    %cst_83 = arith.constant dense<0xFF800000> : vector<17xf32>
    %153 = vector.multi_reduction <maximumf>, %152, %cst_83 [1] : vector<17x17xf32> to vector<17xf32>
    %154 = vector.shape_cast %153 : vector<17xf32> to vector<17x1xf32>
    %155 = vector.broadcast %154 : vector<17x1xf32> to vector<17x17xf32>
    %156 = arith.subf %152, %155 : vector<17x17xf32>
    %157 = math.exp %156 : vector<17x17xf32>
    %cst_84 = arith.constant dense<0.000000e+00> : vector<17xf32>
    %158 = vector.multi_reduction <add>, %157, %cst_84 [1] : vector<17x17xf32> to vector<17xf32>
    %159 = vector.shape_cast %158 : vector<17xf32> to vector<17x1xf32>
    %160 = tpu.reciprocal %159 {approx = true} : vector<17x1xf32> -> vector<17x1xf32>
    %161 = vector.broadcast %160 : vector<17x1xf32> to vector<17x17xf32>
    %162 = arith.mulf %157, %161 : vector<17x17xf32>
    %cst_85 = arith.constant dense<0.000000e+00> : vector<17x8xf32>
    %163 = tpu.matmul %162, %149, %cst_85 {dimension_numbers = #tpu.dot_dimension_numbers<[1], [0], [0], [1], [0, 0, 1, 1], [], []>} : vector<17x17xf32>, vector<17x8xf32>, vector<17x8xf32> -> vector<17x8xf32>
    %c17_86 = arith.constant 17 : index
    %c16_87 = arith.constant 16 : index
    %164 = vector.load %arg13[%c17_86, %c16_87] : memref<34x32xf32, #tpu.memory_space<vmem>>, vector<17x8xf32>
    tpu.vector_store %arg13[%c17_86, %c16_87], %163 {strides = array<i32>} : memref<34x32xf32, #tpu.memory_space<vmem>>, vector<17x8xf32>,
    %165 = vector.extract_strided_slice %24 {offsets = [17, 24], sizes = [17, 8], strides = [1, 1]} : vector<34x32xf32> to vector<17x8xf32>
    %166 = vector.extract_strided_slice %31 {offsets = [17, 24], sizes = [17, 8], strides = [1, 1]} : vector<34x32xf32> to vector<17x8xf32>
    %167 = vector.extract_strided_slice %38 {offsets = [17, 24], sizes = [17, 8], strides = [1, 1]} : vector<34x32xf32> to vector<17x8xf32>
    %cst_88 = arith.constant dense<0.000000e+00> : vector<17x17xf32>
    %168 = tpu.matmul %165, %166, %cst_88 {dimension_numbers = #tpu.dot_dimension_numbers<[1], [1], [0], [0], [0, 0, 1, 0], [], []>} : vector<17x8xf32>, vector<17x8xf32>, vector<17x17xf32> -> vector<17x17xf32>
    %cst_89 = arith.constant 0.353553385 : f32
    %169 = vector.broadcast %cst_89 : f32 to vector<17x17xf32>
    %170 = arith.mulf %168, %169 : vector<17x17xf32>
    %cst_90 = arith.constant dense<0xFF800000> : vector<17xf32>
    %171 = vector.multi_reduction <maximumf>, %170, %cst_90 [1] : vector<17x17xf32> to vector<17xf32>
    %172 = vector.shape_cast %171 : vector<17xf32> to vector<17x1xf32>
    %173 = vector.broadcast %172 : vector<17x1xf32> to vector<17x17xf32>
    %174 = arith.subf %170, %173 : vector<17x17xf32>
    %175 = math.exp %174 : vector<17x17xf32>
    %cst_91 = arith.constant dense<0.000000e+00> : vector<17xf32>
    %176 = vector.multi_reduction <add>, %175, %cst_91 [1] : vector<17x17xf32> to vector<17xf32>
    %177 = vector.shape_cast %176 : vector<17xf32> to vector<17x1xf32>
    %178 = tpu.reciprocal %177 {approx = true} : vector<17x1xf32> -> vector<17x1xf32>
    %179 = vector.broadcast %178 : vector<17x1xf32> to vector<17x17xf32>
    %180 = arith.mulf %175, %179 : vector<17x17xf32>
    %cst_92 = arith.constant dense<0.000000e+00> : vector<17x8xf32>
    %181 = tpu.matmul %180, %167, %cst_92 {dimension_numbers = #tpu.dot_dimension_numbers<[1], [0], [0], [1], [0, 0, 1, 1], [], []>} : vector<17x17xf32>, vector<17x8xf32>, vector<17x8xf32> -> vector<17x8xf32>
    %c17_93 = arith.constant 17 : index
    %c24_94 = arith.constant 24 : index
    %182 = vector.load %arg13[%c17_93, %c24_94] : memref<34x32xf32, #tpu.memory_space<vmem>>, vector<17x8xf32>
    tpu.vector_store %arg13[%c17_93, %c24_94], %181 {strides = array<i32>} : memref<34x32xf32, #tpu.memory_space<vmem>>, vector<17x8xf32>,
    %c0_95 = arith.constant 0 : index
    %c0_96 = arith.constant 0 : index
    %183 = vector.load %arg13[%c0_95, %c0_96] : memref<34x32xf32, #tpu.memory_space<vmem>>, vector<34x32xf32>
    %c0_97 = arith.constant 0 : index
    %c3 = arith.constant 3 : index
    %c0_98 = arith.constant 0 : index
    %c0_99 = arith.constant 0 : index
    %184 = vector.load %arg5[%c0_97, %c3, %c0_98, %c0_99] : memref<2x4x32x32xf32, #tpu.memory_space<vmem>>, vector<1x1x32x32xf32>
    %185 = vector.shape_cast %184 : vector<1x1x32x32xf32> to vector<32x32xf32>
    %cst_100 = arith.constant dense<0.000000e+00> : vector<34x32xf32>
    %186 = tpu.matmul %183, %185, %cst_100 {dimension_numbers = #tpu.dot_dimension_numbers<[1], [0], [0], [1], [0, 0, 1, 1], [], []>} : vector<34x32xf32>, vector<32x32xf32>, vector<34x32xf32> -> vector<34x32xf32>
    %c0_101 = arith.constant 0 : index
    %c3_102 = arith.constant 3 : index
    %c0_103 = arith.constant 0 : index
    %c0_104 = arith.constant 0 : index
    %187 = vector.load %arg6[%c0_101, %c3_102, %c0_103, %c0_104] : memref<2x4x1x32xf32, #tpu.memory_space<vmem>>, vector<1x1x1x32xf32>
    %188 = vector.shape_cast %187 : vector<1x1x1x32xf32> to vector<1x32xf32>
    %189 = vector.broadcast %188 : vector<1x32xf32> to vector<34x32xf32>
    %190 = arith.addf %186, %189 : vector<34x32xf32>
    %191 = arith.addf %17, %190 : vector<34x32xf32>
    %c0_105 = arith.constant 0 : index
    %c0_106 = arith.constant 0 : index
    %c0_107 = arith.constant 0 : index
    %c0_108 = arith.constant 0 : index
    %192 = vector.load %arg9[%c0_105, %c0_106, %c0_107, %c0_108] : memref<2x4x1x32xf32, #tpu.memory_space<vmem>>, vector<1x1x1x32xf32>
    %193 = vector.shape_cast %192 : vector<1x1x1x32xf32> to vector<1x32xf32>
    %c0_109 = arith.constant 0 : index
    %c1_110 = arith.constant 1 : index
    %c0_111 = arith.constant 0 : index
    %c0_112 = arith.constant 0 : index
    %194 = vector.load %arg9[%c0_109, %c1_110, %c0_111, %c0_112] : memref<2x4x1x32xf32, #tpu.memory_space<vmem>>, vector<1x1x1x32xf32>
    %195 = vector.shape_cast %194 : vector<1x1x1x32xf32> to vector<1x32xf32>
    %cst_113 = arith.constant dense<0.000000e+00> : vector<34xf32>
    %196 = vector.multi_reduction <add>, %191, %cst_113 [1] : vector<34x32xf32> to vector<34xf32>
    %197 = vector.shape_cast %196 : vector<34xf32> to vector<34x1xf32>
    %cst_114 = arith.constant 3.200000e+01 : f32
    %198 = vector.broadcast %cst_114 : f32 to vector<34x1xf32>
    %199 = arith.divf %197, %198 : vector<34x1xf32>
    %200 = vector.broadcast %199 : vector<34x1xf32> to vector<34x32xf32>
    %201 = arith.subf %191, %200 : vector<34x32xf32>
    %202 = arith.mulf %201, %201 : vector<34x32xf32>
    %cst_115 = arith.constant dense<0.000000e+00> : vector<34xf32>
    %203 = vector.multi_reduction <add>, %202, %cst_115 [1] : vector<34x32xf32> to vector<34xf32>
    %204 = vector.shape_cast %203 : vector<34xf32> to vector<34x1xf32>
    %cst_116 = arith.constant 3.200000e+01 : f32
    %205 = vector.broadcast %cst_116 : f32 to vector<34x1xf32>
    %206 = arith.divf %204, %205 : vector<34x1xf32>
    %207 = vector.broadcast %199 : vector<34x1xf32> to vector<34x32xf32>
    %208 = arith.subf %191, %207 : vector<34x32xf32>
    %cst_117 = arith.constant 9.99999974E-6 : f32
    %209 = vector.broadcast %cst_117 : f32 to vector<34x1xf32>
    %210 = arith.addf %206, %209 : vector<34x1xf32>
    %211 = math.rsqrt %210 : vector<34x1xf32>
    %212 = vector.broadcast %211 : vector<34x1xf32> to vector<34x32xf32>
    %213 = arith.mulf %208, %212 : vector<34x32xf32>
    %214 = vector.broadcast %193 : vector<1x32xf32> to vector<34x32xf32>
    %215 = arith.mulf %213, %214 : vector<34x32xf32>
    %216 = vector.broadcast %195 : vector<1x32xf32> to vector<34x32xf32>
    %217 = arith.addf %215, %216 : vector<34x32xf32>
    %c0_118 = arith.constant 0 : index
    %c0_119 = arith.constant 0 : index
    %c0_120 = arith.constant 0 : index
    %c0_121 = arith.constant 0 : index
    %218 = vector.load %arg7[%c0_118, %c0_119, %c0_120, %c0_121] : memref<2x2x32x32xf32, #tpu.memory_space<vmem>>, vector<1x1x32x32xf32>
    %219 = vector.shape_cast %218 : vector<1x1x32x32xf32> to vector<32x32xf32>
    %cst_122 = arith.constant dense<0.000000e+00> : vector<34x32xf32>
    %220 = tpu.matmul %217, %219, %cst_122 {dimension_numbers = #tpu.dot_dimension_numbers<[1], [0], [0], [1], [0, 0, 1, 1], [], []>} : vector<34x32xf32>, vector<32x32xf32>, vector<34x32xf32> -> vector<34x32xf32>
    %c0_123 = arith.constant 0 : index
    %c0_124 = arith.constant 0 : index
    %c0_125 = arith.constant 0 : index
    %c0_126 = arith.constant 0 : index
    %221 = vector.load %arg8[%c0_123, %c0_124, %c0_125, %c0_126] : memref<2x2x1x32xf32, #tpu.memory_space<vmem>>, vector<1x1x1x32xf32>
    %222 = vector.shape_cast %221 : vector<1x1x1x32xf32> to vector<1x32xf32>
    %223 = vector.broadcast %222 : vector<1x32xf32> to vector<34x32xf32>
    %224 = arith.addf %220, %223 : vector<34x32xf32>
    %225 = arith.mulf %224, %224 : vector<34x32xf32>
    %226 = arith.mulf %224, %225 : vector<34x32xf32>
    %cst_127 = arith.constant 4.471500e-02 : f32
    %227 = vector.broadcast %cst_127 : f32 to vector<34x32xf32>
    %228 = arith.mulf %227, %226 : vector<34x32xf32>
    %229 = arith.addf %224, %228 : vector<34x32xf32>
    %cst_128 = arith.constant 0.797884583 : f32
    %230 = vector.broadcast %cst_128 : f32 to vector<34x32xf32>
    %231 = arith.mulf %230, %229 : vector<34x32xf32>
    %232 = math.tanh %231 : vector<34x32xf32>
    %cst_129 = arith.constant 1.000000e+00 : f32
    %233 = vector.broadcast %cst_129 : f32 to vector<34x32xf32>
    %234 = arith.addf %233, %232 : vector<34x32xf32>
    %cst_130 = arith.constant 5.000000e-01 : f32
    %235 = vector.broadcast %cst_130 : f32 to vector<34x32xf32>
    %236 = arith.mulf %235, %234 : vector<34x32xf32>
    %237 = arith.mulf %224, %236 : vector<34x32xf32>
    %c0_131 = arith.constant 0 : index
    %c1_132 = arith.constant 1 : index
    %c0_133 = arith.constant 0 : index
    %c0_134 = arith.constant 0 : index
    %238 = vector.load %arg7[%c0_131, %c1_132, %c0_133, %c0_134] : memref<2x2x32x32xf32, #tpu.memory_space<vmem>>, vector<1x1x32x32xf32>
    %239 = vector.shape_cast %238 : vector<1x1x32x32xf32> to vector<32x32xf32>
    %cst_135 = arith.constant dense<0.000000e+00> : vector<34x32xf32>
    %240 = tpu.matmul %237, %239, %cst_135 {dimension_numbers = #tpu.dot_dimension_numbers<[1], [0], [0], [1], [0, 0, 1, 1], [], []>} : vector<34x32xf32>, vector<32x32xf32>, vector<34x32xf32> -> vector<34x32xf32>
    %c0_136 = arith.constant 0 : index
    %c1_137 = arith.constant 1 : index
    %c0_138 = arith.constant 0 : index
    %c0_139 = arith.constant 0 : index
    %241 = vector.load %arg8[%c0_136, %c1_137, %c0_138, %c0_139] : memref<2x2x1x32xf32, #tpu.memory_space<vmem>>, vector<1x1x1x32xf32>
    %242 = vector.shape_cast %241 : vector<1x1x1x32xf32> to vector<1x32xf32>
    %243 = vector.broadcast %242 : vector<1x32xf32> to vector<34x32xf32>
    %244 = arith.addf %240, %243 : vector<34x32xf32>
    %245 = arith.addf %217, %244 : vector<34x32xf32>
    %c0_140 = arith.constant 0 : index
    %c2_141 = arith.constant 2 : index
    %c0_142 = arith.constant 0 : index
    %c0_143 = arith.constant 0 : index
    %246 = vector.load %arg9[%c0_140, %c2_141, %c0_142, %c0_143] : memref<2x4x1x32xf32, #tpu.memory_space<vmem>>, vector<1x1x1x32xf32>
    %247 = vector.shape_cast %246 : vector<1x1x1x32xf32> to vector<1x32xf32>
    %c0_144 = arith.constant 0 : index
    %c3_145 = arith.constant 3 : index
    %c0_146 = arith.constant 0 : index
    %c0_147 = arith.constant 0 : index
    %248 = vector.load %arg9[%c0_144, %c3_145, %c0_146, %c0_147] : memref<2x4x1x32xf32, #tpu.memory_space<vmem>>, vector<1x1x1x32xf32>
    %249 = vector.shape_cast %248 : vector<1x1x1x32xf32> to vector<1x32xf32>
    %cst_148 = arith.constant dense<0.000000e+00> : vector<34xf32>
    %250 = vector.multi_reduction <add>, %245, %cst_148 [1] : vector<34x32xf32> to vector<34xf32>
    %251 = vector.shape_cast %250 : vector<34xf32> to vector<34x1xf32>
    %cst_149 = arith.constant 3.200000e+01 : f32
    %252 = vector.broadcast %cst_149 : f32 to vector<34x1xf32>
    %253 = arith.divf %251, %252 : vector<34x1xf32>
    %254 = vector.broadcast %253 : vector<34x1xf32> to vector<34x32xf32>
    %255 = arith.subf %245, %254 : vector<34x32xf32>
    %256 = arith.mulf %255, %255 : vector<34x32xf32>
    %cst_150 = arith.constant dense<0.000000e+00> : vector<34xf32>
    %257 = vector.multi_reduction <add>, %256, %cst_150 [1] : vector<34x32xf32> to vector<34xf32>
    %258 = vector.shape_cast %257 : vector<34xf32> to vector<34x1xf32>
    %cst_151 = arith.constant 3.200000e+01 : f32
    %259 = vector.broadcast %cst_151 : f32 to vector<34x1xf32>
    %260 = arith.divf %258, %259 : vector<34x1xf32>
    %261 = vector.broadcast %253 : vector<34x1xf32> to vector<34x32xf32>
    %262 = arith.subf %245, %261 : vector<34x32xf32>
    %cst_152 = arith.constant 9.99999974E-6 : f32
    %263 = vector.broadcast %cst_152 : f32 to vector<34x1xf32>
    %264 = arith.addf %260, %263 : vector<34x1xf32>
    %265 = math.rsqrt %264 : vector<34x1xf32>
    %266 = vector.broadcast %265 : vector<34x1xf32> to vector<34x32xf32>
    %267 = arith.mulf %262, %266 : vector<34x32xf32>
    %268 = vector.broadcast %247 : vector<1x32xf32> to vector<34x32xf32>
    %269 = arith.mulf %267, %268 : vector<34x32xf32>
    %270 = vector.broadcast %249 : vector<1x32xf32> to vector<34x32xf32>
    %271 = arith.addf %269, %270 : vector<34x32xf32>
    %c1_153 = arith.constant 1 : index
    %c0_154 = arith.constant 0 : index
    %c0_155 = arith.constant 0 : index
    %c0_156 = arith.constant 0 : index
    %272 = vector.load %arg5[%c1_153, %c0_154, %c0_155, %c0_156] : memref<2x4x32x32xf32, #tpu.memory_space<vmem>>, vector<1x1x32x32xf32>
    %273 = vector.shape_cast %272 : vector<1x1x32x32xf32> to vector<32x32xf32>
    %cst_157 = arith.constant dense<0.000000e+00> : vector<34x32xf32>
    %274 = tpu.matmul %271, %273, %cst_157 {dimension_numbers = #tpu.dot_dimension_numbers<[1], [0], [0], [1], [0, 0, 1, 1], [], []>} : vector<34x32xf32>, vector<32x32xf32>, vector<34x32xf32> -> vector<34x32xf32>
    %c1_158 = arith.constant 1 : index
    %c0_159 = arith.constant 0 : index
    %c0_160 = arith.constant 0 : index
    %c0_161 = arith.constant 0 : index
    %275 = vector.load %arg6[%c1_158, %c0_159, %c0_160, %c0_161] : memref<2x4x1x32xf32, #tpu.memory_space<vmem>>, vector<1x1x1x32xf32>
    %276 = vector.shape_cast %275 : vector<1x1x1x32xf32> to vector<1x32xf32>
    %277 = vector.broadcast %276 : vector<1x32xf32> to vector<34x32xf32>
    %278 = arith.addf %274, %277 : vector<34x32xf32>
    %c1_162 = arith.constant 1 : index
    %c1_163 = arith.constant 1 : index
    %c0_164 = arith.constant 0 : index
    %c0_165 = arith.constant 0 : index
    %279 = vector.load %arg5[%c1_162, %c1_163, %c0_164, %c0_165] : memref<2x4x32x32xf32, #tpu.memory_space<vmem>>, vector<1x1x32x32xf32>
    %280 = vector.shape_cast %279 : vector<1x1x32x32xf32> to vector<32x32xf32>
    %cst_166 = arith.constant dense<0.000000e+00> : vector<34x32xf32>
    %281 = tpu.matmul %271, %280, %cst_166 {dimension_numbers = #tpu.dot_dimension_numbers<[1], [0], [0], [1], [0, 0, 1, 1], [], []>} : vector<34x32xf32>, vector<32x32xf32>, vector<34x32xf32> -> vector<34x32xf32>
    %c1_167 = arith.constant 1 : index
    %c1_168 = arith.constant 1 : index
    %c0_169 = arith.constant 0 : index
    %c0_170 = arith.constant 0 : index
    %282 = vector.load %arg6[%c1_167, %c1_168, %c0_169, %c0_170] : memref<2x4x1x32xf32, #tpu.memory_space<vmem>>, vector<1x1x1x32xf32>
    %283 = vector.shape_cast %282 : vector<1x1x1x32xf32> to vector<1x32xf32>
    %284 = vector.broadcast %283 : vector<1x32xf32> to vector<34x32xf32>
    %285 = arith.addf %281, %284 : vector<34x32xf32>
    %c1_171 = arith.constant 1 : index
    %c2_172 = arith.constant 2 : index
    %c0_173 = arith.constant 0 : index
    %c0_174 = arith.constant 0 : index
    %286 = vector.load %arg5[%c1_171, %c2_172, %c0_173, %c0_174] : memref<2x4x32x32xf32, #tpu.memory_space<vmem>>, vector<1x1x32x32xf32>
    %287 = vector.shape_cast %286 : vector<1x1x32x32xf32> to vector<32x32xf32>
    %cst_175 = arith.constant dense<0.000000e+00> : vector<34x32xf32>
    %288 = tpu.matmul %271, %287, %cst_175 {dimension_numbers = #tpu.dot_dimension_numbers<[1], [0], [0], [1], [0, 0, 1, 1], [], []>} : vector<34x32xf32>, vector<32x32xf32>, vector<34x32xf32> -> vector<34x32xf32>
    %c1_176 = arith.constant 1 : index
    %c2_177 = arith.constant 2 : index
    %c0_178 = arith.constant 0 : index
    %c0_179 = arith.constant 0 : index
    %289 = vector.load %arg6[%c1_176, %c2_177, %c0_178, %c0_179] : memref<2x4x1x32xf32, #tpu.memory_space<vmem>>, vector<1x1x1x32xf32>
    %290 = vector.shape_cast %289 : vector<1x1x1x32xf32> to vector<1x32xf32>
    %291 = vector.broadcast %290 : vector<1x32xf32> to vector<34x32xf32>
    %292 = arith.addf %288, %291 : vector<34x32xf32>
    %293 = vector.extract_strided_slice %278 {offsets = [0, 0], sizes = [17, 8], strides = [1, 1]} : vector<34x32xf32> to vector<17x8xf32>
    %294 = vector.extract_strided_slice %285 {offsets = [0, 0], sizes = [17, 8], strides = [1, 1]} : vector<34x32xf32> to vector<17x8xf32>
    %295 = vector.extract_strided_slice %292 {offsets = [0, 0], sizes = [17, 8], strides = [1, 1]} : vector<34x32xf32> to vector<17x8xf32>
    %cst_180 = arith.constant dense<0.000000e+00> : vector<17x17xf32>
    %296 = tpu.matmul %293, %294, %cst_180 {dimension_numbers = #tpu.dot_dimension_numbers<[1], [1], [0], [0], [0, 0, 1, 0], [], []>} : vector<17x8xf32>, vector<17x8xf32>, vector<17x17xf32> -> vector<17x17xf32>
    %cst_181 = arith.constant 0.353553385 : f32
    %297 = vector.broadcast %cst_181 : f32 to vector<17x17xf32>
    %298 = arith.mulf %296, %297 : vector<17x17xf32>
    %cst_182 = arith.constant dense<0xFF800000> : vector<17xf32>
    %299 = vector.multi_reduction <maximumf>, %298, %cst_182 [1] : vector<17x17xf32> to vector<17xf32>
    %300 = vector.shape_cast %299 : vector<17xf32> to vector<17x1xf32>
    %301 = vector.broadcast %300 : vector<17x1xf32> to vector<17x17xf32>
    %302 = arith.subf %298, %301 : vector<17x17xf32>
    %303 = math.exp %302 : vector<17x17xf32>
    %cst_183 = arith.constant dense<0.000000e+00> : vector<17xf32>
    %304 = vector.multi_reduction <add>, %303, %cst_183 [1] : vector<17x17xf32> to vector<17xf32>
    %305 = vector.shape_cast %304 : vector<17xf32> to vector<17x1xf32>
    %306 = tpu.reciprocal %305 {approx = true} : vector<17x1xf32> -> vector<17x1xf32>
    %307 = vector.broadcast %306 : vector<17x1xf32> to vector<17x17xf32>
    %308 = arith.mulf %303, %307 : vector<17x17xf32>
    %cst_184 = arith.constant dense<0.000000e+00> : vector<17x8xf32>
    %309 = tpu.matmul %308, %295, %cst_184 {dimension_numbers = #tpu.dot_dimension_numbers<[1], [0], [0], [1], [0, 0, 1, 1], [], []>} : vector<17x17xf32>, vector<17x8xf32>, vector<17x8xf32> -> vector<17x8xf32>
    %c0_185 = arith.constant 0 : index
    %c0_186 = arith.constant 0 : index
    %310 = vector.load %arg13[%c0_185, %c0_186] : memref<34x32xf32, #tpu.memory_space<vmem>>, vector<17x8xf32>
    tpu.vector_store %arg13[%c0_185, %c0_186], %309 {strides = array<i32>} : memref<34x32xf32, #tpu.memory_space<vmem>>, vector<17x8xf32>,
    %311 = vector.extract_strided_slice %278 {offsets = [0, 8], sizes = [17, 8], strides = [1, 1]} : vector<34x32xf32> to vector<17x8xf32>
    %312 = vector.extract_strided_slice %285 {offsets = [0, 8], sizes = [17, 8], strides = [1, 1]} : vector<34x32xf32> to vector<17x8xf32>
    %313 = vector.extract_strided_slice %292 {offsets = [0, 8], sizes = [17, 8], strides = [1, 1]} : vector<34x32xf32> to vector<17x8xf32>
    %cst_187 = arith.constant dense<0.000000e+00> : vector<17x17xf32>
    %314 = tpu.matmul %311, %312, %cst_187 {dimension_numbers = #tpu.dot_dimension_numbers<[1], [1], [0], [0], [0, 0, 1, 0], [], []>} : vector<17x8xf32>, vector<17x8xf32>, vector<17x17xf32> -> vector<17x17xf32>
    %cst_188 = arith.constant 0.353553385 : f32
    %315 = vector.broadcast %cst_188 : f32 to vector<17x17xf32>
    %316 = arith.mulf %314, %315 : vector<17x17xf32>
    %cst_189 = arith.constant dense<0xFF800000> : vector<17xf32>
    %317 = vector.multi_reduction <maximumf>, %316, %cst_189 [1] : vector<17x17xf32> to vector<17xf32>
    %318 = vector.shape_cast %317 : vector<17xf32> to vector<17x1xf32>
    %319 = vector.broadcast %318 : vector<17x1xf32> to vector<17x17xf32>
    %320 = arith.subf %316, %319 : vector<17x17xf32>
    %321 = math.exp %320 : vector<17x17xf32>
    %cst_190 = arith.constant dense<0.000000e+00> : vector<17xf32>
    %322 = vector.multi_reduction <add>, %321, %cst_190 [1] : vector<17x17xf32> to vector<17xf32>
    %323 = vector.shape_cast %322 : vector<17xf32> to vector<17x1xf32>
    %324 = tpu.reciprocal %323 {approx = true} : vector<17x1xf32> -> vector<17x1xf32>
    %325 = vector.broadcast %324 : vector<17x1xf32> to vector<17x17xf32>
    %326 = arith.mulf %321, %325 : vector<17x17xf32>
    %cst_191 = arith.constant dense<0.000000e+00> : vector<17x8xf32>
    %327 = tpu.matmul %326, %313, %cst_191 {dimension_numbers = #tpu.dot_dimension_numbers<[1], [0], [0], [1], [0, 0, 1, 1], [], []>} : vector<17x17xf32>, vector<17x8xf32>, vector<17x8xf32> -> vector<17x8xf32>
    %c0_192 = arith.constant 0 : index
    %c8_193 = arith.constant 8 : index
    %328 = vector.load %arg13[%c0_192, %c8_193] : memref<34x32xf32, #tpu.memory_space<vmem>>, vector<17x8xf32>
    tpu.vector_store %arg13[%c0_192, %c8_193], %327 {strides = array<i32>} : memref<34x32xf32, #tpu.memory_space<vmem>>, vector<17x8xf32>,
    %329 = vector.extract_strided_slice %278 {offsets = [0, 16], sizes = [17, 8], strides = [1, 1]} : vector<34x32xf32> to vector<17x8xf32>
    %330 = vector.extract_strided_slice %285 {offsets = [0, 16], sizes = [17, 8], strides = [1, 1]} : vector<34x32xf32> to vector<17x8xf32>
    %331 = vector.extract_strided_slice %292 {offsets = [0, 16], sizes = [17, 8], strides = [1, 1]} : vector<34x32xf32> to vector<17x8xf32>
    %cst_194 = arith.constant dense<0.000000e+00> : vector<17x17xf32>
    %332 = tpu.matmul %329, %330, %cst_194 {dimension_numbers = #tpu.dot_dimension_numbers<[1], [1], [0], [0], [0, 0, 1, 0], [], []>} : vector<17x8xf32>, vector<17x8xf32>, vector<17x17xf32> -> vector<17x17xf32>
    %cst_195 = arith.constant 0.353553385 : f32
    %333 = vector.broadcast %cst_195 : f32 to vector<17x17xf32>
    %334 = arith.mulf %332, %333 : vector<17x17xf32>
    %cst_196 = arith.constant dense<0xFF800000> : vector<17xf32>
    %335 = vector.multi_reduction <maximumf>, %334, %cst_196 [1] : vector<17x17xf32> to vector<17xf32>
    %336 = vector.shape_cast %335 : vector<17xf32> to vector<17x1xf32>
    %337 = vector.broadcast %336 : vector<17x1xf32> to vector<17x17xf32>
    %338 = arith.subf %334, %337 : vector<17x17xf32>
    %339 = math.exp %338 : vector<17x17xf32>
    %cst_197 = arith.constant dense<0.000000e+00> : vector<17xf32>
    %340 = vector.multi_reduction <add>, %339, %cst_197 [1] : vector<17x17xf32> to vector<17xf32>
    %341 = vector.shape_cast %340 : vector<17xf32> to vector<17x1xf32>
    %342 = tpu.reciprocal %341 {approx = true} : vector<17x1xf32> -> vector<17x1xf32>
    %343 = vector.broadcast %342 : vector<17x1xf32> to vector<17x17xf32>
    %344 = arith.mulf %339, %343 : vector<17x17xf32>
    %cst_198 = arith.constant dense<0.000000e+00> : vector<17x8xf32>
    %345 = tpu.matmul %344, %331, %cst_198 {dimension_numbers = #tpu.dot_dimension_numbers<[1], [0], [0], [1], [0, 0, 1, 1], [], []>} : vector<17x17xf32>, vector<17x8xf32>, vector<17x8xf32> -> vector<17x8xf32>
    %c0_199 = arith.constant 0 : index
    %c16_200 = arith.constant 16 : index
    %346 = vector.load %arg13[%c0_199, %c16_200] : memref<34x32xf32, #tpu.memory_space<vmem>>, vector<17x8xf32>
    tpu.vector_store %arg13[%c0_199, %c16_200], %345 {strides = array<i32>} : memref<34x32xf32, #tpu.memory_space<vmem>>, vector<17x8xf32>,
    %347 = vector.extract_strided_slice %278 {offsets = [0, 24], sizes = [17, 8], strides = [1, 1]} : vector<34x32xf32> to vector<17x8xf32>
    %348 = vector.extract_strided_slice %285 {offsets = [0, 24], sizes = [17, 8], strides = [1, 1]} : vector<34x32xf32> to vector<17x8xf32>
    %349 = vector.extract_strided_slice %292 {offsets = [0, 24], sizes = [17, 8], strides = [1, 1]} : vector<34x32xf32> to vector<17x8xf32>
    %cst_201 = arith.constant dense<0.000000e+00> : vector<17x17xf32>
    %350 = tpu.matmul %347, %348, %cst_201 {dimension_numbers = #tpu.dot_dimension_numbers<[1], [1], [0], [0], [0, 0, 1, 0], [], []>} : vector<17x8xf32>, vector<17x8xf32>, vector<17x17xf32> -> vector<17x17xf32>
    %cst_202 = arith.constant 0.353553385 : f32
    %351 = vector.broadcast %cst_202 : f32 to vector<17x17xf32>
    %352 = arith.mulf %350, %351 : vector<17x17xf32>
    %cst_203 = arith.constant dense<0xFF800000> : vector<17xf32>
    %353 = vector.multi_reduction <maximumf>, %352, %cst_203 [1] : vector<17x17xf32> to vector<17xf32>
    %354 = vector.shape_cast %353 : vector<17xf32> to vector<17x1xf32>
    %355 = vector.broadcast %354 : vector<17x1xf32> to vector<17x17xf32>
    %356 = arith.subf %352, %355 : vector<17x17xf32>
    %357 = math.exp %356 : vector<17x17xf32>
    %cst_204 = arith.constant dense<0.000000e+00> : vector<17xf32>
    %358 = vector.multi_reduction <add>, %357, %cst_204 [1] : vector<17x17xf32> to vector<17xf32>
    %359 = vector.shape_cast %358 : vector<17xf32> to vector<17x1xf32>
    %360 = tpu.reciprocal %359 {approx = true} : vector<17x1xf32> -> vector<17x1xf32>
    %361 = vector.broadcast %360 : vector<17x1xf32> to vector<17x17xf32>
    %362 = arith.mulf %357, %361 : vector<17x17xf32>
    %cst_205 = arith.constant dense<0.000000e+00> : vector<17x8xf32>
    %363 = tpu.matmul %362, %349, %cst_205 {dimension_numbers = #tpu.dot_dimension_numbers<[1], [0], [0], [1], [0, 0, 1, 1], [], []>} : vector<17x17xf32>, vector<17x8xf32>, vector<17x8xf32> -> vector<17x8xf32>
    %c0_206 = arith.constant 0 : index
    %c24_207 = arith.constant 24 : index
    %364 = vector.load %arg13[%c0_206, %c24_207] : memref<34x32xf32, #tpu.memory_space<vmem>>, vector<17x8xf32>
    tpu.vector_store %arg13[%c0_206, %c24_207], %363 {strides = array<i32>} : memref<34x32xf32, #tpu.memory_space<vmem>>, vector<17x8xf32>,
    %365 = vector.extract_strided_slice %278 {offsets = [17, 0], sizes = [17, 8], strides = [1, 1]} : vector<34x32xf32> to vector<17x8xf32>
    %366 = vector.extract_strided_slice %285 {offsets = [17, 0], sizes = [17, 8], strides = [1, 1]} : vector<34x32xf32> to vector<17x8xf32>
    %367 = vector.extract_strided_slice %292 {offsets = [17, 0], sizes = [17, 8], strides = [1, 1]} : vector<34x32xf32> to vector<17x8xf32>
    %cst_208 = arith.constant dense<0.000000e+00> : vector<17x17xf32>
    %368 = tpu.matmul %365, %366, %cst_208 {dimension_numbers = #tpu.dot_dimension_numbers<[1], [1], [0], [0], [0, 0, 1, 0], [], []>} : vector<17x8xf32>, vector<17x8xf32>, vector<17x17xf32> -> vector<17x17xf32>
    %cst_209 = arith.constant 0.353553385 : f32
    %369 = vector.broadcast %cst_209 : f32 to vector<17x17xf32>
    %370 = arith.mulf %368, %369 : vector<17x17xf32>
    %cst_210 = arith.constant dense<0xFF800000> : vector<17xf32>
    %371 = vector.multi_reduction <maximumf>, %370, %cst_210 [1] : vector<17x17xf32> to vector<17xf32>
    %372 = vector.shape_cast %371 : vector<17xf32> to vector<17x1xf32>
    %373 = vector.broadcast %372 : vector<17x1xf32> to vector<17x17xf32>
    %374 = arith.subf %370, %373 : vector<17x17xf32>
    %375 = math.exp %374 : vector<17x17xf32>
    %cst_211 = arith.constant dense<0.000000e+00> : vector<17xf32>
    %376 = vector.multi_reduction <add>, %375, %cst_211 [1] : vector<17x17xf32> to vector<17xf32>
    %377 = vector.shape_cast %376 : vector<17xf32> to vector<17x1xf32>
    %378 = tpu.reciprocal %377 {approx = true} : vector<17x1xf32> -> vector<17x1xf32>
    %379 = vector.broadcast %378 : vector<17x1xf32> to vector<17x17xf32>
    %380 = arith.mulf %375, %379 : vector<17x17xf32>
    %cst_212 = arith.constant dense<0.000000e+00> : vector<17x8xf32>
    %381 = tpu.matmul %380, %367, %cst_212 {dimension_numbers = #tpu.dot_dimension_numbers<[1], [0], [0], [1], [0, 0, 1, 1], [], []>} : vector<17x17xf32>, vector<17x8xf32>, vector<17x8xf32> -> vector<17x8xf32>
    %c17_213 = arith.constant 17 : index
    %c0_214 = arith.constant 0 : index
    %382 = vector.load %arg13[%c17_213, %c0_214] : memref<34x32xf32, #tpu.memory_space<vmem>>, vector<17x8xf32>
    tpu.vector_store %arg13[%c17_213, %c0_214], %381 {strides = array<i32>} : memref<34x32xf32, #tpu.memory_space<vmem>>, vector<17x8xf32>,
    %383 = vector.extract_strided_slice %278 {offsets = [17, 8], sizes = [17, 8], strides = [1, 1]} : vector<34x32xf32> to vector<17x8xf32>
    %384 = vector.extract_strided_slice %285 {offsets = [17, 8], sizes = [17, 8], strides = [1, 1]} : vector<34x32xf32> to vector<17x8xf32>
    %385 = vector.extract_strided_slice %292 {offsets = [17, 8], sizes = [17, 8], strides = [1, 1]} : vector<34x32xf32> to vector<17x8xf32>
    %cst_215 = arith.constant dense<0.000000e+00> : vector<17x17xf32>
    %386 = tpu.matmul %383, %384, %cst_215 {dimension_numbers = #tpu.dot_dimension_numbers<[1], [1], [0], [0], [0, 0, 1, 0], [], []>} : vector<17x8xf32>, vector<17x8xf32>, vector<17x17xf32> -> vector<17x17xf32>
    %cst_216 = arith.constant 0.353553385 : f32
    %387 = vector.broadcast %cst_216 : f32 to vector<17x17xf32>
    %388 = arith.mulf %386, %387 : vector<17x17xf32>
    %cst_217 = arith.constant dense<0xFF800000> : vector<17xf32>
    %389 = vector.multi_reduction <maximumf>, %388, %cst_217 [1] : vector<17x17xf32> to vector<17xf32>
    %390 = vector.shape_cast %389 : vector<17xf32> to vector<17x1xf32>
    %391 = vector.broadcast %390 : vector<17x1xf32> to vector<17x17xf32>
    %392 = arith.subf %388, %391 : vector<17x17xf32>
    %393 = math.exp %392 : vector<17x17xf32>
    %cst_218 = arith.constant dense<0.000000e+00> : vector<17xf32>
    %394 = vector.multi_reduction <add>, %393, %cst_218 [1] : vector<17x17xf32> to vector<17xf32>
    %395 = vector.shape_cast %394 : vector<17xf32> to vector<17x1xf32>
    %396 = tpu.reciprocal %395 {approx = true} : vector<17x1xf32> -> vector<17x1xf32>
    %397 = vector.broadcast %396 : vector<17x1xf32> to vector<17x17xf32>
    %398 = arith.mulf %393, %397 : vector<17x17xf32>
    %cst_219 = arith.constant dense<0.000000e+00> : vector<17x8xf32>
    %399 = tpu.matmul %398, %385, %cst_219 {dimension_numbers = #tpu.dot_dimension_numbers<[1], [0], [0], [1], [0, 0, 1, 1], [], []>} : vector<17x17xf32>, vector<17x8xf32>, vector<17x8xf32> -> vector<17x8xf32>
    %c17_220 = arith.constant 17 : index
    %c8_221 = arith.constant 8 : index
    %400 = vector.load %arg13[%c17_220, %c8_221] : memref<34x32xf32, #tpu.memory_space<vmem>>, vector<17x8xf32>
    tpu.vector_store %arg13[%c17_220, %c8_221], %399 {strides = array<i32>} : memref<34x32xf32, #tpu.memory_space<vmem>>, vector<17x8xf32>,
    %401 = vector.extract_strided_slice %278 {offsets = [17, 16], sizes = [17, 8], strides = [1, 1]} : vector<34x32xf32> to vector<17x8xf32>
    %402 = vector.extract_strided_slice %285 {offsets = [17, 16], sizes = [17, 8], strides = [1, 1]} : vector<34x32xf32> to vector<17x8xf32>
    %403 = vector.extract_strided_slice %292 {offsets = [17, 16], sizes = [17, 8], strides = [1, 1]} : vector<34x32xf32> to vector<17x8xf32>
    %cst_222 = arith.constant dense<0.000000e+00> : vector<17x17xf32>
    %404 = tpu.matmul %401, %402, %cst_222 {dimension_numbers = #tpu.dot_dimension_numbers<[1], [1], [0], [0], [0, 0, 1, 0], [], []>} : vector<17x8xf32>, vector<17x8xf32>, vector<17x17xf32> -> vector<17x17xf32>
    %cst_223 = arith.constant 0.353553385 : f32
    %405 = vector.broadcast %cst_223 : f32 to vector<17x17xf32>
    %406 = arith.mulf %404, %405 : vector<17x17xf32>
    %cst_224 = arith.constant dense<0xFF800000> : vector<17xf32>
    %407 = vector.multi_reduction <maximumf>, %406, %cst_224 [1] : vector<17x17xf32> to vector<17xf32>
    %408 = vector.shape_cast %407 : vector<17xf32> to vector<17x1xf32>
    %409 = vector.broadcast %408 : vector<17x1xf32> to vector<17x17xf32>
    %410 = arith.subf %406, %409 : vector<17x17xf32>
    %411 = math.exp %410 : vector<17x17xf32>
    %cst_225 = arith.constant dense<0.000000e+00> : vector<17xf32>
    %412 = vector.multi_reduction <add>, %411, %cst_225 [1] : vector<17x17xf32> to vector<17xf32>
    %413 = vector.shape_cast %412 : vector<17xf32> to vector<17x1xf32>
    %414 = tpu.reciprocal %413 {approx = true} : vector<17x1xf32> -> vector<17x1xf32>
    %415 = vector.broadcast %414 : vector<17x1xf32> to vector<17x17xf32>
    %416 = arith.mulf %411, %415 : vector<17x17xf32>
    %cst_226 = arith.constant dense<0.000000e+00> : vector<17x8xf32>
    %417 = tpu.matmul %416, %403, %cst_226 {dimension_numbers = #tpu.dot_dimension_numbers<[1], [0], [0], [1], [0, 0, 1, 1], [], []>} : vector<17x17xf32>, vector<17x8xf32>, vector<17x8xf32> -> vector<17x8xf32>
    %c17_227 = arith.constant 17 : index
    %c16_228 = arith.constant 16 : index
    %418 = vector.load %arg13[%c17_227, %c16_228] : memref<34x32xf32, #tpu.memory_space<vmem>>, vector<17x8xf32>
    tpu.vector_store %arg13[%c17_227, %c16_228], %417 {strides = array<i32>} : memref<34x32xf32, #tpu.memory_space<vmem>>, vector<17x8xf32>,
    %419 = vector.extract_strided_slice %278 {offsets = [17, 24], sizes = [17, 8], strides = [1, 1]} : vector<34x32xf32> to vector<17x8xf32>
    %420 = vector.extract_strided_slice %285 {offsets = [17, 24], sizes = [17, 8], strides = [1, 1]} : vector<34x32xf32> to vector<17x8xf32>
    %421 = vector.extract_strided_slice %292 {offsets = [17, 24], sizes = [17, 8], strides = [1, 1]} : vector<34x32xf32> to vector<17x8xf32>
    %cst_229 = arith.constant dense<0.000000e+00> : vector<17x17xf32>
    %422 = tpu.matmul %419, %420, %cst_229 {dimension_numbers = #tpu.dot_dimension_numbers<[1], [1], [0], [0], [0, 0, 1, 0], [], []>} : vector<17x8xf32>, vector<17x8xf32>, vector<17x17xf32> -> vector<17x17xf32>
    %cst_230 = arith.constant 0.353553385 : f32
    %423 = vector.broadcast %cst_230 : f32 to vector<17x17xf32>
    %424 = arith.mulf %422, %423 : vector<17x17xf32>
    %cst_231 = arith.constant dense<0xFF800000> : vector<17xf32>
    %425 = vector.multi_reduction <maximumf>, %424, %cst_231 [1] : vector<17x17xf32> to vector<17xf32>
    %426 = vector.shape_cast %425 : vector<17xf32> to vector<17x1xf32>
    %427 = vector.broadcast %426 : vector<17x1xf32> to vector<17x17xf32>
    %428 = arith.subf %424, %427 : vector<17x17xf32>
    %429 = math.exp %428 : vector<17x17xf32>
    %cst_232 = arith.constant dense<0.000000e+00> : vector<17xf32>
    %430 = vector.multi_reduction <add>, %429, %cst_232 [1] : vector<17x17xf32> to vector<17xf32>
    %431 = vector.shape_cast %430 : vector<17xf32> to vector<17x1xf32>
    %432 = tpu.reciprocal %431 {approx = true} : vector<17x1xf32> -> vector<17x1xf32>
    %433 = vector.broadcast %432 : vector<17x1xf32> to vector<17x17xf32>
    %434 = arith.mulf %429, %433 : vector<17x17xf32>
    %cst_233 = arith.constant dense<0.000000e+00> : vector<17x8xf32>
    %435 = tpu.matmul %434, %421, %cst_233 {dimension_numbers = #tpu.dot_dimension_numbers<[1], [0], [0], [1], [0, 0, 1, 1], [], []>} : vector<17x17xf32>, vector<17x8xf32>, vector<17x8xf32> -> vector<17x8xf32>
    %c17_234 = arith.constant 17 : index
    %c24_235 = arith.constant 24 : index
    %436 = vector.load %arg13[%c17_234, %c24_235] : memref<34x32xf32, #tpu.memory_space<vmem>>, vector<17x8xf32>
    tpu.vector_store %arg13[%c17_234, %c24_235], %435 {strides = array<i32>} : memref<34x32xf32, #tpu.memory_space<vmem>>, vector<17x8xf32>,
    %c0_236 = arith.constant 0 : index
    %c0_237 = arith.constant 0 : index
    %437 = vector.load %arg13[%c0_236, %c0_237] : memref<34x32xf32, #tpu.memory_space<vmem>>, vector<34x32xf32>
    %c1_238 = arith.constant 1 : index
    %c3_239 = arith.constant 3 : index
    %c0_240 = arith.constant 0 : index
    %c0_241 = arith.constant 0 : index
    %438 = vector.load %arg5[%c1_238, %c3_239, %c0_240, %c0_241] : memref<2x4x32x32xf32, #tpu.memory_space<vmem>>, vector<1x1x32x32xf32>
    %439 = vector.shape_cast %438 : vector<1x1x32x32xf32> to vector<32x32xf32>
    %cst_242 = arith.constant dense<0.000000e+00> : vector<34x32xf32>
    %440 = tpu.matmul %437, %439, %cst_242 {dimension_numbers = #tpu.dot_dimension_numbers<[1], [0], [0], [1], [0, 0, 1, 1], [], []>} : vector<34x32xf32>, vector<32x32xf32>, vector<34x32xf32> -> vector<34x32xf32>
    %c1_243 = arith.constant 1 : index
    %c3_244 = arith.constant 3 : index
    %c0_245 = arith.constant 0 : index
    %c0_246 = arith.constant 0 : index
    %441 = vector.load %arg6[%c1_243, %c3_244, %c0_245, %c0_246] : memref<2x4x1x32xf32, #tpu.memory_space<vmem>>, vector<1x1x1x32xf32>
    %442 = vector.shape_cast %441 : vector<1x1x1x32xf32> to vector<1x32xf32>
    %443 = vector.broadcast %442 : vector<1x32xf32> to vector<34x32xf32>
    %444 = arith.addf %440, %443 : vector<34x32xf32>
    %445 = arith.addf %271, %444 : vector<34x32xf32>
    %c1_247 = arith.constant 1 : index
    %c0_248 = arith.constant 0 : index
    %c0_249 = arith.constant 0 : index
    %c0_250 = arith.constant 0 : index
    %446 = vector.load %arg9[%c1_247, %c0_248, %c0_249, %c0_250] : memref<2x4x1x32xf32, #tpu.memory_space<vmem>>, vector<1x1x1x32xf32>
    %447 = vector.shape_cast %446 : vector<1x1x1x32xf32> to vector<1x32xf32>
    %c1_251 = arith.constant 1 : index
    %c1_252 = arith.constant 1 : index
    %c0_253 = arith.constant 0 : index
    %c0_254 = arith.constant 0 : index
    %448 = vector.load %arg9[%c1_251, %c1_252, %c0_253, %c0_254] : memref<2x4x1x32xf32, #tpu.memory_space<vmem>>, vector<1x1x1x32xf32>
    %449 = vector.shape_cast %448 : vector<1x1x1x32xf32> to vector<1x32xf32>
    %cst_255 = arith.constant dense<0.000000e+00> : vector<34xf32>
    %450 = vector.multi_reduction <add>, %445, %cst_255 [1] : vector<34x32xf32> to vector<34xf32>
    %451 = vector.shape_cast %450 : vector<34xf32> to vector<34x1xf32>
    %cst_256 = arith.constant 3.200000e+01 : f32
    %452 = vector.broadcast %cst_256 : f32 to vector<34x1xf32>
    %453 = arith.divf %451, %452 : vector<34x1xf32>
    %454 = vector.broadcast %453 : vector<34x1xf32> to vector<34x32xf32>
    %455 = arith.subf %445, %454 : vector<34x32xf32>
    %456 = arith.mulf %455, %455 : vector<34x32xf32>
    %cst_257 = arith.constant dense<0.000000e+00> : vector<34xf32>
    %457 = vector.multi_reduction <add>, %456, %cst_257 [1] : vector<34x32xf32> to vector<34xf32>
    %458 = vector.shape_cast %457 : vector<34xf32> to vector<34x1xf32>
    %cst_258 = arith.constant 3.200000e+01 : f32
    %459 = vector.broadcast %cst_258 : f32 to vector<34x1xf32>
    %460 = arith.divf %458, %459 : vector<34x1xf32>
    %461 = vector.broadcast %453 : vector<34x1xf32> to vector<34x32xf32>
    %462 = arith.subf %445, %461 : vector<34x32xf32>
    %cst_259 = arith.constant 9.99999974E-6 : f32
    %463 = vector.broadcast %cst_259 : f32 to vector<34x1xf32>
    %464 = arith.addf %460, %463 : vector<34x1xf32>
    %465 = math.rsqrt %464 : vector<34x1xf32>
    %466 = vector.broadcast %465 : vector<34x1xf32> to vector<34x32xf32>
    %467 = arith.mulf %462, %466 : vector<34x32xf32>
    %468 = vector.broadcast %447 : vector<1x32xf32> to vector<34x32xf32>
    %469 = arith.mulf %467, %468 : vector<34x32xf32>
    %470 = vector.broadcast %449 : vector<1x32xf32> to vector<34x32xf32>
    %471 = arith.addf %469, %470 : vector<34x32xf32>
    %c1_260 = arith.constant 1 : index
    %c0_261 = arith.constant 0 : index
    %c0_262 = arith.constant 0 : index
    %c0_263 = arith.constant 0 : index
    %472 = vector.load %arg7[%c1_260, %c0_261, %c0_262, %c0_263] : memref<2x2x32x32xf32, #tpu.memory_space<vmem>>, vector<1x1x32x32xf32>
    %473 = vector.shape_cast %472 : vector<1x1x32x32xf32> to vector<32x32xf32>
    %cst_264 = arith.constant dense<0.000000e+00> : vector<34x32xf32>
    %474 = tpu.matmul %471, %473, %cst_264 {dimension_numbers = #tpu.dot_dimension_numbers<[1], [0], [0], [1], [0, 0, 1, 1], [], []>} : vector<34x32xf32>, vector<32x32xf32>, vector<34x32xf32> -> vector<34x32xf32>
    %c1_265 = arith.constant 1 : index
    %c0_266 = arith.constant 0 : index
    %c0_267 = arith.constant 0 : index
    %c0_268 = arith.constant 0 : index
    %475 = vector.load %arg8[%c1_265, %c0_266, %c0_267, %c0_268] : memref<2x2x1x32xf32, #tpu.memory_space<vmem>>, vector<1x1x1x32xf32>
    %476 = vector.shape_cast %475 : vector<1x1x1x32xf32> to vector<1x32xf32>
    %477 = vector.broadcast %476 : vector<1x32xf32> to vector<34x32xf32>
    %478 = arith.addf %474, %477 : vector<34x32xf32>
    %479 = arith.mulf %478, %478 : vector<34x32xf32>
    %480 = arith.mulf %478, %479 : vector<34x32xf32>
    %cst_269 = arith.constant 4.471500e-02 : f32
    %481 = vector.broadcast %cst_269 : f32 to vector<34x32xf32>
    %482 = arith.mulf %481, %480 : vector<34x32xf32>
    %483 = arith.addf %478, %482 : vector<34x32xf32>
    %cst_270 = arith.constant 0.797884583 : f32
    %484 = vector.broadcast %cst_270 : f32 to vector<34x32xf32>
    %485 = arith.mulf %484, %483 : vector<34x32xf32>
    %486 = math.tanh %485 : vector<34x32xf32>
    %cst_271 = arith.constant 1.000000e+00 : f32
    %487 = vector.broadcast %cst_271 : f32 to vector<34x32xf32>
    %488 = arith.addf %487, %486 : vector<34x32xf32>
    %cst_272 = arith.constant 5.000000e-01 : f32
    %489 = vector.broadcast %cst_272 : f32 to vector<34x32xf32>
    %490 = arith.mulf %489, %488 : vector<34x32xf32>
    %491 = arith.mulf %478, %490 : vector<34x32xf32>
    %c1_273 = arith.constant 1 : index
    %c1_274 = arith.constant 1 : index
    %c0_275 = arith.constant 0 : index
    %c0_276 = arith.constant 0 : index
    %492 = vector.load %arg7[%c1_273, %c1_274, %c0_275, %c0_276] : memref<2x2x32x32xf32, #tpu.memory_space<vmem>>, vector<1x1x32x32xf32>
    %493 = vector.shape_cast %492 : vector<1x1x32x32xf32> to vector<32x32xf32>
    %cst_277 = arith.constant dense<0.000000e+00> : vector<34x32xf32>
    %494 = tpu.matmul %491, %493, %cst_277 {dimension_numbers = #tpu.dot_dimension_numbers<[1], [0], [0], [1], [0, 0, 1, 1], [], []>} : vector<34x32xf32>, vector<32x32xf32>, vector<34x32xf32> -> vector<34x32xf32>
    %c1_278 = arith.constant 1 : index
    %c1_279 = arith.constant 1 : index
    %c0_280 = arith.constant 0 : index
    %c0_281 = arith.constant 0 : index
    %495 = vector.load %arg8[%c1_278, %c1_279, %c0_280, %c0_281] : memref<2x2x1x32xf32, #tpu.memory_space<vmem>>, vector<1x1x1x32xf32>
    %496 = vector.shape_cast %495 : vector<1x1x1x32xf32> to vector<1x32xf32>
    %497 = vector.broadcast %496 : vector<1x32xf32> to vector<34x32xf32>
    %498 = arith.addf %494, %497 : vector<34x32xf32>
    %499 = arith.addf %471, %498 : vector<34x32xf32>
    %c1_282 = arith.constant 1 : index
    %c2_283 = arith.constant 2 : index
    %c0_284 = arith.constant 0 : index
    %c0_285 = arith.constant 0 : index
    %500 = vector.load %arg9[%c1_282, %c2_283, %c0_284, %c0_285] : memref<2x4x1x32xf32, #tpu.memory_space<vmem>>, vector<1x1x1x32xf32>
    %501 = vector.shape_cast %500 : vector<1x1x1x32xf32> to vector<1x32xf32>
    %c1_286 = arith.constant 1 : index
    %c3_287 = arith.constant 3 : index
    %c0_288 = arith.constant 0 : index
    %c0_289 = arith.constant 0 : index
    %502 = vector.load %arg9[%c1_286, %c3_287, %c0_288, %c0_289] : memref<2x4x1x32xf32, #tpu.memory_space<vmem>>, vector<1x1x1x32xf32>
    %503 = vector.shape_cast %502 : vector<1x1x1x32xf32> to vector<1x32xf32>
    %cst_290 = arith.constant dense<0.000000e+00> : vector<34xf32>
    %504 = vector.multi_reduction <add>, %499, %cst_290 [1] : vector<34x32xf32> to vector<34xf32>
    %505 = vector.shape_cast %504 : vector<34xf32> to vector<34x1xf32>
    %cst_291 = arith.constant 3.200000e+01 : f32
    %506 = vector.broadcast %cst_291 : f32 to vector<34x1xf32>
    %507 = arith.divf %505, %506 : vector<34x1xf32>
    %508 = vector.broadcast %507 : vector<34x1xf32> to vector<34x32xf32>
    %509 = arith.subf %499, %508 : vector<34x32xf32>
    %510 = arith.mulf %509, %509 : vector<34x32xf32>
    %cst_292 = arith.constant dense<0.000000e+00> : vector<34xf32>
    %511 = vector.multi_reduction <add>, %510, %cst_292 [1] : vector<34x32xf32> to vector<34xf32>
    %512 = vector.shape_cast %511 : vector<34xf32> to vector<34x1xf32>
    %cst_293 = arith.constant 3.200000e+01 : f32
    %513 = vector.broadcast %cst_293 : f32 to vector<34x1xf32>
    %514 = arith.divf %512, %513 : vector<34x1xf32>
    %515 = vector.broadcast %507 : vector<34x1xf32> to vector<34x32xf32>
    %516 = arith.subf %499, %515 : vector<34x32xf32>
    %cst_294 = arith.constant 9.99999974E-6 : f32
    %517 = vector.broadcast %cst_294 : f32 to vector<34x1xf32>
    %518 = arith.addf %514, %517 : vector<34x1xf32>
    %519 = math.rsqrt %518 : vector<34x1xf32>
    %520 = vector.broadcast %519 : vector<34x1xf32> to vector<34x32xf32>
    %521 = arith.mulf %516, %520 : vector<34x32xf32>
    %522 = vector.broadcast %501 : vector<1x32xf32> to vector<34x32xf32>
    %523 = arith.mulf %521, %522 : vector<34x32xf32>
    %524 = vector.broadcast %503 : vector<1x32xf32> to vector<34x32xf32>
    %525 = arith.addf %523, %524 : vector<34x32xf32>
    %c0_295 = arith.constant 0 : index
    %c0_296 = arith.constant 0 : index
    %526 = vector.load %arg10[%c0_295, %c0_296] : memref<32x10xf32, #tpu.memory_space<vmem>>, vector<32x10xf32>
    %c0_297 = arith.constant 0 : index
    %c0_298 = arith.constant 0 : index
    %527 = vector.load %arg11[%c0_297, %c0_298] : memref<1x10xf32, #tpu.memory_space<vmem>>, vector<1x10xf32>
    %528 = vector.extract_strided_slice %525 {offsets = [0, 0], sizes = [1, 32], strides = [1, 1]} : vector<34x32xf32> to vector<1x32xf32>
    %cst_299 = arith.constant dense<0.000000e+00> : vector<1x10xf32>
    %529 = tpu.matmul %528, %526, %cst_299 {dimension_numbers = #tpu.dot_dimension_numbers<[1], [0], [0], [1], [0, 0, 1, 1], [], []>} : vector<1x32xf32>, vector<32x10xf32>, vector<1x10xf32> -> vector<1x10xf32>
    %530 = arith.addf %529, %527 : vector<1x10xf32>
    %c0_300 = arith.constant 0 : index
    %c0_301 = arith.constant 0 : index
    %531 = vector.load %arg12[%c0_300, %c0_301] : memref<2x10xf32, #tpu.memory_space<vmem>>, vector<1x10xf32>
    tpu.vector_store %arg12[%c0_300, %c0_301], %530 {strides = array<i32>} : memref<2x10xf32, #tpu.memory_space<vmem>>, vector<1x10xf32>,
    %532 = vector.extract_strided_slice %525 {offsets = [17, 0], sizes = [1, 32], strides = [1, 1]} : vector<34x32xf32> to vector<1x32xf32>
    %cst_302 = arith.constant dense<0.000000e+00> : vector<1x10xf32>
    %533 = tpu.matmul %532, %526, %cst_302 {dimension_numbers = #tpu.dot_dimension_numbers<[1], [0], [0], [1], [0, 0, 1, 1], [], []>} : vector<1x32xf32>, vector<32x10xf32>, vector<1x10xf32> -> vector<1x10xf32>
    %534 = arith.addf %533, %527 : vector<1x10xf32>
    %c1_303 = arith.constant 1 : index
    %c0_304 = arith.constant 0 : index
    %535 = vector.load %arg12[%c1_303, %c0_304] : memref<2x10xf32, #tpu.memory_space<vmem>>, vector<1x10xf32>
    tpu.vector_store %arg12[%c1_303, %c0_304], %534 {strides = array<i32>} : memref<2x10xf32, #tpu.memory_space<vmem>>, vector<1x10xf32>,
    return
  }
}

</mosaic_0001>

<llo_original>
// kernel: vit_lite_forward.1
$region0: #{vit_lite_forward.1}
  #allocation0 [shape = 'u32[]', space=smem, size = 0x4, offset = 0x4, fixed_abs, tag = 'smem constant byte address 0x4 - core index']
  #allocation1 [shape = 'u32[144,128]{1,0:T(1,128)}', space=vmem, size = 0x12000, scoped, tag = 'internal scratch']
  #allocation2 [shape = 'f32[34,32]{1,0:T(8,128)}', space=vmem, size = 0x5000, scoped, tag = 'scratch operand']
  %s0 = inlined_call_operand.vmem [shape: f32[32,64], index: 0, kind: input, shape index: {}]
  %s1 = inlined_call_operand.vmem [shape: f32[2,32], index: 1, kind: input, shape index: {}]
  %s2 = inlined_call_operand.vmem [shape: f32[32,32], index: 2, kind: input, shape index: {}]
  %s3 = inlined_call_operand.vmem [shape: f32[64,32], index: 3, kind: input, shape index: {}]
  %s4 = inlined_call_operand.vmem [shape: f32[1,32], index: 4, kind: input, shape index: {}]
  %s5 = inlined_call_operand.vmem [shape: f32[2,4,32,32], index: 5, kind: input, shape index: {}]
  %s6 = inlined_call_operand.vmem [shape: f32[2,4,1,32], index: 6, kind: input, shape index: {}]
  %s7 = inlined_call_operand.vmem [shape: f32[2,2,32,32], index: 7, kind: input, shape index: {}]
  %s8 = inlined_call_operand.vmem [shape: f32[2,2,1,32], index: 8, kind: input, shape index: {}]
  %s9 = inlined_call_operand.vmem [shape: f32[2,4,1,32], index: 9, kind: input, shape index: {}]
  %s10 = inlined_call_operand.vmem [shape: f32[32,10], index: 10, kind: input, shape index: {}]
  %s11 = inlined_call_operand.vmem [shape: f32[1,10], index: 11, kind: input, shape index: {}]
  %s12 = inlined_call_operand.hbm [shape: f32[2,10], index: 12, kind: output, shape index: {}]
  %s13 = sld [smem:[#allocation0]]
  $region58: #{vit_lite_forward.1} parent=0
    _
  %s15 = ssub.s32 1, %s13
  %s16 = scalar_select 0, %s15, %s13
  $region1: #{vit_lite_forward.1} parent=0
    #allocation3 [shape = 'u8[1024]{0}', space=vmem, size = 0x400, scoped, tag = 'output window, operand 0, single buffered']
    #allocation4 [shape = 's32[1]{0}', space=sflag, size = 0x4, scoped, tag = 'scoped memory for vit_lite_forward.1']
    %17 = vsyncpa [#allocation4], 0
    // Predicated region
    $region2: #{vit_lite_forward.1} parent=1 // pred_check
      _
    $region3: #{vit_lite_forward.1} parent=1 // pred_check_branch
      %19 = sbr.rel (0) target = $region5
    $region4: #{vit_lite_forward.1} parent=1 // pred_region
      _
    $region5: #{vit_lite_forward.1} parent=1 // pred_fallthru
      _
    // Predicated region
    $region6: #{vit_lite_forward.1} parent=1 // pred_check
      _
    $region7: #{vit_lite_forward.1} parent=1 // pred_check_branch
      %21 = sbr.rel (0) target = $region9
    $region8: #{vit_lite_forward.1} parent=1 // pred_region
      _
    $region9: #{vit_lite_forward.1} parent=1 // pred_fallthru
      _
    // Predicated region
    $region10: #{vit_lite_forward.1} parent=1 // pred_check
      _
    $region11: #{vit_lite_forward.1} parent=1 // pred_check_branch
      %23 = sbr.rel (0) target = $region13
    $region12: #{vit_lite_forward.1} parent=1 // pred_region
      _
    $region13: #{vit_lite_forward.1} parent=1 // pred_fallthru
      _
    // Predicated region
    $region14: #{vit_lite_forward.1} parent=1 // pred_check
      _
    $region15: #{vit_lite_forward.1} parent=1 // pred_check_branch
      %25 = sbr.rel (0) target = $region17
    $region16: #{vit_lite_forward.1} parent=1 // pred_region
      _
    $region17: #{vit_lite_forward.1} parent=1 // pred_fallthru
      _
    // Predicated region
    $region18: #{vit_lite_forward.1} parent=1 // pred_check
      _
    $region19: #{vit_lite_forward.1} parent=1 // pred_check_branch
      %27 = sbr.rel (0) target = $region21
    $region20: #{vit_lite_forward.1} parent=1 // pred_region
      _
    $region21: #{vit_lite_forward.1} parent=1 // pred_fallthru
      _
    // Predicated region
    $region22: #{vit_lite_forward.1} parent=1 // pred_check
      _
    $region23: #{vit_lite_forward.1} parent=1 // pred_check_branch
      %29 = sbr.rel (0) target = $region25
    $region24: #{vit_lite_forward.1} parent=1 // pred_region
      _
    $region25: #{vit_lite_forward.1} parent=1 // pred_fallthru
      _
    // Predicated region
    $region26: #{vit_lite_forward.1} parent=1 // pred_check
      _
    $region27: #{vit_lite_forward.1} parent=1 // pred_check_branch
      %31 = sbr.rel (0) target = $region29
    $region28: #{vit_lite_forward.1} parent=1 // pred_region
      _
    $region29: #{vit_lite_forward.1} parent=1 // pred_fallthru
      _
    // Predicated region
    $region30: #{vit_lite_forward.1} parent=1 // pred_check
      _
    $region31: #{vit_lite_forward.1} parent=1 // pred_check_branch
      %33 = sbr.rel (0) target = $region33
    $region32: #{vit_lite_forward.1} parent=1 // pred_region
      _
    $region33: #{vit_lite_forward.1} parent=1 // pred_fallthru
      _
    // Predicated region
    $region34: #{vit_lite_forward.1} parent=1 // pred_check
      _
    $region35: #{vit_lite_forward.1} parent=1 // pred_check_branch
      %35 = sbr.rel (0) target = $region37
    $region36: #{vit_lite_forward.1} parent=1 // pred_region
      _
    $region37: #{vit_lite_forward.1} parent=1 // pred_fallthru
      _
    // Predicated region
    $region38: #{vit_lite_forward.1} parent=1 // pred_check
      _
    $region39: #{vit_lite_forward.1} parent=1 // pred_check_branch
      %37 = sbr.rel (0) target = $region41
    $region40: #{vit_lite_forward.1} parent=1 // pred_region
      _
    $region41: #{vit_lite_forward.1} parent=1 // pred_fallthru
      _
    // Predicated region
    $region42: #{vit_lite_forward.1} parent=1 // pred_check
      _
    $region43: #{vit_lite_forward.1} parent=1 // pred_check_branch
      %39 = sbr.rel (0) target = $region45
    $region44: #{vit_lite_forward.1} parent=1 // pred_region
      _
    $region45: #{vit_lite_forward.1} parent=1 // pred_fallthru
      _
    // Predicated region
    $region46: #{vit_lite_forward.1} parent=1 // pred_check
      _
    $region47: #{vit_lite_forward.1} parent=1 // pred_check_branch
      %41 = sbr.rel (0) target = $region49
    $region48: #{vit_lite_forward.1} parent=1 // pred_region
      _
    $region49: #{vit_lite_forward.1} parent=1 // pred_fallthru
      _
    %v42 = vld [vmem:[%s0] sm:$0xff]
    %v43 = vld [vmem:[%s0 + $0x8] sm:$0xff]
    %v44 = vld [vmem:[%s0 + $0x10] sm:$0xff]
    %v45 = vld [vmem:[%s0 + $0x18] sm:$0xff]
    %v46 = vld [vmem:[%s3] sm:$0xff]
    %v47 = vld [vmem:[%s3 + $0x8] sm:$0xff]
    %v48 = vld [vmem:[%s3 + $0x10] sm:$0xff]
    %v49 = vld [vmem:[%s3 + $0x18] sm:$0xff]
    %v50 = vld [vmem:[%s3 + $0x20] sm:$0xff]
    %v51 = vld [vmem:[%s3 + $0x28] sm:$0xff]
    %v52 = vld [vmem:[%s3 + $0x30] sm:$0xff]
    %v53 = vld [vmem:[%s3 + $0x38] sm:$0xff]
    %v54 = vld [vmem:[%s4] sm:$0x1]
    %v56 = vlaneseq
    %v57 = vshrl.u32 %v56, 7
    %v58 = vsub.s32 0, %v57
    %v59 = vrot.slane %v54, %v58
    %vm61 = vcmask 523264
    %v63 = vsel %vm61, %v42, 0
    %v66 = vsel %vm61, %v43, 0
    %v69 = vsel %vm61, %v44, 0
    %v72 = vsel %vm61, %v45, 0
    %74 = vmatprep.subr.mxu0 0.0
    %75 = vmatpush1.msra.mxu0 %v46
    %76 = vmatprep.subr.mxu0 0.0
    %77 = vmatpush1.msra.mxu0 %v47
    %78 = vmatprep.subr.mxu0 0.0
    %79 = vmatpush1.msra.mxu0 %v48
    %80 = vmatprep.subr.mxu0 0.0
    %81 = vmatpush1.msra.mxu0 %v49
    %82 = vmatprep.subr.mxu0 0.0
    %83 = vmatpush1.msra.mxu0 %v50
    %84 = vmatprep.subr.mxu0 0.0
    %85 = vmatpush1.msra.mxu0 %v51
    %86 = vmatprep.subr.mxu0 0.0
    %87 = vmatpush1.msra.mxu0 %v52
    %88 = vmatprep.subr.mxu0 0.0
    %89 = vmatpush1.msra.mxu0 %v53
    %90 = vmatprep.subr.mxu0 0.0
    %91 = vmatpush1.msra.mxu0 0.0
    %92 = vmatprep.subr.mxu0 0.0
    %93 = vmatpush1.msra.mxu0 0.0
    %94 = vmatprep.subr.mxu0 0.0
    %95 = vmatpush1.msra.mxu0 0.0
    %96 = vmatprep.subr.mxu0 0.0
    %97 = vmatpush1.msra.mxu0 0.0
    %98 = vmatprep.subr.mxu0 0.0
    %99 = vmatpush1.msra.mxu0 0.0
    %100 = vmatprep.subr.mxu0 0.0
    %101 = vmatpush1.msra.mxu0 0.0
    %102 = vmatprep.subr.mxu0 0.0
    %103 = vmatpush1.msra.mxu0 0.0
    %104 = vmatprep.subr.mxu0 0.0
    %105 = vmatpush1.msra.mxu0 0.0
    %106 = vmatprep.subr.mxu0 0.0
    %107 = vmatpush1.msra.mxu0 0.0
    %108 = vmatprep.subr.mxu0 0.0
    %109 = vmatpush1.msra.mxu0 0.0
    %110 = vmatprep.subr.mxu0 0.0
    %111 = vmatpush1.msra.mxu0 0.0
    %112 = vmatprep.subr.mxu0 0.0
    %113 = vmatpush1.msra.mxu0 0.0
    %114 = vmatprep.subr.mxu0 0.0
    %115 = vmatpush1.msra.mxu0 0.0
    %116 = vmatprep.subr.mxu0 0.0
    %117 = vmatpush1.msra.mxu0 0.0
    %118 = vmatprep.subr.mxu0 0.0
    %119 = vmatpush1.msra.mxu0 0.0
    %120 = vmatprep.subr.mxu0 0.0
    %121 = vmatpush1.msra.mxu0 0.0
    %122 = vmatprep.subr.mxu0 0.0
    %123 = vmatpush1.msra.mxu0 0.0
    %124 = vmatprep.subr.mxu0 0.0
    %125 = vmatpush1.msra.mxu0 0.0
    %126 = vmatprep.subr.mxu0 0.0
    %127 = vmatpush1.msra.mxu0 0.0
    %128 = vmatprep.subr.mxu0 0.0
    %129 = vmatpush1.msra.mxu0 0.0
    %130 = vmatprep.subr.mxu0 0.0
    %131 = vmatpush1.msra.mxu0 0.0
    %132 = vmatprep.subr.mxu0 0.0
    %133 = vmatpush1.msra.mxu0 0.0
    %134 = vmatprep.subr.mxu0 0.0
    %135 = vmatpush1.msra.mxu0 0.0
    %136 = vmatprep.subr.mxu0 0.0
    %137 = vmatpush1.msra.mxu0 0.0
    %138 = vmatprep.mubr.f32.mxu0 0.0
    %139 = vmatmul.mubr.f32.gmra.mrb[0].mxu0 %v63
    %v140 = vpop.f32.mrb[0].mxu0
    %v141 = vadd.f32 %v59, %v140
    %v142 = vpop.f32.mrb[0].mxu0
    %143 = vmatprep.mubr.f32.mxu0 0.0
    %144 = vmatmul.mubr.f32.gmra.mrb[0].mxu0 %v66
    %v145 = vpop.f32.mrb[0].mxu0
    %v146 = vadd.f32 %v59, %v145
    %v147 = vpop.f32.mrb[0].mxu0
    %148 = vmatprep.mubr.f32.mxu0 0.0
    %149 = vmatmul.mubr.f32.gmra.mrb[0].mxu0 %v69
    %v150 = vpop.f32.mrb[0].mxu0
    %v151 = vadd.f32 %v59, %v150
    %v152 = vpop.f32.mrb[0].mxu0
    %153 = vmatprep.mubr.f32.mxu0 0.0
    %154 = vmatmul.mubr.f32.gmra.mrb[0].mxu0 %v72
    %v155 = vpop.f32.mrb[0].mxu0
    %v156 = vadd.f32 %v59, %v155
    %v157 = vpop.f32.mrb[0].mxu0
    %158 = vdwg.mxu0
    %v159 = vld [vmem:[%s2] sm:$0xff]
    %v160 = vld [vmem:[%s2 + $0x8] sm:$0xff]
    %v161 = vld [vmem:[%s2 + $0x10] sm:$0xff]
    %v162 = vld [vmem:[%s2 + $0x18] sm:$0xff]
    %v163 = vadd.f32 %v141, %v159
    %v164 = vadd.f32 %v146, %v160
    %v165 = vadd.f32 %v151, %v161
    %v166 = vadd.f32 %v156, %v162
    %v167 = vld [vmem:[%s1] sm:$0x3]
    %vm168 = vcmask 253952
    %169 = vst.msk [vmem:[#allocation2] sm:$0x1] %vm168, %v167
    %vm170 = vcmask 261120
    %171 = vst.msk [vmem:[#allocation2 + $0x1] sm:$0xff] %vm170, %v163
    %172 = vst.msk [vmem:[#allocation2 + $0x9] sm:$0xff] %vm170, %v164
    %vm173 = vcmask 254977
    %174 = vst.msk [vmem:[#allocation2 + $0x10] sm:$0x2] %vm173, %v167
    %175 = vst.msk [vmem:[#allocation2 + $0x12] sm:$0xff] %vm170, %v165
    %176 = vst.msk [vmem:[#allocation2 + $0x1a] sm:$0xff] %vm170, %v166
    %v177 = vld [vmem:[#allocation2] sm:$0xff]
    %v178 = vld [vmem:[#allocation2 + $0x8] sm:$0xff]
    %v179 = vld [vmem:[#allocation2 + $0x10] sm:$0xff]
    %v180 = vld [vmem:[#allocation2 + $0x18] sm:$0xff]
    %v181 = vld [vmem:[#allocation2 + $0x20] sm:$0x3]
    %v182 = vld [vmem:[%s5] sm:$0xff]
    %v183 = vld [vmem:[%s5 + $0x8] sm:$0xff]
    %v184 = vld [vmem:[%s5 + $0x10] sm:$0xff]
    %v185 = vld [vmem:[%s5 + $0x18] sm:$0xff]
    %v186 = vld [vmem:[%s6] sm:$0x1]
    %v188 = vlaneseq
    %v189 = vshrl.u32 %v188, 7
    %v190 = vsub.s32 0, %v189
    %v191 = vrot.slane %v186, %v190
    %v194 = vsel %vm170, %v177, 0
    %v197 = vsel %vm170, %v178, 0
    %v200 = vsel %vm170, %v179, 0
    %v203 = vsel %vm170, %v180, 0
    %v206 = vsel %vm170, %v181, 0
    %208 = vmatprep.subr.mxu0 0.0
    %209 = vmatpush1.msra.mxu0 %v182
    %210 = vmatprep.subr.mxu0 0.0
    %211 = vmatpush1.msra.mxu0 %v183
    %212 = vmatprep.subr.mxu0 0.0
    %213 = vmatpush1.msra.mxu0 %v184
    %214 = vmatprep.subr.mxu0 0.0
    %215 = vmatpush1.msra.mxu0 %v185
    %216 = vmatprep.subr.mxu0 0.0
    %217 = vmatpush1.msra.mxu0 0.0
    %218 = vmatprep.subr.mxu0 0.0
    %219 = vmatpush1.msra.mxu0 0.0
    %220 = vmatprep.subr.mxu0 0.0
    %221 = vmatpush1.msra.mxu0 0.0
    %222 = vmatprep.subr.mxu0 0.0
    %223 = vmatpush1.msra.mxu0 0.0
    %224 = vmatprep.subr.mxu0 0.0
    %225 = vmatpush1.msra.mxu0 0.0
    %226 = vmatprep.subr.mxu0 0.0
    %227 = vmatpush1.msra.mxu0 0.0
    %228 = vmatprep.subr.mxu0 0.0
    %229 = vmatpush1.msra.mxu0 0.0
    %230 = vmatprep.subr.mxu0 0.0
    %231 = vmatpush1.msra.mxu0 0.0
    %232 = vmatprep.subr.mxu0 0.0
    %233 = vmatpush1.msra.mxu0 0.0
    %234 = vmatprep.subr.mxu0 0.0
    %235 = vmatpush1.msra.mxu0 0.0
    %236 = vmatprep.subr.mxu0 0.0
    %237 = vmatpush1.msra.mxu0 0.0
    %238 = vmatprep.subr.mxu0 0.0
    %239 = vmatpush1.msra.mxu0 0.0
    %240 = vmatprep.subr.mxu0 0.0
    %241 = vmatpush1.msra.mxu0 0.0
    %242 = vmatprep.subr.mxu0 0.0
    %243 = vmatpush1.msra.mxu0 0.0
    %244 = vmatprep.subr.mxu0 0.0
    %245 = vmatpush1.msra.mxu0 0.0
    %246 = vmatprep.subr.mxu0 0.0
    %247 = vmatpush1.msra.mxu0 0.0
    %248 = vmatprep.subr.mxu0 0.0
    %249 = vmatpush1.msra.mxu0 0.0
    %250 = vmatprep.subr.mxu0 0.0
    %251 = vmatpush1.msra.mxu0 0.0
    %252 = vmatprep.subr.mxu0 0.0
    %253 = vmatpush1.msra.mxu0 0.0
    %254 = vmatprep.subr.mxu0 0.0
    %255 = vmatpush1.msra.mxu0 0.0
    %256 = vmatprep.subr.mxu0 0.0
    %257 = vmatpush1.msra.mxu0 0.0
    %258 = vmatprep.subr.mxu0 0.0
    %259 = vmatpush1.msra.mxu0 0.0
    %260 = vmatprep.subr.mxu0 0.0
    %261 = vmatpush1.msra.mxu0 0.0
    %262 = vmatprep.subr.mxu0 0.0
    %263 = vmatpush1.msra.mxu0 0.0
    %264 = vmatprep.subr.mxu0 0.0
    %265 = vmatpush1.msra.mxu0 0.0
    %266 = vmatprep.subr.mxu0 0.0
    %267 = vmatpush1.msra.mxu0 0.0
    %268 = vmatprep.subr.mxu0 0.0
    %269 = vmatpush1.msra.mxu0 0.0
    %270 = vmatprep.subr.mxu0 0.0
    %271 = vmatpush1.msra.mxu0 0.0
    %272 = vmatprep.mubr.f32.mxu0 0.0
    %273 = vmatmul.mubr.f32.gmra.mrb[0].mxu0 %v194
    %v274 = vpop.f32.mrb[0].mxu0
    %v275 = vadd.f32 %v191, %v274
    %v276 = vpop.f32.mrb[0].mxu0
    %277 = vmatprep.mubr.f32.mxu0 0.0
    %278 = vmatmul.mubr.f32.gmra.mrb[0].mxu0 %v197
    %v279 = vpop.f32.mrb[0].mxu0
    %v280 = vadd.f32 %v191, %v279
    %v281 = vpop.f32.mrb[0].mxu0
    %282 = vmatprep.mubr.f32.mxu0 0.0
    %283 = vmatmul.mubr.f32.gmra.mrb[0].mxu0 %v200
    %v284 = vpop.f32.mrb[0].mxu0
    %v285 = vadd.f32 %v191, %v284
    %v286 = vpop.f32.mrb[0].mxu0
    %287 = vmatprep.mubr.f32.mxu0 0.0
    %288 = vmatmul.mubr.f32.gmra.mrb[0].mxu0 %v203
    %v289 = vpop.f32.mrb[0].mxu0
    %v290 = vadd.f32 %v191, %v289
    %v291 = vpop.f32.mrb[0].mxu0
    %292 = vmatprep.mubr.f32.mxu0 0.0
    %293 = vmatmul.mubr.f32.gmra.mrb[0].mxu0 %v206
    %v294 = vpop.f32.mrb[0].mxu0
    %v295 = vadd.f32 %v191, %v294
    %v296 = vpop.f32.mrb[0].mxu0
    %297 = vdwg.mxu0
    %s298 = scalar_lea.vmem %s5, 32
    %v299 = vld [vmem:[%s298] sm:$0xff]
    %v300 = vld [vmem:[%s298 + $0x8] sm:$0xff]
    %v301 = vld [vmem:[%s298 + $0x10] sm:$0xff]
    %v302 = vld [vmem:[%s298 + $0x18] sm:$0xff]
    %s303 = scalar_lea.vmem %s6, 1
    %v304 = vld [vmem:[%s303] sm:$0x1]
    %v306 = vlaneseq
    %v307 = vshrl.u32 %v306, 7
    %v308 = vsub.s32 0, %v307
    %v309 = vrot.slane %v304, %v308
    %311 = vmatprep.subr.mxu0 0.0
    %312 = vmatpush1.msra.mxu0 %v299
    %313 = vmatprep.subr.mxu0 0.0
    %314 = vmatpush1.msra.mxu0 %v300
    %315 = vmatprep.subr.mxu0 0.0
    %316 = vmatpush1.msra.mxu0 %v301
    %317 = vmatprep.subr.mxu0 0.0
    %318 = vmatpush1.msra.mxu0 %v302
    %319 = vmatprep.subr.mxu0 0.0
    %320 = vmatpush1.msra.mxu0 0.0
    %321 = vmatprep.subr.mxu0 0.0
    %322 = vmatpush1.msra.mxu0 0.0
    %323 = vmatprep.subr.mxu0 0.0
    %324 = vmatpush1.msra.mxu0 0.0
    %325 = vmatprep.subr.mxu0 0.0
    %326 = vmatpush1.msra.mxu0 0.0
    %327 = vmatprep.subr.mxu0 0.0
    %328 = vmatpush1.msra.mxu0 0.0
    %329 = vmatprep.subr.mxu0 0.0
    %330 = vmatpush1.msra.mxu0 0.0
    %331 = vmatprep.subr.mxu0 0.0
    %332 = vmatpush1.msra.mxu0 0.0
    %333 = vmatprep.subr.mxu0 0.0
    %334 = vmatpush1.msra.mxu0 0.0
    %335 = vmatprep.subr.mxu0 0.0
    %336 = vmatpush1.msra.mxu0 0.0
    %337 = vmatprep.subr.mxu0 0.0
    %338 = vmatpush1.msra.mxu0 0.0
    %339 = vmatprep.subr.mxu0 0.0
    %340 = vmatpush1.msra.mxu0 0.0
    %341 = vmatprep.subr.mxu0 0.0
    %342 = vmatpush1.msra.mxu0 0.0
    %343 = vmatprep.subr.mxu0 0.0
    %344 = vmatpush1.msra.mxu0 0.0
    %345 = vmatprep.subr.mxu0 0.0
    %346 = vmatpush1.msra.mxu0 0.0
    %347 = vmatprep.subr.mxu0 0.0
    %348 = vmatpush1.msra.mxu0 0.0
    %349 = vmatprep.subr.mxu0 0.0
    %350 = vmatpush1.msra.mxu0 0.0
    %351 = vmatprep.subr.mxu0 0.0
    %352 = vmatpush1.msra.mxu0 0.0
    %353 = vmatprep.subr.mxu0 0.0
    %354 = vmatpush1.msra.mxu0 0.0
    %355 = vmatprep.subr.mxu0 0.0
    %356 = vmatpush1.msra.mxu0 0.0
    %357 = vmatprep.subr.mxu0 0.0
    %358 = vmatpush1.msra.mxu0 0.0
    %359 = vmatprep.subr.mxu0 0.0
    %360 = vmatpush1.msra.mxu0 0.0
    %361 = vmatprep.subr.mxu0 0.0
    %362 = vmatpush1.msra.mxu0 0.0
    %363 = vmatprep.subr.mxu0 0.0
    %364 = vmatpush1.msra.mxu0 0.0
    %365 = vmatprep.subr.mxu0 0.0
    %366 = vmatpush1.msra.mxu0 0.0
    %367 = vmatprep.subr.mxu0 0.0
    %368 = vmatpush1.msra.mxu0 0.0
    %369 = vmatprep.subr.mxu0 0.0
    %370 = vmatpush1.msra.mxu0 0.0
    %371 = vmatprep.subr.mxu0 0.0
    %372 = vmatpush1.msra.mxu0 0.0
    %373 = vmatprep.subr.mxu0 0.0
    %374 = vmatpush1.msra.mxu0 0.0
    %375 = vmatprep.mubr.f32.mxu0 0.0
    %376 = vmatmul.mubr.f32.gmra.mrb[0].mxu0 %v194
    %v377 = vpop.f32.mrb[0].mxu0
    %v378 = vadd.f32 %v309, %v377
    %v379 = vpop.f32.mrb[0].mxu0
    %380 = vmatprep.mubr.f32.mxu0 0.0
    %381 = vmatmul.mubr.f32.gmra.mrb[0].mxu0 %v197
    %v382 = vpop.f32.mrb[0].mxu0
    %v383 = vadd.f32 %v309, %v382
    %v384 = vpop.f32.mrb[0].mxu0
    %385 = vmatprep.mubr.f32.mxu0 0.0
    %386 = vmatmul.mubr.f32.gmra.mrb[0].mxu0 %v200
    %v387 = vpop.f32.mrb[0].mxu0
    %v388 = vadd.f32 %v309, %v387
    %v389 = vpop.f32.mrb[0].mxu0
    %390 = vmatprep.mubr.f32.mxu0 0.0
    %391 = vmatmul.mubr.f32.gmra.mrb[0].mxu0 %v203
    %v392 = vpop.f32.mrb[0].mxu0
    %v393 = vadd.f32 %v309, %v392
    %v394 = vpop.f32.mrb[0].mxu0
    %395 = vmatprep.mubr.f32.mxu0 0.0
    %396 = vmatmul.mubr.f32.gmra.mrb[0].mxu0 %v206
    %v397 = vpop.f32.mrb[0].mxu0
    %v398 = vadd.f32 %v309, %v397
    %v399 = vpop.f32.mrb[0].mxu0
    %400 = vdwg.mxu0
    %s401 = scalar_lea.vmem %s5, 64
    %v402 = vld [vmem:[%s401] sm:$0xff]
    %v403 = vld [vmem:[%s401 + $0x8] sm:$0xff]
    %v404 = vld [vmem:[%s401 + $0x10] sm:$0xff]
    %v405 = vld [vmem:[%s401 + $0x18] sm:$0xff]
    %s406 = scalar_lea.vmem %s6, 2
    %v407 = vld [vmem:[%s406] sm:$0x1]
    %v409 = vlaneseq
    %v410 = vshrl.u32 %v409, 7
    %v411 = vsub.s32 0, %v410
    %v412 = vrot.slane %v407, %v411
    %414 = vmatprep.subr.mxu0 0.0
    %415 = vmatpush1.msra.mxu0 %v402
    %416 = vmatprep.subr.mxu0 0.0
    %417 = vmatpush1.msra.mxu0 %v403
    %418 = vmatprep.subr.mxu0 0.0
    %419 = vmatpush1.msra.mxu0 %v404
    %420 = vmatprep.subr.mxu0 0.0
    %421 = vmatpush1.msra.mxu0 %v405
    %422 = vmatprep.subr.mxu0 0.0
    %423 = vmatpush1.msra.mxu0 0.0
    %424 = vmatprep.subr.mxu0 0.0
    %425 = vmatpush1.msra.mxu0 0.0
    %426 = vmatprep.subr.mxu0 0.0
    %427 = vmatpush1.msra.mxu0 0.0
    %428 = vmatprep.subr.mxu0 0.0
    %429 = vmatpush1.msra.mxu0 0.0
    %430 = vmatprep.subr.mxu0 0.0
    %431 = vmatpush1.msra.mxu0 0.0
    %432 = vmatprep.subr.mxu0 0.0
    %433 = vmatpush1.msra.mxu0 0.0
    %434 = vmatprep.subr.mxu0 0.0
    %435 = vmatpush1.msra.mxu0 0.0
    %436 = vmatprep.subr.mxu0 0.0
    %437 = vmatpush1.msra.mxu0 0.0
    %438 = vmatprep.subr.mxu0 0.0
    %439 = vmatpush1.msra.mxu0 0.0
    %440 = vmatprep.subr.mxu0 0.0
    %441 = vmatpush1.msra.mxu0 0.0
    %442 = vmatprep.subr.mxu0 0.0
    %443 = vmatpush1.msra.mxu0 0.0
    %444 = vmatprep.subr.mxu0 0.0
    %445 = vmatpush1.msra.mxu0 0.0
    %446 = vmatprep.subr.mxu0 0.0
    %447 = vmatpush1.msra.mxu0 0.0
    %448 = vmatprep.subr.mxu0 0.0
    %449 = vmatpush1.msra.mxu0 0.0
    %450 = vmatprep.subr.mxu0 0.0
    %451 = vmatpush1.msra.mxu0 0.0
    %452 = vmatprep.subr.mxu0 0.0
    %453 = vmatpush1.msra.mxu0 0.0
    %454 = vmatprep.subr.mxu0 0.0
    %455 = vmatpush1.msra.mxu0 0.0
    %456 = vmatprep.subr.mxu0 0.0
    %457 = vmatpush1.msra.mxu0 0.0
    %458 = vmatprep.subr.mxu0 0.0
    %459 = vmatpush1.msra.mxu0 0.0
    %460 = vmatprep.subr.mxu0 0.0
    %461 = vmatpush1.msra.mxu0 0.0
    %462 = vmatprep.subr.mxu0 0.0
    %463 = vmatpush1.msra.mxu0 0.0
    %464 = vmatprep.subr.mxu0 0.0
    %465 = vmatpush1.msra.mxu0 0.0
    %466 = vmatprep.subr.mxu0 0.0
    %467 = vmatpush1.msra.mxu0 0.0
    %468 = vmatprep.subr.mxu0 0.0
    %469 = vmatpush1.msra.mxu0 0.0
    %470 = vmatprep.subr.mxu0 0.0
    %471 = vmatpush1.msra.mxu0 0.0
    %472 = vmatprep.subr.mxu0 0.0
    %473 = vmatpush1.msra.mxu0 0.0
    %474 = vmatprep.subr.mxu0 0.0
    %475 = vmatpush1.msra.mxu0 0.0
    %476 = vmatprep.subr.mxu0 0.0
    %477 = vmatpush1.msra.mxu0 0.0
    %478 = vmatprep.mubr.f32.mxu0 0.0
    %479 = vmatmul.mubr.f32.gmra.mrb[0].mxu0 %v194
    %v480 = vpop.f32.mrb[0].mxu0
    %v481 = vadd.f32 %v412, %v480
    %v482 = vpop.f32.mrb[0].mxu0
    %483 = vmatprep.mubr.f32.mxu0 0.0
    %484 = vmatmul.mubr.f32.gmra.mrb[0].mxu0 %v197
    %v485 = vpop.f32.mrb[0].mxu0
    %v486 = vadd.f32 %v412, %v485
    %v487 = vpop.f32.mrb[0].mxu0
    %488 = vmatprep.mubr.f32.mxu0 0.0
    %489 = vmatmul.mubr.f32.gmra.mrb[0].mxu0 %v200
    %v490 = vpop.f32.mrb[0].mxu0
    %v491 = vadd.f32 %v412, %v490
    %v492 = vpop.f32.mrb[0].mxu0
    %493 = vmatprep.mubr.f32.mxu0 0.0
    %494 = vmatmul.mubr.f32.gmra.mrb[0].mxu0 %v203
    %v495 = vpop.f32.mrb[0].mxu0
    %v496 = vadd.f32 %v412, %v495
    %v497 = vpop.f32.mrb[0].mxu0
    %498 = vmatprep.mubr.f32.mxu0 0.0
    %499 = vmatmul.mubr.f32.gmra.mrb[0].mxu0 %v206
    %v500 = vpop.f32.mrb[0].mxu0
    %v501 = vadd.f32 %v412, %v500
    %v502 = vpop.f32.mrb[0].mxu0
    %503 = vdwg.mxu0
    %vm504 = vcmask 64512
    %v506 = vsel %vm504, %v275, 0
    %v509 = vsel %vm504, %v280, 0
    %v512 = vsel %vm504, %v285, 0
    %v515 = vsel %vm504, %v378, 0
    %v518 = vsel %vm504, %v383, 0
    %v521 = vsel %vm504, %v388, 0
    %523 = vmatprep.subr.mxu0 0.0
    %524 = vmatpush1.xpose.msra.mxu0 %v515
    %525 = vmatprep.subr.mxu0 0.0
    %526 = vmatpush1.xpose.msra.mxu0 %v518
    %527 = vmatprep.subr.mxu0 0.0
    %528 = vmatpush1.xpose.msra.mxu0 %v521
    %529 = vmatprep.subr.mxu0 0.0
    %530 = vmatpush1.xpose.msra.mxu0 0.0
    %531 = vmatprep.subr.mxu0 0.0
    %532 = vmatpush1.xpose.msra.mxu0 0.0
    %533 = vmatprep.subr.mxu0 0.0
    %534 = vmatpush1.xpose.msra.mxu0 0.0
    %535 = vmatprep.subr.mxu0 0.0
    %536 = vmatpush1.xpose.msra.mxu0 0.0
    %537 = vmatprep.subr.mxu0 0.0
    %538 = vmatpush1.xpose.msra.mxu0 0.0
    %539 = vmatprep.subr.mxu0 0.0
    %540 = vmatpush1.xpose.msra.mxu0 0.0
    %541 = vmatprep.subr.mxu0 0.0
    %542 = vmatpush1.xpose.msra.mxu0 0.0
    %543 = vmatprep.subr.mxu0 0.0
    %544 = vmatpush1.xpose.msra.mxu0 0.0
    %545 = vmatprep.subr.mxu0 0.0
    %546 = vmatpush1.xpose.msra.mxu0 0.0
    %547 = vmatprep.subr.mxu0 0.0
    %548 = vmatpush1.xpose.msra.mxu0 0.0
    %549 = vmatprep.subr.mxu0 0.0
    %550 = vmatpush1.xpose.msra.mxu0 0.0
    %551 = vmatprep.subr.mxu0 0.0
    %552 = vmatpush1.xpose.msra.mxu0 0.0
    %553 = vmatprep.subr.mxu0 0.0
    %554 = vmatpush1.xpose.msra.mxu0 0.0
    %555 = vmatprep.subr.mxu0 0.0
    %556 = vmatpush1.xpose.msra.mxu0 0.0
    %557 = vmatprep.subr.mxu0 0.0
    %558 = vmatpush1.xpose.msra.mxu0 0.0
    %559 = vmatprep.subr.mxu0 0.0
    %560 = vmatpush1.xpose.msra.mxu0 0.0
    %561 = vmatprep.subr.mxu0 0.0
    %562 = vmatpush1.xpose.msra.mxu0 0.0
    %563 = vmatprep.subr.mxu0 0.0
    %564 = vmatpush1.xpose.msra.mxu0 0.0
    %565 = vmatprep.subr.mxu0 0.0
    %566 = vmatpush1.xpose.msra.mxu0 0.0
    %567 = vmatprep.subr.mxu0 0.0
    %568 = vmatpush1.xpose.msra.mxu0 0.0
    %569 = vmatprep.subr.mxu0 0.0
    %570 = vmatpush1.xpose.msra.mxu0 0.0
    %571 = vmatprep.subr.mxu0 0.0
    %572 = vmatpush1.xpose.msra.mxu0 0.0
    %573 = vmatprep.subr.mxu0 0.0
    %574 = vmatpush1.xpose.msra.mxu0 0.0
    %575 = vmatprep.subr.mxu0 0.0
    %576 = vmatpush1.xpose.msra.mxu0 0.0
    %577 = vmatprep.subr.mxu0 0.0
    %578 = vmatpush1.xpose.msra.mxu0 0.0
    %579 = vmatprep.subr.mxu0 0.0
    %580 = vmatpush1.xpose.msra.mxu0 0.0
    %581 = vmatprep.subr.mxu0 0.0
    %582 = vmatpush1.xpose.msra.mxu0 0.0
    %583 = vmatprep.subr.mxu0 0.0
    %584 = vmatpush1.xpose.msra.mxu0 0.0
    %585 = vmatprep.subr.mxu0 0.0
    %586 = vmatpush1.xpose.msra.mxu0 0.0
    %587 = vmatprep.mubr.f32.mxu0 0.0
    %588 = vmatmul.mubr.f32.gmra.mrb[0].mxu0 %v506
    %v589 = vpop.f32.mrb[0].mxu0
    %v590 = vadd.f32 0.0, %v589
    %v591 = vpop.f32.mrb[0].mxu0
    %592 = vmatprep.mubr.f32.mxu0 0.0
    %593 = vmatmul.mubr.f32.gmra.mrb[0].mxu0 %v509
    %v594 = vpop.f32.mrb[0].mxu0
    %v595 = vadd.f32 0.0, %v594
    %v596 = vpop.f32.mrb[0].mxu0
    %597 = vmatprep.mubr.f32.mxu0 0.0
    %598 = vmatmul.mubr.f32.gmra.mrb[0].mxu0 %v512
    %v599 = vpop.f32.mrb[0].mxu0
    %v600 = vadd.f32 0.0, %v599
    %v601 = vpop.f32.mrb[0].mxu0
    %602 = vdwg.mxu0
    %v603 = vmul.f32 %v590, 0.35355338
    %v604 = vmul.f32 %v595, 0.35355338
    %v605 = vmul.f32 %v600, 0.35355338
    %vm606 = vcmask 138240
    %v607 = vsel %vm606, %v603, -inf
    %608 = vmax.xlane.f32.xlu0 %v607
    %v609 = vpop.xlane.xlu0 %608
    %v610 = vsel %vm606, %v604, -inf
    %611 = vmax.xlane.f32.xlu0 %v610
    %v612 = vpop.xlane.xlu0 %611
    %vm613 = vcmask 131072
    %v614 = vsel %vm613, %v605, -inf
    %615 = vmax.xlane.f32.xlu0 %v614
    %v616 = vpop.xlane.xlu0 %615
    %v617 = vsub.f32 %v603, %v609
    %v618 = vsub.f32 %v604, %v612
    %v619 = vsub.f32 %v605, %v616
    %v620 = vmul.f32 %v617, 1.442695
    %v621 = vpow.pop %v620
    %v622 = vmul.f32 %v618, 1.442695
    %v623 = vpow.pop %v622
    %v624 = vmul.f32 %v619, 1.442695
    %v625 = vpow.pop %v624
    %v626 = vsel %vm606, %v621, 0.0
    %627 = vadd.xlane.f32.xlu0 %v626
    %v628 = vpop.xlane.xlu0 %627
    %v629 = vsel %vm606, %v623, 0.0
    %630 = vadd.xlane.f32.xlu0 %v629
    %v631 = vpop.xlane.xlu0 %630
    %v632 = vsel %vm613, %v625, 0.0
    %633 = vadd.xlane.f32.xlu0 %v632
    %v634 = vpop.xlane.xlu0 %633
    %v635 = vrcp.pop %v628
    %v636 = vrcp.pop %v631
    %v637 = vrcp.pop %v634
    %v638 = vmul.f32 %v621, %v635
    %v639 = vmul.f32 %v623, %v636
    %v640 = vmul.f32 %v625, %v637
    %v642 = vsel %vm606, %v638, 0
    %v645 = vsel %vm606, %v639, 0
    %v648 = vsel %vm606, %v640, 0
    %vm650 = vcmask 1040384
    %v652 = vsel %vm650, %v491, 0
    %654 = vmatprep.subr.mxu0 0.0
    %655 = vmatpush1.msra.mxu0 %v481
    %656 = vmatprep.subr.mxu0 0.0
    %657 = vmatpush1.msra.mxu0 %v486
    %658 = vmatprep.subr.mxu0 0.0
    %659 = vmatpush1.msra.mxu0 %v652
    %660 = vmatprep.subr.mxu0 0.0
    %661 = vmatpush1.msra.mxu0 0.0
    %662 = vmatprep.subr.mxu0 0.0
    %663 = vmatpush1.msra.mxu0 0.0
    %664 = vmatprep.subr.mxu0 0.0
    %665 = vmatpush1.msra.mxu0 0.0
    %666 = vmatprep.subr.mxu0 0.0
    %667 = vmatpush1.msra.mxu0 0.0
    %668 = vmatprep.subr.mxu0 0.0
    %669 = vmatpush1.msra.mxu0 0.0
    %670 = vmatprep.subr.mxu0 0.0
    %671 = vmatpush1.msra.mxu0 0.0
    %672 = vmatprep.subr.mxu0 0.0
    %673 = vmatpush1.msra.mxu0 0.0
    %674 = vmatprep.subr.mxu0 0.0
    %675 = vmatpush1.msra.mxu0 0.0
    %676 = vmatprep.subr.mxu0 0.0
    %677 = vmatpush1.msra.mxu0 0.0
    %678 = vmatprep.subr.mxu0 0.0
    %679 = vmatpush1.msra.mxu0 0.0
    %680 = vmatprep.subr.mxu0 0.0
    %681 = vmatpush1.msra.mxu0 0.0
    %682 = vmatprep.subr.mxu0 0.0
    %683 = vmatpush1.msra.mxu0 0.0
    %684 = vmatprep.subr.mxu0 0.0
    %685 = vmatpush1.msra.mxu0 0.0
    %686 = vmatprep.subr.mxu0 0.0
    %687 = vmatpush1.msra.mxu0 0.0
    %688 = vmatprep.subr.mxu0 0.0
    %689 = vmatpush1.msra.mxu0 0.0
    %690 = vmatprep.subr.mxu0 0.0
    %691 = vmatpush1.msra.mxu0 0.0
    %692 = vmatprep.subr.mxu0 0.0
    %693 = vmatpush1.msra.mxu0 0.0
    %694 = vmatprep.subr.mxu0 0.0
    %695 = vmatpush1.msra.mxu0 0.0
    %696 = vmatprep.subr.mxu0 0.0
    %697 = vmatpush1.msra.mxu0 0.0
    %698 = vmatprep.subr.mxu0 0.0
    %699 = vmatpush1.msra.mxu0 0.0
    %700 = vmatprep.subr.mxu0 0.0
    %701 = vmatpush1.msra.mxu0 0.0
    %702 = vmatprep.subr.mxu0 0.0
    %703 = vmatpush1.msra.mxu0 0.0
    %704 = vmatprep.subr.mxu0 0.0
    %705 = vmatpush1.msra.mxu0 0.0
    %706 = vmatprep.subr.mxu0 0.0
    %707 = vmatpush1.msra.mxu0 0.0
    %708 = vmatprep.subr.mxu0 0.0
    %709 = vmatpush1.msra.mxu0 0.0
    %710 = vmatprep.subr.mxu0 0.0
    %711 = vmatpush1.msra.mxu0 0.0
    %712 = vmatprep.subr.mxu0 0.0
    %713 = vmatpush1.msra.mxu0 0.0
    %714 = vmatprep.subr.mxu0 0.0
    %715 = vmatpush1.msra.mxu0 0.0
    %716 = vmatprep.subr.mxu0 0.0
    %717 = vmatpush1.msra.mxu0 0.0
    %718 = vmatprep.mubr.f32.mxu0 0.0
    %719 = vmatmul.mubr.f32.gmra.mrb[0].mxu0 %v642
    %v720 = vpop.f32.mrb[0].mxu0
    %v721 = vadd.f32 0.0, %v720
    %v722 = vpop.f32.mrb[0].mxu0
    %723 = vmatprep.mubr.f32.mxu0 0.0
    %724 = vmatmul.mubr.f32.gmra.mrb[0].mxu0 %v645
    %v725 = vpop.f32.mrb[0].mxu0
    %v726 = vadd.f32 0.0, %v725
    %v727 = vpop.f32.mrb[0].mxu0
    %728 = vmatprep.mubr.f32.mxu0 0.0
    %729 = vmatmul.mubr.f32.gmra.mrb[0].mxu0 %v648
    %v730 = vpop.f32.mrb[0].mxu0
    %v731 = vadd.f32 0.0, %v730
    %v732 = vpop.f32.mrb[0].mxu0
    %733 = vdwg.mxu0
    %734 = vst.msk [vmem:[#allocation2] sm:$0xff] %vm504, %v721
    %735 = vst.msk [vmem:[#allocation2 + $0x8] sm:$0xff] %vm504, %v726
    %vm736 = vcmask 57344
    %737 = vst.msk [vmem:[#allocation2 + $0x10] sm:$0x1] %vm736, %v731
    %738 = vrot.lane.b32.xlu0 %v275, 120
    %v739 = vpop.permute.xlu0 %738
    %740 = vrot.lane.b32.xlu0 %v280, 120
    %v741 = vpop.permute.xlu0 %740
    %742 = vrot.lane.b32.xlu0 %v285, 120
    %v743 = vpop.permute.xlu0 %742
    %744 = vrot.lane.b32.xlu0 %v378, 120
    %v745 = vpop.permute.xlu0 %744
    %746 = vrot.lane.b32.xlu0 %v383, 120
    %v747 = vpop.permute.xlu0 %746
    %748 = vrot.lane.b32.xlu0 %v388, 120
    %v749 = vpop.permute.xlu0 %748
    %v750 = vsel %vm504, %v739, 0
    %v752 = vsel %vm504, %v741, 0
    %v754 = vsel %vm504, %v743, 0
    %v756 = vsel %vm504, %v745, 0
    %v758 = vsel %vm504, %v747, 0
    %v760 = vsel %vm504, %v749, 0
    %762 = vmatprep.subr.mxu0 0.0
    %763 = vmatpush1.xpose.msra.mxu0 %v756
    %764 = vmatprep.subr.mxu0 0.0
    %765 = vmatpush1.xpose.msra.mxu0 %v758
    %766 = vmatprep.subr.mxu0 0.0
    %767 = vmatpush1.xpose.msra.mxu0 %v760
    %768 = vmatprep.subr.mxu0 0.0
    %769 = vmatpush1.xpose.msra.mxu0 0.0
    %770 = vmatprep.subr.mxu0 0.0
    %771 = vmatpush1.xpose.msra.mxu0 0.0
    %772 = vmatprep.subr.mxu0 0.0
    %773 = vmatpush1.xpose.msra.mxu0 0.0
    %774 = vmatprep.subr.mxu0 0.0
    %775 = vmatpush1.xpose.msra.mxu0 0.0
    %776 = vmatprep.subr.mxu0 0.0
    %777 = vmatpush1.xpose.msra.mxu0 0.0
    %778 = vmatprep.subr.mxu0 0.0
    %779 = vmatpush1.xpose.msra.mxu0 0.0
    %780 = vmatprep.subr.mxu0 0.0
    %781 = vmatpush1.xpose.msra.mxu0 0.0
    %782 = vmatprep.subr.mxu0 0.0
    %783 = vmatpush1.xpose.msra.mxu0 0.0
    %784 = vmatprep.subr.mxu0 0.0
    %785 = vmatpush1.xpose.msra.mxu0 0.0
    %786 = vmatprep.subr.mxu0 0.0
    %787 = vmatpush1.xpose.msra.mxu0 0.0
    %788 = vmatprep.subr.mxu0 0.0
    %789 = vmatpush1.xpose.msra.mxu0 0.0
    %790 = vmatprep.subr.mxu0 0.0
    %791 = vmatpush1.xpose.msra.mxu0 0.0
    %792 = vmatprep.subr.mxu0 0.0
    %793 = vmatpush1.xpose.msra.mxu0 0.0
    %794 = vmatprep.subr.mxu0 0.0
    %795 = vmatpush1.xpose.msra.mxu0 0.0
    %796 = vmatprep.subr.mxu0 0.0
    %797 = vmatpush1.xpose.msra.mxu0 0.0
    %798 = vmatprep.subr.mxu0 0.0
    %799 = vmatpush1.xpose.msra.mxu0 0.0
    %800 = vmatprep.subr.mxu0 0.0
    %801 = vmatpush1.xpose.msra.mxu0 0.0
    %802 = vmatprep.subr.mxu0 0.0
    %803 = vmatpush1.xpose.msra.mxu0 0.0
    %804 = vmatprep.subr.mxu0 0.0
    %805 = vmatpush1.xpose.msra.mxu0 0.0
    %806 = vmatprep.subr.mxu0 0.0
    %807 = vmatpush1.xpose.msra.mxu0 0.0
    %808 = vmatprep.subr.mxu0 0.0
    %809 = vmatpush1.xpose.msra.mxu0 0.0
    %810 = vmatprep.subr.mxu0 0.0
    %811 = vmatpush1.xpose.msra.mxu0 0.0
    %812 = vmatprep.subr.mxu0 0.0
    %813 = vmatpush1.xpose.msra.mxu0 0.0
    %814 = vmatprep.subr.mxu0 0.0
    %815 = vmatpush1.xpose.msra.mxu0 0.0
    %816 = vmatprep.subr.mxu0 0.0
    %817 = vmatpush1.xpose.msra.mxu0 0.0
    %818 = vmatprep.subr.mxu0 0.0
    %819 = vmatpush1.xpose.msra.mxu0 0.0
    %820 = vmatprep.subr.mxu0 0.0
    %821 = vmatpush1.xpose.msra.mxu0 0.0
    %822 = vmatprep.subr.mxu0 0.0
    %823 = vmatpush1.xpose.msra.mxu0 0.0
    %824 = vmatprep.subr.mxu0 0.0
    %825 = vmatpush1.xpose.msra.mxu0 0.0
    %826 = vmatprep.mubr.f32.mxu0 0.0
    %827 = vmatmul.mubr.f32.gmra.mrb[0].mxu0 %v750
    %v828 = vpop.f32.mrb[0].mxu0
    %v829 = vadd.f32 0.0, %v828
    %v830 = vpop.f32.mrb[0].mxu0
    %831 = vmatprep.mubr.f32.mxu0 0.0
    %832 = vmatmul.mubr.f32.gmra.mrb[0].mxu0 %v752
    %v833 = vpop.f32.mrb[0].mxu0
    %v834 = vadd.f32 0.0, %v833
    %v835 = vpop.f32.mrb[0].mxu0
    %836 = vmatprep.mubr.f32.mxu0 0.0
    %837 = vmatmul.mubr.f32.gmra.mrb[0].mxu0 %v754
    %v838 = vpop.f32.mrb[0].mxu0
    %v839 = vadd.f32 0.0, %v838
    %v840 = vpop.f32.mrb[0].mxu0
    %841 = vdwg.mxu0
    %v842 = vmul.f32 %v829, 0.35355338
    %v843 = vmul.f32 %v834, 0.35355338
    %v844 = vmul.f32 %v839, 0.35355338
    %v845 = vsel %vm606, %v842, -inf
    %846 = vmax.xlane.f32.xlu0 %v845
    %v847 = vpop.xlane.xlu0 %846
    %v848 = vsel %vm606, %v843, -inf
    %849 = vmax.xlane.f32.xlu0 %v848
    %v850 = vpop.xlane.xlu0 %849
    %v851 = vsel %vm613, %v844, -inf
    %852 = vmax.xlane.f32.xlu0 %v851
    %v853 = vpop.xlane.xlu0 %852
    %v854 = vsub.f32 %v842, %v847
    %v855 = vsub.f32 %v843, %v850
    %v856 = vsub.f32 %v844, %v853
    %v857 = vmul.f32 %v854, 1.442695
    %v858 = vpow.pop %v857
    %v859 = vmul.f32 %v855, 1.442695
    %v860 = vpow.pop %v859
    %v861 = vmul.f32 %v856, 1.442695
    %v862 = vpow.pop %v861
    %v863 = vsel %vm606, %v858, 0.0
    %864 = vadd.xlane.f32.xlu0 %v863
    %v865 = vpop.xlane.xlu0 %864
    %v866 = vsel %vm606, %v860, 0.0
    %867 = vadd.xlane.f32.xlu0 %v866
    %v868 = vpop.xlane.xlu0 %867
    %v869 = vsel %vm613, %v862, 0.0
    %870 = vadd.xlane.f32.xlu0 %v869
    %v871 = vpop.xlane.xlu0 %870
    %v872 = vrcp.pop %v865
    %v873 = vrcp.pop %v868
    %v874 = vrcp.pop %v871
    %v875 = vmul.f32 %v858, %v872
    %v876 = vmul.f32 %v860, %v873
    %v877 = vmul.f32 %v862, %v874
    %880 = vrot.lane.b32.xlu0 %v481, 120
    %v881 = vpop.permute.xlu0 %880
    %882 = vrot.lane.b32.xlu0 %v486, 120
    %v883 = vpop.permute.xlu0 %882
    %884 = vrot.lane.b32.xlu0 %v491, 120
    %v885 = vpop.permute.xlu0 %884
    %v889 = vsel %vm606, %v875, 0
    %v892 = vsel %vm606, %v876, 0
    %v895 = vsel %vm606, %v877, 0
    %v897 = vsel %vm650, %v885, 0
    %899 = vmatprep.subr.mxu0 0.0
    %900 = vmatpush1.msra.mxu0 %v881
    %901 = vmatprep.subr.mxu0 0.0
    %902 = vmatpush1.msra.mxu0 %v883
    %903 = vmatprep.subr.mxu0 0.0
    %904 = vmatpush1.msra.mxu0 %v897
    %905 = vmatprep.subr.mxu0 0.0
    %906 = vmatpush1.msra.mxu0 0.0
    %907 = vmatprep.subr.mxu0 0.0
    %908 = vmatpush1.msra.mxu0 0.0
    %909 = vmatprep.subr.mxu0 0.0
    %910 = vmatpush1.msra.mxu0 0.0
    %911 = vmatprep.subr.mxu0 0.0
    %912 = vmatpush1.msra.mxu0 0.0
    %913 = vmatprep.subr.mxu0 0.0
    %914 = vmatpush1.msra.mxu0 0.0
    %915 = vmatprep.subr.mxu0 0.0
    %916 = vmatpush1.msra.mxu0 0.0
    %917 = vmatprep.subr.mxu0 0.0
    %918 = vmatpush1.msra.mxu0 0.0
    %919 = vmatprep.subr.mxu0 0.0
    %920 = vmatpush1.msra.mxu0 0.0
    %921 = vmatprep.subr.mxu0 0.0
    %922 = vmatpush1.msra.mxu0 0.0
    %923 = vmatprep.subr.mxu0 0.0
    %924 = vmatpush1.msra.mxu0 0.0
    %925 = vmatprep.subr.mxu0 0.0
    %926 = vmatpush1.msra.mxu0 0.0
    %927 = vmatprep.subr.mxu0 0.0
    %928 = vmatpush1.msra.mxu0 0.0
    %929 = vmatprep.subr.mxu0 0.0
    %930 = vmatpush1.msra.mxu0 0.0
    %931 = vmatprep.subr.mxu0 0.0
    %932 = vmatpush1.msra.mxu0 0.0
    %933 = vmatprep.subr.mxu0 0.0
    %934 = vmatpush1.msra.mxu0 0.0
    %935 = vmatprep.subr.mxu0 0.0
    %936 = vmatpush1.msra.mxu0 0.0
    %937 = vmatprep.subr.mxu0 0.0
    %938 = vmatpush1.msra.mxu0 0.0
    %939 = vmatprep.subr.mxu0 0.0
    %940 = vmatpush1.msra.mxu0 0.0
    %941 = vmatprep.subr.mxu0 0.0
    %942 = vmatpush1.msra.mxu0 0.0
    %943 = vmatprep.subr.mxu0 0.0
    %944 = vmatpush1.msra.mxu0 0.0
    %945 = vmatprep.subr.mxu0 0.0
    %946 = vmatpush1.msra.mxu0 0.0
    %947 = vmatprep.subr.mxu0 0.0
    %948 = vmatpush1.msra.mxu0 0.0
    %949 = vmatprep.subr.mxu0 0.0
    %950 = vmatpush1.msra.mxu0 0.0
    %951 = vmatprep.subr.mxu0 0.0
    %952 = vmatpush1.msra.mxu0 0.0
    %953 = vmatprep.subr.mxu0 0.0
    %954 = vmatpush1.msra.mxu0 0.0
    %955 = vmatprep.subr.mxu0 0.0
    %956 = vmatpush1.msra.mxu0 0.0
    %957 = vmatprep.subr.mxu0 0.0
    %958 = vmatpush1.msra.mxu0 0.0
    %959 = vmatprep.subr.mxu0 0.0
    %960 = vmatpush1.msra.mxu0 0.0
    %961 = vmatprep.subr.mxu0 0.0
    %962 = vmatpush1.msra.mxu0 0.0
    %963 = vmatprep.mubr.f32.mxu0 0.0
    %964 = vmatmul.mubr.f32.gmra.mrb[0].mxu0 %v889
    %v965 = vpop.f32.mrb[0].mxu0
    %v966 = vadd.f32 0.0, %v965
    %v967 = vpop.f32.mrb[0].mxu0
    %968 = vmatprep.mubr.f32.mxu0 0.0
    %969 = vmatmul.mubr.f32.gmra.mrb[0].mxu0 %v892
    %v970 = vpop.f32.mrb[0].mxu0
    %v971 = vadd.f32 0.0, %v970
    %v972 = vpop.f32.mrb[0].mxu0
    %973 = vmatprep.mubr.f32.mxu0 0.0
    %974 = vmatmul.mubr.f32.gmra.mrb[0].mxu0 %v895
    %v975 = vpop.f32.mrb[0].mxu0
    %v976 = vadd.f32 0.0, %v975
    %v977 = vpop.f32.mrb[0].mxu0
    %978 = vdwg.mxu0
    %982 = vrot.lane.b32.xlu0 %v966, 8
    %v983 = vpop.permute.xlu0 %982
    %984 = vrot.lane.b32.xlu0 %v971, 8
    %v985 = vpop.permute.xlu0 %984
    %986 = vrot.lane.b32.xlu0 %v976, 8
    %v987 = vpop.permute.xlu0 %986
    %vm991 = vcmask 130112
    %992 = vst.msk [vmem:[#allocation2] sm:$0xff] %vm991, %v983
    %993 = vst.msk [vmem:[#allocation2 + $0x8] sm:$0xff] %vm991, %v985
    %vm994 = vcmask 122944
    %995 = vst.msk [vmem:[#allocation2 + $0x10] sm:$0x1] %vm994, %v987
    %996 = vrot.lane.b32.xlu0 %v275, 112
    %v997 = vpop.permute.xlu0 %996
    %998 = vrot.lane.b32.xlu0 %v280, 112
    %v999 = vpop.permute.xlu0 %998
    %1000 = vrot.lane.b32.xlu0 %v285, 112
    %v1001 = vpop.permute.xlu0 %1000
    %1002 = vrot.lane.b32.xlu0 %v378, 112
    %v1003 = vpop.permute.xlu0 %1002
    %1004 = vrot.lane.b32.xlu0 %v383, 112
    %v1005 = vpop.permute.xlu0 %1004
    %1006 = vrot.lane.b32.xlu0 %v388, 112
    %v1007 = vpop.permute.xlu0 %1006
    %v1008 = vsel %vm504, %v997, 0
    %v1010 = vsel %vm504, %v999, 0
    %v1012 = vsel %vm504, %v1001, 0
    %v1014 = vsel %vm504, %v1003, 0
    %v1016 = vsel %vm504, %v1005, 0
    %v1018 = vsel %vm504, %v1007, 0
    %1020 = vmatprep.subr.mxu0 0.0
    %1021 = vmatpush1.xpose.msra.mxu0 %v1014
    %1022 = vmatprep.subr.mxu0 0.0
    %1023 = vmatpush1.xpose.msra.mxu0 %v1016
    %1024 = vmatprep.subr.mxu0 0.0
    %1025 = vmatpush1.xpose.msra.mxu0 %v1018
    %1026 = vmatprep.subr.mxu0 0.0
    %1027 = vmatpush1.xpose.msra.mxu0 0.0
    %1028 = vmatprep.subr.mxu0 0.0
    %1029 = vmatpush1.xpose.msra.mxu0 0.0
    %1030 = vmatprep.subr.mxu0 0.0
    %1031 = vmatpush1.xpose.msra.mxu0 0.0
    %1032 = vmatprep.subr.mxu0 0.0
    %1033 = vmatpush1.xpose.msra.mxu0 0.0
    %1034 = vmatprep.subr.mxu0 0.0
    %1035 = vmatpush1.xpose.msra.mxu0 0.0
    %1036 = vmatprep.subr.mxu0 0.0
    %1037 = vmatpush1.xpose.msra.mxu0 0.0
    %1038 = vmatprep.subr.mxu0 0.0
    %1039 = vmatpush1.xpose.msra.mxu0 0.0
    %1040 = vmatprep.subr.mxu0 0.0
    %1041 = vmatpush1.xpose.msra.mxu0 0.0
    %1042 = vmatprep.subr.mxu0 0.0
    %1043 = vmatpush1.xpose.msra.mxu0 0.0
    %1044 = vmatprep.subr.mxu0 0.0
    %1045 = vmatpush1.xpose.msra.mxu0 0.0
    %1046 = vmatprep.subr.mxu0 0.0
    %1047 = vmatpush1.xpose.msra.mxu0 0.0
    %1048 = vmatprep.subr.mxu0 0.0
    %1049 = vmatpush1.xpose.msra.mxu0 0.0
    %1050 = vmatprep.subr.mxu0 0.0
    %1051 = vmatpush1.xpose.msra.mxu0 0.0
    %1052 = vmatprep.subr.mxu0 0.0
    %1053 = vmatpush1.xpose.msra.mxu0 0.0
    %1054 = vmatprep.subr.mxu0 0.0
    %1055 = vmatpush1.xpose.msra.mxu0 0.0
    %1056 = vmatprep.subr.mxu0 0.0
    %1057 = vmatpush1.xpose.msra.mxu0 0.0
    %1058 = vmatprep.subr.mxu0 0.0
    %1059 = vmatpush1.xpose.msra.mxu0 0.0
    %1060 = vmatprep.subr.mxu0 0.0
    %1061 = vmatpush1.xpose.msra.mxu0 0.0
    %1062 = vmatprep.subr.mxu0 0.0
    %1063 = vmatpush1.xpose.msra.mxu0 0.0
    %1064 = vmatprep.subr.mxu0 0.0
    %1065 = vmatpush1.xpose.msra.mxu0 0.0
    %1066 = vmatprep.subr.mxu0 0.0
    %1067 = vmatpush1.xpose.msra.mxu0 0.0
    %1068 = vmatprep.subr.mxu0 0.0
    %1069 = vmatpush1.xpose.msra.mxu0 0.0
    %1070 = vmatprep.subr.mxu0 0.0
    %1071 = vmatpush1.xpose.msra.mxu0 0.0
    %1072 = vmatprep.subr.mxu0 0.0
    %1073 = vmatpush1.xpose.msra.mxu0 0.0
    %1074 = vmatprep.subr.mxu0 0.0
    %1075 = vmatpush1.xpose.msra.mxu0 0.0
    %1076 = vmatprep.subr.mxu0 0.0
    %1077 = vmatpush1.xpose.msra.mxu0 0.0
    %1078 = vmatprep.subr.mxu0 0.0
    %1079 = vmatpush1.xpose.msra.mxu0 0.0
    %1080 = vmatprep.subr.mxu0 0.0
    %1081 = vmatpush1.xpose.msra.mxu0 0.0
    %1082 = vmatprep.subr.mxu0 0.0
    %1083 = vmatpush1.xpose.msra.mxu0 0.0
    %1084 = vmatprep.mubr.f32.mxu0 0.0
    %1085 = vmatmul.mubr.f32.gmra.mrb[0].mxu0 %v1008
    %v1086 = vpop.f32.mrb[0].mxu0
    %v1087 = vadd.f32 0.0, %v1086
    %v1088 = vpop.f32.mrb[0].mxu0
    %1089 = vmatprep.mubr.f32.mxu0 0.0
    %1090 = vmatmul.mubr.f32.gmra.mrb[0].mxu0 %v1010
    %v1091 = vpop.f32.mrb[0].mxu0
    %v1092 = vadd.f32 0.0, %v1091
    %v1093 = vpop.f32.mrb[0].mxu0
    %1094 = vmatprep.mubr.f32.mxu0 0.0
    %1095 = vmatmul.mubr.f32.gmra.mrb[0].mxu0 %v1012
    %v1096 = vpop.f32.mrb[0].mxu0
    %v1097 = vadd.f32 0.0, %v1096
    %v1098 = vpop.f32.mrb[0].mxu0
    %1099 = vdwg.mxu0
    %v1100 = vmul.f32 %v1087, 0.35355338
    %v1101 = vmul.f32 %v1092, 0.35355338
    %v1102 = vmul.f32 %v1097, 0.35355338
    %v1103 = vsel %vm606, %v1100, -inf
    %1104 = vmax.xlane.f32.xlu0 %v1103
    %v1105 = vpop.xlane.xlu0 %1104
    %v1106 = vsel %vm606, %v1101, -inf
    %1107 = vmax.xlane.f32.xlu0 %v1106
    %v1108 = vpop.xlane.xlu0 %1107
    %v1109 = vsel %vm613, %v1102, -inf
    %1110 = vmax.xlane.f32.xlu0 %v1109
    %v1111 = vpop.xlane.xlu0 %1110
    %v1112 = vsub.f32 %v1100, %v1105
    %v1113 = vsub.f32 %v1101, %v1108
    %v1114 = vsub.f32 %v1102, %v1111
    %v1115 = vmul.f32 %v1112, 1.442695
    %v1116 = vpow.pop %v1115
    %v1117 = vmul.f32 %v1113, 1.442695
    %v1118 = vpow.pop %v1117
    %v1119 = vmul.f32 %v1114, 1.442695
    %v1120 = vpow.pop %v1119
    %v1121 = vsel %vm606, %v1116, 0.0
    %1122 = vadd.xlane.f32.xlu0 %v1121
    %v1123 = vpop.xlane.xlu0 %1122
    %v1124 = vsel %vm606, %v1118, 0.0
    %1125 = vadd.xlane.f32.xlu0 %v1124
    %v1126 = vpop.xlane.xlu0 %1125
    %v1127 = vsel %vm613, %v1120, 0.0
    %1128 = vadd.xlane.f32.xlu0 %v1127
    %v1129 = vpop.xlane.xlu0 %1128
    %v1130 = vrcp.pop %v1123
    %v1131 = vrcp.pop %v1126
    %v1132 = vrcp.pop %v1129
    %v1133 = vmul.f32 %v1116, %v1130
    %v1134 = vmul.f32 %v1118, %v1131
    %v1135 = vmul.f32 %v1120, %v1132
    %1136 = vrot.lane.b32.xlu0 %v481, 112
    %v1137 = vpop.permute.xlu0 %1136
    %1138 = vrot.lane.b32.xlu0 %v486, 112
    %v1139 = vpop.permute.xlu0 %1138
    %1140 = vrot.lane.b32.xlu0 %v491, 112
    %v1141 = vpop.permute.xlu0 %1140
    %v1145 = vsel %vm606, %v1133, 0
    %v1148 = vsel %vm606, %v1134, 0
    %v1151 = vsel %vm606, %v1135, 0
    %v1153 = vsel %vm650, %v1141, 0
    %1155 = vmatprep.subr.mxu0 0.0
    %1156 = vmatpush1.msra.mxu0 %v1137
    %1157 = vmatprep.subr.mxu0 0.0
    %1158 = vmatpush1.msra.mxu0 %v1139
    %1159 = vmatprep.subr.mxu0 0.0
    %1160 = vmatpush1.msra.mxu0 %v1153
    %1161 = vmatprep.subr.mxu0 0.0
    %1162 = vmatpush1.msra.mxu0 0.0
    %1163 = vmatprep.subr.mxu0 0.0
    %1164 = vmatpush1.msra.mxu0 0.0
    %1165 = vmatprep.subr.mxu0 0.0
    %1166 = vmatpush1.msra.mxu0 0.0
    %1167 = vmatprep.subr.mxu0 0.0
    %1168 = vmatpush1.msra.mxu0 0.0
    %1169 = vmatprep.subr.mxu0 0.0
    %1170 = vmatpush1.msra.mxu0 0.0
    %1171 = vmatprep.subr.mxu0 0.0
    %1172 = vmatpush1.msra.mxu0 0.0
    %1173 = vmatprep.subr.mxu0 0.0
    %1174 = vmatpush1.msra.mxu0 0.0
    %1175 = vmatprep.subr.mxu0 0.0
    %1176 = vmatpush1.msra.mxu0 0.0
    %1177 = vmatprep.subr.mxu0 0.0
    %1178 = vmatpush1.msra.mxu0 0.0
    %1179 = vmatprep.subr.mxu0 0.0
    %1180 = vmatpush1.msra.mxu0 0.0
    %1181 = vmatprep.subr.mxu0 0.0
    %1182 = vmatpush1.msra.mxu0 0.0
    %1183 = vmatprep.subr.mxu0 0.0
    %1184 = vmatpush1.msra.mxu0 0.0
    %1185 = vmatprep.subr.mxu0 0.0
    %1186 = vmatpush1.msra.mxu0 0.0
    %1187 = vmatprep.subr.mxu0 0.0
    %1188 = vmatpush1.msra.mxu0 0.0
    %1189 = vmatprep.subr.mxu0 0.0
    %1190 = vmatpush1.msra.mxu0 0.0
    %1191 = vmatprep.subr.mxu0 0.0
    %1192 = vmatpush1.msra.mxu0 0.0
    %1193 = vmatprep.subr.mxu0 0.0
    %1194 = vmatpush1.msra.mxu0 0.0
    %1195 = vmatprep.subr.mxu0 0.0
    %1196 = vmatpush1.msra.mxu0 0.0
    %1197 = vmatprep.subr.mxu0 0.0
    %1198 = vmatpush1.msra.mxu0 0.0
    %1199 = vmatprep.subr.mxu0 0.0
    %1200 = vmatpush1.msra.mxu0 0.0
    %1201 = vmatprep.subr.mxu0 0.0
    %1202 = vmatpush1.msra.mxu0 0.0
    %1203 = vmatprep.subr.mxu0 0.0
    %1204 = vmatpush1.msra.mxu0 0.0
    %1205 = vmatprep.subr.mxu0 0.0
    %1206 = vmatpush1.msra.mxu0 0.0
    %1207 = vmatprep.subr.mxu0 0.0
    %1208 = vmatpush1.msra.mxu0 0.0
    %1209 = vmatprep.subr.mxu0 0.0
    %1210 = vmatpush1.msra.mxu0 0.0
    %1211 = vmatprep.subr.mxu0 0.0
    %1212 = vmatpush1.msra.mxu0 0.0
    %1213 = vmatprep.subr.mxu0 0.0
    %1214 = vmatpush1.msra.mxu0 0.0
    %1215 = vmatprep.subr.mxu0 0.0
    %1216 = vmatpush1.msra.mxu0 0.0
    %1217 = vmatprep.subr.mxu0 0.0
    %1218 = vmatpush1.msra.mxu0 0.0
    %1219 = vmatprep.mubr.f32.mxu0 0.0
    %1220 = vmatmul.mubr.f32.gmra.mrb[0].mxu0 %v1145
    %v1221 = vpop.f32.mrb[0].mxu0
    %v1222 = vadd.f32 0.0, %v1221
    %v1223 = vpop.f32.mrb[0].mxu0
    %1224 = vmatprep.mubr.f32.mxu0 0.0
    %1225 = vmatmul.mubr.f32.gmra.mrb[0].mxu0 %v1148
    %v1226 = vpop.f32.mrb[0].mxu0
    %v1227 = vadd.f32 0.0, %v1226
    %v1228 = vpop.f32.mrb[0].mxu0
    %1229 = vmatprep.mubr.f32.mxu0 0.0
    %1230 = vmatmul.mubr.f32.gmra.mrb[0].mxu0 %v1151
    %v1231 = vpop.f32.mrb[0].mxu0
    %v1232 = vadd.f32 0.0, %v1231
    %v1233 = vpop.f32.mrb[0].mxu0
    %1234 = vdwg.mxu0
    %1238 = vrot.lane.b32.xlu0 %v1222, 16
    %v1239 = vpop.permute.xlu0 %1238
    %1240 = vrot.lane.b32.xlu0 %v1227, 16
    %v1241 = vpop.permute.xlu0 %1240
    %1242 = vrot.lane.b32.xlu0 %v1232, 16
    %v1243 = vpop.permute.xlu0 %1242
    %vm1247 = vcmask 195712
    %1248 = vst.msk [vmem:[#allocation2] sm:$0xff] %vm1247, %v1239
    %1249 = vst.msk [vmem:[#allocation2 + $0x8] sm:$0xff] %vm1247, %v1241
    %vm1250 = vcmask 188544
    %1251 = vst.msk [vmem:[#allocation2 + $0x10] sm:$0x1] %vm1250, %v1243
    %1252 = vrot.lane.b32.xlu0 %v275, 104
    %v1253 = vpop.permute.xlu0 %1252
    %1254 = vrot.lane.b32.xlu0 %v280, 104
    %v1255 = vpop.permute.xlu0 %1254
    %1256 = vrot.lane.b32.xlu0 %v285, 104
    %v1257 = vpop.permute.xlu0 %1256
    %1258 = vrot.lane.b32.xlu0 %v378, 104
    %v1259 = vpop.permute.xlu0 %1258
    %1260 = vrot.lane.b32.xlu0 %v383, 104
    %v1261 = vpop.permute.xlu0 %1260
    %1262 = vrot.lane.b32.xlu0 %v388, 104
    %v1263 = vpop.permute.xlu0 %1262
    %v1264 = vsel %vm504, %v1253, 0
    %v1266 = vsel %vm504, %v1255, 0
    %v1268 = vsel %vm504, %v1257, 0
    %v1270 = vsel %vm504, %v1259, 0
    %v1272 = vsel %vm504, %v1261, 0
    %v1274 = vsel %vm504, %v1263, 0
    %1276 = vmatprep.subr.mxu0 0.0
    %1277 = vmatpush1.xpose.msra.mxu0 %v1270
    %1278 = vmatprep.subr.mxu0 0.0
    %1279 = vmatpush1.xpose.msra.mxu0 %v1272
    %1280 = vmatprep.subr.mxu0 0.0
    %1281 = vmatpush1.xpose.msra.mxu0 %v1274
    %1282 = vmatprep.subr.mxu0 0.0
    %1283 = vmatpush1.xpose.msra.mxu0 0.0
    %1284 = vmatprep.subr.mxu0 0.0
    %1285 = vmatpush1.xpose.msra.mxu0 0.0
    %1286 = vmatprep.subr.mxu0 0.0
    %1287 = vmatpush1.xpose.msra.mxu0 0.0
    %1288 = vmatprep.subr.mxu0 0.0
    %1289 = vmatpush1.xpose.msra.mxu0 0.0
    %1290 = vmatprep.subr.mxu0 0.0
    %1291 = vmatpush1.xpose.msra.mxu0 0.0
    %1292 = vmatprep.subr.mxu0 0.0
    %1293 = vmatpush1.xpose.msra.mxu0 0.0
    %1294 = vmatprep.subr.mxu0 0.0
    %1295 = vmatpush1.xpose.msra.mxu0 0.0
    %1296 = vmatprep.subr.mxu0 0.0
    %1297 = vmatpush1.xpose.msra.mxu0 0.0
    %1298 = vmatprep.subr.mxu0 0.0
    %1299 = vmatpush1.xpose.msra.mxu0 0.0
    %1300 = vmatprep.subr.mxu0 0.0
    %1301 = vmatpush1.xpose.msra.mxu0 0.0
    %1302 = vmatprep.subr.mxu0 0.0
    %1303 = vmatpush1.xpose.msra.mxu0 0.0
    %1304 = vmatprep.subr.mxu0 0.0
    %1305 = vmatpush1.xpose.msra.mxu0 0.0
    %1306 = vmatprep.subr.mxu0 0.0
    %1307 = vmatpush1.xpose.msra.mxu0 0.0
    %1308 = vmatprep.subr.mxu0 0.0
    %1309 = vmatpush1.xpose.msra.mxu0 0.0
    %1310 = vmatprep.subr.mxu0 0.0
    %1311 = vmatpush1.xpose.msra.mxu0 0.0
    %1312 = vmatprep.subr.mxu0 0.0
    %1313 = vmatpush1.xpose.msra.mxu0 0.0
    %1314 = vmatprep.subr.mxu0 0.0
    %1315 = vmatpush1.xpose.msra.mxu0 0.0
    %1316 = vmatprep.subr.mxu0 0.0
    %1317 = vmatpush1.xpose.msra.mxu0 0.0
    %1318 = vmatprep.subr.mxu0 0.0
    %1319 = vmatpush1.xpose.msra.mxu0 0.0
    %1320 = vmatprep.subr.mxu0 0.0
    %1321 = vmatpush1.xpose.msra.mxu0 0.0
    %1322 = vmatprep.subr.mxu0 0.0
    %1323 = vmatpush1.xpose.msra.mxu0 0.0
    %1324 = vmatprep.subr.mxu0 0.0
    %1325 = vmatpush1.xpose.msra.mxu0 0.0
    %1326 = vmatprep.subr.mxu0 0.0
    %1327 = vmatpush1.xpose.msra.mxu0 0.0
    %1328 = vmatprep.subr.mxu0 0.0
    %1329 = vmatpush1.xpose.msra.mxu0 0.0
    %1330 = vmatprep.subr.mxu0 0.0
    %1331 = vmatpush1.xpose.msra.mxu0 0.0
    %1332 = vmatprep.subr.mxu0 0.0
    %1333 = vmatpush1.xpose.msra.mxu0 0.0
    %1334 = vmatprep.subr.mxu0 0.0
    %1335 = vmatpush1.xpose.msra.mxu0 0.0
    %1336 = vmatprep.subr.mxu0 0.0
    %1337 = vmatpush1.xpose.msra.mxu0 0.0
    %1338 = vmatprep.subr.mxu0 0.0
    %1339 = vmatpush1.xpose.msra.mxu0 0.0
    %1340 = vmatprep.mubr.f32.mxu0 0.0
    %1341 = vmatmul.mubr.f32.gmra.mrb[0].mxu0 %v1264
    %v1342 = vpop.f32.mrb[0].mxu0
    %v1343 = vadd.f32 0.0, %v1342
    %v1344 = vpop.f32.mrb[0].mxu0
    %1345 = vmatprep.mubr.f32.mxu0 0.0
    %1346 = vmatmul.mubr.f32.gmra.mrb[0].mxu0 %v1266
    %v1347 = vpop.f32.mrb[0].mxu0
    %v1348 = vadd.f32 0.0, %v1347
    %v1349 = vpop.f32.mrb[0].mxu0
    %1350 = vmatprep.mubr.f32.mxu0 0.0
    %1351 = vmatmul.mubr.f32.gmra.mrb[0].mxu0 %v1268
    %v1352 = vpop.f32.mrb[0].mxu0
    %v1353 = vadd.f32 0.0, %v1352
    %v1354 = vpop.f32.mrb[0].mxu0
    %1355 = vdwg.mxu0
    %v1356 = vmul.f32 %v1343, 0.35355338
    %v1357 = vmul.f32 %v1348, 0.35355338
    %v1358 = vmul.f32 %v1353, 0.35355338
    %v1359 = vsel %vm606, %v1356, -inf
    %1360 = vmax.xlane.f32.xlu0 %v1359
    %v1361 = vpop.xlane.xlu0 %1360
    %v1362 = vsel %vm606, %v1357, -inf
    %1363 = vmax.xlane.f32.xlu0 %v1362
    %v1364 = vpop.xlane.xlu0 %1363
    %v1365 = vsel %vm613, %v1358, -inf
    %1366 = vmax.xlane.f32.xlu0 %v1365
    %v1367 = vpop.xlane.xlu0 %1366
    %v1368 = vsub.f32 %v1356, %v1361
    %v1369 = vsub.f32 %v1357, %v1364
    %v1370 = vsub.f32 %v1358, %v1367
    %v1371 = vmul.f32 %v1368, 1.442695
    %v1372 = vpow.pop %v1371
    %v1373 = vmul.f32 %v1369, 1.442695
    %v1374 = vpow.pop %v1373
    %v1375 = vmul.f32 %v1370, 1.442695
    %v1376 = vpow.pop %v1375
    %v1377 = vsel %vm606, %v1372, 0.0
    %1378 = vadd.xlane.f32.xlu0 %v1377
    %v1379 = vpop.xlane.xlu0 %1378
    %v1380 = vsel %vm606, %v1374, 0.0
    %1381 = vadd.xlane.f32.xlu0 %v1380
    %v1382 = vpop.xlane.xlu0 %1381
    %v1383 = vsel %vm613, %v1376, 0.0
    %1384 = vadd.xlane.f32.xlu0 %v1383
    %v1385 = vpop.xlane.xlu0 %1384
    %v1386 = vrcp.pop %v1379
    %v1387 = vrcp.pop %v1382
    %v1388 = vrcp.pop %v1385
    %v1389 = vmul.f32 %v1372, %v1386
    %v1390 = vmul.f32 %v1374, %v1387
    %v1391 = vmul.f32 %v1376, %v1388
    %1392 = vrot.lane.b32.xlu0 %v481, 104
    %v1393 = vpop.permute.xlu0 %1392
    %1394 = vrot.lane.b32.xlu0 %v486, 104
    %v1395 = vpop.permute.xlu0 %1394
    %1396 = vrot.lane.b32.xlu0 %v491, 104
    %v1397 = vpop.permute.xlu0 %1396
    %v1401 = vsel %vm606, %v1389, 0
    %v1404 = vsel %vm606, %v1390, 0
    %v1407 = vsel %vm606, %v1391, 0
    %v1409 = vsel %vm650, %v1397, 0
    %1411 = vmatprep.subr.mxu0 0.0
    %1412 = vmatpush1.msra.mxu0 %v1393
    %1413 = vmatprep.subr.mxu0 0.0
    %1414 = vmatpush1.msra.mxu0 %v1395
    %1415 = vmatprep.subr.mxu0 0.0
    %1416 = vmatpush1.msra.mxu0 %v1409
    %1417 = vmatprep.subr.mxu0 0.0
    %1418 = vmatpush1.msra.mxu0 0.0
    %1419 = vmatprep.subr.mxu0 0.0
    %1420 = vmatpush1.msra.mxu0 0.0
    %1421 = vmatprep.subr.mxu0 0.0
    %1422 = vmatpush1.msra.mxu0 0.0
    %1423 = vmatprep.subr.mxu0 0.0
    %1424 = vmatpush1.msra.mxu0 0.0
    %1425 = vmatprep.subr.mxu0 0.0
    %1426 = vmatpush1.msra.mxu0 0.0
    %1427 = vmatprep.subr.mxu0 0.0
    %1428 = vmatpush1.msra.mxu0 0.0
    %1429 = vmatprep.subr.mxu0 0.0
    %1430 = vmatpush1.msra.mxu0 0.0
    %1431 = vmatprep.subr.mxu0 0.0
    %1432 = vmatpush1.msra.mxu0 0.0
    %1433 = vmatprep.subr.mxu0 0.0
    %1434 = vmatpush1.msra.mxu0 0.0
    %1435 = vmatprep.subr.mxu0 0.0
    %1436 = vmatpush1.msra.mxu0 0.0
    %1437 = vmatprep.subr.mxu0 0.0
    %1438 = vmatpush1.msra.mxu0 0.0
    %1439 = vmatprep.subr.mxu0 0.0
    %1440 = vmatpush1.msra.mxu0 0.0
    %1441 = vmatprep.subr.mxu0 0.0
    %1442 = vmatpush1.msra.mxu0 0.0
    %1443 = vmatprep.subr.mxu0 0.0
    %1444 = vmatpush1.msra.mxu0 0.0
    %1445 = vmatprep.subr.mxu0 0.0
    %1446 = vmatpush1.msra.mxu0 0.0
    %1447 = vmatprep.subr.mxu0 0.0
    %1448 = vmatpush1.msra.mxu0 0.0
    %1449 = vmatprep.subr.mxu0 0.0
    %1450 = vmatpush1.msra.mxu0 0.0
    %1451 = vmatprep.subr.mxu0 0.0
    %1452 = vmatpush1.msra.mxu0 0.0
    %1453 = vmatprep.subr.mxu0 0.0
    %1454 = vmatpush1.msra.mxu0 0.0
    %1455 = vmatprep.subr.mxu0 0.0
    %1456 = vmatpush1.msra.mxu0 0.0
    %1457 = vmatprep.subr.mxu0 0.0
    %1458 = vmatpush1.msra.mxu0 0.0
    %1459 = vmatprep.subr.mxu0 0.0
    %1460 = vmatpush1.msra.mxu0 0.0
    %1461 = vmatprep.subr.mxu0 0.0
    %1462 = vmatpush1.msra.mxu0 0.0
    %1463 = vmatprep.subr.mxu0 0.0
    %1464 = vmatpush1.msra.mxu0 0.0
    %1465 = vmatprep.subr.mxu0 0.0
    %1466 = vmatpush1.msra.mxu0 0.0
    %1467 = vmatprep.subr.mxu0 0.0
    %1468 = vmatpush1.msra.mxu0 0.0
    %1469 = vmatprep.subr.mxu0 0.0
    %1470 = vmatpush1.msra.mxu0 0.0
    %1471 = vmatprep.subr.mxu0 0.0
    %1472 = vmatpush1.msra.mxu0 0.0
    %1473 = vmatprep.subr.mxu0 0.0
    %1474 = vmatpush1.msra.mxu0 0.0
    %1475 = vmatprep.mubr.f32.mxu0 0.0
    %1476 = vmatmul.mubr.f32.gmra.mrb[0].mxu0 %v1401
    %v1477 = vpop.f32.mrb[0].mxu0
    %v1478 = vadd.f32 0.0, %v1477
    %v1479 = vpop.f32.mrb[0].mxu0
    %1480 = vmatprep.mubr.f32.mxu0 0.0
    %1481 = vmatmul.mubr.f32.gmra.mrb[0].mxu0 %v1404
    %v1482 = vpop.f32.mrb[0].mxu0
    %v1483 = vadd.f32 0.0, %v1482
    %v1484 = vpop.f32.mrb[0].mxu0
    %1485 = vmatprep.mubr.f32.mxu0 0.0
    %1486 = vmatmul.mubr.f32.gmra.mrb[0].mxu0 %v1407
    %v1487 = vpop.f32.mrb[0].mxu0
    %v1488 = vadd.f32 0.0, %v1487
    %v1489 = vpop.f32.mrb[0].mxu0
    %1490 = vdwg.mxu0
    %1494 = vrot.lane.b32.xlu0 %v1478, 24
    %v1495 = vpop.permute.xlu0 %1494
    %1496 = vrot.lane.b32.xlu0 %v1483, 24
    %v1497 = vpop.permute.xlu0 %1496
    %1498 = vrot.lane.b32.xlu0 %v1488, 24
    %v1499 = vpop.permute.xlu0 %1498
    %vm1503 = vcmask 261312
    %1504 = vst.msk [vmem:[#allocation2] sm:$0xff] %vm1503, %v1495
    %1505 = vst.msk [vmem:[#allocation2 + $0x8] sm:$0xff] %vm1503, %v1497
    %vm1506 = vcmask 254144
    %1507 = vst.msk [vmem:[#allocation2 + $0x10] sm:$0x1] %vm1506, %v1499
    %vm1510 = vcmask 1046528
    %v1511 = vrot.slane %v285, 1
    %v1512 = vrot.slane %v290, 1
    %v1513 = vsel %vm1510, %v1511, %v1512
    %v1514 = vrot.slane %v295, 1
    %v1515 = vsel %vm1510, %v1512, %v1514
    %v1518 = vrot.slane %v388, 1
    %v1519 = vrot.slane %v393, 1
    %v1520 = vsel %vm1510, %v1518, %v1519
    %v1521 = vrot.slane %v398, 1
    %v1522 = vsel %vm1510, %v1519, %v1521
    %v1523 = vsel %vm504, %v1513, 0
    %v1525 = vsel %vm504, %v1515, 0
    %v1527 = vsel %vm504, %v1514, 0
    %v1529 = vsel %vm504, %v1520, 0
    %v1531 = vsel %vm504, %v1522, 0
    %v1533 = vsel %vm504, %v1521, 0
    %1535 = vmatprep.subr.mxu0 0.0
    %1536 = vmatpush1.xpose.msra.mxu0 %v1529
    %1537 = vmatprep.subr.mxu0 0.0
    %1538 = vmatpush1.xpose.msra.mxu0 %v1531
    %1539 = vmatprep.subr.mxu0 0.0
    %1540 = vmatpush1.xpose.msra.mxu0 %v1533
    %1541 = vmatprep.subr.mxu0 0.0
    %1542 = vmatpush1.xpose.msra.mxu0 0.0
    %1543 = vmatprep.subr.mxu0 0.0
    %1544 = vmatpush1.xpose.msra.mxu0 0.0
    %1545 = vmatprep.subr.mxu0 0.0
    %1546 = vmatpush1.xpose.msra.mxu0 0.0
    %1547 = vmatprep.subr.mxu0 0.0
    %1548 = vmatpush1.xpose.msra.mxu0 0.0
    %1549 = vmatprep.subr.mxu0 0.0
    %1550 = vmatpush1.xpose.msra.mxu0 0.0
    %1551 = vmatprep.subr.mxu0 0.0
    %1552 = vmatpush1.xpose.msra.mxu0 0.0
    %1553 = vmatprep.subr.mxu0 0.0
    %1554 = vmatpush1.xpose.msra.mxu0 0.0
    %1555 = vmatprep.subr.mxu0 0.0
    %1556 = vmatpush1.xpose.msra.mxu0 0.0
    %1557 = vmatprep.subr.mxu0 0.0
    %1558 = vmatpush1.xpose.msra.mxu0 0.0
    %1559 = vmatprep.subr.mxu0 0.0
    %1560 = vmatpush1.xpose.msra.mxu0 0.0
    %1561 = vmatprep.subr.mxu0 0.0
    %1562 = vmatpush1.xpose.msra.mxu0 0.0
    %1563 = vmatprep.subr.mxu0 0.0
    %1564 = vmatpush1.xpose.msra.mxu0 0.0
    %1565 = vmatprep.subr.mxu0 0.0
    %1566 = vmatpush1.xpose.msra.mxu0 0.0
    %1567 = vmatprep.subr.mxu0 0.0
    %1568 = vmatpush1.xpose.msra.mxu0 0.0
    %1569 = vmatprep.subr.mxu0 0.0
    %1570 = vmatpush1.xpose.msra.mxu0 0.0
    %1571 = vmatprep.subr.mxu0 0.0
    %1572 = vmatpush1.xpose.msra.mxu0 0.0
    %1573 = vmatprep.subr.mxu0 0.0
    %1574 = vmatpush1.xpose.msra.mxu0 0.0
    %1575 = vmatprep.subr.mxu0 0.0
    %1576 = vmatpush1.xpose.msra.mxu0 0.0
    %1577 = vmatprep.subr.mxu0 0.0
    %1578 = vmatpush1.xpose.msra.mxu0 0.0
    %1579 = vmatprep.subr.mxu0 0.0
    %1580 = vmatpush1.xpose.msra.mxu0 0.0
    %1581 = vmatprep.subr.mxu0 0.0
    %1582 = vmatpush1.xpose.msra.mxu0 0.0
    %1583 = vmatprep.subr.mxu0 0.0
    %1584 = vmatpush1.xpose.msra.mxu0 0.0
    %1585 = vmatprep.subr.mxu0 0.0
    %1586 = vmatpush1.xpose.msra.mxu0 0.0
    %1587 = vmatprep.subr.mxu0 0.0
    %1588 = vmatpush1.xpose.msra.mxu0 0.0
    %1589 = vmatprep.subr.mxu0 0.0
    %1590 = vmatpush1.xpose.msra.mxu0 0.0
    %1591 = vmatprep.subr.mxu0 0.0
    %1592 = vmatpush1.xpose.msra.mxu0 0.0
    %1593 = vmatprep.subr.mxu0 0.0
    %1594 = vmatpush1.xpose.msra.mxu0 0.0
    %1595 = vmatprep.subr.mxu0 0.0
    %1596 = vmatpush1.xpose.msra.mxu0 0.0
    %1597 = vmatprep.subr.mxu0 0.0
    %1598 = vmatpush1.xpose.msra.mxu0 0.0
    %1599 = vmatprep.mubr.f32.mxu0 0.0
    %1600 = vmatmul.mubr.f32.gmra.mrb[0].mxu0 %v1523
    %v1601 = vpop.f32.mrb[0].mxu0
    %v1602 = vadd.f32 0.0, %v1601
    %v1603 = vpop.f32.mrb[0].mxu0
    %1604 = vmatprep.mubr.f32.mxu0 0.0
    %1605 = vmatmul.mubr.f32.gmra.mrb[0].mxu0 %v1525
    %v1606 = vpop.f32.mrb[0].mxu0
    %v1607 = vadd.f32 0.0, %v1606
    %v1608 = vpop.f32.mrb[0].mxu0
    %1609 = vmatprep.mubr.f32.mxu0 0.0
    %1610 = vmatmul.mubr.f32.gmra.mrb[0].mxu0 %v1527
    %v1611 = vpop.f32.mrb[0].mxu0
    %v1612 = vadd.f32 0.0, %v1611
    %v1613 = vpop.f32.mrb[0].mxu0
    %1614 = vdwg.mxu0
    %v1615 = vmul.f32 %v1602, 0.35355338
    %v1616 = vmul.f32 %v1607, 0.35355338
    %v1617 = vmul.f32 %v1612, 0.35355338
    %v1618 = vsel %vm606, %v1615, -inf
    %1619 = vmax.xlane.f32.xlu0 %v1618
    %v1620 = vpop.xlane.xlu0 %1619
    %v1621 = vsel %vm606, %v1616, -inf
    %1622 = vmax.xlane.f32.xlu0 %v1621
    %v1623 = vpop.xlane.xlu0 %1622
    %v1624 = vsel %vm613, %v1617, -inf
    %1625 = vmax.xlane.f32.xlu0 %v1624
    %v1626 = vpop.xlane.xlu0 %1625
    %v1627 = vsub.f32 %v1615, %v1620
    %v1628 = vsub.f32 %v1616, %v1623
    %v1629 = vsub.f32 %v1617, %v1626
    %v1630 = vmul.f32 %v1627, 1.442695
    %v1631 = vpow.pop %v1630
    %v1632 = vmul.f32 %v1628, 1.442695
    %v1633 = vpow.pop %v1632
    %v1634 = vmul.f32 %v1629, 1.442695
    %v1635 = vpow.pop %v1634
    %v1636 = vsel %vm606, %v1631, 0.0
    %1637 = vadd.xlane.f32.xlu0 %v1636
    %v1638 = vpop.xlane.xlu0 %1637
    %v1639 = vsel %vm606, %v1633, 0.0
    %1640 = vadd.xlane.f32.xlu0 %v1639
    %v1641 = vpop.xlane.xlu0 %1640
    %v1642 = vsel %vm613, %v1635, 0.0
    %1643 = vadd.xlane.f32.xlu0 %v1642
    %v1644 = vpop.xlane.xlu0 %1643
    %v1645 = vrcp.pop %v1638
    %v1646 = vrcp.pop %v1641
    %v1647 = vrcp.pop %v1644
    %v1648 = vmul.f32 %v1631, %v1645
    %v1649 = vmul.f32 %v1633, %v1646
    %v1650 = vmul.f32 %v1635, %v1647
    %v1653 = vrot.slane %v491, 1
    %v1654 = vrot.slane %v496, 1
    %v1655 = vsel %vm1510, %v1653, %v1654
    %v1656 = vrot.slane %v501, 1
    %v1657 = vsel %vm1510, %v1654, %v1656
    %v1661 = vsel %vm606, %v1648, 0
    %v1664 = vsel %vm606, %v1649, 0
    %v1667 = vsel %vm606, %v1650, 0
    %v1669 = vsel %vm650, %v1656, 0
    %1671 = vmatprep.subr.mxu0 0.0
    %1672 = vmatpush1.msra.mxu0 %v1655
    %1673 = vmatprep.subr.mxu0 0.0
    %1674 = vmatpush1.msra.mxu0 %v1657
    %1675 = vmatprep.subr.mxu0 0.0
    %1676 = vmatpush1.msra.mxu0 %v1669
    %1677 = vmatprep.subr.mxu0 0.0
    %1678 = vmatpush1.msra.mxu0 0.0
    %1679 = vmatprep.subr.mxu0 0.0
    %1680 = vmatpush1.msra.mxu0 0.0
    %1681 = vmatprep.subr.mxu0 0.0
    %1682 = vmatpush1.msra.mxu0 0.0
    %1683 = vmatprep.subr.mxu0 0.0
    %1684 = vmatpush1.msra.mxu0 0.0
    %1685 = vmatprep.subr.mxu0 0.0
    %1686 = vmatpush1.msra.mxu0 0.0
    %1687 = vmatprep.subr.mxu0 0.0
    %1688 = vmatpush1.msra.mxu0 0.0
    %1689 = vmatprep.subr.mxu0 0.0
    %1690 = vmatpush1.msra.mxu0 0.0
    %1691 = vmatprep.subr.mxu0 0.0
    %1692 = vmatpush1.msra.mxu0 0.0
    %1693 = vmatprep.subr.mxu0 0.0
    %1694 = vmatpush1.msra.mxu0 0.0
    %1695 = vmatprep.subr.mxu0 0.0
    %1696 = vmatpush1.msra.mxu0 0.0
    %1697 = vmatprep.subr.mxu0 0.0
    %1698 = vmatpush1.msra.mxu0 0.0
    %1699 = vmatprep.subr.mxu0 0.0
    %1700 = vmatpush1.msra.mxu0 0.0
    %1701 = vmatprep.subr.mxu0 0.0
    %1702 = vmatpush1.msra.mxu0 0.0
    %1703 = vmatprep.subr.mxu0 0.0
    %1704 = vmatpush1.msra.mxu0 0.0
    %1705 = vmatprep.subr.mxu0 0.0
    %1706 = vmatpush1.msra.mxu0 0.0
    %1707 = vmatprep.subr.mxu0 0.0
    %1708 = vmatpush1.msra.mxu0 0.0
    %1709 = vmatprep.subr.mxu0 0.0
    %1710 = vmatpush1.msra.mxu0 0.0
    %1711 = vmatprep.subr.mxu0 0.0
    %1712 = vmatpush1.msra.mxu0 0.0
    %1713 = vmatprep.subr.mxu0 0.0
    %1714 = vmatpush1.msra.mxu0 0.0
    %1715 = vmatprep.subr.mxu0 0.0
    %1716 = vmatpush1.msra.mxu0 0.0
    %1717 = vmatprep.subr.mxu0 0.0
    %1718 = vmatpush1.msra.mxu0 0.0
    %1719 = vmatprep.subr.mxu0 0.0
    %1720 = vmatpush1.msra.mxu0 0.0
    %1721 = vmatprep.subr.mxu0 0.0
    %1722 = vmatpush1.msra.mxu0 0.0
    %1723 = vmatprep.subr.mxu0 0.0
    %1724 = vmatpush1.msra.mxu0 0.0
    %1725 = vmatprep.subr.mxu0 0.0
    %1726 = vmatpush1.msra.mxu0 0.0
    %1727 = vmatprep.subr.mxu0 0.0
    %1728 = vmatpush1.msra.mxu0 0.0
    %1729 = vmatprep.subr.mxu0 0.0
    %1730 = vmatpush1.msra.mxu0 0.0
    %1731 = vmatprep.subr.mxu0 0.0
    %1732 = vmatpush1.msra.mxu0 0.0
    %1733 = vmatprep.subr.mxu0 0.0
    %1734 = vmatpush1.msra.mxu0 0.0
    %1735 = vmatprep.mubr.f32.mxu0 0.0
    %1736 = vmatmul.mubr.f32.gmra.mrb[0].mxu0 %v1661
    %v1737 = vpop.f32.mrb[0].mxu0
    %v1738 = vadd.f32 0.0, %v1737
    %v1739 = vpop.f32.mrb[0].mxu0
    %1740 = vmatprep.mubr.f32.mxu0 0.0
    %1741 = vmatmul.mubr.f32.gmra.mrb[0].mxu0 %v1664
    %v1742 = vpop.f32.mrb[0].mxu0
    %v1743 = vadd.f32 0.0, %v1742
    %v1744 = vpop.f32.mrb[0].mxu0
    %1745 = vmatprep.mubr.f32.mxu0 0.0
    %1746 = vmatmul.mubr.f32.gmra.mrb[0].mxu0 %v1667
    %v1747 = vpop.f32.mrb[0].mxu0
    %v1748 = vadd.f32 0.0, %v1747
    %v1749 = vpop.f32.mrb[0].mxu0
    %1750 = vdwg.mxu0
    %1751 = vst.msk [vmem:[#allocation2 + $0x11] sm:$0xff] %vm504, %v1738
    %1752 = vst.msk [vmem:[#allocation2 + $0x19] sm:$0xff] %vm504, %v1743
    %1753 = vst.msk [vmem:[#allocation2 + $0x21] sm:$0x1] %vm736, %v1748
    %1754 = vrot.lane.b32.xlu0 %v1513, 120
    %v1755 = vpop.permute.xlu0 %1754
    %1756 = vrot.lane.b32.xlu0 %v1515, 120
    %v1757 = vpop.permute.xlu0 %1756
    %1758 = vrot.lane.b32.xlu0 %v1514, 120
    %v1759 = vpop.permute.xlu0 %1758
    %1760 = vrot.lane.b32.xlu0 %v1520, 120
    %v1761 = vpop.permute.xlu0 %1760
    %1762 = vrot.lane.b32.xlu0 %v1522, 120
    %v1763 = vpop.permute.xlu0 %1762
    %1764 = vrot.lane.b32.xlu0 %v1521, 120
    %v1765 = vpop.permute.xlu0 %1764
    %v1766 = vsel %vm504, %v1755, 0
    %v1768 = vsel %vm504, %v1757, 0
    %v1770 = vsel %vm504, %v1759, 0
    %v1772 = vsel %vm504, %v1761, 0
    %v1774 = vsel %vm504, %v1763, 0
    %v1776 = vsel %vm504, %v1765, 0
    %1778 = vmatprep.subr.mxu0 0.0
    %1779 = vmatpush1.xpose.msra.mxu0 %v1772
    %1780 = vmatprep.subr.mxu0 0.0
    %1781 = vmatpush1.xpose.msra.mxu0 %v1774
    %1782 = vmatprep.subr.mxu0 0.0
    %1783 = vmatpush1.xpose.msra.mxu0 %v1776
    %1784 = vmatprep.subr.mxu0 0.0
    %1785 = vmatpush1.xpose.msra.mxu0 0.0
    %1786 = vmatprep.subr.mxu0 0.0
    %1787 = vmatpush1.xpose.msra.mxu0 0.0
    %1788 = vmatprep.subr.mxu0 0.0
    %1789 = vmatpush1.xpose.msra.mxu0 0.0
    %1790 = vmatprep.subr.mxu0 0.0
    %1791 = vmatpush1.xpose.msra.mxu0 0.0
    %1792 = vmatprep.subr.mxu0 0.0
    %1793 = vmatpush1.xpose.msra.mxu0 0.0
    %1794 = vmatprep.subr.mxu0 0.0
    %1795 = vmatpush1.xpose.msra.mxu0 0.0
    %1796 = vmatprep.subr.mxu0 0.0
    %1797 = vmatpush1.xpose.msra.mxu0 0.0
    %1798 = vmatprep.subr.mxu0 0.0
    %1799 = vmatpush1.xpose.msra.mxu0 0.0
    %1800 = vmatprep.subr.mxu0 0.0
    %1801 = vmatpush1.xpose.msra.mxu0 0.0
    %1802 = vmatprep.subr.mxu0 0.0
    %1803 = vmatpush1.xpose.msra.mxu0 0.0
    %1804 = vmatprep.subr.mxu0 0.0
    %1805 = vmatpush1.xpose.msra.mxu0 0.0
    %1806 = vmatprep.subr.mxu0 0.0
    %1807 = vmatpush1.xpose.msra.mxu0 0.0
    %1808 = vmatprep.subr.mxu0 0.0
    %1809 = vmatpush1.xpose.msra.mxu0 0.0
    %1810 = vmatprep.subr.mxu0 0.0
    %1811 = vmatpush1.xpose.msra.mxu0 0.0
    %1812 = vmatprep.subr.mxu0 0.0
    %1813 = vmatpush1.xpose.msra.mxu0 0.0
    %1814 = vmatprep.subr.mxu0 0.0
    %1815 = vmatpush1.xpose.msra.mxu0 0.0
    %1816 = vmatprep.subr.mxu0 0.0
    %1817 = vmatpush1.xpose.msra.mxu0 0.0
    %1818 = vmatprep.subr.mxu0 0.0
    %1819 = vmatpush1.xpose.msra.mxu0 0.0
    %1820 = vmatprep.subr.mxu0 0.0
    %1821 = vmatpush1.xpose.msra.mxu0 0.0
    %1822 = vmatprep.subr.mxu0 0.0
    %1823 = vmatpush1.xpose.msra.mxu0 0.0
    %1824 = vmatprep.subr.mxu0 0.0
    %1825 = vmatpush1.xpose.msra.mxu0 0.0
    %1826 = vmatprep.subr.mxu0 0.0
    %1827 = vmatpush1.xpose.msra.mxu0 0.0
    %1828 = vmatprep.subr.mxu0 0.0
    %1829 = vmatpush1.xpose.msra.mxu0 0.0
    %1830 = vmatprep.subr.mxu0 0.0
    %1831 = vmatpush1.xpose.msra.mxu0 0.0
    %1832 = vmatprep.subr.mxu0 0.0
    %1833 = vmatpush1.xpose.msra.mxu0 0.0
    %1834 = vmatprep.subr.mxu0 0.0
    %1835 = vmatpush1.xpose.msra.mxu0 0.0
    %1836 = vmatprep.subr.mxu0 0.0
    %1837 = vmatpush1.xpose.msra.mxu0 0.0
    %1838 = vmatprep.subr.mxu0 0.0
    %1839 = vmatpush1.xpose.msra.mxu0 0.0
    %1840 = vmatprep.subr.mxu0 0.0
    %1841 = vmatpush1.xpose.msra.mxu0 0.0
    %1842 = vmatprep.mubr.f32.mxu0 0.0
    %1843 = vmatmul.mubr.f32.gmra.mrb[0].mxu0 %v1766
    %v1844 = vpop.f32.mrb[0].mxu0
    %v1845 = vadd.f32 0.0, %v1844
    %v1846 = vpop.f32.mrb[0].mxu0
    %1847 = vmatprep.mubr.f32.mxu0 0.0
    %1848 = vmatmul.mubr.f32.gmra.mrb[0].mxu0 %v1768
    %v1849 = vpop.f32.mrb[0].mxu0
    %v1850 = vadd.f32 0.0, %v1849
    %v1851 = vpop.f32.mrb[0].mxu0
    %1852 = vmatprep.mubr.f32.mxu0 0.0
    %1853 = vmatmul.mubr.f32.gmra.mrb[0].mxu0 %v1770
    %v1854 = vpop.f32.mrb[0].mxu0
    %v1855 = vadd.f32 0.0, %v1854
    %v1856 = vpop.f32.mrb[0].mxu0
    %1857 = vdwg.mxu0
    %v1858 = vmul.f32 %v1845, 0.35355338
    %v1859 = vmul.f32 %v1850, 0.35355338
    %v1860 = vmul.f32 %v1855, 0.35355338
    %v1861 = vsel %vm606, %v1858, -inf
    %1862 = vmax.xlane.f32.xlu0 %v1861
    %v1863 = vpop.xlane.xlu0 %1862
    %v1864 = vsel %vm606, %v1859, -inf
    %1865 = vmax.xlane.f32.xlu0 %v1864
    %v1866 = vpop.xlane.xlu0 %1865
    %v1867 = vsel %vm613, %v1860, -inf
    %1868 = vmax.xlane.f32.xlu0 %v1867
    %v1869 = vpop.xlane.xlu0 %1868
    %v1870 = vsub.f32 %v1858, %v1863
    %v1871 = vsub.f32 %v1859, %v1866
    %v1872 = vsub.f32 %v1860, %v1869
    %v1873 = vmul.f32 %v1870, 1.442695
    %v1874 = vpow.pop %v1873
    %v1875 = vmul.f32 %v1871, 1.442695
    %v1876 = vpow.pop %v1875
    %v1877 = vmul.f32 %v1872, 1.442695
    %v1878 = vpow.pop %v1877
    %v1879 = vsel %vm606, %v1874, 0.0
    %1880 = vadd.xlane.f32.xlu0 %v1879
    %v1881 = vpop.xlane.xlu0 %1880
    %v1882 = vsel %vm606, %v1876, 0.0
    %1883 = vadd.xlane.f32.xlu0 %v1882
    %v1884 = vpop.xlane.xlu0 %1883
    %v1885 = vsel %vm613, %v1878, 0.0
    %1886 = vadd.xlane.f32.xlu0 %v1885
    %v1887 = vpop.xlane.xlu0 %1886
    %v1888 = vrcp.pop %v1881
    %v1889 = vrcp.pop %v1884
    %v1890 = vrcp.pop %v1887
    %v1891 = vmul.f32 %v1874, %v1888
    %v1892 = vmul.f32 %v1876, %v1889
    %v1893 = vmul.f32 %v1878, %v1890
    %1894 = vrot.lane.b32.xlu0 %v1655, 120
    %v1895 = vpop.permute.xlu0 %1894
    %1896 = vrot.lane.b32.xlu0 %v1657, 120
    %v1897 = vpop.permute.xlu0 %1896
    %1898 = vrot.lane.b32.xlu0 %v1656, 120
    %v1899 = vpop.permute.xlu0 %1898
    %v1903 = vsel %vm606, %v1891, 0
    %v1906 = vsel %vm606, %v1892, 0
    %v1909 = vsel %vm606, %v1893, 0
    %v1911 = vsel %vm650, %v1899, 0
    %1913 = vmatprep.subr.mxu0 0.0
    %1914 = vmatpush1.msra.mxu0 %v1895
    %1915 = vmatprep.subr.mxu0 0.0
    %1916 = vmatpush1.msra.mxu0 %v1897
    %1917 = vmatprep.subr.mxu0 0.0
    %1918 = vmatpush1.msra.mxu0 %v1911
    %1919 = vmatprep.subr.mxu0 0.0
    %1920 = vmatpush1.msra.mxu0 0.0
    %1921 = vmatprep.subr.mxu0 0.0
    %1922 = vmatpush1.msra.mxu0 0.0
    %1923 = vmatprep.subr.mxu0 0.0
    %1924 = vmatpush1.msra.mxu0 0.0
    %1925 = vmatprep.subr.mxu0 0.0
    %1926 = vmatpush1.msra.mxu0 0.0
    %1927 = vmatprep.subr.mxu0 0.0
    %1928 = vmatpush1.msra.mxu0 0.0
    %1929 = vmatprep.subr.mxu0 0.0
    %1930 = vmatpush1.msra.mxu0 0.0
    %1931 = vmatprep.subr.mxu0 0.0
    %1932 = vmatpush1.msra.mxu0 0.0
    %1933 = vmatprep.subr.mxu0 0.0
    %1934 = vmatpush1.msra.mxu0 0.0
    %1935 = vmatprep.subr.mxu0 0.0
    %1936 = vmatpush1.msra.mxu0 0.0
    %1937 = vmatprep.subr.mxu0 0.0
    %1938 = vmatpush1.msra.mxu0 0.0
    %1939 = vmatprep.subr.mxu0 0.0
    %1940 = vmatpush1.msra.mxu0 0.0
    %1941 = vmatprep.subr.mxu0 0.0
    %1942 = vmatpush1.msra.mxu0 0.0
    %1943 = vmatprep.subr.mxu0 0.0
    %1944 = vmatpush1.msra.mxu0 0.0
    %1945 = vmatprep.subr.mxu0 0.0
    %1946 = vmatpush1.msra.mxu0 0.0
    %1947 = vmatprep.subr.mxu0 0.0
    %1948 = vmatpush1.msra.mxu0 0.0
    %1949 = vmatprep.subr.mxu0 0.0
    %1950 = vmatpush1.msra.mxu0 0.0
    %1951 = vmatprep.subr.mxu0 0.0
    %1952 = vmatpush1.msra.mxu0 0.0
    %1953 = vmatprep.subr.mxu0 0.0
    %1954 = vmatpush1.msra.mxu0 0.0
    %1955 = vmatprep.subr.mxu0 0.0
    %1956 = vmatpush1.msra.mxu0 0.0
    %1957 = vmatprep.subr.mxu0 0.0
    %1958 = vmatpush1.msra.mxu0 0.0
    %1959 = vmatprep.subr.mxu0 0.0
    %1960 = vmatpush1.msra.mxu0 0.0
    %1961 = vmatprep.subr.mxu0 0.0
    %1962 = vmatpush1.msra.mxu0 0.0
    %1963 = vmatprep.subr.mxu0 0.0
    %1964 = vmatpush1.msra.mxu0 0.0
    %1965 = vmatprep.subr.mxu0 0.0
    %1966 = vmatpush1.msra.mxu0 0.0
    %1967 = vmatprep.subr.mxu0 0.0
    %1968 = vmatpush1.msra.mxu0 0.0
    %1969 = vmatprep.subr.mxu0 0.0
    %1970 = vmatpush1.msra.mxu0 0.0
    %1971 = vmatprep.subr.mxu0 0.0
    %1972 = vmatpush1.msra.mxu0 0.0
    %1973 = vmatprep.subr.mxu0 0.0
    %1974 = vmatpush1.msra.mxu0 0.0
    %1975 = vmatprep.subr.mxu0 0.0
    %1976 = vmatpush1.msra.mxu0 0.0
    %1977 = vmatprep.mubr.f32.mxu0 0.0
    %1978 = vmatmul.mubr.f32.gmra.mrb[0].mxu0 %v1903
    %v1979 = vpop.f32.mrb[0].mxu0
    %v1980 = vadd.f32 0.0, %v1979
    %v1981 = vpop.f32.mrb[0].mxu0
    %1982 = vmatprep.mubr.f32.mxu0 0.0
    %1983 = vmatmul.mubr.f32.gmra.mrb[0].mxu0 %v1906
    %v1984 = vpop.f32.mrb[0].mxu0
    %v1985 = vadd.f32 0.0, %v1984
    %v1986 = vpop.f32.mrb[0].mxu0
    %1987 = vmatprep.mubr.f32.mxu0 0.0
    %1988 = vmatmul.mubr.f32.gmra.mrb[0].mxu0 %v1909
    %v1989 = vpop.f32.mrb[0].mxu0
    %v1990 = vadd.f32 0.0, %v1989
    %v1991 = vpop.f32.mrb[0].mxu0
    %1992 = vdwg.mxu0
    %1996 = vrot.lane.b32.xlu0 %v1980, 8
    %v1997 = vpop.permute.xlu0 %1996
    %1998 = vrot.lane.b32.xlu0 %v1985, 8
    %v1999 = vpop.permute.xlu0 %1998
    %2000 = vrot.lane.b32.xlu0 %v1990, 8
    %v2001 = vpop.permute.xlu0 %2000
    %2005 = vst.msk [vmem:[#allocation2 + $0x11] sm:$0xff] %vm991, %v1997
    %2006 = vst.msk [vmem:[#allocation2 + $0x19] sm:$0xff] %vm991, %v1999
    %2007 = vst.msk [vmem:[#allocation2 + $0x21] sm:$0x1] %vm994, %v2001
    %2008 = vrot.lane.b32.xlu0 %v1513, 112
    %v2009 = vpop.permute.xlu0 %2008
    %2010 = vrot.lane.b32.xlu0 %v1515, 112
    %v2011 = vpop.permute.xlu0 %2010
    %2012 = vrot.lane.b32.xlu0 %v1514, 112
    %v2013 = vpop.permute.xlu0 %2012
    %2014 = vrot.lane.b32.xlu0 %v1520, 112
    %v2015 = vpop.permute.xlu0 %2014
    %2016 = vrot.lane.b32.xlu0 %v1522, 112
    %v2017 = vpop.permute.xlu0 %2016
    %2018 = vrot.lane.b32.xlu0 %v1521, 112
    %v2019 = vpop.permute.xlu0 %2018
    %v2020 = vsel %vm504, %v2009, 0
    %v2022 = vsel %vm504, %v2011, 0
    %v2024 = vsel %vm504, %v2013, 0
    %v2026 = vsel %vm504, %v2015, 0
    %v2028 = vsel %vm504, %v2017, 0
    %v2030 = vsel %vm504, %v2019, 0
    %2032 = vmatprep.subr.mxu0 0.0
    %2033 = vmatpush1.xpose.msra.mxu0 %v2026
    %2034 = vmatprep.subr.mxu0 0.0
    %2035 = vmatpush1.xpose.msra.mxu0 %v2028
    %2036 = vmatprep.subr.mxu0 0.0
    %2037 = vmatpush1.xpose.msra.mxu0 %v2030
    %2038 = vmatprep.subr.mxu0 0.0
    %2039 = vmatpush1.xpose.msra.mxu0 0.0
    %2040 = vmatprep.subr.mxu0 0.0
    %2041 = vmatpush1.xpose.msra.mxu0 0.0
    %2042 = vmatprep.subr.mxu0 0.0
    %2043 = vmatpush1.xpose.msra.mxu0 0.0
    %2044 = vmatprep.subr.mxu0 0.0
    %2045 = vmatpush1.xpose.msra.mxu0 0.0
    %2046 = vmatprep.subr.mxu0 0.0
    %2047 = vmatpush1.xpose.msra.mxu0 0.0
    %2048 = vmatprep.subr.mxu0 0.0
    %2049 = vmatpush1.xpose.msra.mxu0 0.0
    %2050 = vmatprep.subr.mxu0 0.0
    %2051 = vmatpush1.xpose.msra.mxu0 0.0
    %2052 = vmatprep.subr.mxu0 0.0
    %2053 = vmatpush1.xpose.msra.mxu0 0.0
    %2054 = vmatprep.subr.mxu0 0.0
    %2055 = vmatpush1.xpose.msra.mxu0 0.0
    %2056 = vmatprep.subr.mxu0 0.0
    %2057 = vmatpush1.xpose.msra.mxu0 0.0
    %2058 = vmatprep.subr.mxu0 0.0
    %2059 = vmatpush1.xpose.msra.mxu0 0.0
    %2060 = vmatprep.subr.mxu0 0.0
    %2061 = vmatpush1.xpose.msra.mxu0 0.0
    %2062 = vmatprep.subr.mxu0 0.0
    %2063 = vmatpush1.xpose.msra.mxu0 0.0
    %2064 = vmatprep.subr.mxu0 0.0
    %2065 = vmatpush1.xpose.msra.mxu0 0.0
    %2066 = vmatprep.subr.mxu0 0.0
    %2067 = vmatpush1.xpose.msra.mxu0 0.0
    %2068 = vmatprep.subr.mxu0 0.0
    %2069 = vmatpush1.xpose.msra.mxu0 0.0
    %2070 = vmatprep.subr.mxu0 0.0
    %2071 = vmatpush1.xpose.msra.mxu0 0.0
    %2072 = vmatprep.subr.mxu0 0.0
    %2073 = vmatpush1.xpose.msra.mxu0 0.0
    %2074 = vmatprep.subr.mxu0 0.0
    %2075 = vmatpush1.xpose.msra.mxu0 0.0
    %2076 = vmatprep.subr.mxu0 0.0
    %2077 = vmatpush1.xpose.msra.mxu0 0.0
    %2078 = vmatprep.subr.mxu0 0.0
    %2079 = vmatpush1.xpose.msra.mxu0 0.0
    %2080 = vmatprep.subr.mxu0 0.0
    %2081 = vmatpush1.xpose.msra.mxu0 0.0
    %2082 = vmatprep.subr.mxu0 0.0
    %2083 = vmatpush1.xpose.msra.mxu0 0.0
    %2084 = vmatprep.subr.mxu0 0.0
    %2085 = vmatpush1.xpose.msra.mxu0 0.0
    %2086 = vmatprep.subr.mxu0 0.0
    %2087 = vmatpush1.xpose.msra.mxu0 0.0
    %2088 = vmatprep.subr.mxu0 0.0
    %2089 = vmatpush1.xpose.msra.mxu0 0.0
    %2090 = vmatprep.subr.mxu0 0.0
    %2091 = vmatpush1.xpose.msra.mxu0 0.0
    %2092 = vmatprep.subr.mxu0 0.0
    %2093 = vmatpush1.xpose.msra.mxu0 0.0
    %2094 = vmatprep.subr.mxu0 0.0
    %2095 = vmatpush1.xpose.msra.mxu0 0.0
    %2096 = vmatprep.mubr.f32.mxu0 0.0
    %2097 = vmatmul.mubr.f32.gmra.mrb[0].mxu0 %v2020
    %v2098 = vpop.f32.mrb[0].mxu0
    %v2099 = vadd.f32 0.0, %v2098
    %v2100 = vpop.f32.mrb[0].mxu0
    %2101 = vmatprep.mubr.f32.mxu0 0.0
    %2102 = vmatmul.mubr.f32.gmra.mrb[0].mxu0 %v2022
    %v2103 = vpop.f32.mrb[0].mxu0
    %v2104 = vadd.f32 0.0, %v2103
    %v2105 = vpop.f32.mrb[0].mxu0
    %2106 = vmatprep.mubr.f32.mxu0 0.0
    %2107 = vmatmul.mubr.f32.gmra.mrb[0].mxu0 %v2024
    %v2108 = vpop.f32.mrb[0].mxu0
    %v2109 = vadd.f32 0.0, %v2108
    %v2110 = vpop.f32.mrb[0].mxu0
    %2111 = vdwg.mxu0
    %v2112 = vmul.f32 %v2099, 0.35355338
    %v2113 = vmul.f32 %v2104, 0.35355338
    %v2114 = vmul.f32 %v2109, 0.35355338
    %v2115 = vsel %vm606, %v2112, -inf
    %2116 = vmax.xlane.f32.xlu0 %v2115
    %v2117 = vpop.xlane.xlu0 %2116
    %v2118 = vsel %vm606, %v2113, -inf
    %2119 = vmax.xlane.f32.xlu0 %v2118
    %v2120 = vpop.xlane.xlu0 %2119
    %v2121 = vsel %vm613, %v2114, -inf
    %2122 = vmax.xlane.f32.xlu0 %v2121
    %v2123 = vpop.xlane.xlu0 %2122
    %v2124 = vsub.f32 %v2112, %v2117
    %v2125 = vsub.f32 %v2113, %v2120
    %v2126 = vsub.f32 %v2114, %v2123
    %v2127 = vmul.f32 %v2124, 1.442695
    %v2128 = vpow.pop %v2127
    %v2129 = vmul.f32 %v2125, 1.442695
    %v2130 = vpow.pop %v2129
    %v2131 = vmul.f32 %v2126, 1.442695
    %v2132 = vpow.pop %v2131
    %v2133 = vsel %vm606, %v2128, 0.0
    %2134 = vadd.xlane.f32.xlu0 %v2133
    %v2135 = vpop.xlane.xlu0 %2134
    %v2136 = vsel %vm606, %v2130, 0.0
    %2137 = vadd.xlane.f32.xlu0 %v2136
    %v2138 = vpop.xlane.xlu0 %2137
    %v2139 = vsel %vm613, %v2132, 0.0
    %2140 = vadd.xlane.f32.xlu0 %v2139
    %v2141 = vpop.xlane.xlu0 %2140
    %v2142 = vrcp.pop %v2135
    %v2143 = vrcp.pop %v2138
    %v2144 = vrcp.pop %v2141
    %v2145 = vmul.f32 %v2128, %v2142
    %v2146 = vmul.f32 %v2130, %v2143
    %v2147 = vmul.f32 %v2132, %v2144
    %2148 = vrot.lane.b32.xlu0 %v1655, 112
    %v2149 = vpop.permute.xlu0 %2148
    %2150 = vrot.lane.b32.xlu0 %v1657, 112
    %v2151 = vpop.permute.xlu0 %2150
    %2152 = vrot.lane.b32.xlu0 %v1656, 112
    %v2153 = vpop.permute.xlu0 %2152
    %v2157 = vsel %vm606, %v2145, 0
    %v2160 = vsel %vm606, %v2146, 0
    %v2163 = vsel %vm606, %v2147, 0
    %v2165 = vsel %vm650, %v2153, 0
    %2167 = vmatprep.subr.mxu0 0.0
    %2168 = vmatpush1.msra.mxu0 %v2149
    %2169 = vmatprep.subr.mxu0 0.0
    %2170 = vmatpush1.msra.mxu0 %v2151
    %2171 = vmatprep.subr.mxu0 0.0
    %2172 = vmatpush1.msra.mxu0 %v2165
    %2173 = vmatprep.subr.mxu0 0.0
    %2174 = vmatpush1.msra.mxu0 0.0
    %2175 = vmatprep.subr.mxu0 0.0
    %2176 = vmatpush1.msra.mxu0 0.0
    %2177 = vmatprep.subr.mxu0 0.0
    %2178 = vmatpush1.msra.mxu0 0.0
    %2179 = vmatprep.subr.mxu0 0.0
    %2180 = vmatpush1.msra.mxu0 0.0
    %2181 = vmatprep.subr.mxu0 0.0
    %2182 = vmatpush1.msra.mxu0 0.0
    %2183 = vmatprep.subr.mxu0 0.0
    %2184 = vmatpush1.msra.mxu0 0.0
    %2185 = vmatprep.subr.mxu0 0.0
    %2186 = vmatpush1.msra.mxu0 0.0
    %2187 = vmatprep.subr.mxu0 0.0
    %2188 = vmatpush1.msra.mxu0 0.0
    %2189 = vmatprep.subr.mxu0 0.0
    %2190 = vmatpush1.msra.mxu0 0.0
    %2191 = vmatprep.subr.mxu0 0.0
    %2192 = vmatpush1.msra.mxu0 0.0
    %2193 = vmatprep.subr.mxu0 0.0
    %2194 = vmatpush1.msra.mxu0 0.0
    %2195 = vmatprep.subr.mxu0 0.0
    %2196 = vmatpush1.msra.mxu0 0.0
    %2197 = vmatprep.subr.mxu0 0.0
    %2198 = vmatpush1.msra.mxu0 0.0
    %2199 = vmatprep.subr.mxu0 0.0
    %2200 = vmatpush1.msra.mxu0 0.0
    %2201 = vmatprep.subr.mxu0 0.0
    %2202 = vmatpush1.msra.mxu0 0.0
    %2203 = vmatprep.subr.mxu0 0.0
    %2204 = vmatpush1.msra.mxu0 0.0
    %2205 = vmatprep.subr.mxu0 0.0
    %2206 = vmatpush1.msra.mxu0 0.0
    %2207 = vmatprep.subr.mxu0 0.0
    %2208 = vmatpush1.msra.mxu0 0.0
    %2209 = vmatprep.subr.mxu0 0.0
    %2210 = vmatpush1.msra.mxu0 0.0
    %2211 = vmatprep.subr.mxu0 0.0
    %2212 = vmatpush1.msra.mxu0 0.0
    %2213 = vmatprep.subr.mxu0 0.0
    %2214 = vmatpush1.msra.mxu0 0.0
    %2215 = vmatprep.subr.mxu0 0.0
    %2216 = vmatpush1.msra.mxu0 0.0
    %2217 = vmatprep.subr.mxu0 0.0
    %2218 = vmatpush1.msra.mxu0 0.0
    %2219 = vmatprep.subr.mxu0 0.0
    %2220 = vmatpush1.msra.mxu0 0.0
    %2221 = vmatprep.subr.mxu0 0.0
    %2222 = vmatpush1.msra.mxu0 0.0
    %2223 = vmatprep.subr.mxu0 0.0
    %2224 = vmatpush1.msra.mxu0 0.0
    %2225 = vmatprep.subr.mxu0 0.0
    %2226 = vmatpush1.msra.mxu0 0.0
    %2227 = vmatprep.subr.mxu0 0.0
    %2228 = vmatpush1.msra.mxu0 0.0
    %2229 = vmatprep.subr.mxu0 0.0
    %2230 = vmatpush1.msra.mxu0 0.0
    %2231 = vmatprep.mubr.f32.mxu0 0.0
    %2232 = vmatmul.mubr.f32.gmra.mrb[0].mxu0 %v2157
    %v2233 = vpop.f32.mrb[0].mxu0
    %v2234 = vadd.f32 0.0, %v2233
    %v2235 = vpop.f32.mrb[0].mxu0
    %2236 = vmatprep.mubr.f32.mxu0 0.0
    %2237 = vmatmul.mubr.f32.gmra.mrb[0].mxu0 %v2160
    %v2238 = vpop.f32.mrb[0].mxu0
    %v2239 = vadd.f32 0.0, %v2238
    %v2240 = vpop.f32.mrb[0].mxu0
    %2241 = vmatprep.mubr.f32.mxu0 0.0
    %2242 = vmatmul.mubr.f32.gmra.mrb[0].mxu0 %v2163
    %v2243 = vpop.f32.mrb[0].mxu0
    %v2244 = vadd.f32 0.0, %v2243
    %v2245 = vpop.f32.mrb[0].mxu0
    %2246 = vdwg.mxu0
    %2250 = vrot.lane.b32.xlu0 %v2234, 16
    %v2251 = vpop.permute.xlu0 %2250
    %2252 = vrot.lane.b32.xlu0 %v2239, 16
    %v2253 = vpop.permute.xlu0 %2252
    %2254 = vrot.lane.b32.xlu0 %v2244, 16
    %v2255 = vpop.permute.xlu0 %2254
    %2259 = vst.msk [vmem:[#allocation2 + $0x11] sm:$0xff] %vm1247, %v2251
    %2260 = vst.msk [vmem:[#allocation2 + $0x19] sm:$0xff] %vm1247, %v2253
    %2261 = vst.msk [vmem:[#allocation2 + $0x21] sm:$0x1] %vm1250, %v2255
    %2262 = vrot.lane.b32.xlu0 %v1513, 104
    %v2263 = vpop.permute.xlu0 %2262
    %2264 = vrot.lane.b32.xlu0 %v1515, 104
    %v2265 = vpop.permute.xlu0 %2264
    %2266 = vrot.lane.b32.xlu0 %v1514, 104
    %v2267 = vpop.permute.xlu0 %2266
    %2268 = vrot.lane.b32.xlu0 %v1520, 104
    %v2269 = vpop.permute.xlu0 %2268
    %2270 = vrot.lane.b32.xlu0 %v1522, 104
    %v2271 = vpop.permute.xlu0 %2270
    %2272 = vrot.lane.b32.xlu0 %v1521, 104
    %v2273 = vpop.permute.xlu0 %2272
    %v2274 = vsel %vm504, %v2263, 0
    %v2276 = vsel %vm504, %v2265, 0
    %v2278 = vsel %vm504, %v2267, 0
    %v2280 = vsel %vm504, %v2269, 0
    %v2282 = vsel %vm504, %v2271, 0
    %v2284 = vsel %vm504, %v2273, 0
    %2286 = vmatprep.subr.mxu0 0.0
    %2287 = vmatpush1.xpose.msra.mxu0 %v2280
    %2288 = vmatprep.subr.mxu0 0.0
    %2289 = vmatpush1.xpose.msra.mxu0 %v2282
    %2290 = vmatprep.subr.mxu0 0.0
    %2291 = vmatpush1.xpose.msra.mxu0 %v2284
    %2292 = vmatprep.subr.mxu0 0.0
    %2293 = vmatpush1.xpose.msra.mxu0 0.0
    %2294 = vmatprep.subr.mxu0 0.0
    %2295 = vmatpush1.xpose.msra.mxu0 0.0
    %2296 = vmatprep.subr.mxu0 0.0
    %2297 = vmatpush1.xpose.msra.mxu0 0.0
    %2298 = vmatprep.subr.mxu0 0.0
    %2299 = vmatpush1.xpose.msra.mxu0 0.0
    %2300 = vmatprep.subr.mxu0 0.0
    %2301 = vmatpush1.xpose.msra.mxu0 0.0
    %2302 = vmatprep.subr.mxu0 0.0
    %2303 = vmatpush1.xpose.msra.mxu0 0.0
    %2304 = vmatprep.subr.mxu0 0.0
    %2305 = vmatpush1.xpose.msra.mxu0 0.0
    %2306 = vmatprep.subr.mxu0 0.0
    %2307 = vmatpush1.xpose.msra.mxu0 0.0
    %2308 = vmatprep.subr.mxu0 0.0
    %2309 = vmatpush1.xpose.msra.mxu0 0.0
    %2310 = vmatprep.subr.mxu0 0.0
    %2311 = vmatpush1.xpose.msra.mxu0 0.0
    %2312 = vmatprep.subr.mxu0 0.0
    %2313 = vmatpush1.xpose.msra.mxu0 0.0
    %2314 = vmatprep.subr.mxu0 0.0
    %2315 = vmatpush1.xpose.msra.mxu0 0.0
    %2316 = vmatprep.subr.mxu0 0.0
    %2317 = vmatpush1.xpose.msra.mxu0 0.0
    %2318 = vmatprep.subr.mxu0 0.0
    %2319 = vmatpush1.xpose.msra.mxu0 0.0
    %2320 = vmatprep.subr.mxu0 0.0
    %2321 = vmatpush1.xpose.msra.mxu0 0.0
    %2322 = vmatprep.subr.mxu0 0.0
    %2323 = vmatpush1.xpose.msra.mxu0 0.0
    %2324 = vmatprep.subr.mxu0 0.0
    %2325 = vmatpush1.xpose.msra.mxu0 0.0
    %2326 = vmatprep.subr.mxu0 0.0
    %2327 = vmatpush1.xpose.msra.mxu0 0.0
    %2328 = vmatprep.subr.mxu0 0.0
    %2329 = vmatpush1.xpose.msra.mxu0 0.0
    %2330 = vmatprep.subr.mxu0 0.0
    %2331 = vmatpush1.xpose.msra.mxu0 0.0
    %2332 = vmatprep.subr.mxu0 0.0
    %2333 = vmatpush1.xpose.msra.mxu0 0.0
    %2334 = vmatprep.subr.mxu0 0.0
    %2335 = vmatpush1.xpose.msra.mxu0 0.0
    %2336 = vmatprep.subr.mxu0 0.0
    %2337 = vmatpush1.xpose.msra.mxu0 0.0
    %2338 = vmatprep.subr.mxu0 0.0
    %2339 = vmatpush1.xpose.msra.mxu0 0.0
    %2340 = vmatprep.subr.mxu0 0.0
    %2341 = vmatpush1.xpose.msra.mxu0 0.0
    %2342 = vmatprep.subr.mxu0 0.0
    %2343 = vmatpush1.xpose.msra.mxu0 0.0
    %2344 = vmatprep.subr.mxu0 0.0
    %2345 = vmatpush1.xpose.msra.mxu0 0.0
    %2346 = vmatprep.subr.mxu0 0.0
    %2347 = vmatpush1.xpose.msra.mxu0 0.0
    %2348 = vmatprep.subr.mxu0 0.0
    %2349 = vmatpush1.xpose.msra.mxu0 0.0
    %2350 = vmatprep.mubr.f32.mxu0 0.0
    %2351 = vmatmul.mubr.f32.gmra.mrb[0].mxu0 %v2274
    %v2352 = vpop.f32.mrb[0].mxu0
    %v2353 = vadd.f32 0.0, %v2352
    %v2354 = vpop.f32.mrb[0].mxu0
    %2355 = vmatprep.mubr.f32.mxu0 0.0
    %2356 = vmatmul.mubr.f32.gmra.mrb[0].mxu0 %v2276
    %v2357 = vpop.f32.mrb[0].mxu0
    %v2358 = vadd.f32 0.0, %v2357
    %v2359 = vpop.f32.mrb[0].mxu0
    %2360 = vmatprep.mubr.f32.mxu0 0.0
    %2361 = vmatmul.mubr.f32.gmra.mrb[0].mxu0 %v2278
    %v2362 = vpop.f32.mrb[0].mxu0
    %v2363 = vadd.f32 0.0, %v2362
    %v2364 = vpop.f32.mrb[0].mxu0
    %2365 = vdwg.mxu0
    %v2366 = vmul.f32 %v2353, 0.35355338
    %v2367 = vmul.f32 %v2358, 0.35355338
    %v2368 = vmul.f32 %v2363, 0.35355338
    %v2369 = vsel %vm606, %v2366, -inf
    %2370 = vmax.xlane.f32.xlu0 %v2369
    %v2371 = vpop.xlane.xlu0 %2370
    %v2372 = vsel %vm606, %v2367, -inf
    %2373 = vmax.xlane.f32.xlu0 %v2372
    %v2374 = vpop.xlane.xlu0 %2373
    %v2375 = vsel %vm613, %v2368, -inf
    %2376 = vmax.xlane.f32.xlu0 %v2375
    %v2377 = vpop.xlane.xlu0 %2376
    %v2378 = vsub.f32 %v2366, %v2371
    %v2379 = vsub.f32 %v2367, %v2374
    %v2380 = vsub.f32 %v2368, %v2377
    %v2381 = vmul.f32 %v2378, 1.442695
    %v2382 = vpow.pop %v2381
    %v2383 = vmul.f32 %v2379, 1.442695
    %v2384 = vpow.pop %v2383
    %v2385 = vmul.f32 %v2380, 1.442695
    %v2386 = vpow.pop %v2385
    %v2387 = vsel %vm606, %v2382, 0.0
    %2388 = vadd.xlane.f32.xlu0 %v2387
    %v2389 = vpop.xlane.xlu0 %2388
    %v2390 = vsel %vm606, %v2384, 0.0
    %2391 = vadd.xlane.f32.xlu0 %v2390
    %v2392 = vpop.xlane.xlu0 %2391
    %v2393 = vsel %vm613, %v2386, 0.0
    %2394 = vadd.xlane.f32.xlu0 %v2393
    %v2395 = vpop.xlane.xlu0 %2394
    %v2396 = vrcp.pop %v2389
    %v2397 = vrcp.pop %v2392
    %v2398 = vrcp.pop %v2395
    %v2399 = vmul.f32 %v2382, %v2396
    %v2400 = vmul.f32 %v2384, %v2397
    %v2401 = vmul.f32 %v2386, %v2398
    %2402 = vrot.lane.b32.xlu0 %v1655, 104
    %v2403 = vpop.permute.xlu0 %2402
    %2404 = vrot.lane.b32.xlu0 %v1657, 104
    %v2405 = vpop.permute.xlu0 %2404
    %2406 = vrot.lane.b32.xlu0 %v1656, 104
    %v2407 = vpop.permute.xlu0 %2406
    %v2411 = vsel %vm606, %v2399, 0
    %v2414 = vsel %vm606, %v2400, 0
    %v2417 = vsel %vm606, %v2401, 0
    %v2419 = vsel %vm650, %v2407, 0
    %2421 = vmatprep.subr.mxu0 0.0
    %2422 = vmatpush1.msra.mxu0 %v2403
    %2423 = vmatprep.subr.mxu0 0.0
    %2424 = vmatpush1.msra.mxu0 %v2405
    %2425 = vmatprep.subr.mxu0 0.0
    %2426 = vmatpush1.msra.mxu0 %v2419
    %2427 = vmatprep.subr.mxu0 0.0
    %2428 = vmatpush1.msra.mxu0 0.0
    %2429 = vmatprep.subr.mxu0 0.0
    %2430 = vmatpush1.msra.mxu0 0.0
    %2431 = vmatprep.subr.mxu0 0.0
    %2432 = vmatpush1.msra.mxu0 0.0
    %2433 = vmatprep.subr.mxu0 0.0
    %2434 = vmatpush1.msra.mxu0 0.0
    %2435 = vmatprep.subr.mxu0 0.0
    %2436 = vmatpush1.msra.mxu0 0.0
    %2437 = vmatprep.subr.mxu0 0.0
    %2438 = vmatpush1.msra.mxu0 0.0
    %2439 = vmatprep.subr.mxu0 0.0
    %2440 = vmatpush1.msra.mxu0 0.0
    %2441 = vmatprep.subr.mxu0 0.0
    %2442 = vmatpush1.msra.mxu0 0.0
    %2443 = vmatprep.subr.mxu0 0.0
    %2444 = vmatpush1.msra.mxu0 0.0
    %2445 = vmatprep.subr.mxu0 0.0
    %2446 = vmatpush1.msra.mxu0 0.0
    %2447 = vmatprep.subr.mxu0 0.0
    %2448 = vmatpush1.msra.mxu0 0.0
    %2449 = vmatprep.subr.mxu0 0.0
    %2450 = vmatpush1.msra.mxu0 0.0
    %2451 = vmatprep.subr.mxu0 0.0
    %2452 = vmatpush1.msra.mxu0 0.0
    %2453 = vmatprep.subr.mxu0 0.0
    %2454 = vmatpush1.msra.mxu0 0.0
    %2455 = vmatprep.subr.mxu0 0.0
    %2456 = vmatpush1.msra.mxu0 0.0
    %2457 = vmatprep.subr.mxu0 0.0
    %2458 = vmatpush1.msra.mxu0 0.0
    %2459 = vmatprep.subr.mxu0 0.0
    %2460 = vmatpush1.msra.mxu0 0.0
    %2461 = vmatprep.subr.mxu0 0.0
    %2462 = vmatpush1.msra.mxu0 0.0
    %2463 = vmatprep.subr.mxu0 0.0
    %2464 = vmatpush1.msra.mxu0 0.0
    %2465 = vmatprep.subr.mxu0 0.0
    %2466 = vmatpush1.msra.mxu0 0.0
    %2467 = vmatprep.subr.mxu0 0.0
    %2468 = vmatpush1.msra.mxu0 0.0
    %2469 = vmatprep.subr.mxu0 0.0
    %2470 = vmatpush1.msra.mxu0 0.0
    %2471 = vmatprep.subr.mxu0 0.0
    %2472 = vmatpush1.msra.mxu0 0.0
    %2473 = vmatprep.subr.mxu0 0.0
    %2474 = vmatpush1.msra.mxu0 0.0
    %2475 = vmatprep.subr.mxu0 0.0
    %2476 = vmatpush1.msra.mxu0 0.0
    %2477 = vmatprep.subr.mxu0 0.0
    %2478 = vmatpush1.msra.mxu0 0.0
    %2479 = vmatprep.subr.mxu0 0.0
    %2480 = vmatpush1.msra.mxu0 0.0
    %2481 = vmatprep.subr.mxu0 0.0
    %2482 = vmatpush1.msra.mxu0 0.0
    %2483 = vmatprep.subr.mxu0 0.0
    %2484 = vmatpush1.msra.mxu0 0.0
    %2485 = vmatprep.mubr.f32.mxu0 0.0
    %2486 = vmatmul.mubr.f32.gmra.mrb[0].mxu0 %v2411
    %v2487 = vpop.f32.mrb[0].mxu0
    %v2488 = vadd.f32 0.0, %v2487
    %v2489 = vpop.f32.mrb[0].mxu0
    %2490 = vmatprep.mubr.f32.mxu0 0.0
    %2491 = vmatmul.mubr.f32.gmra.mrb[0].mxu0 %v2414
    %v2492 = vpop.f32.mrb[0].mxu0
    %v2493 = vadd.f32 0.0, %v2492
    %v2494 = vpop.f32.mrb[0].mxu0
    %2495 = vmatprep.mubr.f32.mxu0 0.0
    %2496 = vmatmul.mubr.f32.gmra.mrb[0].mxu0 %v2417
    %v2497 = vpop.f32.mrb[0].mxu0
    %v2498 = vadd.f32 0.0, %v2497
    %v2499 = vpop.f32.mrb[0].mxu0
    %2500 = vdwg.mxu0
    %2504 = vrot.lane.b32.xlu0 %v2488, 24
    %v2505 = vpop.permute.xlu0 %2504
    %2506 = vrot.lane.b32.xlu0 %v2493, 24
    %v2507 = vpop.permute.xlu0 %2506
    %2508 = vrot.lane.b32.xlu0 %v2498, 24
    %v2509 = vpop.permute.xlu0 %2508
    %2513 = vst.msk [vmem:[#allocation2 + $0x11] sm:$0xff] %vm1503, %v2505
    %2514 = vst.msk [vmem:[#allocation2 + $0x19] sm:$0xff] %vm1503, %v2507
    %2515 = vst.msk [vmem:[#allocation2 + $0x21] sm:$0x1] %vm1506, %v2509
    %v2516 = vld [vmem:[#allocation2] sm:$0xff]
    %v2517 = vld [vmem:[#allocation2 + $0x8] sm:$0xff]
    %v2518 = vld [vmem:[#allocation2 + $0x10] sm:$0xff]
    %v2519 = vld [vmem:[#allocation2 + $0x18] sm:$0xff]
    %v2520 = vld [vmem:[#allocation2 + $0x20] sm:$0x3]
    %s2521 = scalar_lea.vmem %s5, 96
    %v2522 = vld [vmem:[%s2521] sm:$0xff]
    %v2523 = vld [vmem:[%s2521 + $0x8] sm:$0xff]
    %v2524 = vld [vmem:[%s2521 + $0x10] sm:$0xff]
    %v2525 = vld [vmem:[%s2521 + $0x18] sm:$0xff]
    %s2526 = scalar_lea.vmem %s6, 3
    %v2527 = vld [vmem:[%s2526] sm:$0x1]
    %v2529 = vlaneseq
    %v2530 = vshrl.u32 %v2529, 7
    %v2531 = vsub.s32 0, %v2530
    %v2532 = vrot.slane %v2527, %v2531
    %v2535 = vsel %vm170, %v2516, 0
    %v2538 = vsel %vm170, %v2517, 0
    %v2541 = vsel %vm170, %v2518, 0
    %v2544 = vsel %vm170, %v2519, 0
    %v2547 = vsel %vm170, %v2520, 0
    %2549 = vmatprep.subr.mxu0 0.0
    %2550 = vmatpush1.msra.mxu0 %v2522
    %2551 = vmatprep.subr.mxu0 0.0
    %2552 = vmatpush1.msra.mxu0 %v2523
    %2553 = vmatprep.subr.mxu0 0.0
    %2554 = vmatpush1.msra.mxu0 %v2524
    %2555 = vmatprep.subr.mxu0 0.0
    %2556 = vmatpush1.msra.mxu0 %v2525
    %2557 = vmatprep.subr.mxu0 0.0
    %2558 = vmatpush1.msra.mxu0 0.0
    %2559 = vmatprep.subr.mxu0 0.0
    %2560 = vmatpush1.msra.mxu0 0.0
    %2561 = vmatprep.subr.mxu0 0.0
    %2562 = vmatpush1.msra.mxu0 0.0
    %2563 = vmatprep.subr.mxu0 0.0
    %2564 = vmatpush1.msra.mxu0 0.0
    %2565 = vmatprep.subr.mxu0 0.0
    %2566 = vmatpush1.msra.mxu0 0.0
    %2567 = vmatprep.subr.mxu0 0.0
    %2568 = vmatpush1.msra.mxu0 0.0
    %2569 = vmatprep.subr.mxu0 0.0
    %2570 = vmatpush1.msra.mxu0 0.0
    %2571 = vmatprep.subr.mxu0 0.0
    %2572 = vmatpush1.msra.mxu0 0.0
    %2573 = vmatprep.subr.mxu0 0.0
    %2574 = vmatpush1.msra.mxu0 0.0
    %2575 = vmatprep.subr.mxu0 0.0
    %2576 = vmatpush1.msra.mxu0 0.0
    %2577 = vmatprep.subr.mxu0 0.0
    %2578 = vmatpush1.msra.mxu0 0.0
    %2579 = vmatprep.subr.mxu0 0.0
    %2580 = vmatpush1.msra.mxu0 0.0
    %2581 = vmatprep.subr.mxu0 0.0
    %2582 = vmatpush1.msra.mxu0 0.0
    %2583 = vmatprep.subr.mxu0 0.0
    %2584 = vmatpush1.msra.mxu0 0.0
    %2585 = vmatprep.subr.mxu0 0.0
    %2586 = vmatpush1.msra.mxu0 0.0
    %2587 = vmatprep.subr.mxu0 0.0
    %2588 = vmatpush1.msra.mxu0 0.0
    %2589 = vmatprep.subr.mxu0 0.0
    %2590 = vmatpush1.msra.mxu0 0.0
    %2591 = vmatprep.subr.mxu0 0.0
    %2592 = vmatpush1.msra.mxu0 0.0
    %2593 = vmatprep.subr.mxu0 0.0
    %2594 = vmatpush1.msra.mxu0 0.0
    %2595 = vmatprep.subr.mxu0 0.0
    %2596 = vmatpush1.msra.mxu0 0.0
    %2597 = vmatprep.subr.mxu0 0.0
    %2598 = vmatpush1.msra.mxu0 0.0
    %2599 = vmatprep.subr.mxu0 0.0
    %2600 = vmatpush1.msra.mxu0 0.0
    %2601 = vmatprep.subr.mxu0 0.0
    %2602 = vmatpush1.msra.mxu0 0.0
    %2603 = vmatprep.subr.mxu0 0.0
    %2604 = vmatpush1.msra.mxu0 0.0
    %2605 = vmatprep.subr.mxu0 0.0
    %2606 = vmatpush1.msra.mxu0 0.0
    %2607 = vmatprep.subr.mxu0 0.0
    %2608 = vmatpush1.msra.mxu0 0.0
    %2609 = vmatprep.subr.mxu0 0.0
    %2610 = vmatpush1.msra.mxu0 0.0
    %2611 = vmatprep.subr.mxu0 0.0
    %2612 = vmatpush1.msra.mxu0 0.0
    %2613 = vmatprep.mubr.f32.mxu0 0.0
    %2614 = vmatmul.mubr.f32.gmra.mrb[0].mxu0 %v2535
    %v2615 = vpop.f32.mrb[0].mxu0
    %v2616 = vadd.f32 %v2532, %v2615
    %v2617 = vpop.f32.mrb[0].mxu0
    %2618 = vmatprep.mubr.f32.mxu0 0.0
    %2619 = vmatmul.mubr.f32.gmra.mrb[0].mxu0 %v2538
    %v2620 = vpop.f32.mrb[0].mxu0
    %v2621 = vadd.f32 %v2532, %v2620
    %v2622 = vpop.f32.mrb[0].mxu0
    %2623 = vmatprep.mubr.f32.mxu0 0.0
    %2624 = vmatmul.mubr.f32.gmra.mrb[0].mxu0 %v2541
    %v2625 = vpop.f32.mrb[0].mxu0
    %v2626 = vadd.f32 %v2532, %v2625
    %v2627 = vpop.f32.mrb[0].mxu0
    %2628 = vmatprep.mubr.f32.mxu0 0.0
    %2629 = vmatmul.mubr.f32.gmra.mrb[0].mxu0 %v2544
    %v2630 = vpop.f32.mrb[0].mxu0
    %v2631 = vadd.f32 %v2532, %v2630
    %v2632 = vpop.f32.mrb[0].mxu0
    %2633 = vmatprep.mubr.f32.mxu0 0.0
    %2634 = vmatmul.mubr.f32.gmra.mrb[0].mxu0 %v2547
    %v2635 = vpop.f32.mrb[0].mxu0
    %v2636 = vadd.f32 %v2532, %v2635
    %v2637 = vpop.f32.mrb[0].mxu0
    %2638 = vdwg.mxu0
    %v2639 = vadd.f32 %v177, %v2616
    %v2640 = vadd.f32 %v178, %v2621
    %v2641 = vadd.f32 %v179, %v2626
    %v2642 = vadd.f32 %v180, %v2631
    %v2643 = vadd.f32 %v181, %v2636
    %v2644 = vld [vmem:[%s9] sm:$0x1]
    %s2645 = scalar_lea.vmem %s9, 1
    %v2646 = vld [vmem:[%s2645] sm:$0x1]
    %v2647 = vsel %vm170, %v2639, 0.0
    %2648 = vadd.xlane.f32.xlu0 %v2647
    %v2649 = vpop.xlane.xlu0 %2648
    %v2650 = vsel %vm170, %v2640, 0.0
    %2651 = vadd.xlane.f32.xlu0 %v2650
    %v2652 = vpop.xlane.xlu0 %2651
    %v2653 = vsel %vm170, %v2641, 0.0
    %2654 = vadd.xlane.f32.xlu0 %v2653
    %v2655 = vpop.xlane.xlu0 %2654
    %v2656 = vsel %vm170, %v2642, 0.0
    %2657 = vadd.xlane.f32.xlu0 %v2656
    %v2658 = vpop.xlane.xlu0 %2657
    %vm2659 = vcmask 254976
    %v2660 = vsel %vm2659, %v2643, 0.0
    %2661 = vadd.xlane.f32.xlu0 %v2660
    %v2662 = vpop.xlane.xlu0 %2661
    %v2663 = vrcp.pop 32.0
    %v2664 = vmul.f32 %v2649, %v2663
    %v2665 = vmul.f32 %v2652, %v2663
    %v2666 = vmul.f32 %v2655, %v2663
    %v2667 = vmul.f32 %v2658, %v2663
    %v2668 = vmul.f32 %v2662, %v2663
    %v2669 = vsub.f32 %v2639, %v2664
    %v2670 = vsub.f32 %v2640, %v2665
    %v2671 = vsub.f32 %v2641, %v2666
    %v2672 = vsub.f32 %v2642, %v2667
    %v2673 = vsub.f32 %v2643, %v2668
    %v2674 = vmul.f32 %v2669, %v2669
    %v2675 = vmul.f32 %v2670, %v2670
    %v2676 = vmul.f32 %v2671, %v2671
    %v2677 = vmul.f32 %v2672, %v2672
    %v2678 = vmul.f32 %v2673, %v2673
    %v2679 = vsel %vm170, %v2674, 0.0
    %2680 = vadd.xlane.f32.xlu0 %v2679
    %v2681 = vpop.xlane.xlu0 %2680
    %v2682 = vsel %vm170, %v2675, 0.0
    %2683 = vadd.xlane.f32.xlu0 %v2682
    %v2684 = vpop.xlane.xlu0 %2683
    %v2685 = vsel %vm170, %v2676, 0.0
    %2686 = vadd.xlane.f32.xlu0 %v2685
    %v2687 = vpop.xlane.xlu0 %2686
    %v2688 = vsel %vm170, %v2677, 0.0
    %2689 = vadd.xlane.f32.xlu0 %v2688
    %v2690 = vpop.xlane.xlu0 %2689
    %v2691 = vsel %vm2659, %v2678, 0.0
    %2692 = vadd.xlane.f32.xlu0 %v2691
    %v2693 = vpop.xlane.xlu0 %2692
    %v2694 = vmul.f32 %v2681, %v2663
    %v2695 = vmul.f32 %v2684, %v2663
    %v2696 = vmul.f32 %v2687, %v2663
    %v2697 = vmul.f32 %v2690, %v2663
    %v2698 = vmul.f32 %v2693, %v2663
    %v2699 = vadd.f32 %v2694, 1e-05
    %v2700 = vadd.f32 %v2695, 1e-05
    %v2701 = vadd.f32 %v2696, 1e-05
    %v2702 = vadd.f32 %v2697, 1e-05
    %v2703 = vadd.f32 %v2698, 1e-05
    %v2704 = vrsqrt.pop %v2699
    %v2705 = vrsqrt.pop %v2700
    %v2706 = vrsqrt.pop %v2701
    %v2707 = vrsqrt.pop %v2702
    %v2708 = vrsqrt.pop %v2703
    %v2709 = vmul.f32 %v2669, %v2704
    %v2710 = vmul.f32 %v2670, %v2705
    %v2711 = vmul.f32 %v2671, %v2706
    %v2712 = vmul.f32 %v2672, %v2707
    %v2713 = vmul.f32 %v2673, %v2708
    %v2715 = vlaneseq
    %v2716 = vshrl.u32 %v2715, 7
    %v2717 = vsub.s32 0, %v2716
    %v2718 = vrot.slane %v2644, %v2717
    %v2720 = vmul.f32 %v2709, %v2718
    %v2721 = vmul.f32 %v2710, %v2718
    %v2722 = vmul.f32 %v2711, %v2718
    %v2723 = vmul.f32 %v2712, %v2718
    %v2724 = vmul.f32 %v2713, %v2718
    %v2726 = vlaneseq
    %v2727 = vshrl.u32 %v2726, 7
    %v2728 = vsub.s32 0, %v2727
    %v2729 = vrot.slane %v2646, %v2728
    %v2731 = vadd.f32 %v2720, %v2729
    %v2732 = vadd.f32 %v2721, %v2729
    %v2733 = vadd.f32 %v2722, %v2729
    %v2734 = vadd.f32 %v2723, %v2729
    %v2735 = vadd.f32 %v2724, %v2729
    %v2736 = vld [vmem:[%s7] sm:$0xff]
    %v2737 = vld [vmem:[%s7 + $0x8] sm:$0xff]
    %v2738 = vld [vmem:[%s7 + $0x10] sm:$0xff]
    %v2739 = vld [vmem:[%s7 + $0x18] sm:$0xff]
    %v2740 = vld [vmem:[%s8] sm:$0x1]
    %v2742 = vlaneseq
    %v2743 = vshrl.u32 %v2742, 7
    %v2744 = vsub.s32 0, %v2743
    %v2745 = vrot.slane %v2740, %v2744
    %v2748 = vsel %vm170, %v2731, 0
    %v2751 = vsel %vm170, %v2732, 0
    %v2754 = vsel %vm170, %v2733, 0
    %v2757 = vsel %vm170, %v2734, 0
    %v2760 = vsel %vm170, %v2735, 0
    %2762 = vmatprep.subr.mxu0 0.0
    %2763 = vmatpush1.msra.mxu0 %v2736
    %2764 = vmatprep.subr.mxu0 0.0
    %2765 = vmatpush1.msra.mxu0 %v2737
    %2766 = vmatprep.subr.mxu0 0.0
    %2767 = vmatpush1.msra.mxu0 %v2738
    %2768 = vmatprep.subr.mxu0 0.0
    %2769 = vmatpush1.msra.mxu0 %v2739
    %2770 = vmatprep.subr.mxu0 0.0
    %2771 = vmatpush1.msra.mxu0 0.0
    %2772 = vmatprep.subr.mxu0 0.0
    %2773 = vmatpush1.msra.mxu0 0.0
    %2774 = vmatprep.subr.mxu0 0.0
    %2775 = vmatpush1.msra.mxu0 0.0
    %2776 = vmatprep.subr.mxu0 0.0
    %2777 = vmatpush1.msra.mxu0 0.0
    %2778 = vmatprep.subr.mxu0 0.0
    %2779 = vmatpush1.msra.mxu0 0.0
    %2780 = vmatprep.subr.mxu0 0.0
    %2781 = vmatpush1.msra.mxu0 0.0
    %2782 = vmatprep.subr.mxu0 0.0
    %2783 = vmatpush1.msra.mxu0 0.0
    %2784 = vmatprep.subr.mxu0 0.0
    %2785 = vmatpush1.msra.mxu0 0.0
    %2786 = vmatprep.subr.mxu0 0.0
    %2787 = vmatpush1.msra.mxu0 0.0
    %2788 = vmatprep.subr.mxu0 0.0
    %2789 = vmatpush1.msra.mxu0 0.0
    %2790 = vmatprep.subr.mxu0 0.0
    %2791 = vmatpush1.msra.mxu0 0.0
    %2792 = vmatprep.subr.mxu0 0.0
    %2793 = vmatpush1.msra.mxu0 0.0
    %2794 = vmatprep.subr.mxu0 0.0
    %2795 = vmatpush1.msra.mxu0 0.0
    %2796 = vmatprep.subr.mxu0 0.0
    %2797 = vmatpush1.msra.mxu0 0.0
    %2798 = vmatprep.subr.mxu0 0.0
    %2799 = vmatpush1.msra.mxu0 0.0
    %2800 = vmatprep.subr.mxu0 0.0
    %2801 = vmatpush1.msra.mxu0 0.0
    %2802 = vmatprep.subr.mxu0 0.0
    %2803 = vmatpush1.msra.mxu0 0.0
    %2804 = vmatprep.subr.mxu0 0.0
    %2805 = vmatpush1.msra.mxu0 0.0
    %2806 = vmatprep.subr.mxu0 0.0
    %2807 = vmatpush1.msra.mxu0 0.0
    %2808 = vmatprep.subr.mxu0 0.0
    %2809 = vmatpush1.msra.mxu0 0.0
    %2810 = vmatprep.subr.mxu0 0.0
    %2811 = vmatpush1.msra.mxu0 0.0
    %2812 = vmatprep.subr.mxu0 0.0
    %2813 = vmatpush1.msra.mxu0 0.0
    %2814 = vmatprep.subr.mxu0 0.0
    %2815 = vmatpush1.msra.mxu0 0.0
    %2816 = vmatprep.subr.mxu0 0.0
    %2817 = vmatpush1.msra.mxu0 0.0
    %2818 = vmatprep.subr.mxu0 0.0
    %2819 = vmatpush1.msra.mxu0 0.0
    %2820 = vmatprep.subr.mxu0 0.0
    %2821 = vmatpush1.msra.mxu0 0.0
    %2822 = vmatprep.subr.mxu0 0.0
    %2823 = vmatpush1.msra.mxu0 0.0
    %2824 = vmatprep.subr.mxu0 0.0
    %2825 = vmatpush1.msra.mxu0 0.0
    %2826 = vmatprep.mubr.f32.mxu0 0.0
    %2827 = vmatmul.mubr.f32.gmra.mrb[0].mxu0 %v2748
    %v2828 = vpop.f32.mrb[0].mxu0
    %v2829 = vadd.f32 %v2745, %v2828
    %v2830 = vpop.f32.mrb[0].mxu0
    %2831 = vmatprep.mubr.f32.mxu0 0.0
    %2832 = vmatmul.mubr.f32.gmra.mrb[0].mxu0 %v2751
    %v2833 = vpop.f32.mrb[0].mxu0
    %v2834 = vadd.f32 %v2745, %v2833
    %v2835 = vpop.f32.mrb[0].mxu0
    %2836 = vmatprep.mubr.f32.mxu0 0.0
    %2837 = vmatmul.mubr.f32.gmra.mrb[0].mxu0 %v2754
    %v2838 = vpop.f32.mrb[0].mxu0
    %v2839 = vadd.f32 %v2745, %v2838
    %v2840 = vpop.f32.mrb[0].mxu0
    %2841 = vmatprep.mubr.f32.mxu0 0.0
    %2842 = vmatmul.mubr.f32.gmra.mrb[0].mxu0 %v2757
    %v2843 = vpop.f32.mrb[0].mxu0
    %v2844 = vadd.f32 %v2745, %v2843
    %v2845 = vpop.f32.mrb[0].mxu0
    %2846 = vmatprep.mubr.f32.mxu0 0.0
    %2847 = vmatmul.mubr.f32.gmra.mrb[0].mxu0 %v2760
    %v2848 = vpop.f32.mrb[0].mxu0
    %v2849 = vadd.f32 %v2745, %v2848
    %v2850 = vpop.f32.mrb[0].mxu0
    %2851 = vdwg.mxu0
    %v2852 = vmul.f32 %v2829, %v2829
    %v2853 = vmul.f32 %v2834, %v2834
    %v2854 = vmul.f32 %v2839, %v2839
    %v2855 = vmul.f32 %v2844, %v2844
    %v2856 = vmul.f32 %v2849, %v2849
    %v2857 = vmul.f32 %v2829, %v2852
    %v2858 = vmul.f32 %v2834, %v2853
    %v2859 = vmul.f32 %v2839, %v2854
    %v2860 = vmul.f32 %v2844, %v2855
    %v2861 = vmul.f32 %v2849, %v2856
    %v2862 = vmul.f32 %v2857, 0.044715
    %v2863 = vmul.f32 %v2858, 0.044715
    %v2864 = vmul.f32 %v2859, 0.044715
    %v2865 = vmul.f32 %v2860, 0.044715
    %v2866 = vmul.f32 %v2861, 0.044715
    %v2867 = vadd.f32 %v2829, %v2862
    %v2868 = vadd.f32 %v2834, %v2863
    %v2869 = vadd.f32 %v2839, %v2864
    %v2870 = vadd.f32 %v2844, %v2865
    %v2871 = vadd.f32 %v2849, %v2866
    %v2872 = vmul.f32 %v2867, 0.7978846
    %v2873 = vmul.f32 %v2868, 0.7978846
    %v2874 = vmul.f32 %v2869, 0.7978846
    %v2875 = vmul.f32 %v2870, 0.7978846
    %v2876 = vmul.f32 %v2871, 0.7978846
    %v2877 = vtanh.pop %v2872
    %v2878 = vtanh.pop %v2873
    %v2879 = vtanh.pop %v2874
    %v2880 = vtanh.pop %v2875
    %v2881 = vtanh.pop %v2876
    %v2882 = vadd.f32 %v2877, 1.0
    %v2883 = vadd.f32 %v2878, 1.0
    %v2884 = vadd.f32 %v2879, 1.0
    %v2885 = vadd.f32 %v2880, 1.0
    %v2886 = vadd.f32 %v2881, 1.0
    %v2887 = vmul.f32 %v2882, 0.5
    %v2888 = vmul.f32 %v2883, 0.5
    %v2889 = vmul.f32 %v2884, 0.5
    %v2890 = vmul.f32 %v2885, 0.5
    %v2891 = vmul.f32 %v2886, 0.5
    %v2892 = vmul.f32 %v2829, %v2887
    %v2893 = vmul.f32 %v2834, %v2888
    %v2894 = vmul.f32 %v2839, %v2889
    %v2895 = vmul.f32 %v2844, %v2890
    %v2896 = vmul.f32 %v2849, %v2891
    %s2897 = scalar_lea.vmem %s7, 32
    %v2898 = vld [vmem:[%s2897] sm:$0xff]
    %v2899 = vld [vmem:[%s2897 + $0x8] sm:$0xff]
    %v2900 = vld [vmem:[%s2897 + $0x10] sm:$0xff]
    %v2901 = vld [vmem:[%s2897 + $0x18] sm:$0xff]
    %s2902 = scalar_lea.vmem %s8, 1
    %v2903 = vld [vmem:[%s2902] sm:$0x1]
    %v2905 = vlaneseq
    %v2906 = vshrl.u32 %v2905, 7
    %v2907 = vsub.s32 0, %v2906
    %v2908 = vrot.slane %v2903, %v2907
    %v2911 = vsel %vm170, %v2892, 0
    %v2914 = vsel %vm170, %v2893, 0
    %v2917 = vsel %vm170, %v2894, 0
    %v2920 = vsel %vm170, %v2895, 0
    %v2923 = vsel %vm170, %v2896, 0
    %2925 = vmatprep.subr.mxu0 0.0
    %2926 = vmatpush1.msra.mxu0 %v2898
    %2927 = vmatprep.subr.mxu0 0.0
    %2928 = vmatpush1.msra.mxu0 %v2899
    %2929 = vmatprep.subr.mxu0 0.0
    %2930 = vmatpush1.msra.mxu0 %v2900
    %2931 = vmatprep.subr.mxu0 0.0
    %2932 = vmatpush1.msra.mxu0 %v2901
    %2933 = vmatprep.subr.mxu0 0.0
    %2934 = vmatpush1.msra.mxu0 0.0
    %2935 = vmatprep.subr.mxu0 0.0
    %2936 = vmatpush1.msra.mxu0 0.0
    %2937 = vmatprep.subr.mxu0 0.0
    %2938 = vmatpush1.msra.mxu0 0.0
    %2939 = vmatprep.subr.mxu0 0.0
    %2940 = vmatpush1.msra.mxu0 0.0
    %2941 = vmatprep.subr.mxu0 0.0
    %2942 = vmatpush1.msra.mxu0 0.0
    %2943 = vmatprep.subr.mxu0 0.0
    %2944 = vmatpush1.msra.mxu0 0.0
    %2945 = vmatprep.subr.mxu0 0.0
    %2946 = vmatpush1.msra.mxu0 0.0
    %2947 = vmatprep.subr.mxu0 0.0
    %2948 = vmatpush1.msra.mxu0 0.0
    %2949 = vmatprep.subr.mxu0 0.0
    %2950 = vmatpush1.msra.mxu0 0.0
    %2951 = vmatprep.subr.mxu0 0.0
    %2952 = vmatpush1.msra.mxu0 0.0
    %2953 = vmatprep.subr.mxu0 0.0
    %2954 = vmatpush1.msra.mxu0 0.0
    %2955 = vmatprep.subr.mxu0 0.0
    %2956 = vmatpush1.msra.mxu0 0.0
    %2957 = vmatprep.subr.mxu0 0.0
    %2958 = vmatpush1.msra.mxu0 0.0
    %2959 = vmatprep.subr.mxu0 0.0
    %2960 = vmatpush1.msra.mxu0 0.0
    %2961 = vmatprep.subr.mxu0 0.0
    %2962 = vmatpush1.msra.mxu0 0.0
    %2963 = vmatprep.subr.mxu0 0.0
    %2964 = vmatpush1.msra.mxu0 0.0
    %2965 = vmatprep.subr.mxu0 0.0
    %2966 = vmatpush1.msra.mxu0 0.0
    %2967 = vmatprep.subr.mxu0 0.0
    %2968 = vmatpush1.msra.mxu0 0.0
    %2969 = vmatprep.subr.mxu0 0.0
    %2970 = vmatpush1.msra.mxu0 0.0
    %2971 = vmatprep.subr.mxu0 0.0
    %2972 = vmatpush1.msra.mxu0 0.0
    %2973 = vmatprep.subr.mxu0 0.0
    %2974 = vmatpush1.msra.mxu0 0.0
    %2975 = vmatprep.subr.mxu0 0.0
    %2976 = vmatpush1.msra.mxu0 0.0
    %2977 = vmatprep.subr.mxu0 0.0
    %2978 = vmatpush1.msra.mxu0 0.0
    %2979 = vmatprep.subr.mxu0 0.0
    %2980 = vmatpush1.msra.mxu0 0.0
    %2981 = vmatprep.subr.mxu0 0.0
    %2982 = vmatpush1.msra.mxu0 0.0
    %2983 = vmatprep.subr.mxu0 0.0
    %2984 = vmatpush1.msra.mxu0 0.0
    %2985 = vmatprep.subr.mxu0 0.0
    %2986 = vmatpush1.msra.mxu0 0.0
    %2987 = vmatprep.subr.mxu0 0.0
    %2988 = vmatpush1.msra.mxu0 0.0
    %2989 = vmatprep.mubr.f32.mxu0 0.0
    %2990 = vmatmul.mubr.f32.gmra.mrb[0].mxu0 %v2911
    %v2991 = vpop.f32.mrb[0].mxu0
    %v2992 = vadd.f32 %v2908, %v2991
    %v2993 = vpop.f32.mrb[0].mxu0
    %2994 = vmatprep.mubr.f32.mxu0 0.0
    %2995 = vmatmul.mubr.f32.gmra.mrb[0].mxu0 %v2914
    %v2996 = vpop.f32.mrb[0].mxu0
    %v2997 = vadd.f32 %v2908, %v2996
    %v2998 = vpop.f32.mrb[0].mxu0
    %2999 = vmatprep.mubr.f32.mxu0 0.0
    %3000 = vmatmul.mubr.f32.gmra.mrb[0].mxu0 %v2917
    %v3001 = vpop.f32.mrb[0].mxu0
    %v3002 = vadd.f32 %v2908, %v3001
    %v3003 = vpop.f32.mrb[0].mxu0
    %3004 = vmatprep.mubr.f32.mxu0 0.0
    %3005 = vmatmul.mubr.f32.gmra.mrb[0].mxu0 %v2920
    %v3006 = vpop.f32.mrb[0].mxu0
    %v3007 = vadd.f32 %v2908, %v3006
    %v3008 = vpop.f32.mrb[0].mxu0
    %3009 = vmatprep.mubr.f32.mxu0 0.0
    %3010 = vmatmul.mubr.f32.gmra.mrb[0].mxu0 %v2923
    %v3011 = vpop.f32.mrb[0].mxu0
    %v3012 = vadd.f32 %v2908, %v3011
    %v3013 = vpop.f32.mrb[0].mxu0
    %3014 = vdwg.mxu0
    %v3015 = vadd.f32 %v2731, %v2992
    %v3016 = vadd.f32 %v2732, %v2997
    %v3017 = vadd.f32 %v2733, %v3002
    %v3018 = vadd.f32 %v2734, %v3007
    %v3019 = vadd.f32 %v2735, %v3012
    %s3020 = scalar_lea.vmem %s9, 2
    %v3021 = vld [vmem:[%s3020] sm:$0x1]
    %s3022 = scalar_lea.vmem %s9, 3
    %v3023 = vld [vmem:[%s3022] sm:$0x1]
    %v3024 = vsel %vm170, %v3015, 0.0
    %3025 = vadd.xlane.f32.xlu0 %v3024
    %v3026 = vpop.xlane.xlu0 %3025
    %v3027 = vsel %vm170, %v3016, 0.0
    %3028 = vadd.xlane.f32.xlu0 %v3027
    %v3029 = vpop.xlane.xlu0 %3028
    %v3030 = vsel %vm170, %v3017, 0.0
    %3031 = vadd.xlane.f32.xlu0 %v3030
    %v3032 = vpop.xlane.xlu0 %3031
    %v3033 = vsel %vm170, %v3018, 0.0
    %3034 = vadd.xlane.f32.xlu0 %v3033
    %v3035 = vpop.xlane.xlu0 %3034
    %v3036 = vsel %vm2659, %v3019, 0.0
    %3037 = vadd.xlane.f32.xlu0 %v3036
    %v3038 = vpop.xlane.xlu0 %3037
    %v3039 = vmul.f32 %v3026, %v2663
    %v3040 = vmul.f32 %v3029, %v2663
    %v3041 = vmul.f32 %v3032, %v2663
    %v3042 = vmul.f32 %v3035, %v2663
    %v3043 = vmul.f32 %v3038, %v2663
    %v3044 = vsub.f32 %v3015, %v3039
    %v3045 = vsub.f32 %v3016, %v3040
    %v3046 = vsub.f32 %v3017, %v3041
    %v3047 = vsub.f32 %v3018, %v3042
    %v3048 = vsub.f32 %v3019, %v3043
    %v3049 = vmul.f32 %v3044, %v3044
    %v3050 = vmul.f32 %v3045, %v3045
    %v3051 = vmul.f32 %v3046, %v3046
    %v3052 = vmul.f32 %v3047, %v3047
    %v3053 = vmul.f32 %v3048, %v3048
    %v3054 = vsel %vm170, %v3049, 0.0
    %3055 = vadd.xlane.f32.xlu0 %v3054
    %v3056 = vpop.xlane.xlu0 %3055
    %v3057 = vsel %vm170, %v3050, 0.0
    %3058 = vadd.xlane.f32.xlu0 %v3057
    %v3059 = vpop.xlane.xlu0 %3058
    %v3060 = vsel %vm170, %v3051, 0.0
    %3061 = vadd.xlane.f32.xlu0 %v3060
    %v3062 = vpop.xlane.xlu0 %3061
    %v3063 = vsel %vm170, %v3052, 0.0
    %3064 = vadd.xlane.f32.xlu0 %v3063
    %v3065 = vpop.xlane.xlu0 %3064
    %v3066 = vsel %vm2659, %v3053, 0.0
    %3067 = vadd.xlane.f32.xlu0 %v3066
    %v3068 = vpop.xlane.xlu0 %3067
    %v3069 = vmul.f32 %v3056, %v2663
    %v3070 = vmul.f32 %v3059, %v2663
    %v3071 = vmul.f32 %v3062, %v2663
    %v3072 = vmul.f32 %v3065, %v2663
    %v3073 = vmul.f32 %v3068, %v2663
    %v3074 = vadd.f32 %v3069, 1e-05
    %v3075 = vadd.f32 %v3070, 1e-05
    %v3076 = vadd.f32 %v3071, 1e-05
    %v3077 = vadd.f32 %v3072, 1e-05
    %v3078 = vadd.f32 %v3073, 1e-05
    %v3079 = vrsqrt.pop %v3074
    %v3080 = vrsqrt.pop %v3075
    %v3081 = vrsqrt.pop %v3076
    %v3082 = vrsqrt.pop %v3077
    %v3083 = vrsqrt.pop %v3078
    %v3084 = vmul.f32 %v3044, %v3079
    %v3085 = vmul.f32 %v3045, %v3080
    %v3086 = vmul.f32 %v3046, %v3081
    %v3087 = vmul.f32 %v3047, %v3082
    %v3088 = vmul.f32 %v3048, %v3083
    %v3090 = vlaneseq
    %v3091 = vshrl.u32 %v3090, 7
    %v3092 = vsub.s32 0, %v3091
    %v3093 = vrot.slane %v3021, %v3092
    %v3095 = vmul.f32 %v3084, %v3093
    %v3096 = vmul.f32 %v3085, %v3093
    %v3097 = vmul.f32 %v3086, %v3093
    %v3098 = vmul.f32 %v3087, %v3093
    %v3099 = vmul.f32 %v3088, %v3093
    %v3101 = vlaneseq
    %v3102 = vshrl.u32 %v3101, 7
    %v3103 = vsub.s32 0, %v3102
    %v3104 = vrot.slane %v3023, %v3103
    %v3106 = vadd.f32 %v3095, %v3104
    %v3107 = vadd.f32 %v3096, %v3104
    %v3108 = vadd.f32 %v3097, %v3104
    %v3109 = vadd.f32 %v3098, %v3104
    %v3110 = vadd.f32 %v3099, %v3104
    %s3111 = scalar_lea.vmem %s5, 128
    %v3112 = vld [vmem:[%s3111] sm:$0xff]
    %v3113 = vld [vmem:[%s3111 + $0x8] sm:$0xff]
    %v3114 = vld [vmem:[%s3111 + $0x10] sm:$0xff]
    %v3115 = vld [vmem:[%s3111 + $0x18] sm:$0xff]
    %s3116 = scalar_lea.vmem %s6, 4
    %v3117 = vld [vmem:[%s3116] sm:$0x1]
    %v3119 = vlaneseq
    %v3120 = vshrl.u32 %v3119, 7
    %v3121 = vsub.s32 0, %v3120
    %v3122 = vrot.slane %v3117, %v3121
    %v3125 = vsel %vm170, %v3106, 0
    %v3128 = vsel %vm170, %v3107, 0
    %v3131 = vsel %vm170, %v3108, 0
    %v3134 = vsel %vm170, %v3109, 0
    %v3137 = vsel %vm170, %v3110, 0
    %3139 = vmatprep.subr.mxu0 0.0
    %3140 = vmatpush1.msra.mxu0 %v3112
    %3141 = vmatprep.subr.mxu0 0.0
    %3142 = vmatpush1.msra.mxu0 %v3113
    %3143 = vmatprep.subr.mxu0 0.0
    %3144 = vmatpush1.msra.mxu0 %v3114
    %3145 = vmatprep.subr.mxu0 0.0
    %3146 = vmatpush1.msra.mxu0 %v3115
    %3147 = vmatprep.subr.mxu0 0.0
    %3148 = vmatpush1.msra.mxu0 0.0
    %3149 = vmatprep.subr.mxu0 0.0
    %3150 = vmatpush1.msra.mxu0 0.0
    %3151 = vmatprep.subr.mxu0 0.0
    %3152 = vmatpush1.msra.mxu0 0.0
    %3153 = vmatprep.subr.mxu0 0.0
    %3154 = vmatpush1.msra.mxu0 0.0
    %3155 = vmatprep.subr.mxu0 0.0
    %3156 = vmatpush1.msra.mxu0 0.0
    %3157 = vmatprep.subr.mxu0 0.0
    %3158 = vmatpush1.msra.mxu0 0.0
    %3159 = vmatprep.subr.mxu0 0.0
    %3160 = vmatpush1.msra.mxu0 0.0
    %3161 = vmatprep.subr.mxu0 0.0
    %3162 = vmatpush1.msra.mxu0 0.0
    %3163 = vmatprep.subr.mxu0 0.0
    %3164 = vmatpush1.msra.mxu0 0.0
    %3165 = vmatprep.subr.mxu0 0.0
    %3166 = vmatpush1.msra.mxu0 0.0
    %3167 = vmatprep.subr.mxu0 0.0
    %3168 = vmatpush1.msra.mxu0 0.0
    %3169 = vmatprep.subr.mxu0 0.0
    %3170 = vmatpush1.msra.mxu0 0.0
    %3171 = vmatprep.subr.mxu0 0.0
    %3172 = vmatpush1.msra.mxu0 0.0
    %3173 = vmatprep.subr.mxu0 0.0
    %3174 = vmatpush1.msra.mxu0 0.0
    %3175 = vmatprep.subr.mxu0 0.0
    %3176 = vmatpush1.msra.mxu0 0.0
    %3177 = vmatprep.subr.mxu0 0.0
    %3178 = vmatpush1.msra.mxu0 0.0
    %3179 = vmatprep.subr.mxu0 0.0
    %3180 = vmatpush1.msra.mxu0 0.0
    %3181 = vmatprep.subr.mxu0 0.0
    %3182 = vmatpush1.msra.mxu0 0.0
    %3183 = vmatprep.subr.mxu0 0.0
    %3184 = vmatpush1.msra.mxu0 0.0
    %3185 = vmatprep.subr.mxu0 0.0
    %3186 = vmatpush1.msra.mxu0 0.0
    %3187 = vmatprep.subr.mxu0 0.0
    %3188 = vmatpush1.msra.mxu0 0.0
    %3189 = vmatprep.subr.mxu0 0.0
    %3190 = vmatpush1.msra.mxu0 0.0
    %3191 = vmatprep.subr.mxu0 0.0
    %3192 = vmatpush1.msra.mxu0 0.0
    %3193 = vmatprep.subr.mxu0 0.0
    %3194 = vmatpush1.msra.mxu0 0.0
    %3195 = vmatprep.subr.mxu0 0.0
    %3196 = vmatpush1.msra.mxu0 0.0
    %3197 = vmatprep.subr.mxu0 0.0
    %3198 = vmatpush1.msra.mxu0 0.0
    %3199 = vmatprep.subr.mxu0 0.0
    %3200 = vmatpush1.msra.mxu0 0.0
    %3201 = vmatprep.subr.mxu0 0.0
    %3202 = vmatpush1.msra.mxu0 0.0
    %3203 = vmatprep.mubr.f32.mxu0 0.0
    %3204 = vmatmul.mubr.f32.gmra.mrb[0].mxu0 %v3125
    %v3205 = vpop.f32.mrb[0].mxu0
    %v3206 = vadd.f32 %v3122, %v3205
    %v3207 = vpop.f32.mrb[0].mxu0
    %3208 = vmatprep.mubr.f32.mxu0 0.0
    %3209 = vmatmul.mubr.f32.gmra.mrb[0].mxu0 %v3128
    %v3210 = vpop.f32.mrb[0].mxu0
    %v3211 = vadd.f32 %v3122, %v3210
    %v3212 = vpop.f32.mrb[0].mxu0
    %3213 = vmatprep.mubr.f32.mxu0 0.0
    %3214 = vmatmul.mubr.f32.gmra.mrb[0].mxu0 %v3131
    %v3215 = vpop.f32.mrb[0].mxu0
    %v3216 = vadd.f32 %v3122, %v3215
    %v3217 = vpop.f32.mrb[0].mxu0
    %3218 = vmatprep.mubr.f32.mxu0 0.0
    %3219 = vmatmul.mubr.f32.gmra.mrb[0].mxu0 %v3134
    %v3220 = vpop.f32.mrb[0].mxu0
    %v3221 = vadd.f32 %v3122, %v3220
    %v3222 = vpop.f32.mrb[0].mxu0
    %3223 = vmatprep.mubr.f32.mxu0 0.0
    %3224 = vmatmul.mubr.f32.gmra.mrb[0].mxu0 %v3137
    %v3225 = vpop.f32.mrb[0].mxu0
    %v3226 = vadd.f32 %v3122, %v3225
    %v3227 = vpop.f32.mrb[0].mxu0
    %3228 = vdwg.mxu0
    %s3229 = scalar_lea.vmem %s5, 160
    %v3230 = vld [vmem:[%s3229] sm:$0xff]
    %v3231 = vld [vmem:[%s3229 + $0x8] sm:$0xff]
    %v3232 = vld [vmem:[%s3229 + $0x10] sm:$0xff]
    %v3233 = vld [vmem:[%s3229 + $0x18] sm:$0xff]
    %s3234 = scalar_lea.vmem %s6, 5
    %v3235 = vld [vmem:[%s3234] sm:$0x1]
    %v3237 = vlaneseq
    %v3238 = vshrl.u32 %v3237, 7
    %v3239 = vsub.s32 0, %v3238
    %v3240 = vrot.slane %v3235, %v3239
    %3242 = vmatprep.subr.mxu0 0.0
    %3243 = vmatpush1.msra.mxu0 %v3230
    %3244 = vmatprep.subr.mxu0 0.0
    %3245 = vmatpush1.msra.mxu0 %v3231
    %3246 = vmatprep.subr.mxu0 0.0
    %3247 = vmatpush1.msra.mxu0 %v3232
    %3248 = vmatprep.subr.mxu0 0.0
    %3249 = vmatpush1.msra.mxu0 %v3233
    %3250 = vmatprep.subr.mxu0 0.0
    %3251 = vmatpush1.msra.mxu0 0.0
    %3252 = vmatprep.subr.mxu0 0.0
    %3253 = vmatpush1.msra.mxu0 0.0
    %3254 = vmatprep.subr.mxu0 0.0
    %3255 = vmatpush1.msra.mxu0 0.0
    %3256 = vmatprep.subr.mxu0 0.0
    %3257 = vmatpush1.msra.mxu0 0.0
    %3258 = vmatprep.subr.mxu0 0.0
    %3259 = vmatpush1.msra.mxu0 0.0
    %3260 = vmatprep.subr.mxu0 0.0
    %3261 = vmatpush1.msra.mxu0 0.0
    %3262 = vmatprep.subr.mxu0 0.0
    %3263 = vmatpush1.msra.mxu0 0.0
    %3264 = vmatprep.subr.mxu0 0.0
    %3265 = vmatpush1.msra.mxu0 0.0
    %3266 = vmatprep.subr.mxu0 0.0
    %3267 = vmatpush1.msra.mxu0 0.0
    %3268 = vmatprep.subr.mxu0 0.0
    %3269 = vmatpush1.msra.mxu0 0.0
    %3270 = vmatprep.subr.mxu0 0.0
    %3271 = vmatpush1.msra.mxu0 0.0
    %3272 = vmatprep.subr.mxu0 0.0
    %3273 = vmatpush1.msra.mxu0 0.0
    %3274 = vmatprep.subr.mxu0 0.0
    %3275 = vmatpush1.msra.mxu0 0.0
    %3276 = vmatprep.subr.mxu0 0.0
    %3277 = vmatpush1.msra.mxu0 0.0
    %3278 = vmatprep.subr.mxu0 0.0
    %3279 = vmatpush1.msra.mxu0 0.0
    %3280 = vmatprep.subr.mxu0 0.0
    %3281 = vmatpush1.msra.mxu0 0.0
    %3282 = vmatprep.subr.mxu0 0.0
    %3283 = vmatpush1.msra.mxu0 0.0
    %3284 = vmatprep.subr.mxu0 0.0
    %3285 = vmatpush1.msra.mxu0 0.0
    %3286 = vmatprep.subr.mxu0 0.0
    %3287 = vmatpush1.msra.mxu0 0.0
    %3288 = vmatprep.subr.mxu0 0.0
    %3289 = vmatpush1.msra.mxu0 0.0
    %3290 = vmatprep.subr.mxu0 0.0
    %3291 = vmatpush1.msra.mxu0 0.0
    %3292 = vmatprep.subr.mxu0 0.0
    %3293 = vmatpush1.msra.mxu0 0.0
    %3294 = vmatprep.subr.mxu0 0.0
    %3295 = vmatpush1.msra.mxu0 0.0
    %3296 = vmatprep.subr.mxu0 0.0
    %3297 = vmatpush1.msra.mxu0 0.0
    %3298 = vmatprep.subr.mxu0 0.0
    %3299 = vmatpush1.msra.mxu0 0.0
    %3300 = vmatprep.subr.mxu0 0.0
    %3301 = vmatpush1.msra.mxu0 0.0
    %3302 = vmatprep.subr.mxu0 0.0
    %3303 = vmatpush1.msra.mxu0 0.0
    %3304 = vmatprep.subr.mxu0 0.0
    %3305 = vmatpush1.msra.mxu0 0.0
    %3306 = vmatprep.mubr.f32.mxu0 0.0
    %3307 = vmatmul.mubr.f32.gmra.mrb[0].mxu0 %v3125
    %v3308 = vpop.f32.mrb[0].mxu0
    %v3309 = vadd.f32 %v3240, %v3308
    %v3310 = vpop.f32.mrb[0].mxu0
    %3311 = vmatprep.mubr.f32.mxu0 0.0
    %3312 = vmatmul.mubr.f32.gmra.mrb[0].mxu0 %v3128
    %v3313 = vpop.f32.mrb[0].mxu0
    %v3314 = vadd.f32 %v3240, %v3313
    %v3315 = vpop.f32.mrb[0].mxu0
    %3316 = vmatprep.mubr.f32.mxu0 0.0
    %3317 = vmatmul.mubr.f32.gmra.mrb[0].mxu0 %v3131
    %v3318 = vpop.f32.mrb[0].mxu0
    %v3319 = vadd.f32 %v3240, %v3318
    %v3320 = vpop.f32.mrb[0].mxu0
    %3321 = vmatprep.mubr.f32.mxu0 0.0
    %3322 = vmatmul.mubr.f32.gmra.mrb[0].mxu0 %v3134
    %v3323 = vpop.f32.mrb[0].mxu0
    %v3324 = vadd.f32 %v3240, %v3323
    %v3325 = vpop.f32.mrb[0].mxu0
    %3326 = vmatprep.mubr.f32.mxu0 0.0
    %3327 = vmatmul.mubr.f32.gmra.mrb[0].mxu0 %v3137
    %v3328 = vpop.f32.mrb[0].mxu0
    %v3329 = vadd.f32 %v3240, %v3328
    %v3330 = vpop.f32.mrb[0].mxu0
    %3331 = vdwg.mxu0
    %s3332 = scalar_lea.vmem %s5, 192
    %v3333 = vld [vmem:[%s3332] sm:$0xff]
    %v3334 = vld [vmem:[%s3332 + $0x8] sm:$0xff]
    %v3335 = vld [vmem:[%s3332 + $0x10] sm:$0xff]
    %v3336 = vld [vmem:[%s3332 + $0x18] sm:$0xff]
    %s3337 = scalar_lea.vmem %s6, 6
    %v3338 = vld [vmem:[%s3337] sm:$0x1]
    %v3340 = vlaneseq
    %v3341 = vshrl.u32 %v3340, 7
    %v3342 = vsub.s32 0, %v3341
    %v3343 = vrot.slane %v3338, %v3342
    %3345 = vmatprep.subr.mxu0 0.0
    %3346 = vmatpush1.msra.mxu0 %v3333
    %3347 = vmatprep.subr.mxu0 0.0
    %3348 = vmatpush1.msra.mxu0 %v3334
    %3349 = vmatprep.subr.mxu0 0.0
    %3350 = vmatpush1.msra.mxu0 %v3335
    %3351 = vmatprep.subr.mxu0 0.0
    %3352 = vmatpush1.msra.mxu0 %v3336
    %3353 = vmatprep.subr.mxu0 0.0
    %3354 = vmatpush1.msra.mxu0 0.0
    %3355 = vmatprep.subr.mxu0 0.0
    %3356 = vmatpush1.msra.mxu0 0.0
    %3357 = vmatprep.subr.mxu0 0.0
    %3358 = vmatpush1.msra.mxu0 0.0
    %3359 = vmatprep.subr.mxu0 0.0
    %3360 = vmatpush1.msra.mxu0 0.0
    %3361 = vmatprep.subr.mxu0 0.0
    %3362 = vmatpush1.msra.mxu0 0.0
    %3363 = vmatprep.subr.mxu0 0.0
    %3364 = vmatpush1.msra.mxu0 0.0
    %3365 = vmatprep.subr.mxu0 0.0
    %3366 = vmatpush1.msra.mxu0 0.0
    %3367 = vmatprep.subr.mxu0 0.0
    %3368 = vmatpush1.msra.mxu0 0.0
    %3369 = vmatprep.subr.mxu0 0.0
    %3370 = vmatpush1.msra.mxu0 0.0
    %3371 = vmatprep.subr.mxu0 0.0
    %3372 = vmatpush1.msra.mxu0 0.0
    %3373 = vmatprep.subr.mxu0 0.0
    %3374 = vmatpush1.msra.mxu0 0.0
    %3375 = vmatprep.subr.mxu0 0.0
    %3376 = vmatpush1.msra.mxu0 0.0
    %3377 = vmatprep.subr.mxu0 0.0
    %3378 = vmatpush1.msra.mxu0 0.0
    %3379 = vmatprep.subr.mxu0 0.0
    %3380 = vmatpush1.msra.mxu0 0.0
    %3381 = vmatprep.subr.mxu0 0.0
    %3382 = vmatpush1.msra.mxu0 0.0
    %3383 = vmatprep.subr.mxu0 0.0
    %3384 = vmatpush1.msra.mxu0 0.0
    %3385 = vmatprep.subr.mxu0 0.0
    %3386 = vmatpush1.msra.mxu0 0.0
    %3387 = vmatprep.subr.mxu0 0.0
    %3388 = vmatpush1.msra.mxu0 0.0
    %3389 = vmatprep.subr.mxu0 0.0
    %3390 = vmatpush1.msra.mxu0 0.0
    %3391 = vmatprep.subr.mxu0 0.0
    %3392 = vmatpush1.msra.mxu0 0.0
    %3393 = vmatprep.subr.mxu0 0.0
    %3394 = vmatpush1.msra.mxu0 0.0
    %3395 = vmatprep.subr.mxu0 0.0
    %3396 = vmatpush1.msra.mxu0 0.0
    %3397 = vmatprep.subr.mxu0 0.0
    %3398 = vmatpush1.msra.mxu0 0.0
    %3399 = vmatprep.subr.mxu0 0.0
    %3400 = vmatpush1.msra.mxu0 0.0
    %3401 = vmatprep.subr.mxu0 0.0
    %3402 = vmatpush1.msra.mxu0 0.0
    %3403 = vmatprep.subr.mxu0 0.0
    %3404 = vmatpush1.msra.mxu0 0.0
    %3405 = vmatprep.subr.mxu0 0.0
    %3406 = vmatpush1.msra.mxu0 0.0
    %3407 = vmatprep.subr.mxu0 0.0
    %3408 = vmatpush1.msra.mxu0 0.0
    %3409 = vmatprep.mubr.f32.mxu0 0.0
    %3410 = vmatmul.mubr.f32.gmra.mrb[0].mxu0 %v3125
    %v3411 = vpop.f32.mrb[0].mxu0
    %v3412 = vadd.f32 %v3343, %v3411
    %v3413 = vpop.f32.mrb[0].mxu0
    %3414 = vmatprep.mubr.f32.mxu0 0.0
    %3415 = vmatmul.mubr.f32.gmra.mrb[0].mxu0 %v3128
    %v3416 = vpop.f32.mrb[0].mxu0
    %v3417 = vadd.f32 %v3343, %v3416
    %v3418 = vpop.f32.mrb[0].mxu0
    %3419 = vmatprep.mubr.f32.mxu0 0.0
    %3420 = vmatmul.mubr.f32.gmra.mrb[0].mxu0 %v3131
    %v3421 = vpop.f32.mrb[0].mxu0
    %v3422 = vadd.f32 %v3343, %v3421
    %v3423 = vpop.f32.mrb[0].mxu0
    %3424 = vmatprep.mubr.f32.mxu0 0.0
    %3425 = vmatmul.mubr.f32.gmra.mrb[0].mxu0 %v3134
    %v3426 = vpop.f32.mrb[0].mxu0
    %v3427 = vadd.f32 %v3343, %v3426
    %v3428 = vpop.f32.mrb[0].mxu0
    %3429 = vmatprep.mubr.f32.mxu0 0.0
    %3430 = vmatmul.mubr.f32.gmra.mrb[0].mxu0 %v3137
    %v3431 = vpop.f32.mrb[0].mxu0
    %v3432 = vadd.f32 %v3343, %v3431
    %v3433 = vpop.f32.mrb[0].mxu0
    %3434 = vdwg.mxu0
    %v3436 = vsel %vm504, %v3206, 0
    %v3439 = vsel %vm504, %v3211, 0
    %v3442 = vsel %vm504, %v3216, 0
    %v3445 = vsel %vm504, %v3309, 0
    %v3448 = vsel %vm504, %v3314, 0
    %v3451 = vsel %vm504, %v3319, 0
    %3453 = vmatprep.subr.mxu0 0.0
    %3454 = vmatpush1.xpose.msra.mxu0 %v3445
    %3455 = vmatprep.subr.mxu0 0.0
    %3456 = vmatpush1.xpose.msra.mxu0 %v3448
    %3457 = vmatprep.subr.mxu0 0.0
    %3458 = vmatpush1.xpose.msra.mxu0 %v3451
    %3459 = vmatprep.subr.mxu0 0.0
    %3460 = vmatpush1.xpose.msra.mxu0 0.0
    %3461 = vmatprep.subr.mxu0 0.0
    %3462 = vmatpush1.xpose.msra.mxu0 0.0
    %3463 = vmatprep.subr.mxu0 0.0
    %3464 = vmatpush1.xpose.msra.mxu0 0.0
    %3465 = vmatprep.subr.mxu0 0.0
    %3466 = vmatpush1.xpose.msra.mxu0 0.0
    %3467 = vmatprep.subr.mxu0 0.0
    %3468 = vmatpush1.xpose.msra.mxu0 0.0
    %3469 = vmatprep.subr.mxu0 0.0
    %3470 = vmatpush1.xpose.msra.mxu0 0.0
    %3471 = vmatprep.subr.mxu0 0.0
    %3472 = vmatpush1.xpose.msra.mxu0 0.0
    %3473 = vmatprep.subr.mxu0 0.0
    %3474 = vmatpush1.xpose.msra.mxu0 0.0
    %3475 = vmatprep.subr.mxu0 0.0
    %3476 = vmatpush1.xpose.msra.mxu0 0.0
    %3477 = vmatprep.subr.mxu0 0.0
    %3478 = vmatpush1.xpose.msra.mxu0 0.0
    %3479 = vmatprep.subr.mxu0 0.0
    %3480 = vmatpush1.xpose.msra.mxu0 0.0
    %3481 = vmatprep.subr.mxu0 0.0
    %3482 = vmatpush1.xpose.msra.mxu0 0.0
    %3483 = vmatprep.subr.mxu0 0.0
    %3484 = vmatpush1.xpose.msra.mxu0 0.0
    %3485 = vmatprep.subr.mxu0 0.0
    %3486 = vmatpush1.xpose.msra.mxu0 0.0
    %3487 = vmatprep.subr.mxu0 0.0
    %3488 = vmatpush1.xpose.msra.mxu0 0.0
    %3489 = vmatprep.subr.mxu0 0.0
    %3490 = vmatpush1.xpose.msra.mxu0 0.0
    %3491 = vmatprep.subr.mxu0 0.0
    %3492 = vmatpush1.xpose.msra.mxu0 0.0
    %3493 = vmatprep.subr.mxu0 0.0
    %3494 = vmatpush1.xpose.msra.mxu0 0.0
    %3495 = vmatprep.subr.mxu0 0.0
    %3496 = vmatpush1.xpose.msra.mxu0 0.0
    %3497 = vmatprep.subr.mxu0 0.0
    %3498 = vmatpush1.xpose.msra.mxu0 0.0
    %3499 = vmatprep.subr.mxu0 0.0
    %3500 = vmatpush1.xpose.msra.mxu0 0.0
    %3501 = vmatprep.subr.mxu0 0.0
    %3502 = vmatpush1.xpose.msra.mxu0 0.0
    %3503 = vmatprep.subr.mxu0 0.0
    %3504 = vmatpush1.xpose.msra.mxu0 0.0
    %3505 = vmatprep.subr.mxu0 0.0
    %3506 = vmatpush1.xpose.msra.mxu0 0.0
    %3507 = vmatprep.subr.mxu0 0.0
    %3508 = vmatpush1.xpose.msra.mxu0 0.0
    %3509 = vmatprep.subr.mxu0 0.0
    %3510 = vmatpush1.xpose.msra.mxu0 0.0
    %3511 = vmatprep.subr.mxu0 0.0
    %3512 = vmatpush1.xpose.msra.mxu0 0.0
    %3513 = vmatprep.subr.mxu0 0.0
    %3514 = vmatpush1.xpose.msra.mxu0 0.0
    %3515 = vmatprep.subr.mxu0 0.0
    %3516 = vmatpush1.xpose.msra.mxu0 0.0
    %3517 = vmatprep.mubr.f32.mxu0 0.0
    %3518 = vmatmul.mubr.f32.gmra.mrb[0].mxu0 %v3436
    %v3519 = vpop.f32.mrb[0].mxu0
    %v3520 = vadd.f32 0.0, %v3519
    %v3521 = vpop.f32.mrb[0].mxu0
    %3522 = vmatprep.mubr.f32.mxu0 0.0
    %3523 = vmatmul.mubr.f32.gmra.mrb[0].mxu0 %v3439
    %v3524 = vpop.f32.mrb[0].mxu0
    %v3525 = vadd.f32 0.0, %v3524
    %v3526 = vpop.f32.mrb[0].mxu0
    %3527 = vmatprep.mubr.f32.mxu0 0.0
    %3528 = vmatmul.mubr.f32.gmra.mrb[0].mxu0 %v3442
    %v3529 = vpop.f32.mrb[0].mxu0
    %v3530 = vadd.f32 0.0, %v3529
    %v3531 = vpop.f32.mrb[0].mxu0
    %3532 = vdwg.mxu0
    %v3533 = vmul.f32 %v3520, 0.35355338
    %v3534 = vmul.f32 %v3525, 0.35355338
    %v3535 = vmul.f32 %v3530, 0.35355338
    %v3536 = vsel %vm606, %v3533, -inf
    %3537 = vmax.xlane.f32.xlu0 %v3536
    %v3538 = vpop.xlane.xlu0 %3537
    %v3539 = vsel %vm606, %v3534, -inf
    %3540 = vmax.xlane.f32.xlu0 %v3539
    %v3541 = vpop.xlane.xlu0 %3540
    %v3542 = vsel %vm613, %v3535, -inf
    %3543 = vmax.xlane.f32.xlu0 %v3542
    %v3544 = vpop.xlane.xlu0 %3543
    %v3545 = vsub.f32 %v3533, %v3538
    %v3546 = vsub.f32 %v3534, %v3541
    %v3547 = vsub.f32 %v3535, %v3544
    %v3548 = vmul.f32 %v3545, 1.442695
    %v3549 = vpow.pop %v3548
    %v3550 = vmul.f32 %v3546, 1.442695
    %v3551 = vpow.pop %v3550
    %v3552 = vmul.f32 %v3547, 1.442695
    %v3553 = vpow.pop %v3552
    %v3554 = vsel %vm606, %v3549, 0.0
    %3555 = vadd.xlane.f32.xlu0 %v3554
    %v3556 = vpop.xlane.xlu0 %3555
    %v3557 = vsel %vm606, %v3551, 0.0
    %3558 = vadd.xlane.f32.xlu0 %v3557
    %v3559 = vpop.xlane.xlu0 %3558
    %v3560 = vsel %vm613, %v3553, 0.0
    %3561 = vadd.xlane.f32.xlu0 %v3560
    %v3562 = vpop.xlane.xlu0 %3561
    %v3563 = vrcp.pop %v3556
    %v3564 = vrcp.pop %v3559
    %v3565 = vrcp.pop %v3562
    %v3566 = vmul.f32 %v3549, %v3563
    %v3567 = vmul.f32 %v3551, %v3564
    %v3568 = vmul.f32 %v3553, %v3565
    %v3570 = vsel %vm606, %v3566, 0
    %v3573 = vsel %vm606, %v3567, 0
    %v3576 = vsel %vm606, %v3568, 0
    %v3579 = vsel %vm650, %v3422, 0
    %3581 = vmatprep.subr.mxu0 0.0
    %3582 = vmatpush1.msra.mxu0 %v3412
    %3583 = vmatprep.subr.mxu0 0.0
    %3584 = vmatpush1.msra.mxu0 %v3417
    %3585 = vmatprep.subr.mxu0 0.0
    %3586 = vmatpush1.msra.mxu0 %v3579
    %3587 = vmatprep.subr.mxu0 0.0
    %3588 = vmatpush1.msra.mxu0 0.0
    %3589 = vmatprep.subr.mxu0 0.0
    %3590 = vmatpush1.msra.mxu0 0.0
    %3591 = vmatprep.subr.mxu0 0.0
    %3592 = vmatpush1.msra.mxu0 0.0
    %3593 = vmatprep.subr.mxu0 0.0
    %3594 = vmatpush1.msra.mxu0 0.0
    %3595 = vmatprep.subr.mxu0 0.0
    %3596 = vmatpush1.msra.mxu0 0.0
    %3597 = vmatprep.subr.mxu0 0.0
    %3598 = vmatpush1.msra.mxu0 0.0
    %3599 = vmatprep.subr.mxu0 0.0
    %3600 = vmatpush1.msra.mxu0 0.0
    %3601 = vmatprep.subr.mxu0 0.0
    %3602 = vmatpush1.msra.mxu0 0.0
    %3603 = vmatprep.subr.mxu0 0.0
    %3604 = vmatpush1.msra.mxu0 0.0
    %3605 = vmatprep.subr.mxu0 0.0
    %3606 = vmatpush1.msra.mxu0 0.0
    %3607 = vmatprep.subr.mxu0 0.0
    %3608 = vmatpush1.msra.mxu0 0.0
    %3609 = vmatprep.subr.mxu0 0.0
    %3610 = vmatpush1.msra.mxu0 0.0
    %3611 = vmatprep.subr.mxu0 0.0
    %3612 = vmatpush1.msra.mxu0 0.0
    %3613 = vmatprep.subr.mxu0 0.0
    %3614 = vmatpush1.msra.mxu0 0.0
    %3615 = vmatprep.subr.mxu0 0.0
    %3616 = vmatpush1.msra.mxu0 0.0
    %3617 = vmatprep.subr.mxu0 0.0
    %3618 = vmatpush1.msra.mxu0 0.0
    %3619 = vmatprep.subr.mxu0 0.0
    %3620 = vmatpush1.msra.mxu0 0.0
    %3621 = vmatprep.subr.mxu0 0.0
    %3622 = vmatpush1.msra.mxu0 0.0
    %3623 = vmatprep.subr.mxu0 0.0
    %3624 = vmatpush1.msra.mxu0 0.0
    %3625 = vmatprep.subr.mxu0 0.0
    %3626 = vmatpush1.msra.mxu0 0.0
    %3627 = vmatprep.subr.mxu0 0.0
    %3628 = vmatpush1.msra.mxu0 0.0
    %3629 = vmatprep.subr.mxu0 0.0
    %3630 = vmatpush1.msra.mxu0 0.0
    %3631 = vmatprep.subr.mxu0 0.0
    %3632 = vmatpush1.msra.mxu0 0.0
    %3633 = vmatprep.subr.mxu0 0.0
    %3634 = vmatpush1.msra.mxu0 0.0
    %3635 = vmatprep.subr.mxu0 0.0
    %3636 = vmatpush1.msra.mxu0 0.0
    %3637 = vmatprep.subr.mxu0 0.0
    %3638 = vmatpush1.msra.mxu0 0.0
    %3639 = vmatprep.subr.mxu0 0.0
    %3640 = vmatpush1.msra.mxu0 0.0
    %3641 = vmatprep.subr.mxu0 0.0
    %3642 = vmatpush1.msra.mxu0 0.0
    %3643 = vmatprep.subr.mxu0 0.0
    %3644 = vmatpush1.msra.mxu0 0.0
    %3645 = vmatprep.mubr.f32.mxu0 0.0
    %3646 = vmatmul.mubr.f32.gmra.mrb[0].mxu0 %v3570
    %v3647 = vpop.f32.mrb[0].mxu0
    %v3648 = vadd.f32 0.0, %v3647
    %v3649 = vpop.f32.mrb[0].mxu0
    %3650 = vmatprep.mubr.f32.mxu0 0.0
    %3651 = vmatmul.mubr.f32.gmra.mrb[0].mxu0 %v3573
    %v3652 = vpop.f32.mrb[0].mxu0
    %v3653 = vadd.f32 0.0, %v3652
    %v3654 = vpop.f32.mrb[0].mxu0
    %3655 = vmatprep.mubr.f32.mxu0 0.0
    %3656 = vmatmul.mubr.f32.gmra.mrb[0].mxu0 %v3576
    %v3657 = vpop.f32.mrb[0].mxu0
    %v3658 = vadd.f32 0.0, %v3657
    %v3659 = vpop.f32.mrb[0].mxu0
    %3660 = vdwg.mxu0
    %3661 = vst.msk [vmem:[#allocation2] sm:$0xff] %vm504, %v3648
    %3662 = vst.msk [vmem:[#allocation2 + $0x8] sm:$0xff] %vm504, %v3653
    %3663 = vst.msk [vmem:[#allocation2 + $0x10] sm:$0x1] %vm736, %v3658
    %3664 = vrot.lane.b32.xlu0 %v3206, 120
    %v3665 = vpop.permute.xlu0 %3664
    %3666 = vrot.lane.b32.xlu0 %v3211, 120
    %v3667 = vpop.permute.xlu0 %3666
    %3668 = vrot.lane.b32.xlu0 %v3216, 120
    %v3669 = vpop.permute.xlu0 %3668
    %3670 = vrot.lane.b32.xlu0 %v3309, 120
    %v3671 = vpop.permute.xlu0 %3670
    %3672 = vrot.lane.b32.xlu0 %v3314, 120
    %v3673 = vpop.permute.xlu0 %3672
    %3674 = vrot.lane.b32.xlu0 %v3319, 120
    %v3675 = vpop.permute.xlu0 %3674
    %v3676 = vsel %vm504, %v3665, 0
    %v3678 = vsel %vm504, %v3667, 0
    %v3680 = vsel %vm504, %v3669, 0
    %v3682 = vsel %vm504, %v3671, 0
    %v3684 = vsel %vm504, %v3673, 0
    %v3686 = vsel %vm504, %v3675, 0
    %3688 = vmatprep.subr.mxu0 0.0
    %3689 = vmatpush1.xpose.msra.mxu0 %v3682
    %3690 = vmatprep.subr.mxu0 0.0
    %3691 = vmatpush1.xpose.msra.mxu0 %v3684
    %3692 = vmatprep.subr.mxu0 0.0
    %3693 = vmatpush1.xpose.msra.mxu0 %v3686
    %3694 = vmatprep.subr.mxu0 0.0
    %3695 = vmatpush1.xpose.msra.mxu0 0.0
    %3696 = vmatprep.subr.mxu0 0.0
    %3697 = vmatpush1.xpose.msra.mxu0 0.0
    %3698 = vmatprep.subr.mxu0 0.0
    %3699 = vmatpush1.xpose.msra.mxu0 0.0
    %3700 = vmatprep.subr.mxu0 0.0
    %3701 = vmatpush1.xpose.msra.mxu0 0.0
    %3702 = vmatprep.subr.mxu0 0.0
    %3703 = vmatpush1.xpose.msra.mxu0 0.0
    %3704 = vmatprep.subr.mxu0 0.0
    %3705 = vmatpush1.xpose.msra.mxu0 0.0
    %3706 = vmatprep.subr.mxu0 0.0
    %3707 = vmatpush1.xpose.msra.mxu0 0.0
    %3708 = vmatprep.subr.mxu0 0.0
    %3709 = vmatpush1.xpose.msra.mxu0 0.0
    %3710 = vmatprep.subr.mxu0 0.0
    %3711 = vmatpush1.xpose.msra.mxu0 0.0
    %3712 = vmatprep.subr.mxu0 0.0
    %3713 = vmatpush1.xpose.msra.mxu0 0.0
    %3714 = vmatprep.subr.mxu0 0.0
    %3715 = vmatpush1.xpose.msra.mxu0 0.0
    %3716 = vmatprep.subr.mxu0 0.0
    %3717 = vmatpush1.xpose.msra.mxu0 0.0
    %3718 = vmatprep.subr.mxu0 0.0
    %3719 = vmatpush1.xpose.msra.mxu0 0.0
    %3720 = vmatprep.subr.mxu0 0.0
    %3721 = vmatpush1.xpose.msra.mxu0 0.0
    %3722 = vmatprep.subr.mxu0 0.0
    %3723 = vmatpush1.xpose.msra.mxu0 0.0
    %3724 = vmatprep.subr.mxu0 0.0
    %3725 = vmatpush1.xpose.msra.mxu0 0.0
    %3726 = vmatprep.subr.mxu0 0.0
    %3727 = vmatpush1.xpose.msra.mxu0 0.0
    %3728 = vmatprep.subr.mxu0 0.0
    %3729 = vmatpush1.xpose.msra.mxu0 0.0
    %3730 = vmatprep.subr.mxu0 0.0
    %3731 = vmatpush1.xpose.msra.mxu0 0.0
    %3732 = vmatprep.subr.mxu0 0.0
    %3733 = vmatpush1.xpose.msra.mxu0 0.0
    %3734 = vmatprep.subr.mxu0 0.0
    %3735 = vmatpush1.xpose.msra.mxu0 0.0
    %3736 = vmatprep.subr.mxu0 0.0
    %3737 = vmatpush1.xpose.msra.mxu0 0.0
    %3738 = vmatprep.subr.mxu0 0.0
    %3739 = vmatpush1.xpose.msra.mxu0 0.0
    %3740 = vmatprep.subr.mxu0 0.0
    %3741 = vmatpush1.xpose.msra.mxu0 0.0
    %3742 = vmatprep.subr.mxu0 0.0
    %3743 = vmatpush1.xpose.msra.mxu0 0.0
    %3744 = vmatprep.subr.mxu0 0.0
    %3745 = vmatpush1.xpose.msra.mxu0 0.0
    %3746 = vmatprep.subr.mxu0 0.0
    %3747 = vmatpush1.xpose.msra.mxu0 0.0
    %3748 = vmatprep.subr.mxu0 0.0
    %3749 = vmatpush1.xpose.msra.mxu0 0.0
    %3750 = vmatprep.subr.mxu0 0.0
    %3751 = vmatpush1.xpose.msra.mxu0 0.0
    %3752 = vmatprep.mubr.f32.mxu0 0.0
    %3753 = vmatmul.mubr.f32.gmra.mrb[0].mxu0 %v3676
    %v3754 = vpop.f32.mrb[0].mxu0
    %v3755 = vadd.f32 0.0, %v3754
    %v3756 = vpop.f32.mrb[0].mxu0
    %3757 = vmatprep.mubr.f32.mxu0 0.0
    %3758 = vmatmul.mubr.f32.gmra.mrb[0].mxu0 %v3678
    %v3759 = vpop.f32.mrb[0].mxu0
    %v3760 = vadd.f32 0.0, %v3759
    %v3761 = vpop.f32.mrb[0].mxu0
    %3762 = vmatprep.mubr.f32.mxu0 0.0
    %3763 = vmatmul.mubr.f32.gmra.mrb[0].mxu0 %v3680
    %v3764 = vpop.f32.mrb[0].mxu0
    %v3765 = vadd.f32 0.0, %v3764
    %v3766 = vpop.f32.mrb[0].mxu0
    %3767 = vdwg.mxu0
    %v3768 = vmul.f32 %v3755, 0.35355338
    %v3769 = vmul.f32 %v3760, 0.35355338
    %v3770 = vmul.f32 %v3765, 0.35355338
    %v3771 = vsel %vm606, %v3768, -inf
    %3772 = vmax.xlane.f32.xlu0 %v3771
    %v3773 = vpop.xlane.xlu0 %3772
    %v3774 = vsel %vm606, %v3769, -inf
    %3775 = vmax.xlane.f32.xlu0 %v3774
    %v3776 = vpop.xlane.xlu0 %3775
    %v3777 = vsel %vm613, %v3770, -inf
    %3778 = vmax.xlane.f32.xlu0 %v3777
    %v3779 = vpop.xlane.xlu0 %3778
    %v3780 = vsub.f32 %v3768, %v3773
    %v3781 = vsub.f32 %v3769, %v3776
    %v3782 = vsub.f32 %v3770, %v3779
    %v3783 = vmul.f32 %v3780, 1.442695
    %v3784 = vpow.pop %v3783
    %v3785 = vmul.f32 %v3781, 1.442695
    %v3786 = vpow.pop %v3785
    %v3787 = vmul.f32 %v3782, 1.442695
    %v3788 = vpow.pop %v3787
    %v3789 = vsel %vm606, %v3784, 0.0
    %3790 = vadd.xlane.f32.xlu0 %v3789
    %v3791 = vpop.xlane.xlu0 %3790
    %v3792 = vsel %vm606, %v3786, 0.0
    %3793 = vadd.xlane.f32.xlu0 %v3792
    %v3794 = vpop.xlane.xlu0 %3793
    %v3795 = vsel %vm613, %v3788, 0.0
    %3796 = vadd.xlane.f32.xlu0 %v3795
    %v3797 = vpop.xlane.xlu0 %3796
    %v3798 = vrcp.pop %v3791
    %v3799 = vrcp.pop %v3794
    %v3800 = vrcp.pop %v3797
    %v3801 = vmul.f32 %v3784, %v3798
    %v3802 = vmul.f32 %v3786, %v3799
    %v3803 = vmul.f32 %v3788, %v3800
    %3806 = vrot.lane.b32.xlu0 %v3412, 120
    %v3807 = vpop.permute.xlu0 %3806
    %3808 = vrot.lane.b32.xlu0 %v3417, 120
    %v3809 = vpop.permute.xlu0 %3808
    %3810 = vrot.lane.b32.xlu0 %v3422, 120
    %v3811 = vpop.permute.xlu0 %3810
    %v3815 = vsel %vm606, %v3801, 0
    %v3818 = vsel %vm606, %v3802, 0
    %v3821 = vsel %vm606, %v3803, 0
    %v3823 = vsel %vm650, %v3811, 0
    %3825 = vmatprep.subr.mxu0 0.0
    %3826 = vmatpush1.msra.mxu0 %v3807
    %3827 = vmatprep.subr.mxu0 0.0
    %3828 = vmatpush1.msra.mxu0 %v3809
    %3829 = vmatprep.subr.mxu0 0.0
    %3830 = vmatpush1.msra.mxu0 %v3823
    %3831 = vmatprep.subr.mxu0 0.0
    %3832 = vmatpush1.msra.mxu0 0.0
    %3833 = vmatprep.subr.mxu0 0.0
    %3834 = vmatpush1.msra.mxu0 0.0
    %3835 = vmatprep.subr.mxu0 0.0
    %3836 = vmatpush1.msra.mxu0 0.0
    %3837 = vmatprep.subr.mxu0 0.0
    %3838 = vmatpush1.msra.mxu0 0.0
    %3839 = vmatprep.subr.mxu0 0.0
    %3840 = vmatpush1.msra.mxu0 0.0
    %3841 = vmatprep.subr.mxu0 0.0
    %3842 = vmatpush1.msra.mxu0 0.0
    %3843 = vmatprep.subr.mxu0 0.0
    %3844 = vmatpush1.msra.mxu0 0.0
    %3845 = vmatprep.subr.mxu0 0.0
    %3846 = vmatpush1.msra.mxu0 0.0
    %3847 = vmatprep.subr.mxu0 0.0
    %3848 = vmatpush1.msra.mxu0 0.0
    %3849 = vmatprep.subr.mxu0 0.0
    %3850 = vmatpush1.msra.mxu0 0.0
    %3851 = vmatprep.subr.mxu0 0.0
    %3852 = vmatpush1.msra.mxu0 0.0
    %3853 = vmatprep.subr.mxu0 0.0
    %3854 = vmatpush1.msra.mxu0 0.0
    %3855 = vmatprep.subr.mxu0 0.0
    %3856 = vmatpush1.msra.mxu0 0.0
    %3857 = vmatprep.subr.mxu0 0.0
    %3858 = vmatpush1.msra.mxu0 0.0
    %3859 = vmatprep.subr.mxu0 0.0
    %3860 = vmatpush1.msra.mxu0 0.0
    %3861 = vmatprep.subr.mxu0 0.0
    %3862 = vmatpush1.msra.mxu0 0.0
    %3863 = vmatprep.subr.mxu0 0.0
    %3864 = vmatpush1.msra.mxu0 0.0
    %3865 = vmatprep.subr.mxu0 0.0
    %3866 = vmatpush1.msra.mxu0 0.0
    %3867 = vmatprep.subr.mxu0 0.0
    %3868 = vmatpush1.msra.mxu0 0.0
    %3869 = vmatprep.subr.mxu0 0.0
    %3870 = vmatpush1.msra.mxu0 0.0
    %3871 = vmatprep.subr.mxu0 0.0
    %3872 = vmatpush1.msra.mxu0 0.0
    %3873 = vmatprep.subr.mxu0 0.0
    %3874 = vmatpush1.msra.mxu0 0.0
    %3875 = vmatprep.subr.mxu0 0.0
    %3876 = vmatpush1.msra.mxu0 0.0
    %3877 = vmatprep.subr.mxu0 0.0
    %3878 = vmatpush1.msra.mxu0 0.0
    %3879 = vmatprep.subr.mxu0 0.0
    %3880 = vmatpush1.msra.mxu0 0.0
    %3881 = vmatprep.subr.mxu0 0.0
    %3882 = vmatpush1.msra.mxu0 0.0
    %3883 = vmatprep.subr.mxu0 0.0
    %3884 = vmatpush1.msra.mxu0 0.0
    %3885 = vmatprep.subr.mxu0 0.0
    %3886 = vmatpush1.msra.mxu0 0.0
    %3887 = vmatprep.subr.mxu0 0.0
    %3888 = vmatpush1.msra.mxu0 0.0
    %3889 = vmatprep.mubr.f32.mxu0 0.0
    %3890 = vmatmul.mubr.f32.gmra.mrb[0].mxu0 %v3815
    %v3891 = vpop.f32.mrb[0].mxu0
    %v3892 = vadd.f32 0.0, %v3891
    %v3893 = vpop.f32.mrb[0].mxu0
    %3894 = vmatprep.mubr.f32.mxu0 0.0
    %3895 = vmatmul.mubr.f32.gmra.mrb[0].mxu0 %v3818
    %v3896 = vpop.f32.mrb[0].mxu0
    %v3897 = vadd.f32 0.0, %v3896
    %v3898 = vpop.f32.mrb[0].mxu0
    %3899 = vmatprep.mubr.f32.mxu0 0.0
    %3900 = vmatmul.mubr.f32.gmra.mrb[0].mxu0 %v3821
    %v3901 = vpop.f32.mrb[0].mxu0
    %v3902 = vadd.f32 0.0, %v3901
    %v3903 = vpop.f32.mrb[0].mxu0
    %3904 = vdwg.mxu0
    %3908 = vrot.lane.b32.xlu0 %v3892, 8
    %v3909 = vpop.permute.xlu0 %3908
    %3910 = vrot.lane.b32.xlu0 %v3897, 8
    %v3911 = vpop.permute.xlu0 %3910
    %3912 = vrot.lane.b32.xlu0 %v3902, 8
    %v3913 = vpop.permute.xlu0 %3912
    %3917 = vst.msk [vmem:[#allocation2] sm:$0xff] %vm991, %v3909
    %3918 = vst.msk [vmem:[#allocation2 + $0x8] sm:$0xff] %vm991, %v3911
    %3919 = vst.msk [vmem:[#allocation2 + $0x10] sm:$0x1] %vm994, %v3913
    %3920 = vrot.lane.b32.xlu0 %v3206, 112
    %v3921 = vpop.permute.xlu0 %3920
    %3922 = vrot.lane.b32.xlu0 %v3211, 112
    %v3923 = vpop.permute.xlu0 %3922
    %3924 = vrot.lane.b32.xlu0 %v3216, 112
    %v3925 = vpop.permute.xlu0 %3924
    %3926 = vrot.lane.b32.xlu0 %v3309, 112
    %v3927 = vpop.permute.xlu0 %3926
    %3928 = vrot.lane.b32.xlu0 %v3314, 112
    %v3929 = vpop.permute.xlu0 %3928
    %3930 = vrot.lane.b32.xlu0 %v3319, 112
    %v3931 = vpop.permute.xlu0 %3930
    %v3932 = vsel %vm504, %v3921, 0
    %v3934 = vsel %vm504, %v3923, 0
    %v3936 = vsel %vm504, %v3925, 0
    %v3938 = vsel %vm504, %v3927, 0
    %v3940 = vsel %vm504, %v3929, 0
    %v3942 = vsel %vm504, %v3931, 0
    %3944 = vmatprep.subr.mxu0 0.0
    %3945 = vmatpush1.xpose.msra.mxu0 %v3938
    %3946 = vmatprep.subr.mxu0 0.0
    %3947 = vmatpush1.xpose.msra.mxu0 %v3940
    %3948 = vmatprep.subr.mxu0 0.0
    %3949 = vmatpush1.xpose.msra.mxu0 %v3942
    %3950 = vmatprep.subr.mxu0 0.0
    %3951 = vmatpush1.xpose.msra.mxu0 0.0
    %3952 = vmatprep.subr.mxu0 0.0
    %3953 = vmatpush1.xpose.msra.mxu0 0.0
    %3954 = vmatprep.subr.mxu0 0.0
    %3955 = vmatpush1.xpose.msra.mxu0 0.0
    %3956 = vmatprep.subr.mxu0 0.0
    %3957 = vmatpush1.xpose.msra.mxu0 0.0
    %3958 = vmatprep.subr.mxu0 0.0
    %3959 = vmatpush1.xpose.msra.mxu0 0.0
    %3960 = vmatprep.subr.mxu0 0.0
    %3961 = vmatpush1.xpose.msra.mxu0 0.0
    %3962 = vmatprep.subr.mxu0 0.0
    %3963 = vmatpush1.xpose.msra.mxu0 0.0
    %3964 = vmatprep.subr.mxu0 0.0
    %3965 = vmatpush1.xpose.msra.mxu0 0.0
    %3966 = vmatprep.subr.mxu0 0.0
    %3967 = vmatpush1.xpose.msra.mxu0 0.0
    %3968 = vmatprep.subr.mxu0 0.0
    %3969 = vmatpush1.xpose.msra.mxu0 0.0
    %3970 = vmatprep.subr.mxu0 0.0
    %3971 = vmatpush1.xpose.msra.mxu0 0.0
    %3972 = vmatprep.subr.mxu0 0.0
    %3973 = vmatpush1.xpose.msra.mxu0 0.0
    %3974 = vmatprep.subr.mxu0 0.0
    %3975 = vmatpush1.xpose.msra.mxu0 0.0
    %3976 = vmatprep.subr.mxu0 0.0
    %3977 = vmatpush1.xpose.msra.mxu0 0.0
    %3978 = vmatprep.subr.mxu0 0.0
    %3979 = vmatpush1.xpose.msra.mxu0 0.0
    %3980 = vmatprep.subr.mxu0 0.0
    %3981 = vmatpush1.xpose.msra.mxu0 0.0
    %3982 = vmatprep.subr.mxu0 0.0
    %3983 = vmatpush1.xpose.msra.mxu0 0.0
    %3984 = vmatprep.subr.mxu0 0.0
    %3985 = vmatpush1.xpose.msra.mxu0 0.0
    %3986 = vmatprep.subr.mxu0 0.0
    %3987 = vmatpush1.xpose.msra.mxu0 0.0
    %3988 = vmatprep.subr.mxu0 0.0
    %3989 = vmatpush1.xpose.msra.mxu0 0.0
    %3990 = vmatprep.subr.mxu0 0.0
    %3991 = vmatpush1.xpose.msra.mxu0 0.0
    %3992 = vmatprep.subr.mxu0 0.0
    %3993 = vmatpush1.xpose.msra.mxu0 0.0
    %3994 = vmatprep.subr.mxu0 0.0
    %3995 = vmatpush1.xpose.msra.mxu0 0.0
    %3996 = vmatprep.subr.mxu0 0.0
    %3997 = vmatpush1.xpose.msra.mxu0 0.0
    %3998 = vmatprep.subr.mxu0 0.0
    %3999 = vmatpush1.xpose.msra.mxu0 0.0
    %4000 = vmatprep.subr.mxu0 0.0
    %4001 = vmatpush1.xpose.msra.mxu0 0.0
    %4002 = vmatprep.subr.mxu0 0.0
    %4003 = vmatpush1.xpose.msra.mxu0 0.0
    %4004 = vmatprep.subr.mxu0 0.0
    %4005 = vmatpush1.xpose.msra.mxu0 0.0
    %4006 = vmatprep.subr.mxu0 0.0
    %4007 = vmatpush1.xpose.msra.mxu0 0.0
    %4008 = vmatprep.mubr.f32.mxu0 0.0
    %4009 = vmatmul.mubr.f32.gmra.mrb[0].mxu0 %v3932
    %v4010 = vpop.f32.mrb[0].mxu0
    %v4011 = vadd.f32 0.0, %v4010
    %v4012 = vpop.f32.mrb[0].mxu0
    %4013 = vmatprep.mubr.f32.mxu0 0.0
    %4014 = vmatmul.mubr.f32.gmra.mrb[0].mxu0 %v3934
    %v4015 = vpop.f32.mrb[0].mxu0
    %v4016 = vadd.f32 0.0, %v4015
    %v4017 = vpop.f32.mrb[0].mxu0
    %4018 = vmatprep.mubr.f32.mxu0 0.0
    %4019 = vmatmul.mubr.f32.gmra.mrb[0].mxu0 %v3936
    %v4020 = vpop.f32.mrb[0].mxu0
    %v4021 = vadd.f32 0.0, %v4020
    %v4022 = vpop.f32.mrb[0].mxu0
    %4023 = vdwg.mxu0
    %v4024 = vmul.f32 %v4011, 0.35355338
    %v4025 = vmul.f32 %v4016, 0.35355338
    %v4026 = vmul.f32 %v4021, 0.35355338
    %v4027 = vsel %vm606, %v4024, -inf
    %4028 = vmax.xlane.f32.xlu0 %v4027
    %v4029 = vpop.xlane.xlu0 %4028
    %v4030 = vsel %vm606, %v4025, -inf
    %4031 = vmax.xlane.f32.xlu0 %v4030
    %v4032 = vpop.xlane.xlu0 %4031
    %v4033 = vsel %vm613, %v4026, -inf
    %4034 = vmax.xlane.f32.xlu0 %v4033
    %v4035 = vpop.xlane.xlu0 %4034
    %v4036 = vsub.f32 %v4024, %v4029
    %v4037 = vsub.f32 %v4025, %v4032
    %v4038 = vsub.f32 %v4026, %v4035
    %v4039 = vmul.f32 %v4036, 1.442695
    %v4040 = vpow.pop %v4039
    %v4041 = vmul.f32 %v4037, 1.442695
    %v4042 = vpow.pop %v4041
    %v4043 = vmul.f32 %v4038, 1.442695
    %v4044 = vpow.pop %v4043
    %v4045 = vsel %vm606, %v4040, 0.0
    %4046 = vadd.xlane.f32.xlu0 %v4045
    %v4047 = vpop.xlane.xlu0 %4046
    %v4048 = vsel %vm606, %v4042, 0.0
    %4049 = vadd.xlane.f32.xlu0 %v4048
    %v4050 = vpop.xlane.xlu0 %4049
    %v4051 = vsel %vm613, %v4044, 0.0
    %4052 = vadd.xlane.f32.xlu0 %v4051
    %v4053 = vpop.xlane.xlu0 %4052
    %v4054 = vrcp.pop %v4047
    %v4055 = vrcp.pop %v4050
    %v4056 = vrcp.pop %v4053
    %v4057 = vmul.f32 %v4040, %v4054
    %v4058 = vmul.f32 %v4042, %v4055
    %v4059 = vmul.f32 %v4044, %v4056
    %4060 = vrot.lane.b32.xlu0 %v3412, 112
    %v4061 = vpop.permute.xlu0 %4060
    %4062 = vrot.lane.b32.xlu0 %v3417, 112
    %v4063 = vpop.permute.xlu0 %4062
    %4064 = vrot.lane.b32.xlu0 %v3422, 112
    %v4065 = vpop.permute.xlu0 %4064
    %v4069 = vsel %vm606, %v4057, 0
    %v4072 = vsel %vm606, %v4058, 0
    %v4075 = vsel %vm606, %v4059, 0
    %v4077 = vsel %vm650, %v4065, 0
    %4079 = vmatprep.subr.mxu0 0.0
    %4080 = vmatpush1.msra.mxu0 %v4061
    %4081 = vmatprep.subr.mxu0 0.0
    %4082 = vmatpush1.msra.mxu0 %v4063
    %4083 = vmatprep.subr.mxu0 0.0
    %4084 = vmatpush1.msra.mxu0 %v4077
    %4085 = vmatprep.subr.mxu0 0.0
    %4086 = vmatpush1.msra.mxu0 0.0
    %4087 = vmatprep.subr.mxu0 0.0
    %4088 = vmatpush1.msra.mxu0 0.0
    %4089 = vmatprep.subr.mxu0 0.0
    %4090 = vmatpush1.msra.mxu0 0.0
    %4091 = vmatprep.subr.mxu0 0.0
    %4092 = vmatpush1.msra.mxu0 0.0
    %4093 = vmatprep.subr.mxu0 0.0
    %4094 = vmatpush1.msra.mxu0 0.0
    %4095 = vmatprep.subr.mxu0 0.0
    %4096 = vmatpush1.msra.mxu0 0.0
    %4097 = vmatprep.subr.mxu0 0.0
    %4098 = vmatpush1.msra.mxu0 0.0
    %4099 = vmatprep.subr.mxu0 0.0
    %4100 = vmatpush1.msra.mxu0 0.0
    %4101 = vmatprep.subr.mxu0 0.0
    %4102 = vmatpush1.msra.mxu0 0.0
    %4103 = vmatprep.subr.mxu0 0.0
    %4104 = vmatpush1.msra.mxu0 0.0
    %4105 = vmatprep.subr.mxu0 0.0
    %4106 = vmatpush1.msra.mxu0 0.0
    %4107 = vmatprep.subr.mxu0 0.0
    %4108 = vmatpush1.msra.mxu0 0.0
    %4109 = vmatprep.subr.mxu0 0.0
    %4110 = vmatpush1.msra.mxu0 0.0
    %4111 = vmatprep.subr.mxu0 0.0
    %4112 = vmatpush1.msra.mxu0 0.0
    %4113 = vmatprep.subr.mxu0 0.0
    %4114 = vmatpush1.msra.mxu0 0.0
    %4115 = vmatprep.subr.mxu0 0.0
    %4116 = vmatpush1.msra.mxu0 0.0
    %4117 = vmatprep.subr.mxu0 0.0
    %4118 = vmatpush1.msra.mxu0 0.0
    %4119 = vmatprep.subr.mxu0 0.0
    %4120 = vmatpush1.msra.mxu0 0.0
    %4121 = vmatprep.subr.mxu0 0.0
    %4122 = vmatpush1.msra.mxu0 0.0
    %4123 = vmatprep.subr.mxu0 0.0
    %4124 = vmatpush1.msra.mxu0 0.0
    %4125 = vmatprep.subr.mxu0 0.0
    %4126 = vmatpush1.msra.mxu0 0.0
    %4127 = vmatprep.subr.mxu0 0.0
    %4128 = vmatpush1.msra.mxu0 0.0
    %4129 = vmatprep.subr.mxu0 0.0
    %4130 = vmatpush1.msra.mxu0 0.0
    %4131 = vmatprep.subr.mxu0 0.0
    %4132 = vmatpush1.msra.mxu0 0.0
    %4133 = vmatprep.subr.mxu0 0.0
    %4134 = vmatpush1.msra.mxu0 0.0
    %4135 = vmatprep.subr.mxu0 0.0
    %4136 = vmatpush1.msra.mxu0 0.0
    %4137 = vmatprep.subr.mxu0 0.0
    %4138 = vmatpush1.msra.mxu0 0.0
    %4139 = vmatprep.subr.mxu0 0.0
    %4140 = vmatpush1.msra.mxu0 0.0
    %4141 = vmatprep.subr.mxu0 0.0
    %4142 = vmatpush1.msra.mxu0 0.0
    %4143 = vmatprep.mubr.f32.mxu0 0.0
    %4144 = vmatmul.mubr.f32.gmra.mrb[0].mxu0 %v4069
    %v4145 = vpop.f32.mrb[0].mxu0
    %v4146 = vadd.f32 0.0, %v4145
    %v4147 = vpop.f32.mrb[0].mxu0
    %4148 = vmatprep.mubr.f32.mxu0 0.0
    %4149 = vmatmul.mubr.f32.gmra.mrb[0].mxu0 %v4072
    %v4150 = vpop.f32.mrb[0].mxu0
    %v4151 = vadd.f32 0.0, %v4150
    %v4152 = vpop.f32.mrb[0].mxu0
    %4153 = vmatprep.mubr.f32.mxu0 0.0
    %4154 = vmatmul.mubr.f32.gmra.mrb[0].mxu0 %v4075
    %v4155 = vpop.f32.mrb[0].mxu0
    %v4156 = vadd.f32 0.0, %v4155
    %v4157 = vpop.f32.mrb[0].mxu0
    %4158 = vdwg.mxu0
    %4162 = vrot.lane.b32.xlu0 %v4146, 16
    %v4163 = vpop.permute.xlu0 %4162
    %4164 = vrot.lane.b32.xlu0 %v4151, 16
    %v4165 = vpop.permute.xlu0 %4164
    %4166 = vrot.lane.b32.xlu0 %v4156, 16
    %v4167 = vpop.permute.xlu0 %4166
    %4171 = vst.msk [vmem:[#allocation2] sm:$0xff] %vm1247, %v4163
    %4172 = vst.msk [vmem:[#allocation2 + $0x8] sm:$0xff] %vm1247, %v4165
    %4173 = vst.msk [vmem:[#allocation2 + $0x10] sm:$0x1] %vm1250, %v4167
    %4174 = vrot.lane.b32.xlu0 %v3206, 104
    %v4175 = vpop.permute.xlu0 %4174
    %4176 = vrot.lane.b32.xlu0 %v3211, 104
    %v4177 = vpop.permute.xlu0 %4176
    %4178 = vrot.lane.b32.xlu0 %v3216, 104
    %v4179 = vpop.permute.xlu0 %4178
    %4180 = vrot.lane.b32.xlu0 %v3309, 104
    %v4181 = vpop.permute.xlu0 %4180
    %4182 = vrot.lane.b32.xlu0 %v3314, 104
    %v4183 = vpop.permute.xlu0 %4182
    %4184 = vrot.lane.b32.xlu0 %v3319, 104
    %v4185 = vpop.permute.xlu0 %4184
    %v4186 = vsel %vm504, %v4175, 0
    %v4188 = vsel %vm504, %v4177, 0
    %v4190 = vsel %vm504, %v4179, 0
    %v4192 = vsel %vm504, %v4181, 0
    %v4194 = vsel %vm504, %v4183, 0
    %v4196 = vsel %vm504, %v4185, 0
    %4198 = vmatprep.subr.mxu0 0.0
    %4199 = vmatpush1.xpose.msra.mxu0 %v4192
    %4200 = vmatprep.subr.mxu0 0.0
    %4201 = vmatpush1.xpose.msra.mxu0 %v4194
    %4202 = vmatprep.subr.mxu0 0.0
    %4203 = vmatpush1.xpose.msra.mxu0 %v4196
    %4204 = vmatprep.subr.mxu0 0.0
    %4205 = vmatpush1.xpose.msra.mxu0 0.0
    %4206 = vmatprep.subr.mxu0 0.0
    %4207 = vmatpush1.xpose.msra.mxu0 0.0
    %4208 = vmatprep.subr.mxu0 0.0
    %4209 = vmatpush1.xpose.msra.mxu0 0.0
    %4210 = vmatprep.subr.mxu0 0.0
    %4211 = vmatpush1.xpose.msra.mxu0 0.0
    %4212 = vmatprep.subr.mxu0 0.0
    %4213 = vmatpush1.xpose.msra.mxu0 0.0
    %4214 = vmatprep.subr.mxu0 0.0
    %4215 = vmatpush1.xpose.msra.mxu0 0.0
    %4216 = vmatprep.subr.mxu0 0.0
    %4217 = vmatpush1.xpose.msra.mxu0 0.0
    %4218 = vmatprep.subr.mxu0 0.0
    %4219 = vmatpush1.xpose.msra.mxu0 0.0
    %4220 = vmatprep.subr.mxu0 0.0
    %4221 = vmatpush1.xpose.msra.mxu0 0.0
    %4222 = vmatprep.subr.mxu0 0.0
    %4223 = vmatpush1.xpose.msra.mxu0 0.0
    %4224 = vmatprep.subr.mxu0 0.0
    %4225 = vmatpush1.xpose.msra.mxu0 0.0
    %4226 = vmatprep.subr.mxu0 0.0
    %4227 = vmatpush1.xpose.msra.mxu0 0.0
    %4228 = vmatprep.subr.mxu0 0.0
    %4229 = vmatpush1.xpose.msra.mxu0 0.0
    %4230 = vmatprep.subr.mxu0 0.0
    %4231 = vmatpush1.xpose.msra.mxu0 0.0
    %4232 = vmatprep.subr.mxu0 0.0
    %4233 = vmatpush1.xpose.msra.mxu0 0.0
    %4234 = vmatprep.subr.mxu0 0.0
    %4235 = vmatpush1.xpose.msra.mxu0 0.0
    %4236 = vmatprep.subr.mxu0 0.0
    %4237 = vmatpush1.xpose.msra.mxu0 0.0
    %4238 = vmatprep.subr.mxu0 0.0
    %4239 = vmatpush1.xpose.msra.mxu0 0.0
    %4240 = vmatprep.subr.mxu0 0.0
    %4241 = vmatpush1.xpose.msra.mxu0 0.0
    %4242 = vmatprep.subr.mxu0 0.0
    %4243 = vmatpush1.xpose.msra.mxu0 0.0
    %4244 = vmatprep.subr.mxu0 0.0
    %4245 = vmatpush1.xpose.msra.mxu0 0.0
    %4246 = vmatprep.subr.mxu0 0.0
    %4247 = vmatpush1.xpose.msra.mxu0 0.0
    %4248 = vmatprep.subr.mxu0 0.0
    %4249 = vmatpush1.xpose.msra.mxu0 0.0
    %4250 = vmatprep.subr.mxu0 0.0
    %4251 = vmatpush1.xpose.msra.mxu0 0.0
    %4252 = vmatprep.subr.mxu0 0.0
    %4253 = vmatpush1.xpose.msra.mxu0 0.0
    %4254 = vmatprep.subr.mxu0 0.0
    %4255 = vmatpush1.xpose.msra.mxu0 0.0
    %4256 = vmatprep.subr.mxu0 0.0
    %4257 = vmatpush1.xpose.msra.mxu0 0.0
    %4258 = vmatprep.subr.mxu0 0.0
    %4259 = vmatpush1.xpose.msra.mxu0 0.0
    %4260 = vmatprep.subr.mxu0 0.0
    %4261 = vmatpush1.xpose.msra.mxu0 0.0
    %4262 = vmatprep.mubr.f32.mxu0 0.0
    %4263 = vmatmul.mubr.f32.gmra.mrb[0].mxu0 %v4186
    %v4264 = vpop.f32.mrb[0].mxu0
    %v4265 = vadd.f32 0.0, %v4264
    %v4266 = vpop.f32.mrb[0].mxu0
    %4267 = vmatprep.mubr.f32.mxu0 0.0
    %4268 = vmatmul.mubr.f32.gmra.mrb[0].mxu0 %v4188
    %v4269 = vpop.f32.mrb[0].mxu0
    %v4270 = vadd.f32 0.0, %v4269
    %v4271 = vpop.f32.mrb[0].mxu0
    %4272 = vmatprep.mubr.f32.mxu0 0.0
    %4273 = vmatmul.mubr.f32.gmra.mrb[0].mxu0 %v4190
    %v4274 = vpop.f32.mrb[0].mxu0
    %v4275 = vadd.f32 0.0, %v4274
    %v4276 = vpop.f32.mrb[0].mxu0
    %4277 = vdwg.mxu0
    %v4278 = vmul.f32 %v4265, 0.35355338
    %v4279 = vmul.f32 %v4270, 0.35355338
    %v4280 = vmul.f32 %v4275, 0.35355338
    %v4281 = vsel %vm606, %v4278, -inf
    %4282 = vmax.xlane.f32.xlu0 %v4281
    %v4283 = vpop.xlane.xlu0 %4282
    %v4284 = vsel %vm606, %v4279, -inf
    %4285 = vmax.xlane.f32.xlu0 %v4284
    %v4286 = vpop.xlane.xlu0 %4285
    %v4287 = vsel %vm613, %v4280, -inf
    %4288 = vmax.xlane.f32.xlu0 %v4287
    %v4289 = vpop.xlane.xlu0 %4288
    %v4290 = vsub.f32 %v4278, %v4283
    %v4291 = vsub.f32 %v4279, %v4286
    %v4292 = vsub.f32 %v4280, %v4289
    %v4293 = vmul.f32 %v4290, 1.442695
    %v4294 = vpow.pop %v4293
    %v4295 = vmul.f32 %v4291, 1.442695
    %v4296 = vpow.pop %v4295
    %v4297 = vmul.f32 %v4292, 1.442695
    %v4298 = vpow.pop %v4297
    %v4299 = vsel %vm606, %v4294, 0.0
    %4300 = vadd.xlane.f32.xlu0 %v4299
    %v4301 = vpop.xlane.xlu0 %4300
    %v4302 = vsel %vm606, %v4296, 0.0
    %4303 = vadd.xlane.f32.xlu0 %v4302
    %v4304 = vpop.xlane.xlu0 %4303
    %v4305 = vsel %vm613, %v4298, 0.0
    %4306 = vadd.xlane.f32.xlu0 %v4305
    %v4307 = vpop.xlane.xlu0 %4306
    %v4308 = vrcp.pop %v4301
    %v4309 = vrcp.pop %v4304
    %v4310 = vrcp.pop %v4307
    %v4311 = vmul.f32 %v4294, %v4308
    %v4312 = vmul.f32 %v4296, %v4309
    %v4313 = vmul.f32 %v4298, %v4310
    %4314 = vrot.lane.b32.xlu0 %v3412, 104
    %v4315 = vpop.permute.xlu0 %4314
    %4316 = vrot.lane.b32.xlu0 %v3417, 104
    %v4317 = vpop.permute.xlu0 %4316
    %4318 = vrot.lane.b32.xlu0 %v3422, 104
    %v4319 = vpop.permute.xlu0 %4318
    %v4323 = vsel %vm606, %v4311, 0
    %v4326 = vsel %vm606, %v4312, 0
    %v4329 = vsel %vm606, %v4313, 0
    %v4331 = vsel %vm650, %v4319, 0
    %4333 = vmatprep.subr.mxu0 0.0
    %4334 = vmatpush1.msra.mxu0 %v4315
    %4335 = vmatprep.subr.mxu0 0.0
    %4336 = vmatpush1.msra.mxu0 %v4317
    %4337 = vmatprep.subr.mxu0 0.0
    %4338 = vmatpush1.msra.mxu0 %v4331
    %4339 = vmatprep.subr.mxu0 0.0
    %4340 = vmatpush1.msra.mxu0 0.0
    %4341 = vmatprep.subr.mxu0 0.0
    %4342 = vmatpush1.msra.mxu0 0.0
    %4343 = vmatprep.subr.mxu0 0.0
    %4344 = vmatpush1.msra.mxu0 0.0
    %4345 = vmatprep.subr.mxu0 0.0
    %4346 = vmatpush1.msra.mxu0 0.0
    %4347 = vmatprep.subr.mxu0 0.0
    %4348 = vmatpush1.msra.mxu0 0.0
    %4349 = vmatprep.subr.mxu0 0.0
    %4350 = vmatpush1.msra.mxu0 0.0
    %4351 = vmatprep.subr.mxu0 0.0
    %4352 = vmatpush1.msra.mxu0 0.0
    %4353 = vmatprep.subr.mxu0 0.0
    %4354 = vmatpush1.msra.mxu0 0.0
    %4355 = vmatprep.subr.mxu0 0.0
    %4356 = vmatpush1.msra.mxu0 0.0
    %4357 = vmatprep.subr.mxu0 0.0
    %4358 = vmatpush1.msra.mxu0 0.0
    %4359 = vmatprep.subr.mxu0 0.0
    %4360 = vmatpush1.msra.mxu0 0.0
    %4361 = vmatprep.subr.mxu0 0.0
    %4362 = vmatpush1.msra.mxu0 0.0
    %4363 = vmatprep.subr.mxu0 0.0
    %4364 = vmatpush1.msra.mxu0 0.0
    %4365 = vmatprep.subr.mxu0 0.0
    %4366 = vmatpush1.msra.mxu0 0.0
    %4367 = vmatprep.subr.mxu0 0.0
    %4368 = vmatpush1.msra.mxu0 0.0
    %4369 = vmatprep.subr.mxu0 0.0
    %4370 = vmatpush1.msra.mxu0 0.0
    %4371 = vmatprep.subr.mxu0 0.0
    %4372 = vmatpush1.msra.mxu0 0.0
    %4373 = vmatprep.subr.mxu0 0.0
    %4374 = vmatpush1.msra.mxu0 0.0
    %4375 = vmatprep.subr.mxu0 0.0
    %4376 = vmatpush1.msra.mxu0 0.0
    %4377 = vmatprep.subr.mxu0 0.0
    %4378 = vmatpush1.msra.mxu0 0.0
    %4379 = vmatprep.subr.mxu0 0.0
    %4380 = vmatpush1.msra.mxu0 0.0
    %4381 = vmatprep.subr.mxu0 0.0
    %4382 = vmatpush1.msra.mxu0 0.0
    %4383 = vmatprep.subr.mxu0 0.0
    %4384 = vmatpush1.msra.mxu0 0.0
    %4385 = vmatprep.subr.mxu0 0.0
    %4386 = vmatpush1.msra.mxu0 0.0
    %4387 = vmatprep.subr.mxu0 0.0
    %4388 = vmatpush1.msra.mxu0 0.0
    %4389 = vmatprep.subr.mxu0 0.0
    %4390 = vmatpush1.msra.mxu0 0.0
    %4391 = vmatprep.subr.mxu0 0.0
    %4392 = vmatpush1.msra.mxu0 0.0
    %4393 = vmatprep.subr.mxu0 0.0
    %4394 = vmatpush1.msra.mxu0 0.0
    %4395 = vmatprep.subr.mxu0 0.0
    %4396 = vmatpush1.msra.mxu0 0.0
    %4397 = vmatprep.mubr.f32.mxu0 0.0
    %4398 = vmatmul.mubr.f32.gmra.mrb[0].mxu0 %v4323
    %v4399 = vpop.f32.mrb[0].mxu0
    %v4400 = vadd.f32 0.0, %v4399
    %v4401 = vpop.f32.mrb[0].mxu0
    %4402 = vmatprep.mubr.f32.mxu0 0.0
    %4403 = vmatmul.mubr.f32.gmra.mrb[0].mxu0 %v4326
    %v4404 = vpop.f32.mrb[0].mxu0
    %v4405 = vadd.f32 0.0, %v4404
    %v4406 = vpop.f32.mrb[0].mxu0
    %4407 = vmatprep.mubr.f32.mxu0 0.0
    %4408 = vmatmul.mubr.f32.gmra.mrb[0].mxu0 %v4329
    %v4409 = vpop.f32.mrb[0].mxu0
    %v4410 = vadd.f32 0.0, %v4409
    %v4411 = vpop.f32.mrb[0].mxu0
    %4412 = vdwg.mxu0
    %4416 = vrot.lane.b32.xlu0 %v4400, 24
    %v4417 = vpop.permute.xlu0 %4416
    %4418 = vrot.lane.b32.xlu0 %v4405, 24
    %v4419 = vpop.permute.xlu0 %4418
    %4420 = vrot.lane.b32.xlu0 %v4410, 24
    %v4421 = vpop.permute.xlu0 %4420
    %4425 = vst.msk [vmem:[#allocation2] sm:$0xff] %vm1503, %v4417
    %4426 = vst.msk [vmem:[#allocation2 + $0x8] sm:$0xff] %vm1503, %v4419
    %4427 = vst.msk [vmem:[#allocation2 + $0x10] sm:$0x1] %vm1506, %v4421
    %v4430 = vrot.slane %v3216, 1
    %v4431 = vrot.slane %v3221, 1
    %v4432 = vsel %vm1510, %v4430, %v4431
    %v4433 = vrot.slane %v3226, 1
    %v4434 = vsel %vm1510, %v4431, %v4433
    %v4437 = vrot.slane %v3319, 1
    %v4438 = vrot.slane %v3324, 1
    %v4439 = vsel %vm1510, %v4437, %v4438
    %v4440 = vrot.slane %v3329, 1
    %v4441 = vsel %vm1510, %v4438, %v4440
    %v4442 = vsel %vm504, %v4432, 0
    %v4444 = vsel %vm504, %v4434, 0
    %v4446 = vsel %vm504, %v4433, 0
    %v4448 = vsel %vm504, %v4439, 0
    %v4450 = vsel %vm504, %v4441, 0
    %v4452 = vsel %vm504, %v4440, 0
    %4454 = vmatprep.subr.mxu0 0.0
    %4455 = vmatpush1.xpose.msra.mxu0 %v4448
    %4456 = vmatprep.subr.mxu0 0.0
    %4457 = vmatpush1.xpose.msra.mxu0 %v4450
    %4458 = vmatprep.subr.mxu0 0.0
    %4459 = vmatpush1.xpose.msra.mxu0 %v4452
    %4460 = vmatprep.subr.mxu0 0.0
    %4461 = vmatpush1.xpose.msra.mxu0 0.0
    %4462 = vmatprep.subr.mxu0 0.0
    %4463 = vmatpush1.xpose.msra.mxu0 0.0
    %4464 = vmatprep.subr.mxu0 0.0
    %4465 = vmatpush1.xpose.msra.mxu0 0.0
    %4466 = vmatprep.subr.mxu0 0.0
    %4467 = vmatpush1.xpose.msra.mxu0 0.0
    %4468 = vmatprep.subr.mxu0 0.0
    %4469 = vmatpush1.xpose.msra.mxu0 0.0
    %4470 = vmatprep.subr.mxu0 0.0
    %4471 = vmatpush1.xpose.msra.mxu0 0.0
    %4472 = vmatprep.subr.mxu0 0.0
    %4473 = vmatpush1.xpose.msra.mxu0 0.0
    %4474 = vmatprep.subr.mxu0 0.0
    %4475 = vmatpush1.xpose.msra.mxu0 0.0
    %4476 = vmatprep.subr.mxu0 0.0
    %4477 = vmatpush1.xpose.msra.mxu0 0.0
    %4478 = vmatprep.subr.mxu0 0.0
    %4479 = vmatpush1.xpose.msra.mxu0 0.0
    %4480 = vmatprep.subr.mxu0 0.0
    %4481 = vmatpush1.xpose.msra.mxu0 0.0
    %4482 = vmatprep.subr.mxu0 0.0
    %4483 = vmatpush1.xpose.msra.mxu0 0.0
    %4484 = vmatprep.subr.mxu0 0.0
    %4485 = vmatpush1.xpose.msra.mxu0 0.0
    %4486 = vmatprep.subr.mxu0 0.0
    %4487 = vmatpush1.xpose.msra.mxu0 0.0
    %4488 = vmatprep.subr.mxu0 0.0
    %4489 = vmatpush1.xpose.msra.mxu0 0.0
    %4490 = vmatprep.subr.mxu0 0.0
    %4491 = vmatpush1.xpose.msra.mxu0 0.0
    %4492 = vmatprep.subr.mxu0 0.0
    %4493 = vmatpush1.xpose.msra.mxu0 0.0
    %4494 = vmatprep.subr.mxu0 0.0
    %4495 = vmatpush1.xpose.msra.mxu0 0.0
    %4496 = vmatprep.subr.mxu0 0.0
    %4497 = vmatpush1.xpose.msra.mxu0 0.0
    %4498 = vmatprep.subr.mxu0 0.0
    %4499 = vmatpush1.xpose.msra.mxu0 0.0
    %4500 = vmatprep.subr.mxu0 0.0
    %4501 = vmatpush1.xpose.msra.mxu0 0.0
    %4502 = vmatprep.subr.mxu0 0.0
    %4503 = vmatpush1.xpose.msra.mxu0 0.0
    %4504 = vmatprep.subr.mxu0 0.0
    %4505 = vmatpush1.xpose.msra.mxu0 0.0
    %4506 = vmatprep.subr.mxu0 0.0
    %4507 = vmatpush1.xpose.msra.mxu0 0.0
    %4508 = vmatprep.subr.mxu0 0.0
    %4509 = vmatpush1.xpose.msra.mxu0 0.0
    %4510 = vmatprep.subr.mxu0 0.0
    %4511 = vmatpush1.xpose.msra.mxu0 0.0
    %4512 = vmatprep.subr.mxu0 0.0
    %4513 = vmatpush1.xpose.msra.mxu0 0.0
    %4514 = vmatprep.subr.mxu0 0.0
    %4515 = vmatpush1.xpose.msra.mxu0 0.0
    %4516 = vmatprep.subr.mxu0 0.0
    %4517 = vmatpush1.xpose.msra.mxu0 0.0
    %4518 = vmatprep.mubr.f32.mxu0 0.0
    %4519 = vmatmul.mubr.f32.gmra.mrb[0].mxu0 %v4442
    %v4520 = vpop.f32.mrb[0].mxu0
    %v4521 = vadd.f32 0.0, %v4520
    %v4522 = vpop.f32.mrb[0].mxu0
    %4523 = vmatprep.mubr.f32.mxu0 0.0
    %4524 = vmatmul.mubr.f32.gmra.mrb[0].mxu0 %v4444
    %v4525 = vpop.f32.mrb[0].mxu0
    %v4526 = vadd.f32 0.0, %v4525
    %v4527 = vpop.f32.mrb[0].mxu0
    %4528 = vmatprep.mubr.f32.mxu0 0.0
    %4529 = vmatmul.mubr.f32.gmra.mrb[0].mxu0 %v4446
    %v4530 = vpop.f32.mrb[0].mxu0
    %v4531 = vadd.f32 0.0, %v4530
    %v4532 = vpop.f32.mrb[0].mxu0
    %4533 = vdwg.mxu0
    %v4534 = vmul.f32 %v4521, 0.35355338
    %v4535 = vmul.f32 %v4526, 0.35355338
    %v4536 = vmul.f32 %v4531, 0.35355338
    %v4537 = vsel %vm606, %v4534, -inf
    %4538 = vmax.xlane.f32.xlu0 %v4537
    %v4539 = vpop.xlane.xlu0 %4538
    %v4540 = vsel %vm606, %v4535, -inf
    %4541 = vmax.xlane.f32.xlu0 %v4540
    %v4542 = vpop.xlane.xlu0 %4541
    %v4543 = vsel %vm613, %v4536, -inf
    %4544 = vmax.xlane.f32.xlu0 %v4543
    %v4545 = vpop.xlane.xlu0 %4544
    %v4546 = vsub.f32 %v4534, %v4539
    %v4547 = vsub.f32 %v4535, %v4542
    %v4548 = vsub.f32 %v4536, %v4545
    %v4549 = vmul.f32 %v4546, 1.442695
    %v4550 = vpow.pop %v4549
    %v4551 = vmul.f32 %v4547, 1.442695
    %v4552 = vpow.pop %v4551
    %v4553 = vmul.f32 %v4548, 1.442695
    %v4554 = vpow.pop %v4553
    %v4555 = vsel %vm606, %v4550, 0.0
    %4556 = vadd.xlane.f32.xlu0 %v4555
    %v4557 = vpop.xlane.xlu0 %4556
    %v4558 = vsel %vm606, %v4552, 0.0
    %4559 = vadd.xlane.f32.xlu0 %v4558
    %v4560 = vpop.xlane.xlu0 %4559
    %v4561 = vsel %vm613, %v4554, 0.0
    %4562 = vadd.xlane.f32.xlu0 %v4561
    %v4563 = vpop.xlane.xlu0 %4562
    %v4564 = vrcp.pop %v4557
    %v4565 = vrcp.pop %v4560
    %v4566 = vrcp.pop %v4563
    %v4567 = vmul.f32 %v4550, %v4564
    %v4568 = vmul.f32 %v4552, %v4565
    %v4569 = vmul.f32 %v4554, %v4566
    %v4572 = vrot.slane %v3422, 1
    %v4573 = vrot.slane %v3427, 1
    %v4574 = vsel %vm1510, %v4572, %v4573
    %v4575 = vrot.slane %v3432, 1
    %v4576 = vsel %vm1510, %v4573, %v4575
    %v4580 = vsel %vm606, %v4567, 0
    %v4583 = vsel %vm606, %v4568, 0
    %v4586 = vsel %vm606, %v4569, 0
    %v4588 = vsel %vm650, %v4575, 0
    %4590 = vmatprep.subr.mxu0 0.0
    %4591 = vmatpush1.msra.mxu0 %v4574
    %4592 = vmatprep.subr.mxu0 0.0
    %4593 = vmatpush1.msra.mxu0 %v4576
    %4594 = vmatprep.subr.mxu0 0.0
    %4595 = vmatpush1.msra.mxu0 %v4588
    %4596 = vmatprep.subr.mxu0 0.0
    %4597 = vmatpush1.msra.mxu0 0.0
    %4598 = vmatprep.subr.mxu0 0.0
    %4599 = vmatpush1.msra.mxu0 0.0
    %4600 = vmatprep.subr.mxu0 0.0
    %4601 = vmatpush1.msra.mxu0 0.0
    %4602 = vmatprep.subr.mxu0 0.0
    %4603 = vmatpush1.msra.mxu0 0.0
    %4604 = vmatprep.subr.mxu0 0.0
    %4605 = vmatpush1.msra.mxu0 0.0
    %4606 = vmatprep.subr.mxu0 0.0
    %4607 = vmatpush1.msra.mxu0 0.0
    %4608 = vmatprep.subr.mxu0 0.0
    %4609 = vmatpush1.msra.mxu0 0.0
    %4610 = vmatprep.subr.mxu0 0.0
    %4611 = vmatpush1.msra.mxu0 0.0
    %4612 = vmatprep.subr.mxu0 0.0
    %4613 = vmatpush1.msra.mxu0 0.0
    %4614 = vmatprep.subr.mxu0 0.0
    %4615 = vmatpush1.msra.mxu0 0.0
    %4616 = vmatprep.subr.mxu0 0.0
    %4617 = vmatpush1.msra.mxu0 0.0
    %4618 = vmatprep.subr.mxu0 0.0
    %4619 = vmatpush1.msra.mxu0 0.0
    %4620 = vmatprep.subr.mxu0 0.0
    %4621 = vmatpush1.msra.mxu0 0.0
    %4622 = vmatprep.subr.mxu0 0.0
    %4623 = vmatpush1.msra.mxu0 0.0
    %4624 = vmatprep.subr.mxu0 0.0
    %4625 = vmatpush1.msra.mxu0 0.0
    %4626 = vmatprep.subr.mxu0 0.0
    %4627 = vmatpush1.msra.mxu0 0.0
    %4628 = vmatprep.subr.mxu0 0.0
    %4629 = vmatpush1.msra.mxu0 0.0
    %4630 = vmatprep.subr.mxu0 0.0
    %4631 = vmatpush1.msra.mxu0 0.0
    %4632 = vmatprep.subr.mxu0 0.0
    %4633 = vmatpush1.msra.mxu0 0.0
    %4634 = vmatprep.subr.mxu0 0.0
    %4635 = vmatpush1.msra.mxu0 0.0
    %4636 = vmatprep.subr.mxu0 0.0
    %4637 = vmatpush1.msra.mxu0 0.0
    %4638 = vmatprep.subr.mxu0 0.0
    %4639 = vmatpush1.msra.mxu0 0.0
    %4640 = vmatprep.subr.mxu0 0.0
    %4641 = vmatpush1.msra.mxu0 0.0
    %4642 = vmatprep.subr.mxu0 0.0
    %4643 = vmatpush1.msra.mxu0 0.0
    %4644 = vmatprep.subr.mxu0 0.0
    %4645 = vmatpush1.msra.mxu0 0.0
    %4646 = vmatprep.subr.mxu0 0.0
    %4647 = vmatpush1.msra.mxu0 0.0
    %4648 = vmatprep.subr.mxu0 0.0
    %4649 = vmatpush1.msra.mxu0 0.0
    %4650 = vmatprep.subr.mxu0 0.0
    %4651 = vmatpush1.msra.mxu0 0.0
    %4652 = vmatprep.subr.mxu0 0.0
    %4653 = vmatpush1.msra.mxu0 0.0
    %4654 = vmatprep.mubr.f32.mxu0 0.0
    %4655 = vmatmul.mubr.f32.gmra.mrb[0].mxu0 %v4580
    %v4656 = vpop.f32.mrb[0].mxu0
    %v4657 = vadd.f32 0.0, %v4656
    %v4658 = vpop.f32.mrb[0].mxu0
    %4659 = vmatprep.mubr.f32.mxu0 0.0
    %4660 = vmatmul.mubr.f32.gmra.mrb[0].mxu0 %v4583
    %v4661 = vpop.f32.mrb[0].mxu0
    %v4662 = vadd.f32 0.0, %v4661
    %v4663 = vpop.f32.mrb[0].mxu0
    %4664 = vmatprep.mubr.f32.mxu0 0.0
    %4665 = vmatmul.mubr.f32.gmra.mrb[0].mxu0 %v4586
    %v4666 = vpop.f32.mrb[0].mxu0
    %v4667 = vadd.f32 0.0, %v4666
    %v4668 = vpop.f32.mrb[0].mxu0
    %4669 = vdwg.mxu0
    %4670 = vst.msk [vmem:[#allocation2 + $0x11] sm:$0xff] %vm504, %v4657
    %4671 = vst.msk [vmem:[#allocation2 + $0x19] sm:$0xff] %vm504, %v4662
    %4672 = vst.msk [vmem:[#allocation2 + $0x21] sm:$0x1] %vm736, %v4667
    %4673 = vrot.lane.b32.xlu0 %v4432, 120
    %v4674 = vpop.permute.xlu0 %4673
    %4675 = vrot.lane.b32.xlu0 %v4434, 120
    %v4676 = vpop.permute.xlu0 %4675
    %4677 = vrot.lane.b32.xlu0 %v4433, 120
    %v4678 = vpop.permute.xlu0 %4677
    %4679 = vrot.lane.b32.xlu0 %v4439, 120
    %v4680 = vpop.permute.xlu0 %4679
    %4681 = vrot.lane.b32.xlu0 %v4441, 120
    %v4682 = vpop.permute.xlu0 %4681
    %4683 = vrot.lane.b32.xlu0 %v4440, 120
    %v4684 = vpop.permute.xlu0 %4683
    %v4685 = vsel %vm504, %v4674, 0
    %v4687 = vsel %vm504, %v4676, 0
    %v4689 = vsel %vm504, %v4678, 0
    %v4691 = vsel %vm504, %v4680, 0
    %v4693 = vsel %vm504, %v4682, 0
    %v4695 = vsel %vm504, %v4684, 0
    %4697 = vmatprep.subr.mxu0 0.0
    %4698 = vmatpush1.xpose.msra.mxu0 %v4691
    %4699 = vmatprep.subr.mxu0 0.0
    %4700 = vmatpush1.xpose.msra.mxu0 %v4693
    %4701 = vmatprep.subr.mxu0 0.0
    %4702 = vmatpush1.xpose.msra.mxu0 %v4695
    %4703 = vmatprep.subr.mxu0 0.0
    %4704 = vmatpush1.xpose.msra.mxu0 0.0
    %4705 = vmatprep.subr.mxu0 0.0
    %4706 = vmatpush1.xpose.msra.mxu0 0.0
    %4707 = vmatprep.subr.mxu0 0.0
    %4708 = vmatpush1.xpose.msra.mxu0 0.0
    %4709 = vmatprep.subr.mxu0 0.0
    %4710 = vmatpush1.xpose.msra.mxu0 0.0
    %4711 = vmatprep.subr.mxu0 0.0
    %4712 = vmatpush1.xpose.msra.mxu0 0.0
    %4713 = vmatprep.subr.mxu0 0.0
    %4714 = vmatpush1.xpose.msra.mxu0 0.0
    %4715 = vmatprep.subr.mxu0 0.0
    %4716 = vmatpush1.xpose.msra.mxu0 0.0
    %4717 = vmatprep.subr.mxu0 0.0
    %4718 = vmatpush1.xpose.msra.mxu0 0.0
    %4719 = vmatprep.subr.mxu0 0.0
    %4720 = vmatpush1.xpose.msra.mxu0 0.0
    %4721 = vmatprep.subr.mxu0 0.0
    %4722 = vmatpush1.xpose.msra.mxu0 0.0
    %4723 = vmatprep.subr.mxu0 0.0
    %4724 = vmatpush1.xpose.msra.mxu0 0.0
    %4725 = vmatprep.subr.mxu0 0.0
    %4726 = vmatpush1.xpose.msra.mxu0 0.0
    %4727 = vmatprep.subr.mxu0 0.0
    %4728 = vmatpush1.xpose.msra.mxu0 0.0
    %4729 = vmatprep.subr.mxu0 0.0
    %4730 = vmatpush1.xpose.msra.mxu0 0.0
    %4731 = vmatprep.subr.mxu0 0.0
    %4732 = vmatpush1.xpose.msra.mxu0 0.0
    %4733 = vmatprep.subr.mxu0 0.0
    %4734 = vmatpush1.xpose.msra.mxu0 0.0
    %4735 = vmatprep.subr.mxu0 0.0
    %4736 = vmatpush1.xpose.msra.mxu0 0.0
    %4737 = vmatprep.subr.mxu0 0.0
    %4738 = vmatpush1.xpose.msra.mxu0 0.0
    %4739 = vmatprep.subr.mxu0 0.0
    %4740 = vmatpush1.xpose.msra.mxu0 0.0
    %4741 = vmatprep.subr.mxu0 0.0
    %4742 = vmatpush1.xpose.msra.mxu0 0.0
    %4743 = vmatprep.subr.mxu0 0.0
    %4744 = vmatpush1.xpose.msra.mxu0 0.0
    %4745 = vmatprep.subr.mxu0 0.0
    %4746 = vmatpush1.xpose.msra.mxu0 0.0
    %4747 = vmatprep.subr.mxu0 0.0
    %4748 = vmatpush1.xpose.msra.mxu0 0.0
    %4749 = vmatprep.subr.mxu0 0.0
    %4750 = vmatpush1.xpose.msra.mxu0 0.0
    %4751 = vmatprep.subr.mxu0 0.0
    %4752 = vmatpush1.xpose.msra.mxu0 0.0
    %4753 = vmatprep.subr.mxu0 0.0
    %4754 = vmatpush1.xpose.msra.mxu0 0.0
    %4755 = vmatprep.subr.mxu0 0.0
    %4756 = vmatpush1.xpose.msra.mxu0 0.0
    %4757 = vmatprep.subr.mxu0 0.0
    %4758 = vmatpush1.xpose.msra.mxu0 0.0
    %4759 = vmatprep.subr.mxu0 0.0
    %4760 = vmatpush1.xpose.msra.mxu0 0.0
    %4761 = vmatprep.mubr.f32.mxu0 0.0
    %4762 = vmatmul.mubr.f32.gmra.mrb[0].mxu0 %v4685
    %v4763 = vpop.f32.mrb[0].mxu0
    %v4764 = vadd.f32 0.0, %v4763
    %v4765 = vpop.f32.mrb[0].mxu0
    %4766 = vmatprep.mubr.f32.mxu0 0.0
    %4767 = vmatmul.mubr.f32.gmra.mrb[0].mxu0 %v4687
    %v4768 = vpop.f32.mrb[0].mxu0
    %v4769 = vadd.f32 0.0, %v4768
    %v4770 = vpop.f32.mrb[0].mxu0
    %4771 = vmatprep.mubr.f32.mxu0 0.0
    %4772 = vmatmul.mubr.f32.gmra.mrb[0].mxu0 %v4689
    %v4773 = vpop.f32.mrb[0].mxu0
    %v4774 = vadd.f32 0.0, %v4773
    %v4775 = vpop.f32.mrb[0].mxu0
    %4776 = vdwg.mxu0
    %v4777 = vmul.f32 %v4764, 0.35355338
    %v4778 = vmul.f32 %v4769, 0.35355338
    %v4779 = vmul.f32 %v4774, 0.35355338
    %v4780 = vsel %vm606, %v4777, -inf
    %4781 = vmax.xlane.f32.xlu0 %v4780
    %v4782 = vpop.xlane.xlu0 %4781
    %v4783 = vsel %vm606, %v4778, -inf
    %4784 = vmax.xlane.f32.xlu0 %v4783
    %v4785 = vpop.xlane.xlu0 %4784
    %v4786 = vsel %vm613, %v4779, -inf
    %4787 = vmax.xlane.f32.xlu0 %v4786
    %v4788 = vpop.xlane.xlu0 %4787
    %v4789 = vsub.f32 %v4777, %v4782
    %v4790 = vsub.f32 %v4778, %v4785
    %v4791 = vsub.f32 %v4779, %v4788
    %v4792 = vmul.f32 %v4789, 1.442695
    %v4793 = vpow.pop %v4792
    %v4794 = vmul.f32 %v4790, 1.442695
    %v4795 = vpow.pop %v4794
    %v4796 = vmul.f32 %v4791, 1.442695
    %v4797 = vpow.pop %v4796
    %v4798 = vsel %vm606, %v4793, 0.0
    %4799 = vadd.xlane.f32.xlu0 %v4798
    %v4800 = vpop.xlane.xlu0 %4799
    %v4801 = vsel %vm606, %v4795, 0.0
    %4802 = vadd.xlane.f32.xlu0 %v4801
    %v4803 = vpop.xlane.xlu0 %4802
    %v4804 = vsel %vm613, %v4797, 0.0
    %4805 = vadd.xlane.f32.xlu0 %v4804
    %v4806 = vpop.xlane.xlu0 %4805
    %v4807 = vrcp.pop %v4800
    %v4808 = vrcp.pop %v4803
    %v4809 = vrcp.pop %v4806
    %v4810 = vmul.f32 %v4793, %v4807
    %v4811 = vmul.f32 %v4795, %v4808
    %v4812 = vmul.f32 %v4797, %v4809
    %4813 = vrot.lane.b32.xlu0 %v4574, 120
    %v4814 = vpop.permute.xlu0 %4813
    %4815 = vrot.lane.b32.xlu0 %v4576, 120
    %v4816 = vpop.permute.xlu0 %4815
    %4817 = vrot.lane.b32.xlu0 %v4575, 120
    %v4818 = vpop.permute.xlu0 %4817
    %v4822 = vsel %vm606, %v4810, 0
    %v4825 = vsel %vm606, %v4811, 0
    %v4828 = vsel %vm606, %v4812, 0
    %v4830 = vsel %vm650, %v4818, 0
    %4832 = vmatprep.subr.mxu0 0.0
    %4833 = vmatpush1.msra.mxu0 %v4814
    %4834 = vmatprep.subr.mxu0 0.0
    %4835 = vmatpush1.msra.mxu0 %v4816
    %4836 = vmatprep.subr.mxu0 0.0
    %4837 = vmatpush1.msra.mxu0 %v4830
    %4838 = vmatprep.subr.mxu0 0.0
    %4839 = vmatpush1.msra.mxu0 0.0
    %4840 = vmatprep.subr.mxu0 0.0
    %4841 = vmatpush1.msra.mxu0 0.0
    %4842 = vmatprep.subr.mxu0 0.0
    %4843 = vmatpush1.msra.mxu0 0.0
    %4844 = vmatprep.subr.mxu0 0.0
    %4845 = vmatpush1.msra.mxu0 0.0
    %4846 = vmatprep.subr.mxu0 0.0
    %4847 = vmatpush1.msra.mxu0 0.0
    %4848 = vmatprep.subr.mxu0 0.0
    %4849 = vmatpush1.msra.mxu0 0.0
    %4850 = vmatprep.subr.mxu0 0.0
    %4851 = vmatpush1.msra.mxu0 0.0
    %4852 = vmatprep.subr.mxu0 0.0
    %4853 = vmatpush1.msra.mxu0 0.0
    %4854 = vmatprep.subr.mxu0 0.0
    %4855 = vmatpush1.msra.mxu0 0.0
    %4856 = vmatprep.subr.mxu0 0.0
    %4857 = vmatpush1.msra.mxu0 0.0
    %4858 = vmatprep.subr.mxu0 0.0
    %4859 = vmatpush1.msra.mxu0 0.0
    %4860 = vmatprep.subr.mxu0 0.0
    %4861 = vmatpush1.msra.mxu0 0.0
    %4862 = vmatprep.subr.mxu0 0.0
    %4863 = vmatpush1.msra.mxu0 0.0
    %4864 = vmatprep.subr.mxu0 0.0
    %4865 = vmatpush1.msra.mxu0 0.0
    %4866 = vmatprep.subr.mxu0 0.0
    %4867 = vmatpush1.msra.mxu0 0.0
    %4868 = vmatprep.subr.mxu0 0.0
    %4869 = vmatpush1.msra.mxu0 0.0
    %4870 = vmatprep.subr.mxu0 0.0
    %4871 = vmatpush1.msra.mxu0 0.0
    %4872 = vmatprep.subr.mxu0 0.0
    %4873 = vmatpush1.msra.mxu0 0.0
    %4874 = vmatprep.subr.mxu0 0.0
    %4875 = vmatpush1.msra.mxu0 0.0
    %4876 = vmatprep.subr.mxu0 0.0
    %4877 = vmatpush1.msra.mxu0 0.0
    %4878 = vmatprep.subr.mxu0 0.0
    %4879 = vmatpush1.msra.mxu0 0.0
    %4880 = vmatprep.subr.mxu0 0.0
    %4881 = vmatpush1.msra.mxu0 0.0
    %4882 = vmatprep.subr.mxu0 0.0
    %4883 = vmatpush1.msra.mxu0 0.0
    %4884 = vmatprep.subr.mxu0 0.0
    %4885 = vmatpush1.msra.mxu0 0.0
    %4886 = vmatprep.subr.mxu0 0.0
    %4887 = vmatpush1.msra.mxu0 0.0
    %4888 = vmatprep.subr.mxu0 0.0
    %4889 = vmatpush1.msra.mxu0 0.0
    %4890 = vmatprep.subr.mxu0 0.0
    %4891 = vmatpush1.msra.mxu0 0.0
    %4892 = vmatprep.subr.mxu0 0.0
    %4893 = vmatpush1.msra.mxu0 0.0
    %4894 = vmatprep.subr.mxu0 0.0
    %4895 = vmatpush1.msra.mxu0 0.0
    %4896 = vmatprep.mubr.f32.mxu0 0.0
    %4897 = vmatmul.mubr.f32.gmra.mrb[0].mxu0 %v4822
    %v4898 = vpop.f32.mrb[0].mxu0
    %v4899 = vadd.f32 0.0, %v4898
    %v4900 = vpop.f32.mrb[0].mxu0
    %4901 = vmatprep.mubr.f32.mxu0 0.0
    %4902 = vmatmul.mubr.f32.gmra.mrb[0].mxu0 %v4825
    %v4903 = vpop.f32.mrb[0].mxu0
    %v4904 = vadd.f32 0.0, %v4903
    %v4905 = vpop.f32.mrb[0].mxu0
    %4906 = vmatprep.mubr.f32.mxu0 0.0
    %4907 = vmatmul.mubr.f32.gmra.mrb[0].mxu0 %v4828
    %v4908 = vpop.f32.mrb[0].mxu0
    %v4909 = vadd.f32 0.0, %v4908
    %v4910 = vpop.f32.mrb[0].mxu0
    %4911 = vdwg.mxu0
    %4915 = vrot.lane.b32.xlu0 %v4899, 8
    %v4916 = vpop.permute.xlu0 %4915
    %4917 = vrot.lane.b32.xlu0 %v4904, 8
    %v4918 = vpop.permute.xlu0 %4917
    %4919 = vrot.lane.b32.xlu0 %v4909, 8
    %v4920 = vpop.permute.xlu0 %4919
    %4924 = vst.msk [vmem:[#allocation2 + $0x11] sm:$0xff] %vm991, %v4916
    %4925 = vst.msk [vmem:[#allocation2 + $0x19] sm:$0xff] %vm991, %v4918
    %4926 = vst.msk [vmem:[#allocation2 + $0x21] sm:$0x1] %vm994, %v4920
    %4927 = vrot.lane.b32.xlu0 %v4432, 112
    %v4928 = vpop.permute.xlu0 %4927
    %4929 = vrot.lane.b32.xlu0 %v4434, 112
    %v4930 = vpop.permute.xlu0 %4929
    %4931 = vrot.lane.b32.xlu0 %v4433, 112
    %v4932 = vpop.permute.xlu0 %4931
    %4933 = vrot.lane.b32.xlu0 %v4439, 112
    %v4934 = vpop.permute.xlu0 %4933
    %4935 = vrot.lane.b32.xlu0 %v4441, 112
    %v4936 = vpop.permute.xlu0 %4935
    %4937 = vrot.lane.b32.xlu0 %v4440, 112
    %v4938 = vpop.permute.xlu0 %4937
    %v4939 = vsel %vm504, %v4928, 0
    %v4941 = vsel %vm504, %v4930, 0
    %v4943 = vsel %vm504, %v4932, 0
    %v4945 = vsel %vm504, %v4934, 0
    %v4947 = vsel %vm504, %v4936, 0
    %v4949 = vsel %vm504, %v4938, 0
    %4951 = vmatprep.subr.mxu0 0.0
    %4952 = vmatpush1.xpose.msra.mxu0 %v4945
    %4953 = vmatprep.subr.mxu0 0.0
    %4954 = vmatpush1.xpose.msra.mxu0 %v4947
    %4955 = vmatprep.subr.mxu0 0.0
    %4956 = vmatpush1.xpose.msra.mxu0 %v4949
    %4957 = vmatprep.subr.mxu0 0.0
    %4958 = vmatpush1.xpose.msra.mxu0 0.0
    %4959 = vmatprep.subr.mxu0 0.0
    %4960 = vmatpush1.xpose.msra.mxu0 0.0
    %4961 = vmatprep.subr.mxu0 0.0
    %4962 = vmatpush1.xpose.msra.mxu0 0.0
    %4963 = vmatprep.subr.mxu0 0.0
    %4964 = vmatpush1.xpose.msra.mxu0 0.0
    %4965 = vmatprep.subr.mxu0 0.0
    %4966 = vmatpush1.xpose.msra.mxu0 0.0
    %4967 = vmatprep.subr.mxu0 0.0
    %4968 = vmatpush1.xpose.msra.mxu0 0.0
    %4969 = vmatprep.subr.mxu0 0.0
    %4970 = vmatpush1.xpose.msra.mxu0 0.0
    %4971 = vmatprep.subr.mxu0 0.0
    %4972 = vmatpush1.xpose.msra.mxu0 0.0
    %4973 = vmatprep.subr.mxu0 0.0
    %4974 = vmatpush1.xpose.msra.mxu0 0.0
    %4975 = vmatprep.subr.mxu0 0.0
    %4976 = vmatpush1.xpose.msra.mxu0 0.0
    %4977 = vmatprep.subr.mxu0 0.0
    %4978 = vmatpush1.xpose.msra.mxu0 0.0
    %4979 = vmatprep.subr.mxu0 0.0
    %4980 = vmatpush1.xpose.msra.mxu0 0.0
    %4981 = vmatprep.subr.mxu0 0.0
    %4982 = vmatpush1.xpose.msra.mxu0 0.0
    %4983 = vmatprep.subr.mxu0 0.0
    %4984 = vmatpush1.xpose.msra.mxu0 0.0
    %4985 = vmatprep.subr.mxu0 0.0
    %4986 = vmatpush1.xpose.msra.mxu0 0.0
    %4987 = vmatprep.subr.mxu0 0.0
    %4988 = vmatpush1.xpose.msra.mxu0 0.0
    %4989 = vmatprep.subr.mxu0 0.0
    %4990 = vmatpush1.xpose.msra.mxu0 0.0
    %4991 = vmatprep.subr.mxu0 0.0
    %4992 = vmatpush1.xpose.msra.mxu0 0.0
    %4993 = vmatprep.subr.mxu0 0.0
    %4994 = vmatpush1.xpose.msra.mxu0 0.0
    %4995 = vmatprep.subr.mxu0 0.0
    %4996 = vmatpush1.xpose.msra.mxu0 0.0
    %4997 = vmatprep.subr.mxu0 0.0
    %4998 = vmatpush1.xpose.msra.mxu0 0.0
    %4999 = vmatprep.subr.mxu0 0.0
    %5000 = vmatpush1.xpose.msra.mxu0 0.0
    %5001 = vmatprep.subr.mxu0 0.0
    %5002 = vmatpush1.xpose.msra.mxu0 0.0
    %5003 = vmatprep.subr.mxu0 0.0
    %5004 = vmatpush1.xpose.msra.mxu0 0.0
    %5005 = vmatprep.subr.mxu0 0.0
    %5006 = vmatpush1.xpose.msra.mxu0 0.0
    %5007 = vmatprep.subr.mxu0 0.0
    %5008 = vmatpush1.xpose.msra.mxu0 0.0
    %5009 = vmatprep.subr.mxu0 0.0
    %5010 = vmatpush1.xpose.msra.mxu0 0.0
    %5011 = vmatprep.subr.mxu0 0.0
    %5012 = vmatpush1.xpose.msra.mxu0 0.0
    %5013 = vmatprep.subr.mxu0 0.0
    %5014 = vmatpush1.xpose.msra.mxu0 0.0
    %5015 = vmatprep.mubr.f32.mxu0 0.0
    %5016 = vmatmul.mubr.f32.gmra.mrb[0].mxu0 %v4939
    %v5017 = vpop.f32.mrb[0].mxu0
    %v5018 = vadd.f32 0.0, %v5017
    %v5019 = vpop.f32.mrb[0].mxu0
    %5020 = vmatprep.mubr.f32.mxu0 0.0
    %5021 = vmatmul.mubr.f32.gmra.mrb[0].mxu0 %v4941
    %v5022 = vpop.f32.mrb[0].mxu0
    %v5023 = vadd.f32 0.0, %v5022
    %v5024 = vpop.f32.mrb[0].mxu0
    %5025 = vmatprep.mubr.f32.mxu0 0.0
    %5026 = vmatmul.mubr.f32.gmra.mrb[0].mxu0 %v4943
    %v5027 = vpop.f32.mrb[0].mxu0
    %v5028 = vadd.f32 0.0, %v5027
    %v5029 = vpop.f32.mrb[0].mxu0
    %5030 = vdwg.mxu0
    %v5031 = vmul.f32 %v5018, 0.35355338
    %v5032 = vmul.f32 %v5023, 0.35355338
    %v5033 = vmul.f32 %v5028, 0.35355338
    %v5034 = vsel %vm606, %v5031, -inf
    %5035 = vmax.xlane.f32.xlu0 %v5034
    %v5036 = vpop.xlane.xlu0 %5035
    %v5037 = vsel %vm606, %v5032, -inf
    %5038 = vmax.xlane.f32.xlu0 %v5037
    %v5039 = vpop.xlane.xlu0 %5038
    %v5040 = vsel %vm613, %v5033, -inf
    %5041 = vmax.xlane.f32.xlu0 %v5040
    %v5042 = vpop.xlane.xlu0 %5041
    %v5043 = vsub.f32 %v5031, %v5036
    %v5044 = vsub.f32 %v5032, %v5039
    %v5045 = vsub.f32 %v5033, %v5042
    %v5046 = vmul.f32 %v5043, 1.442695
    %v5047 = vpow.pop %v5046
    %v5048 = vmul.f32 %v5044, 1.442695
    %v5049 = vpow.pop %v5048
    %v5050 = vmul.f32 %v5045, 1.442695
    %v5051 = vpow.pop %v5050
    %v5052 = vsel %vm606, %v5047, 0.0
    %5053 = vadd.xlane.f32.xlu0 %v5052
    %v5054 = vpop.xlane.xlu0 %5053
    %v5055 = vsel %vm606, %v5049, 0.0
    %5056 = vadd.xlane.f32.xlu0 %v5055
    %v5057 = vpop.xlane.xlu0 %5056
    %v5058 = vsel %vm613, %v5051, 0.0
    %5059 = vadd.xlane.f32.xlu0 %v5058
    %v5060 = vpop.xlane.xlu0 %5059
    %v5061 = vrcp.pop %v5054
    %v5062 = vrcp.pop %v5057
    %v5063 = vrcp.pop %v5060
    %v5064 = vmul.f32 %v5047, %v5061
    %v5065 = vmul.f32 %v5049, %v5062
    %v5066 = vmul.f32 %v5051, %v5063
    %5067 = vrot.lane.b32.xlu0 %v4574, 112
    %v5068 = vpop.permute.xlu0 %5067
    %5069 = vrot.lane.b32.xlu0 %v4576, 112
    %v5070 = vpop.permute.xlu0 %5069
    %5071 = vrot.lane.b32.xlu0 %v4575, 112
    %v5072 = vpop.permute.xlu0 %5071
    %v5076 = vsel %vm606, %v5064, 0
    %v5079 = vsel %vm606, %v5065, 0
    %v5082 = vsel %vm606, %v5066, 0
    %v5084 = vsel %vm650, %v5072, 0
    %5086 = vmatprep.subr.mxu0 0.0
    %5087 = vmatpush1.msra.mxu0 %v5068
    %5088 = vmatprep.subr.mxu0 0.0
    %5089 = vmatpush1.msra.mxu0 %v5070
    %5090 = vmatprep.subr.mxu0 0.0
    %5091 = vmatpush1.msra.mxu0 %v5084
    %5092 = vmatprep.subr.mxu0 0.0
    %5093 = vmatpush1.msra.mxu0 0.0
    %5094 = vmatprep.subr.mxu0 0.0
    %5095 = vmatpush1.msra.mxu0 0.0
    %5096 = vmatprep.subr.mxu0 0.0
    %5097 = vmatpush1.msra.mxu0 0.0
    %5098 = vmatprep.subr.mxu0 0.0
    %5099 = vmatpush1.msra.mxu0 0.0
    %5100 = vmatprep.subr.mxu0 0.0
    %5101 = vmatpush1.msra.mxu0 0.0
    %5102 = vmatprep.subr.mxu0 0.0
    %5103 = vmatpush1.msra.mxu0 0.0
    %5104 = vmatprep.subr.mxu0 0.0
    %5105 = vmatpush1.msra.mxu0 0.0
    %5106 = vmatprep.subr.mxu0 0.0
    %5107 = vmatpush1.msra.mxu0 0.0
    %5108 = vmatprep.subr.mxu0 0.0
    %5109 = vmatpush1.msra.mxu0 0.0
    %5110 = vmatprep.subr.mxu0 0.0
    %5111 = vmatpush1.msra.mxu0 0.0
    %5112 = vmatprep.subr.mxu0 0.0
    %5113 = vmatpush1.msra.mxu0 0.0
    %5114 = vmatprep.subr.mxu0 0.0
    %5115 = vmatpush1.msra.mxu0 0.0
    %5116 = vmatprep.subr.mxu0 0.0
    %5117 = vmatpush1.msra.mxu0 0.0
    %5118 = vmatprep.subr.mxu0 0.0
    %5119 = vmatpush1.msra.mxu0 0.0
    %5120 = vmatprep.subr.mxu0 0.0
    %5121 = vmatpush1.msra.mxu0 0.0
    %5122 = vmatprep.subr.mxu0 0.0
    %5123 = vmatpush1.msra.mxu0 0.0
    %5124 = vmatprep.subr.mxu0 0.0
    %5125 = vmatpush1.msra.mxu0 0.0
    %5126 = vmatprep.subr.mxu0 0.0
    %5127 = vmatpush1.msra.mxu0 0.0
    %5128 = vmatprep.subr.mxu0 0.0
    %5129 = vmatpush1.msra.mxu0 0.0
    %5130 = vmatprep.subr.mxu0 0.0
    %5131 = vmatpush1.msra.mxu0 0.0
    %5132 = vmatprep.subr.mxu0 0.0
    %5133 = vmatpush1.msra.mxu0 0.0
    %5134 = vmatprep.subr.mxu0 0.0
    %5135 = vmatpush1.msra.mxu0 0.0
    %5136 = vmatprep.subr.mxu0 0.0
    %5137 = vmatpush1.msra.mxu0 0.0
    %5138 = vmatprep.subr.mxu0 0.0
    %5139 = vmatpush1.msra.mxu0 0.0
    %5140 = vmatprep.subr.mxu0 0.0
    %5141 = vmatpush1.msra.mxu0 0.0
    %5142 = vmatprep.subr.mxu0 0.0
    %5143 = vmatpush1.msra.mxu0 0.0
    %5144 = vmatprep.subr.mxu0 0.0
    %5145 = vmatpush1.msra.mxu0 0.0
    %5146 = vmatprep.subr.mxu0 0.0
    %5147 = vmatpush1.msra.mxu0 0.0
    %5148 = vmatprep.subr.mxu0 0.0
    %5149 = vmatpush1.msra.mxu0 0.0
    %5150 = vmatprep.mubr.f32.mxu0 0.0
    %5151 = vmatmul.mubr.f32.gmra.mrb[0].mxu0 %v5076
    %v5152 = vpop.f32.mrb[0].mxu0
    %v5153 = vadd.f32 0.0, %v5152
    %v5154 = vpop.f32.mrb[0].mxu0
    %5155 = vmatprep.mubr.f32.mxu0 0.0
    %5156 = vmatmul.mubr.f32.gmra.mrb[0].mxu0 %v5079
    %v5157 = vpop.f32.mrb[0].mxu0
    %v5158 = vadd.f32 0.0, %v5157
    %v5159 = vpop.f32.mrb[0].mxu0
    %5160 = vmatprep.mubr.f32.mxu0 0.0
    %5161 = vmatmul.mubr.f32.gmra.mrb[0].mxu0 %v5082
    %v5162 = vpop.f32.mrb[0].mxu0
    %v5163 = vadd.f32 0.0, %v5162
    %v5164 = vpop.f32.mrb[0].mxu0
    %5165 = vdwg.mxu0
    %5169 = vrot.lane.b32.xlu0 %v5153, 16
    %v5170 = vpop.permute.xlu0 %5169
    %5171 = vrot.lane.b32.xlu0 %v5158, 16
    %v5172 = vpop.permute.xlu0 %5171
    %5173 = vrot.lane.b32.xlu0 %v5163, 16
    %v5174 = vpop.permute.xlu0 %5173
    %5178 = vst.msk [vmem:[#allocation2 + $0x11] sm:$0xff] %vm1247, %v5170
    %5179 = vst.msk [vmem:[#allocation2 + $0x19] sm:$0xff] %vm1247, %v5172
    %5180 = vst.msk [vmem:[#allocation2 + $0x21] sm:$0x1] %vm1250, %v5174
    %5181 = vrot.lane.b32.xlu0 %v4432, 104
    %v5182 = vpop.permute.xlu0 %5181
    %5183 = vrot.lane.b32.xlu0 %v4434, 104
    %v5184 = vpop.permute.xlu0 %5183
    %5185 = vrot.lane.b32.xlu0 %v4433, 104
    %v5186 = vpop.permute.xlu0 %5185
    %5187 = vrot.lane.b32.xlu0 %v4439, 104
    %v5188 = vpop.permute.xlu0 %5187
    %5189 = vrot.lane.b32.xlu0 %v4441, 104
    %v5190 = vpop.permute.xlu0 %5189
    %5191 = vrot.lane.b32.xlu0 %v4440, 104
    %v5192 = vpop.permute.xlu0 %5191
    %v5193 = vsel %vm504, %v5182, 0
    %v5195 = vsel %vm504, %v5184, 0
    %v5197 = vsel %vm504, %v5186, 0
    %v5199 = vsel %vm504, %v5188, 0
    %v5201 = vsel %vm504, %v5190, 0
    %v5203 = vsel %vm504, %v5192, 0
    %5205 = vmatprep.subr.mxu0 0.0
    %5206 = vmatpush1.xpose.msra.mxu0 %v5199
    %5207 = vmatprep.subr.mxu0 0.0
    %5208 = vmatpush1.xpose.msra.mxu0 %v5201
    %5209 = vmatprep.subr.mxu0 0.0
    %5210 = vmatpush1.xpose.msra.mxu0 %v5203
    %5211 = vmatprep.subr.mxu0 0.0
    %5212 = vmatpush1.xpose.msra.mxu0 0.0
    %5213 = vmatprep.subr.mxu0 0.0
    %5214 = vmatpush1.xpose.msra.mxu0 0.0
    %5215 = vmatprep.subr.mxu0 0.0
    %5216 = vmatpush1.xpose.msra.mxu0 0.0
    %5217 = vmatprep.subr.mxu0 0.0
    %5218 = vmatpush1.xpose.msra.mxu0 0.0
    %5219 = vmatprep.subr.mxu0 0.0
    %5220 = vmatpush1.xpose.msra.mxu0 0.0
    %5221 = vmatprep.subr.mxu0 0.0
    %5222 = vmatpush1.xpose.msra.mxu0 0.0
    %5223 = vmatprep.subr.mxu0 0.0
    %5224 = vmatpush1.xpose.msra.mxu0 0.0
    %5225 = vmatprep.subr.mxu0 0.0
    %5226 = vmatpush1.xpose.msra.mxu0 0.0
    %5227 = vmatprep.subr.mxu0 0.0
    %5228 = vmatpush1.xpose.msra.mxu0 0.0
    %5229 = vmatprep.subr.mxu0 0.0
    %5230 = vmatpush1.xpose.msra.mxu0 0.0
    %5231 = vmatprep.subr.mxu0 0.0
    %5232 = vmatpush1.xpose.msra.mxu0 0.0
    %5233 = vmatprep.subr.mxu0 0.0
    %5234 = vmatpush1.xpose.msra.mxu0 0.0
    %5235 = vmatprep.subr.mxu0 0.0
    %5236 = vmatpush1.xpose.msra.mxu0 0.0
    %5237 = vmatprep.subr.mxu0 0.0
    %5238 = vmatpush1.xpose.msra.mxu0 0.0
    %5239 = vmatprep.subr.mxu0 0.0
    %5240 = vmatpush1.xpose.msra.mxu0 0.0
    %5241 = vmatprep.subr.mxu0 0.0
    %5242 = vmatpush1.xpose.msra.mxu0 0.0
    %5243 = vmatprep.subr.mxu0 0.0
    %5244 = vmatpush1.xpose.msra.mxu0 0.0
    %5245 = vmatprep.subr.mxu0 0.0
    %5246 = vmatpush1.xpose.msra.mxu0 0.0
    %5247 = vmatprep.subr.mxu0 0.0
    %5248 = vmatpush1.xpose.msra.mxu0 0.0
    %5249 = vmatprep.subr.mxu0 0.0
    %5250 = vmatpush1.xpose.msra.mxu0 0.0
    %5251 = vmatprep.subr.mxu0 0.0
    %5252 = vmatpush1.xpose.msra.mxu0 0.0
    %5253 = vmatprep.subr.mxu0 0.0
    %5254 = vmatpush1.xpose.msra.mxu0 0.0
    %5255 = vmatprep.subr.mxu0 0.0
    %5256 = vmatpush1.xpose.msra.mxu0 0.0
    %5257 = vmatprep.subr.mxu0 0.0
    %5258 = vmatpush1.xpose.msra.mxu0 0.0
    %5259 = vmatprep.subr.mxu0 0.0
    %5260 = vmatpush1.xpose.msra.mxu0 0.0
    %5261 = vmatprep.subr.mxu0 0.0
    %5262 = vmatpush1.xpose.msra.mxu0 0.0
    %5263 = vmatprep.subr.mxu0 0.0
    %5264 = vmatpush1.xpose.msra.mxu0 0.0
    %5265 = vmatprep.subr.mxu0 0.0
    %5266 = vmatpush1.xpose.msra.mxu0 0.0
    %5267 = vmatprep.subr.mxu0 0.0
    %5268 = vmatpush1.xpose.msra.mxu0 0.0
    %5269 = vmatprep.mubr.f32.mxu0 0.0
    %5270 = vmatmul.mubr.f32.gmra.mrb[0].mxu0 %v5193
    %v5271 = vpop.f32.mrb[0].mxu0
    %v5272 = vadd.f32 0.0, %v5271
    %v5273 = vpop.f32.mrb[0].mxu0
    %5274 = vmatprep.mubr.f32.mxu0 0.0
    %5275 = vmatmul.mubr.f32.gmra.mrb[0].mxu0 %v5195
    %v5276 = vpop.f32.mrb[0].mxu0
    %v5277 = vadd.f32 0.0, %v5276
    %v5278 = vpop.f32.mrb[0].mxu0
    %5279 = vmatprep.mubr.f32.mxu0 0.0
    %5280 = vmatmul.mubr.f32.gmra.mrb[0].mxu0 %v5197
    %v5281 = vpop.f32.mrb[0].mxu0
    %v5282 = vadd.f32 0.0, %v5281
    %v5283 = vpop.f32.mrb[0].mxu0
    %5284 = vdwg.mxu0
    %v5285 = vmul.f32 %v5272, 0.35355338
    %v5286 = vmul.f32 %v5277, 0.35355338
    %v5287 = vmul.f32 %v5282, 0.35355338
    %v5288 = vsel %vm606, %v5285, -inf
    %5289 = vmax.xlane.f32.xlu0 %v5288
    %v5290 = vpop.xlane.xlu0 %5289
    %v5291 = vsel %vm606, %v5286, -inf
    %5292 = vmax.xlane.f32.xlu0 %v5291
    %v5293 = vpop.xlane.xlu0 %5292
    %v5294 = vsel %vm613, %v5287, -inf
    %5295 = vmax.xlane.f32.xlu0 %v5294
    %v5296 = vpop.xlane.xlu0 %5295
    %v5297 = vsub.f32 %v5285, %v5290
    %v5298 = vsub.f32 %v5286, %v5293
    %v5299 = vsub.f32 %v5287, %v5296
    %v5300 = vmul.f32 %v5297, 1.442695
    %v5301 = vpow.pop %v5300
    %v5302 = vmul.f32 %v5298, 1.442695
    %v5303 = vpow.pop %v5302
    %v5304 = vmul.f32 %v5299, 1.442695
    %v5305 = vpow.pop %v5304
    %v5306 = vsel %vm606, %v5301, 0.0
    %5307 = vadd.xlane.f32.xlu0 %v5306
    %v5308 = vpop.xlane.xlu0 %5307
    %v5309 = vsel %vm606, %v5303, 0.0
    %5310 = vadd.xlane.f32.xlu0 %v5309
    %v5311 = vpop.xlane.xlu0 %5310
    %v5312 = vsel %vm613, %v5305, 0.0
    %5313 = vadd.xlane.f32.xlu0 %v5312
    %v5314 = vpop.xlane.xlu0 %5313
    %v5315 = vrcp.pop %v5308
    %v5316 = vrcp.pop %v5311
    %v5317 = vrcp.pop %v5314
    %v5318 = vmul.f32 %v5301, %v5315
    %v5319 = vmul.f32 %v5303, %v5316
    %v5320 = vmul.f32 %v5305, %v5317
    %5321 = vrot.lane.b32.xlu0 %v4574, 104
    %v5322 = vpop.permute.xlu0 %5321
    %5323 = vrot.lane.b32.xlu0 %v4576, 104
    %v5324 = vpop.permute.xlu0 %5323
    %5325 = vrot.lane.b32.xlu0 %v4575, 104
    %v5326 = vpop.permute.xlu0 %5325
    %v5330 = vsel %vm606, %v5318, 0
    %v5333 = vsel %vm606, %v5319, 0
    %v5336 = vsel %vm606, %v5320, 0
    %v5338 = vsel %vm650, %v5326, 0
    %5340 = vmatprep.subr.mxu0 0.0
    %5341 = vmatpush1.msra.mxu0 %v5322
    %5342 = vmatprep.subr.mxu0 0.0
    %5343 = vmatpush1.msra.mxu0 %v5324
    %5344 = vmatprep.subr.mxu0 0.0
    %5345 = vmatpush1.msra.mxu0 %v5338
    %5346 = vmatprep.subr.mxu0 0.0
    %5347 = vmatpush1.msra.mxu0 0.0
    %5348 = vmatprep.subr.mxu0 0.0
    %5349 = vmatpush1.msra.mxu0 0.0
    %5350 = vmatprep.subr.mxu0 0.0
    %5351 = vmatpush1.msra.mxu0 0.0
    %5352 = vmatprep.subr.mxu0 0.0
    %5353 = vmatpush1.msra.mxu0 0.0
    %5354 = vmatprep.subr.mxu0 0.0
    %5355 = vmatpush1.msra.mxu0 0.0
    %5356 = vmatprep.subr.mxu0 0.0
    %5357 = vmatpush1.msra.mxu0 0.0
    %5358 = vmatprep.subr.mxu0 0.0
    %5359 = vmatpush1.msra.mxu0 0.0
    %5360 = vmatprep.subr.mxu0 0.0
    %5361 = vmatpush1.msra.mxu0 0.0
    %5362 = vmatprep.subr.mxu0 0.0
    %5363 = vmatpush1.msra.mxu0 0.0
    %5364 = vmatprep.subr.mxu0 0.0
    %5365 = vmatpush1.msra.mxu0 0.0
    %5366 = vmatprep.subr.mxu0 0.0
    %5367 = vmatpush1.msra.mxu0 0.0
    %5368 = vmatprep.subr.mxu0 0.0
    %5369 = vmatpush1.msra.mxu0 0.0
    %5370 = vmatprep.subr.mxu0 0.0
    %5371 = vmatpush1.msra.mxu0 0.0
    %5372 = vmatprep.subr.mxu0 0.0
    %5373 = vmatpush1.msra.mxu0 0.0
    %5374 = vmatprep.subr.mxu0 0.0
    %5375 = vmatpush1.msra.mxu0 0.0
    %5376 = vmatprep.subr.mxu0 0.0
    %5377 = vmatpush1.msra.mxu0 0.0
    %5378 = vmatprep.subr.mxu0 0.0
    %5379 = vmatpush1.msra.mxu0 0.0
    %5380 = vmatprep.subr.mxu0 0.0
    %5381 = vmatpush1.msra.mxu0 0.0
    %5382 = vmatprep.subr.mxu0 0.0
    %5383 = vmatpush1.msra.mxu0 0.0
    %5384 = vmatprep.subr.mxu0 0.0
    %5385 = vmatpush1.msra.mxu0 0.0
    %5386 = vmatprep.subr.mxu0 0.0
    %5387 = vmatpush1.msra.mxu0 0.0
    %5388 = vmatprep.subr.mxu0 0.0
    %5389 = vmatpush1.msra.mxu0 0.0
    %5390 = vmatprep.subr.mxu0 0.0
    %5391 = vmatpush1.msra.mxu0 0.0
    %5392 = vmatprep.subr.mxu0 0.0
    %5393 = vmatpush1.msra.mxu0 0.0
    %5394 = vmatprep.subr.mxu0 0.0
    %5395 = vmatpush1.msra.mxu0 0.0
    %5396 = vmatprep.subr.mxu0 0.0
    %5397 = vmatpush1.msra.mxu0 0.0
    %5398 = vmatprep.subr.mxu0 0.0
    %5399 = vmatpush1.msra.mxu0 0.0
    %5400 = vmatprep.subr.mxu0 0.0
    %5401 = vmatpush1.msra.mxu0 0.0
    %5402 = vmatprep.subr.mxu0 0.0
    %5403 = vmatpush1.msra.mxu0 0.0
    %5404 = vmatprep.mubr.f32.mxu0 0.0
    %5405 = vmatmul.mubr.f32.gmra.mrb[0].mxu0 %v5330
    %v5406 = vpop.f32.mrb[0].mxu0
    %v5407 = vadd.f32 0.0, %v5406
    %v5408 = vpop.f32.mrb[0].mxu0
    %5409 = vmatprep.mubr.f32.mxu0 0.0
    %5410 = vmatmul.mubr.f32.gmra.mrb[0].mxu0 %v5333
    %v5411 = vpop.f32.mrb[0].mxu0
    %v5412 = vadd.f32 0.0, %v5411
    %v5413 = vpop.f32.mrb[0].mxu0
    %5414 = vmatprep.mubr.f32.mxu0 0.0
    %5415 = vmatmul.mubr.f32.gmra.mrb[0].mxu0 %v5336
    %v5416 = vpop.f32.mrb[0].mxu0
    %v5417 = vadd.f32 0.0, %v5416
    %v5418 = vpop.f32.mrb[0].mxu0
    %5419 = vdwg.mxu0
    %5423 = vrot.lane.b32.xlu0 %v5407, 24
    %v5424 = vpop.permute.xlu0 %5423
    %5425 = vrot.lane.b32.xlu0 %v5412, 24
    %v5426 = vpop.permute.xlu0 %5425
    %5427 = vrot.lane.b32.xlu0 %v5417, 24
    %v5428 = vpop.permute.xlu0 %5427
    %5432 = vst.msk [vmem:[#allocation2 + $0x11] sm:$0xff] %vm1503, %v5424
    %5433 = vst.msk [vmem:[#allocation2 + $0x19] sm:$0xff] %vm1503, %v5426
    %5434 = vst.msk [vmem:[#allocation2 + $0x21] sm:$0x1] %vm1506, %v5428
    %v5435 = vld [vmem:[#allocation2] sm:$0xff]
    %v5436 = vld [vmem:[#allocation2 + $0x8] sm:$0xff]
    %v5437 = vld [vmem:[#allocation2 + $0x10] sm:$0xff]
    %v5438 = vld [vmem:[#allocation2 + $0x18] sm:$0xff]
    %v5439 = vld [vmem:[#allocation2 + $0x20] sm:$0x3]
    %s5440 = scalar_lea.vmem %s5, 224
    %v5441 = vld [vmem:[%s5440] sm:$0xff]
    %v5442 = vld [vmem:[%s5440 + $0x8] sm:$0xff]
    %v5443 = vld [vmem:[%s5440 + $0x10] sm:$0xff]
    %v5444 = vld [vmem:[%s5440 + $0x18] sm:$0xff]
    %s5445 = scalar_lea.vmem %s6, 7
    %v5446 = vld [vmem:[%s5445] sm:$0x1]
    %v5448 = vlaneseq
    %v5449 = vshrl.u32 %v5448, 7
    %v5450 = vsub.s32 0, %v5449
    %v5451 = vrot.slane %v5446, %v5450
    %v5454 = vsel %vm170, %v5435, 0
    %v5457 = vsel %vm170, %v5436, 0
    %v5460 = vsel %vm170, %v5437, 0
    %v5463 = vsel %vm170, %v5438, 0
    %v5466 = vsel %vm170, %v5439, 0
    %5468 = vmatprep.subr.mxu0 0.0
    %5469 = vmatpush1.msra.mxu0 %v5441
    %5470 = vmatprep.subr.mxu0 0.0
    %5471 = vmatpush1.msra.mxu0 %v5442
    %5472 = vmatprep.subr.mxu0 0.0
    %5473 = vmatpush1.msra.mxu0 %v5443
    %5474 = vmatprep.subr.mxu0 0.0
    %5475 = vmatpush1.msra.mxu0 %v5444
    %5476 = vmatprep.subr.mxu0 0.0
    %5477 = vmatpush1.msra.mxu0 0.0
    %5478 = vmatprep.subr.mxu0 0.0
    %5479 = vmatpush1.msra.mxu0 0.0
    %5480 = vmatprep.subr.mxu0 0.0
    %5481 = vmatpush1.msra.mxu0 0.0
    %5482 = vmatprep.subr.mxu0 0.0
    %5483 = vmatpush1.msra.mxu0 0.0
    %5484 = vmatprep.subr.mxu0 0.0
    %5485 = vmatpush1.msra.mxu0 0.0
    %5486 = vmatprep.subr.mxu0 0.0
    %5487 = vmatpush1.msra.mxu0 0.0
    %5488 = vmatprep.subr.mxu0 0.0
    %5489 = vmatpush1.msra.mxu0 0.0
    %5490 = vmatprep.subr.mxu0 0.0
    %5491 = vmatpush1.msra.mxu0 0.0
    %5492 = vmatprep.subr.mxu0 0.0
    %5493 = vmatpush1.msra.mxu0 0.0
    %5494 = vmatprep.subr.mxu0 0.0
    %5495 = vmatpush1.msra.mxu0 0.0
    %5496 = vmatprep.subr.mxu0 0.0
    %5497 = vmatpush1.msra.mxu0 0.0
    %5498 = vmatprep.subr.mxu0 0.0
    %5499 = vmatpush1.msra.mxu0 0.0
    %5500 = vmatprep.subr.mxu0 0.0
    %5501 = vmatpush1.msra.mxu0 0.0
    %5502 = vmatprep.subr.mxu0 0.0
    %5503 = vmatpush1.msra.mxu0 0.0
    %5504 = vmatprep.subr.mxu0 0.0
    %5505 = vmatpush1.msra.mxu0 0.0
    %5506 = vmatprep.subr.mxu0 0.0
    %5507 = vmatpush1.msra.mxu0 0.0
    %5508 = vmatprep.subr.mxu0 0.0
    %5509 = vmatpush1.msra.mxu0 0.0
    %5510 = vmatprep.subr.mxu0 0.0
    %5511 = vmatpush1.msra.mxu0 0.0
    %5512 = vmatprep.subr.mxu0 0.0
    %5513 = vmatpush1.msra.mxu0 0.0
    %5514 = vmatprep.subr.mxu0 0.0
    %5515 = vmatpush1.msra.mxu0 0.0
    %5516 = vmatprep.subr.mxu0 0.0
    %5517 = vmatpush1.msra.mxu0 0.0
    %5518 = vmatprep.subr.mxu0 0.0
    %5519 = vmatpush1.msra.mxu0 0.0
    %5520 = vmatprep.subr.mxu0 0.0
    %5521 = vmatpush1.msra.mxu0 0.0
    %5522 = vmatprep.subr.mxu0 0.0
    %5523 = vmatpush1.msra.mxu0 0.0
    %5524 = vmatprep.subr.mxu0 0.0
    %5525 = vmatpush1.msra.mxu0 0.0
    %5526 = vmatprep.subr.mxu0 0.0
    %5527 = vmatpush1.msra.mxu0 0.0
    %5528 = vmatprep.subr.mxu0 0.0
    %5529 = vmatpush1.msra.mxu0 0.0
    %5530 = vmatprep.subr.mxu0 0.0
    %5531 = vmatpush1.msra.mxu0 0.0
    %5532 = vmatprep.mubr.f32.mxu0 0.0
    %5533 = vmatmul.mubr.f32.gmra.mrb[0].mxu0 %v5454
    %v5534 = vpop.f32.mrb[0].mxu0
    %v5535 = vadd.f32 %v5451, %v5534
    %v5536 = vpop.f32.mrb[0].mxu0
    %5537 = vmatprep.mubr.f32.mxu0 0.0
    %5538 = vmatmul.mubr.f32.gmra.mrb[0].mxu0 %v5457
    %v5539 = vpop.f32.mrb[0].mxu0
    %v5540 = vadd.f32 %v5451, %v5539
    %v5541 = vpop.f32.mrb[0].mxu0
    %5542 = vmatprep.mubr.f32.mxu0 0.0
    %5543 = vmatmul.mubr.f32.gmra.mrb[0].mxu0 %v5460
    %v5544 = vpop.f32.mrb[0].mxu0
    %v5545 = vadd.f32 %v5451, %v5544
    %v5546 = vpop.f32.mrb[0].mxu0
    %5547 = vmatprep.mubr.f32.mxu0 0.0
    %5548 = vmatmul.mubr.f32.gmra.mrb[0].mxu0 %v5463
    %v5549 = vpop.f32.mrb[0].mxu0
    %v5550 = vadd.f32 %v5451, %v5549
    %v5551 = vpop.f32.mrb[0].mxu0
    %5552 = vmatprep.mubr.f32.mxu0 0.0
    %5553 = vmatmul.mubr.f32.gmra.mrb[0].mxu0 %v5466
    %v5554 = vpop.f32.mrb[0].mxu0
    %v5555 = vadd.f32 %v5451, %v5554
    %v5556 = vpop.f32.mrb[0].mxu0
    %5557 = vdwg.mxu0
    %v5558 = vadd.f32 %v3106, %v5535
    %v5559 = vadd.f32 %v3107, %v5540
    %v5560 = vadd.f32 %v3108, %v5545
    %v5561 = vadd.f32 %v3109, %v5550
    %v5562 = vadd.f32 %v3110, %v5555
    %s5563 = scalar_lea.vmem %s9, 4
    %v5564 = vld [vmem:[%s5563] sm:$0x1]
    %s5565 = scalar_lea.vmem %s9, 5
    %v5566 = vld [vmem:[%s5565] sm:$0x1]
    %v5567 = vsel %vm170, %v5558, 0.0
    %5568 = vadd.xlane.f32.xlu0 %v5567
    %v5569 = vpop.xlane.xlu0 %5568
    %v5570 = vsel %vm170, %v5559, 0.0
    %5571 = vadd.xlane.f32.xlu0 %v5570
    %v5572 = vpop.xlane.xlu0 %5571
    %v5573 = vsel %vm170, %v5560, 0.0
    %5574 = vadd.xlane.f32.xlu0 %v5573
    %v5575 = vpop.xlane.xlu0 %5574
    %v5576 = vsel %vm170, %v5561, 0.0
    %5577 = vadd.xlane.f32.xlu0 %v5576
    %v5578 = vpop.xlane.xlu0 %5577
    %v5579 = vsel %vm2659, %v5562, 0.0
    %5580 = vadd.xlane.f32.xlu0 %v5579
    %v5581 = vpop.xlane.xlu0 %5580
    %v5582 = vmul.f32 %v5569, %v2663
    %v5583 = vmul.f32 %v5572, %v2663
    %v5584 = vmul.f32 %v5575, %v2663
    %v5585 = vmul.f32 %v5578, %v2663
    %v5586 = vmul.f32 %v5581, %v2663
    %v5587 = vsub.f32 %v5558, %v5582
    %v5588 = vsub.f32 %v5559, %v5583
    %v5589 = vsub.f32 %v5560, %v5584
    %v5590 = vsub.f32 %v5561, %v5585
    %v5591 = vsub.f32 %v5562, %v5586
    %v5592 = vmul.f32 %v5587, %v5587
    %v5593 = vmul.f32 %v5588, %v5588
    %v5594 = vmul.f32 %v5589, %v5589
    %v5595 = vmul.f32 %v5590, %v5590
    %v5596 = vmul.f32 %v5591, %v5591
    %v5597 = vsel %vm170, %v5592, 0.0
    %5598 = vadd.xlane.f32.xlu0 %v5597
    %v5599 = vpop.xlane.xlu0 %5598
    %v5600 = vsel %vm170, %v5593, 0.0
    %5601 = vadd.xlane.f32.xlu0 %v5600
    %v5602 = vpop.xlane.xlu0 %5601
    %v5603 = vsel %vm170, %v5594, 0.0
    %5604 = vadd.xlane.f32.xlu0 %v5603
    %v5605 = vpop.xlane.xlu0 %5604
    %v5606 = vsel %vm170, %v5595, 0.0
    %5607 = vadd.xlane.f32.xlu0 %v5606
    %v5608 = vpop.xlane.xlu0 %5607
    %v5609 = vsel %vm2659, %v5596, 0.0
    %5610 = vadd.xlane.f32.xlu0 %v5609
    %v5611 = vpop.xlane.xlu0 %5610
    %v5612 = vmul.f32 %v5599, %v2663
    %v5613 = vmul.f32 %v5602, %v2663
    %v5614 = vmul.f32 %v5605, %v2663
    %v5615 = vmul.f32 %v5608, %v2663
    %v5616 = vmul.f32 %v5611, %v2663
    %v5617 = vadd.f32 %v5612, 1e-05
    %v5618 = vadd.f32 %v5613, 1e-05
    %v5619 = vadd.f32 %v5614, 1e-05
    %v5620 = vadd.f32 %v5615, 1e-05
    %v5621 = vadd.f32 %v5616, 1e-05
    %v5622 = vrsqrt.pop %v5617
    %v5623 = vrsqrt.pop %v5618
    %v5624 = vrsqrt.pop %v5619
    %v5625 = vrsqrt.pop %v5620
    %v5626 = vrsqrt.pop %v5621
    %v5627 = vmul.f32 %v5587, %v5622
    %v5628 = vmul.f32 %v5588, %v5623
    %v5629 = vmul.f32 %v5589, %v5624
    %v5630 = vmul.f32 %v5590, %v5625
    %v5631 = vmul.f32 %v5591, %v5626
    %v5633 = vlaneseq
    %v5634 = vshrl.u32 %v5633, 7
    %v5635 = vsub.s32 0, %v5634
    %v5636 = vrot.slane %v5564, %v5635
    %v5638 = vmul.f32 %v5627, %v5636
    %v5639 = vmul.f32 %v5628, %v5636
    %v5640 = vmul.f32 %v5629, %v5636
    %v5641 = vmul.f32 %v5630, %v5636
    %v5642 = vmul.f32 %v5631, %v5636
    %v5644 = vlaneseq
    %v5645 = vshrl.u32 %v5644, 7
    %v5646 = vsub.s32 0, %v5645
    %v5647 = vrot.slane %v5566, %v5646
    %v5649 = vadd.f32 %v5638, %v5647
    %v5650 = vadd.f32 %v5639, %v5647
    %v5651 = vadd.f32 %v5640, %v5647
    %v5652 = vadd.f32 %v5641, %v5647
    %v5653 = vadd.f32 %v5642, %v5647
    %s5654 = scalar_lea.vmem %s7, 64
    %v5655 = vld [vmem:[%s5654] sm:$0xff]
    %v5656 = vld [vmem:[%s5654 + $0x8] sm:$0xff]
    %v5657 = vld [vmem:[%s5654 + $0x10] sm:$0xff]
    %v5658 = vld [vmem:[%s5654 + $0x18] sm:$0xff]
    %s5659 = scalar_lea.vmem %s8, 2
    %v5660 = vld [vmem:[%s5659] sm:$0x1]
    %v5662 = vlaneseq
    %v5663 = vshrl.u32 %v5662, 7
    %v5664 = vsub.s32 0, %v5663
    %v5665 = vrot.slane %v5660, %v5664
    %v5668 = vsel %vm170, %v5649, 0
    %v5671 = vsel %vm170, %v5650, 0
    %v5674 = vsel %vm170, %v5651, 0
    %v5677 = vsel %vm170, %v5652, 0
    %v5680 = vsel %vm170, %v5653, 0
    %5682 = vmatprep.subr.mxu0 0.0
    %5683 = vmatpush1.msra.mxu0 %v5655
    %5684 = vmatprep.subr.mxu0 0.0
    %5685 = vmatpush1.msra.mxu0 %v5656
    %5686 = vmatprep.subr.mxu0 0.0
    %5687 = vmatpush1.msra.mxu0 %v5657
    %5688 = vmatprep.subr.mxu0 0.0
    %5689 = vmatpush1.msra.mxu0 %v5658
    %5690 = vmatprep.subr.mxu0 0.0
    %5691 = vmatpush1.msra.mxu0 0.0
    %5692 = vmatprep.subr.mxu0 0.0
    %5693 = vmatpush1.msra.mxu0 0.0
    %5694 = vmatprep.subr.mxu0 0.0
    %5695 = vmatpush1.msra.mxu0 0.0
    %5696 = vmatprep.subr.mxu0 0.0
    %5697 = vmatpush1.msra.mxu0 0.0
    %5698 = vmatprep.subr.mxu0 0.0
    %5699 = vmatpush1.msra.mxu0 0.0
    %5700 = vmatprep.subr.mxu0 0.0
    %5701 = vmatpush1.msra.mxu0 0.0
    %5702 = vmatprep.subr.mxu0 0.0
    %5703 = vmatpush1.msra.mxu0 0.0
    %5704 = vmatprep.subr.mxu0 0.0
    %5705 = vmatpush1.msra.mxu0 0.0
    %5706 = vmatprep.subr.mxu0 0.0
    %5707 = vmatpush1.msra.mxu0 0.0
    %5708 = vmatprep.subr.mxu0 0.0
    %5709 = vmatpush1.msra.mxu0 0.0
    %5710 = vmatprep.subr.mxu0 0.0
    %5711 = vmatpush1.msra.mxu0 0.0
    %5712 = vmatprep.subr.mxu0 0.0
    %5713 = vmatpush1.msra.mxu0 0.0
    %5714 = vmatprep.subr.mxu0 0.0
    %5715 = vmatpush1.msra.mxu0 0.0
    %5716 = vmatprep.subr.mxu0 0.0
    %5717 = vmatpush1.msra.mxu0 0.0
    %5718 = vmatprep.subr.mxu0 0.0
    %5719 = vmatpush1.msra.mxu0 0.0
    %5720 = vmatprep.subr.mxu0 0.0
    %5721 = vmatpush1.msra.mxu0 0.0
    %5722 = vmatprep.subr.mxu0 0.0
    %5723 = vmatpush1.msra.mxu0 0.0
    %5724 = vmatprep.subr.mxu0 0.0
    %5725 = vmatpush1.msra.mxu0 0.0
    %5726 = vmatprep.subr.mxu0 0.0
    %5727 = vmatpush1.msra.mxu0 0.0
    %5728 = vmatprep.subr.mxu0 0.0
    %5729 = vmatpush1.msra.mxu0 0.0
    %5730 = vmatprep.subr.mxu0 0.0
    %5731 = vmatpush1.msra.mxu0 0.0
    %5732 = vmatprep.subr.mxu0 0.0
    %5733 = vmatpush1.msra.mxu0 0.0
    %5734 = vmatprep.subr.mxu0 0.0
    %5735 = vmatpush1.msra.mxu0 0.0
    %5736 = vmatprep.subr.mxu0 0.0
    %5737 = vmatpush1.msra.mxu0 0.0
    %5738 = vmatprep.subr.mxu0 0.0
    %5739 = vmatpush1.msra.mxu0 0.0
    %5740 = vmatprep.subr.mxu0 0.0
    %5741 = vmatpush1.msra.mxu0 0.0
    %5742 = vmatprep.subr.mxu0 0.0
    %5743 = vmatpush1.msra.mxu0 0.0
    %5744 = vmatprep.subr.mxu0 0.0
    %5745 = vmatpush1.msra.mxu0 0.0
    %5746 = vmatprep.mubr.f32.mxu0 0.0
    %5747 = vmatmul.mubr.f32.gmra.mrb[0].mxu0 %v5668
    %v5748 = vpop.f32.mrb[0].mxu0
    %v5749 = vadd.f32 %v5665, %v5748
    %v5750 = vpop.f32.mrb[0].mxu0
    %5751 = vmatprep.mubr.f32.mxu0 0.0
    %5752 = vmatmul.mubr.f32.gmra.mrb[0].mxu0 %v5671
    %v5753 = vpop.f32.mrb[0].mxu0
    %v5754 = vadd.f32 %v5665, %v5753
    %v5755 = vpop.f32.mrb[0].mxu0
    %5756 = vmatprep.mubr.f32.mxu0 0.0
    %5757 = vmatmul.mubr.f32.gmra.mrb[0].mxu0 %v5674
    %v5758 = vpop.f32.mrb[0].mxu0
    %v5759 = vadd.f32 %v5665, %v5758
    %v5760 = vpop.f32.mrb[0].mxu0
    %5761 = vmatprep.mubr.f32.mxu0 0.0
    %5762 = vmatmul.mubr.f32.gmra.mrb[0].mxu0 %v5677
    %v5763 = vpop.f32.mrb[0].mxu0
    %v5764 = vadd.f32 %v5665, %v5763
    %v5765 = vpop.f32.mrb[0].mxu0
    %5766 = vmatprep.mubr.f32.mxu0 0.0
    %5767 = vmatmul.mubr.f32.gmra.mrb[0].mxu0 %v5680
    %v5768 = vpop.f32.mrb[0].mxu0
    %v5769 = vadd.f32 %v5665, %v5768
    %v5770 = vpop.f32.mrb[0].mxu0
    %5771 = vdwg.mxu0
    %v5772 = vmul.f32 %v5749, %v5749
    %v5773 = vmul.f32 %v5754, %v5754
    %v5774 = vmul.f32 %v5759, %v5759
    %v5775 = vmul.f32 %v5764, %v5764
    %v5776 = vmul.f32 %v5769, %v5769
    %v5777 = vmul.f32 %v5749, %v5772
    %v5778 = vmul.f32 %v5754, %v5773
    %v5779 = vmul.f32 %v5759, %v5774
    %v5780 = vmul.f32 %v5764, %v5775
    %v5781 = vmul.f32 %v5769, %v5776
    %v5782 = vmul.f32 %v5777, 0.044715
    %v5783 = vmul.f32 %v5778, 0.044715
    %v5784 = vmul.f32 %v5779, 0.044715
    %v5785 = vmul.f32 %v5780, 0.044715
    %v5786 = vmul.f32 %v5781, 0.044715
    %v5787 = vadd.f32 %v5749, %v5782
    %v5788 = vadd.f32 %v5754, %v5783
    %v5789 = vadd.f32 %v5759, %v5784
    %v5790 = vadd.f32 %v5764, %v5785
    %v5791 = vadd.f32 %v5769, %v5786
    %v5792 = vmul.f32 %v5787, 0.7978846
    %v5793 = vmul.f32 %v5788, 0.7978846
    %v5794 = vmul.f32 %v5789, 0.7978846
    %v5795 = vmul.f32 %v5790, 0.7978846
    %v5796 = vmul.f32 %v5791, 0.7978846
    %v5797 = vtanh.pop %v5792
    %v5798 = vtanh.pop %v5793
    %v5799 = vtanh.pop %v5794
    %v5800 = vtanh.pop %v5795
    %v5801 = vtanh.pop %v5796
    %v5802 = vadd.f32 %v5797, 1.0
    %v5803 = vadd.f32 %v5798, 1.0
    %v5804 = vadd.f32 %v5799, 1.0
    %v5805 = vadd.f32 %v5800, 1.0
    %v5806 = vadd.f32 %v5801, 1.0
    %v5807 = vmul.f32 %v5802, 0.5
    %v5808 = vmul.f32 %v5803, 0.5
    %v5809 = vmul.f32 %v5804, 0.5
    %v5810 = vmul.f32 %v5805, 0.5
    %v5811 = vmul.f32 %v5806, 0.5
    %v5812 = vmul.f32 %v5749, %v5807
    %v5813 = vmul.f32 %v5754, %v5808
    %v5814 = vmul.f32 %v5759, %v5809
    %v5815 = vmul.f32 %v5764, %v5810
    %v5816 = vmul.f32 %v5769, %v5811
    %s5817 = scalar_lea.vmem %s7, 96
    %v5818 = vld [vmem:[%s5817] sm:$0xff]
    %v5819 = vld [vmem:[%s5817 + $0x8] sm:$0xff]
    %v5820 = vld [vmem:[%s5817 + $0x10] sm:$0xff]
    %v5821 = vld [vmem:[%s5817 + $0x18] sm:$0xff]
    %s5822 = scalar_lea.vmem %s8, 3
    %v5823 = vld [vmem:[%s5822] sm:$0x1]
    %v5825 = vlaneseq
    %v5826 = vshrl.u32 %v5825, 7
    %v5827 = vsub.s32 0, %v5826
    %v5828 = vrot.slane %v5823, %v5827
    %v5831 = vsel %vm170, %v5812, 0
    %v5834 = vsel %vm170, %v5813, 0
    %v5837 = vsel %vm170, %v5814, 0
    %v5840 = vsel %vm170, %v5815, 0
    %v5843 = vsel %vm170, %v5816, 0
    %5845 = vmatprep.subr.mxu0 0.0
    %5846 = vmatpush1.msra.mxu0 %v5818
    %5847 = vmatprep.subr.mxu0 0.0
    %5848 = vmatpush1.msra.mxu0 %v5819
    %5849 = vmatprep.subr.mxu0 0.0
    %5850 = vmatpush1.msra.mxu0 %v5820
    %5851 = vmatprep.subr.mxu0 0.0
    %5852 = vmatpush1.msra.mxu0 %v5821
    %5853 = vmatprep.subr.mxu0 0.0
    %5854 = vmatpush1.msra.mxu0 0.0
    %5855 = vmatprep.subr.mxu0 0.0
    %5856 = vmatpush1.msra.mxu0 0.0
    %5857 = vmatprep.subr.mxu0 0.0
    %5858 = vmatpush1.msra.mxu0 0.0
    %5859 = vmatprep.subr.mxu0 0.0
    %5860 = vmatpush1.msra.mxu0 0.0
    %5861 = vmatprep.subr.mxu0 0.0
    %5862 = vmatpush1.msra.mxu0 0.0
    %5863 = vmatprep.subr.mxu0 0.0
    %5864 = vmatpush1.msra.mxu0 0.0
    %5865 = vmatprep.subr.mxu0 0.0
    %5866 = vmatpush1.msra.mxu0 0.0
    %5867 = vmatprep.subr.mxu0 0.0
    %5868 = vmatpush1.msra.mxu0 0.0
    %5869 = vmatprep.subr.mxu0 0.0
    %5870 = vmatpush1.msra.mxu0 0.0
    %5871 = vmatprep.subr.mxu0 0.0
    %5872 = vmatpush1.msra.mxu0 0.0
    %5873 = vmatprep.subr.mxu0 0.0
    %5874 = vmatpush1.msra.mxu0 0.0
    %5875 = vmatprep.subr.mxu0 0.0
    %5876 = vmatpush1.msra.mxu0 0.0
    %5877 = vmatprep.subr.mxu0 0.0
    %5878 = vmatpush1.msra.mxu0 0.0
    %5879 = vmatprep.subr.mxu0 0.0
    %5880 = vmatpush1.msra.mxu0 0.0
    %5881 = vmatprep.subr.mxu0 0.0
    %5882 = vmatpush1.msra.mxu0 0.0
    %5883 = vmatprep.subr.mxu0 0.0
    %5884 = vmatpush1.msra.mxu0 0.0
    %5885 = vmatprep.subr.mxu0 0.0
    %5886 = vmatpush1.msra.mxu0 0.0
    %5887 = vmatprep.subr.mxu0 0.0
    %5888 = vmatpush1.msra.mxu0 0.0
    %5889 = vmatprep.subr.mxu0 0.0
    %5890 = vmatpush1.msra.mxu0 0.0
    %5891 = vmatprep.subr.mxu0 0.0
    %5892 = vmatpush1.msra.mxu0 0.0
    %5893 = vmatprep.subr.mxu0 0.0
    %5894 = vmatpush1.msra.mxu0 0.0
    %5895 = vmatprep.subr.mxu0 0.0
    %5896 = vmatpush1.msra.mxu0 0.0
    %5897 = vmatprep.subr.mxu0 0.0
    %5898 = vmatpush1.msra.mxu0 0.0
    %5899 = vmatprep.subr.mxu0 0.0
    %5900 = vmatpush1.msra.mxu0 0.0
    %5901 = vmatprep.subr.mxu0 0.0
    %5902 = vmatpush1.msra.mxu0 0.0
    %5903 = vmatprep.subr.mxu0 0.0
    %5904 = vmatpush1.msra.mxu0 0.0
    %5905 = vmatprep.subr.mxu0 0.0
    %5906 = vmatpush1.msra.mxu0 0.0
    %5907 = vmatprep.subr.mxu0 0.0
    %5908 = vmatpush1.msra.mxu0 0.0
    %5909 = vmatprep.mubr.f32.mxu0 0.0
    %5910 = vmatmul.mubr.f32.gmra.mrb[0].mxu0 %v5831
    %v5911 = vpop.f32.mrb[0].mxu0
    %v5912 = vadd.f32 %v5828, %v5911
    %v5913 = vpop.f32.mrb[0].mxu0
    %5914 = vmatprep.mubr.f32.mxu0 0.0
    %5915 = vmatmul.mubr.f32.gmra.mrb[0].mxu0 %v5834
    %v5916 = vpop.f32.mrb[0].mxu0
    %v5917 = vpop.f32.mrb[0].mxu0
    %5918 = vmatprep.mubr.f32.mxu0 0.0
    %5919 = vmatmul.mubr.f32.gmra.mrb[0].mxu0 %v5837
    %v5920 = vpop.f32.mrb[0].mxu0
    %v5921 = vadd.f32 %v5828, %v5920
    %v5922 = vpop.f32.mrb[0].mxu0
    %5923 = vmatprep.mubr.f32.mxu0 0.0
    %5924 = vmatmul.mubr.f32.gmra.mrb[0].mxu0 %v5840
    %v5925 = vpop.f32.mrb[0].mxu0
    %v5926 = vpop.f32.mrb[0].mxu0
    %5927 = vmatprep.mubr.f32.mxu0 0.0
    %5928 = vmatmul.mubr.f32.gmra.mrb[0].mxu0 %v5843
    %v5929 = vpop.f32.mrb[0].mxu0
    %v5930 = vpop.f32.mrb[0].mxu0
    %5931 = vdwg.mxu0
    %v5932 = vadd.f32 %v5649, %v5912
    %v5933 = vadd.f32 %v5651, %v5921
    %s5934 = scalar_lea.vmem %s9, 6
    %v5935 = vld [vmem:[%s5934] sm:$0x1]
    %s5936 = scalar_lea.vmem %s9, 7
    %v5937 = vld [vmem:[%s5936] sm:$0x1]
    %v5938 = vsel %vm170, %v5932, 0.0
    %5939 = vadd.xlane.f32.xlu0 %v5938
    %v5940 = vpop.xlane.xlu0 %5939
    %v5941 = vsel %vm170, %v5933, 0.0
    %5942 = vadd.xlane.f32.xlu0 %v5941
    %v5943 = vpop.xlane.xlu0 %5942
    %v5944 = vmul.f32 %v5940, %v2663
    %v5945 = vmul.f32 %v5943, %v2663
    %v5946 = vsub.f32 %v5932, %v5944
    %v5947 = vsub.f32 %v5933, %v5945
    %v5948 = vmul.f32 %v5946, %v5946
    %v5949 = vmul.f32 %v5947, %v5947
    %v5950 = vsel %vm170, %v5948, 0.0
    %5951 = vadd.xlane.f32.xlu0 %v5950
    %v5952 = vpop.xlane.xlu0 %5951
    %v5953 = vsel %vm170, %v5949, 0.0
    %5954 = vadd.xlane.f32.xlu0 %v5953
    %v5955 = vpop.xlane.xlu0 %5954
    %v5956 = vmul.f32 %v5952, %v2663
    %v5957 = vmul.f32 %v5955, %v2663
    %v5958 = vadd.f32 %v5956, 1e-05
    %v5959 = vadd.f32 %v5957, 1e-05
    %v5960 = vrsqrt.pop %v5958
    %v5961 = vrsqrt.pop %v5959
    %v5962 = vmul.f32 %v5946, %v5960
    %v5963 = vmul.f32 %v5947, %v5961
    %v5965 = vlaneseq
    %v5966 = vshrl.u32 %v5965, 7
    %v5967 = vsub.s32 0, %v5966
    %v5968 = vrot.slane %v5935, %v5967
    %v5970 = vmul.f32 %v5962, %v5968
    %v5971 = vmul.f32 %v5963, %v5968
    %v5973 = vlaneseq
    %v5974 = vshrl.u32 %v5973, 7
    %v5975 = vsub.s32 0, %v5974
    %v5976 = vrot.slane %v5937, %v5975
    %v5978 = vadd.f32 %v5970, %v5976
    %v5979 = vadd.f32 %v5971, %v5976
    %v5980 = vld [vmem:[%s10] sm:$0xff]
    %v5981 = vld [vmem:[%s10 + $0x8] sm:$0xff]
    %v5982 = vld [vmem:[%s10 + $0x10] sm:$0xff]
    %v5983 = vld [vmem:[%s10 + $0x18] sm:$0xff]
    %v5984 = vld [vmem:[%s11] sm:$0x1]
    %v5986 = vsel %vm170, %v5978, 0
    %5988 = vmatprep.subr.mxu0 0.0
    %5989 = vmatpush1.msra.mxu0 %v5980
    %5990 = vmatprep.subr.mxu0 0.0
    %5991 = vmatpush1.msra.mxu0 %v5981
    %5992 = vmatprep.subr.mxu0 0.0
    %5993 = vmatpush1.msra.mxu0 %v5982
    %5994 = vmatprep.subr.mxu0 0.0
    %5995 = vmatpush1.msra.mxu0 %v5983
    %5996 = vmatprep.subr.mxu0 0.0
    %5997 = vmatpush1.msra.mxu0 0.0
    %5998 = vmatprep.subr.mxu0 0.0
    %5999 = vmatpush1.msra.mxu0 0.0
    %6000 = vmatprep.subr.mxu0 0.0
    %6001 = vmatpush1.msra.mxu0 0.0
    %6002 = vmatprep.subr.mxu0 0.0
    %6003 = vmatpush1.msra.mxu0 0.0
    %6004 = vmatprep.subr.mxu0 0.0
    %6005 = vmatpush1.msra.mxu0 0.0
    %6006 = vmatprep.subr.mxu0 0.0
    %6007 = vmatpush1.msra.mxu0 0.0
    %6008 = vmatprep.subr.mxu0 0.0
    %6009 = vmatpush1.msra.mxu0 0.0
    %6010 = vmatprep.subr.mxu0 0.0
    %6011 = vmatpush1.msra.mxu0 0.0
    %6012 = vmatprep.subr.mxu0 0.0
    %6013 = vmatpush1.msra.mxu0 0.0
    %6014 = vmatprep.subr.mxu0 0.0
    %6015 = vmatpush1.msra.mxu0 0.0
    %6016 = vmatprep.subr.mxu0 0.0
    %6017 = vmatpush1.msra.mxu0 0.0
    %6018 = vmatprep.subr.mxu0 0.0
    %6019 = vmatpush1.msra.mxu0 0.0
    %6020 = vmatprep.subr.mxu0 0.0
    %6021 = vmatpush1.msra.mxu0 0.0
    %6022 = vmatprep.subr.mxu0 0.0
    %6023 = vmatpush1.msra.mxu0 0.0
    %6024 = vmatprep.subr.mxu0 0.0
    %6025 = vmatpush1.msra.mxu0 0.0
    %6026 = vmatprep.subr.mxu0 0.0
    %6027 = vmatpush1.msra.mxu0 0.0
    %6028 = vmatprep.subr.mxu0 0.0
    %6029 = vmatpush1.msra.mxu0 0.0
    %6030 = vmatprep.subr.mxu0 0.0
    %6031 = vmatpush1.msra.mxu0 0.0
    %6032 = vmatprep.subr.mxu0 0.0
    %6033 = vmatpush1.msra.mxu0 0.0
    %6034 = vmatprep.subr.mxu0 0.0
    %6035 = vmatpush1.msra.mxu0 0.0
    %6036 = vmatprep.subr.mxu0 0.0
    %6037 = vmatpush1.msra.mxu0 0.0
    %6038 = vmatprep.subr.mxu0 0.0
    %6039 = vmatpush1.msra.mxu0 0.0
    %6040 = vmatprep.subr.mxu0 0.0
    %6041 = vmatpush1.msra.mxu0 0.0
    %6042 = vmatprep.subr.mxu0 0.0
    %6043 = vmatpush1.msra.mxu0 0.0
    %6044 = vmatprep.subr.mxu0 0.0
    %6045 = vmatpush1.msra.mxu0 0.0
    %6046 = vmatprep.subr.mxu0 0.0
    %6047 = vmatpush1.msra.mxu0 0.0
    %6048 = vmatprep.subr.mxu0 0.0
    %6049 = vmatpush1.msra.mxu0 0.0
    %6050 = vmatprep.subr.mxu0 0.0
    %6051 = vmatpush1.msra.mxu0 0.0
    %6052 = vmatprep.mubr.f32.mxu0 0.0
    %6053 = vmatmul.mubr.f32.gmra.mrb[0].mxu0 %v5986
    %v6054 = vpop.f32.mrb[0].mxu0
    %v6055 = vadd.f32 %v5984, %v6054
    %v6056 = vpop.f32.mrb[0].mxu0
    %6057 = vdwg.mxu0
    %vm6058 = vcmask 73728
    %6059 = vst.msk [vmem:[#allocation3] sm:$0x1] %vm6058, %v6055
    %v6061 = vrot.slane %v5979, 1
    %v6062 = vsel %vm170, %v6061, 0
    %6064 = vmatprep.subr.mxu0 0.0
    %6065 = vmatpush1.msra.mxu0 %v5980
    %6066 = vmatprep.subr.mxu0 0.0
    %6067 = vmatpush1.msra.mxu0 %v5981
    %6068 = vmatprep.subr.mxu0 0.0
    %6069 = vmatpush1.msra.mxu0 %v5982
    %6070 = vmatprep.subr.mxu0 0.0
    %6071 = vmatpush1.msra.mxu0 %v5983
    %6072 = vmatprep.subr.mxu0 0.0
    %6073 = vmatpush1.msra.mxu0 0.0
    %6074 = vmatprep.subr.mxu0 0.0
    %6075 = vmatpush1.msra.mxu0 0.0
    %6076 = vmatprep.subr.mxu0 0.0
    %6077 = vmatpush1.msra.mxu0 0.0
    %6078 = vmatprep.subr.mxu0 0.0
    %6079 = vmatpush1.msra.mxu0 0.0
    %6080 = vmatprep.subr.mxu0 0.0
    %6081 = vmatpush1.msra.mxu0 0.0
    %6082 = vmatprep.subr.mxu0 0.0
    %6083 = vmatpush1.msra.mxu0 0.0
    %6084 = vmatprep.subr.mxu0 0.0
    %6085 = vmatpush1.msra.mxu0 0.0
    %6086 = vmatprep.subr.mxu0 0.0
    %6087 = vmatpush1.msra.mxu0 0.0
    %6088 = vmatprep.subr.mxu0 0.0
    %6089 = vmatpush1.msra.mxu0 0.0
    %6090 = vmatprep.subr.mxu0 0.0
    %6091 = vmatpush1.msra.mxu0 0.0
    %6092 = vmatprep.subr.mxu0 0.0
    %6093 = vmatpush1.msra.mxu0 0.0
    %6094 = vmatprep.subr.mxu0 0.0
    %6095 = vmatpush1.msra.mxu0 0.0
    %6096 = vmatprep.subr.mxu0 0.0
    %6097 = vmatpush1.msra.mxu0 0.0
    %6098 = vmatprep.subr.mxu0 0.0
    %6099 = vmatpush1.msra.mxu0 0.0
    %6100 = vmatprep.subr.mxu0 0.0
    %6101 = vmatpush1.msra.mxu0 0.0
    %6102 = vmatprep.subr.mxu0 0.0
    %6103 = vmatpush1.msra.mxu0 0.0
    %6104 = vmatprep.subr.mxu0 0.0
    %6105 = vmatpush1.msra.mxu0 0.0
    %6106 = vmatprep.subr.mxu0 0.0
    %6107 = vmatpush1.msra.mxu0 0.0
    %6108 = vmatprep.subr.mxu0 0.0
    %6109 = vmatpush1.msra.mxu0 0.0
    %6110 = vmatprep.subr.mxu0 0.0
    %6111 = vmatpush1.msra.mxu0 0.0
    %6112 = vmatprep.subr.mxu0 0.0
    %6113 = vmatpush1.msra.mxu0 0.0
    %6114 = vmatprep.subr.mxu0 0.0
    %6115 = vmatpush1.msra.mxu0 0.0
    %6116 = vmatprep.subr.mxu0 0.0
    %6117 = vmatpush1.msra.mxu0 0.0
    %6118 = vmatprep.subr.mxu0 0.0
    %6119 = vmatpush1.msra.mxu0 0.0
    %6120 = vmatprep.subr.mxu0 0.0
    %6121 = vmatpush1.msra.mxu0 0.0
    %6122 = vmatprep.subr.mxu0 0.0
    %6123 = vmatpush1.msra.mxu0 0.0
    %6124 = vmatprep.subr.mxu0 0.0
    %6125 = vmatpush1.msra.mxu0 0.0
    %6126 = vmatprep.subr.mxu0 0.0
    %6127 = vmatpush1.msra.mxu0 0.0
    %6128 = vmatprep.mubr.f32.mxu0 0.0
    %6129 = vmatmul.mubr.f32.gmra.mrb[0].mxu0 %v6062
    %v6130 = vpop.f32.mrb[0].mxu0
    %v6131 = vadd.f32 %v5984, %v6130
    %v6132 = vpop.f32.mrb[0].mxu0
    %6133 = vdwg.mxu0
    %6134 = vst.msk [vmem:[#allocation3 + $0x1] sm:$0x1] %vm6058, %v6131
    // Predicated region
    $region50: #{vit_lite_forward.1} parent=1 // pred_check
      _
    $region51: #{vit_lite_forward.1} parent=1 // pred_check_branch
      %6136 = sbr.rel (0) target = $region53
    $region52: #{vit_lite_forward.1} parent=1 // pred_region
      %s6138 = ssub.s32 32, 32
      %6139 = vsyncadd [#allocation4], %s6138
      %s6141 = sshll.u32 [#allocation3], 4
      %s6142 = int_to_ptr.vmem [resolvable:$true] %s6141
      %6144 = dma.vmem_to_hbm [thread:$0]  %s6142, 32, %s12, [#allocation4]
    $region53: #{vit_lite_forward.1} parent=1 // pred_fallthru
      _
    // Predicated region
    $region54: #{vit_lite_forward.1} parent=1 // pred_check
      _
    $region55: #{vit_lite_forward.1} parent=1 // pred_check_branch
      %6146 = sbr.rel (0) target = $region57
    $region56: #{vit_lite_forward.1} parent=1 // pred_region
      %6147 = dma.done [#allocation4], 32
    $region57: #{vit_lite_forward.1} parent=1 // pred_fallthru
      _
    %6148 = vsyncpa [#allocation4], 1

</llo_original>
